<compile_context>
chip_gen: v5e
topology: v5e:2x2
jax: 0.10.0
libtpu: 0.0.40
codegen_flags: <defaults>
</compile_context>

<pallas_src>
import functools
import math

import jax
import jax.numpy as jnp
from jax.experimental import pallas as pl
from jax.experimental.pallas import tpu as pltpu


def _round_up(x, m):
    return (x + m - 1) // m * m


# ------------------------------- Pallas kernels -------------------------------

def _make_dense_kernel(has_ln, has_residual, act, softmax_n, ln_eps):
    """Tiled matmul; fused LayerNorm prologue on A, fused bias/residual/
    activation/masked-softmax epilogue on the last K step."""

    def kernel(*refs):
        a_ref, b_ref, bias_ref = refs[0], refs[1], refs[2]
        idx = 3
        if has_ln:
            g_ref, beta_ref = refs[idx], refs[idx + 1]
            idx += 2
        if has_residual:
            res_ref = refs[idx]
            idx += 1
        o_ref, acc_ref = refs[idx], refs[idx + 1]

        @pl.when(pl.program_id(2) == 0)
        def _init():
            acc_ref[...] = jnp.zeros_like(acc_ref)

        a = a_ref[...]
        if has_ln:
            # whole (unpadded) feature dim lives in this single K tile
            a = a.astype(jnp.float32)
            mean = jnp.mean(a, axis=-1, keepdims=True)
            xc = a - mean
            var = jnp.mean(xc * xc, axis=-1, keepdims=True)
            a = xc * jax.lax.rsqrt(var + ln_eps) * g_ref[...] + beta_ref[...]
        a = a.astype(jnp.bfloat16)
        acc_ref[...] += jnp.dot(a, b_ref[...], preferred_element_type=jnp.float32)

        @pl.when(pl.program_id(2) == pl.num_programs(2) - 1)
        def _finalize():
            acc = acc_ref[...] + bias_ref[...]
            if has_residual:
                acc = acc + res_ref[...]
            if act == "gelu":
                c = 0.7978845608028654  # sqrt(2/pi); tanh-approx GELU
                acc = 0.5 * acc * (1.0 + jnp.tanh(c * (acc + 0.044715 * acc * acc * acc)))
            elif act == "relu":
                acc = jnp.maximum(acc, 0.0)
            if softmax_n is not None:
                col = jax.lax.broadcasted_iota(jnp.int32, acc.shape, 1)
                acc = jnp.where(col < softmax_n, acc, -1e30)
                m = jnp.max(acc, axis=-1, keepdims=True)
                e = jnp.exp(acc - m)
                acc = e / jnp.sum(e, axis=-1, keepdims=True)
            o_ref[...] = acc.astype(o_ref.dtype)

    return kernel


def _attention_kernel(q_ref, k_ref, v_ref, o_ref, *, scale, s_valid):
    # q/k/v: (B*H, S_pad, Dh).  Padded key tokens are masked out of the softmax.
    q = q_ref[...].astype(jnp.bfloat16)
    k = k_ref[...].astype(jnp.bfloat16)
    v = v_ref[...].astype(jnp.bfloat16)
    s = jnp.einsum("bqd,bkd->bqk", q, k, preferred_element_type=jnp.float32) * scale
    kidx = jax.lax.broadcasted_iota(jnp.int32, s.shape, 2)
    s = jnp.where(kidx < s_valid, s, -1e30)
    m = jnp.max(s, axis=-1, keepdims=True)
    e = jnp.exp(s - m)
    p = (e / jnp.sum(e, axis=-1, keepdims=True)).astype(jnp.bfloat16)
    o_ref[...] = jnp.einsum("bqk,bkd->bqd", p, v,
                            preferred_element_type=jnp.float32).astype(o_ref.dtype)


# ------------------------------ kernel wrappers --------------------------------

def apply_dense(x, dense, *, ln=None, residual=None, act="none", softmax_n=None,
                ln_eps=1e-6):
    """(optional LN(x)) @ W + b (+ residual) (+ act) (+ masked softmax), on MXU.

    `dense["w"]` is a pre-padded (Kp, Np) bf16 weight, `dense["bias"]` a padded
    (1, Np) f32 bias.  Returns the padded (Mp, Np) f32 result; padded weight
    columns are zero so padded activations feed forward exactly.
    """
    M, K = x.shape
    Kp, Np = dense["w"].shape
    if K > Kp:
        raise ValueError("activation feature dim larger than packed weight")
    Mp = _round_up(max(M, 8), 8)

    has_ln = ln is not None
    a = x.astype(jnp.float32 if has_ln else jnp.bfloat16)
    if (Mp, Kp) != (M, K):
        a = jnp.pad(a, ((0, Mp - M), (0, Kp - K)))

    # Tile sizes: 256-wide N/K tiles (MXU-native on v6e/v7x, fine on v5e);
    # M is tiny at this problem size so a single M tile.
    tm = 256 if Mp % 256 == 0 else (128 if Mp % 128 == 0 else Mp)
    tn = 256 if Np % 256 == 0 else 128
    tk = 256 if Kp % 256 == 0 else 128
    grid = (Mp // tm, Np // tn, Kp // tk)

    if has_ln and (Kp != tk or K != Kp):
        raise ValueError("LayerNorm fusion needs the whole unpadded K dim in one tile")
    if softmax_n is not None and Np != tn:
        raise ValueError("softmax fusion requires the whole N dim in one tile")

    in_specs = [
        pl.BlockSpec((tm, tk), lambda i, j, k: (i, k)),
        pl.BlockSpec((tk, tn), lambda i, j, k: (k, j)),
        pl.BlockSpec((1, tn), lambda i, j, k: (0, j)),
    ]
    inputs = [a, dense["w"], dense["bias"]]

    if has_ln:
        in_specs.append(pl.BlockSpec((1, tk), lambda i, j, k: (0, k)))
        in_specs.append(pl.BlockSpec((1, tk), lambda i, j, k: (0, k)))
        inputs.extend([ln[0], ln[1]])

    has_residual = residual is not None
    if has_residual:
        r = residual.astype(jnp.float32)
        if r.shape != (Mp, Np):
            r = jnp.pad(r, ((0, Mp - r.shape[0]), (0, Np - r.shape[1])))
        in_specs.append(pl.BlockSpec((tm, tn), lambda i, j, k: (i, j)))
        inputs.append(r)

    kernel = _make_dense_kernel(has_ln, has_residual, act, softmax_n, ln_eps)
    return pl.pallas_call(
        kernel,
        out_shape=jax.ShapeDtypeStruct((Mp, Np), jnp.float32),
        grid_spec=pltpu.PrefetchScalarGridSpec(
            num_scalar_prefetch=0,
            grid=grid,
            in_specs=in_specs,
            out_specs=pl.BlockSpec((tm, tn), lambda i, j, k: (i, j)),
            scratch_shapes=[pltpu.VMEM((tm, tn), jnp.float32)],
        ),
        compiler_params=pltpu.CompilerParams(
            dimension_semantics=("parallel", "parallel", "arbitrary"),
            # Tiles are tiny; 32 MiB is generous and safe on v7x (64 MiB VMEM)
            # as well as v5e/v6e (128 MiB).
            vmem_limit_bytes=32 * 1024 * 1024,
        ),
    )(*inputs)


def attention(q, k, v, *, s_valid, scale):
    return pl.pallas_call(
        functools.partial(_attention_kernel, scale=scale, s_valid=s_valid),
        out_shape=jax.ShapeDtypeStruct(q.shape, jnp.float32),
    )(q, k, v)


# ------------------------------ parameter init ---------------------------------

def _ln_params(key, dim):
    k1, k2 = jax.random.split(key)
    gamma = 1.0 + 0.1 * jax.random.normal(k1, (1, dim), jnp.float32)
    beta = 0.1 * jax.random.normal(k2, (1, dim), jnp.float32)
    return gamma, beta


def _raw_linear(key, in_f, out_f):
    kw, kb = jax.random.split(key)
    w = jax.random.normal(kw, (in_f, out_f), jnp.float32) * (1.0 / math.sqrt(in_f))
    b = 0.01 * jax.random.normal(kb, (out_f,), jnp.float32)
    return w, b


def _pack_dense(w, b):
    in_f, out_f = w.shape
    kp, np_ = _round_up(in_f, 128), _round_up(out_f, 128)
    wp = jnp.zeros((kp, np_), jnp.bfloat16).at[:in_f, :out_f].set(w.astype(jnp.bfloat16))
    bp = jnp.zeros((1, np_), jnp.float32).at[0, :out_f].set(b)
    return {"w": wp, "bias": bp, "K": in_f, "N": out_f}


def _make_dense_params(key, in_f, out_f):
    return _pack_dense(*_raw_linear(key, in_f, out_f))


def _make_head_params(key, dim, l1, l2, nc, bn_eps=1e-5):
    """Classifier head Linear->BatchNorm1d(eval)->Dropout->Linear->Linear folded
    (it is purely affine in eval mode) into ONE Linear(dim, nc)."""
    k1, k2, k3, kg, kb = jax.random.split(key, 5)
    w1, b1 = _raw_linear(k1, dim, l1)
    gamma = 1.0 + 0.1 * jax.random.normal(kg, (l1,), jnp.float32)
    beta = 0.1 * jax.random.normal(kb, (l1,), jnp.float32)
    running_mean = jnp.zeros((l1,), jnp.float32)
    running_var = jnp.ones((l1,), jnp.float32)
    s = gamma / jnp.sqrt(running_var + bn_eps)
    w1 = w1 * s[None, :]
    b1 = (b1 - running_mean) * s + beta
    w2, b2 = _raw_linear(k2, l1, l2)
    w3, b3 = _raw_linear(k3, l2, nc)
    w = w1 @ w2 @ w3
    b = (b1 @ w2 + b2) @ w3 + b3
    return _pack_dense(w, b)


def init_vit_params(seed=0, *, img_size=32, patch=16, in_chans=3, dim=256, depth=2,
                    heads=2, mlp_ratio=4, num_classes=6,
                    linear1_out=256, linear2_out=128):
    assert dim % heads == 0
    keys = iter(jax.random.split(jax.random.PRNGKey(seed), 64))
    nph = img_size // patch
    num_patches = nph * nph
    seq = num_patches + 1                      # + cls token
    seq_pad = _round_up(seq, 8)
    patch_dim = in_chans * patch * patch

    pos = 0.02 * jax.random.normal(next(keys), (1, seq_pad, dim), jnp.float32)
    pos = pos * (jnp.arange(seq_pad) < seq).astype(jnp.float32)[None, :, None]

    params = {
        "cfg": dict(img=img_size, patch=patch, in_chans=in_chans, dim=dim,
                    depth=depth, heads=heads, seq=seq, seq_pad=seq_pad,
                    num_classes=num_classes),
        "patch_embed": _make_dense_params(next(keys), patch_dim, dim),
        "cls_token": 0.02 * jax.random.normal(next(keys), (1, 1, dim), jnp.float32),
        "pos_embed": pos,
        "ln_f": _ln_params(next(keys), dim),
        "blocks": [],
    }
    for _ in range(depth):
        params["blocks"].append({
            "ln1": _ln_params(next(keys), dim),
            "qkv": _make_dense_params(next(keys), dim, 3 * dim),
            "proj": _make_dense_params(next(keys), dim, dim),
            "ln2": _ln_params(next(keys), dim),
            "fc1": _make_dense_params(next(keys), dim, mlp_ratio * dim),
            "fc2": _make_dense_params(next(keys), mlp_ratio * dim, dim),
        })
    params["head"] = _make_head_params(next(keys), dim, linear1_out, linear2_out,
                                       num_classes)
    return params


# --------------------------------- forward pass --------------------------------

def vit_forward(params, x_nchw):
    cfg = params["cfg"]
    B = x_nchw.shape[0]
    patch, dim, heads = cfg["patch"], cfg["dim"], cfg["heads"]
    in_chans, seq, seq_pad = cfg["in_chans"], cfg["seq"], cfg["seq_pad"]
    nph = cfg["img"] // patch
    dh = dim // heads

    # --- patch embedding: non-overlapping patches -> one fused matmul ----------
    x = jnp.transpose(x_nchw, (0, 2, 3, 1)).astype(jnp.float32)          # NHWC
    x = x.reshape(B, nph, patch, nph, patch, in_chans)
    x = jnp.transpose(x, (0, 1, 3, 2, 4, 5)).reshape(B * nph * nph,
                                                     patch * patch * in_chans)
    tok = apply_dense(x, params["patch_embed"])[:B * nph * nph]          # (B*P, D)
    tok = tok.reshape(B, nph * nph, dim)

    # --- cls token + positional embedding (padded tokens masked in attention) --
    cls = jnp.broadcast_to(params["cls_token"], (B, 1, dim))
    xs = jnp.concatenate([cls, tok], axis=1)                             # (B, seq, D)
    xs = jnp.pad(xs, ((0, 0), (0, seq_pad - seq), (0, 0)))
    xs = xs + params["pos_embed"]
    stream = xs.reshape(B * seq_pad, dim)                                # (B*Sp, D)

    attn_scale = 1.0 / math.sqrt(dh)
    for blk in params["blocks"]:
        # --- multi-head self-attention (LN fused into qkv matmul) -------------
        qkv = apply_dense(stream, blk["qkv"], ln=blk["ln1"])             # (B*Sp, 3D)
        qkv = qkv.reshape(B, seq_pad, 3, heads, dh)
        qkv = jnp.transpose(qkv, (2, 0, 3, 1, 4)).reshape(3, B * heads, seq_pad, dh)
        attn_out = attention(qkv[0], qkv[1], qkv[2],
                             s_valid=seq, scale=attn_scale)              # (B*H, Sp, dh)
        attn_out = jnp.transpose(attn_out.reshape(B, heads, seq_pad, dh),
                                 (0, 2, 1, 3)).reshape(B * seq_pad, dim)
        stream = apply_dense(attn_out, blk["proj"], residual=stream)     # fused +x
        # --- MLP (LN fused into fc1, GELU fused, residual fused into fc2) -----
        h = apply_dense(stream, blk["fc1"], ln=blk["ln2"], act="gelu")
        stream = apply_dense(h, blk["fc2"], residual=stream)

    cls_tok = stream.reshape(B, seq_pad, dim)[:, 0, :]                   # (B, D)

    # --- classifier head --------------------------------------------------------
    # Final LayerNorm fused as prologue; head (Linear->BN->Dropout->Linear->Linear)
    # folded into a single matmul; masked softmax fused as epilogue.
    # TODO(synk): train-mode BatchNorm1d (batch stats) and Dropout masking are
    # not implemented; eval semantics only.
    probs = apply_dense(cls_tok, params["head"], ln=params["ln_f"],
                        softmax_n=cfg["num_classes"])
    return probs[:B, :cfg["num_classes"]]


if __name__ == "__main__":
    params = init_vit_params(seed=0)
    x = jax.random.normal(jax.random.PRNGKey(0), (2, 3, 32, 32), jnp.float32)  # NCHW
    fwd = jax.jit(lambda inp: vit_forward(params, inp))
    out = jax.block_until_ready(fwd(x))
    assert out.shape == (2, 6), out.shape
    assert bool(jnp.all(jnp.isfinite(out)))
    assert bool(jnp.allclose(jnp.sum(out, axis=1), 1.0, atol=1e-4))
    print("KERNEL_OK")
</pallas_src>

<mosaic_0001>
module attributes {stable_mosaic.version = 11 : i64} {
  func.func @kernel(%arg0: i32, %arg1: i32, %arg2: i32, %arg3: memref<16x256xf32, #tpu.memory_space<vmem>>, %arg4: memref<256x256xbf16, #tpu.memory_space<vmem>>, %arg5: memref<1x256xf32, #tpu.memory_space<vmem>>, %arg6: memref<1x256xf32, #tpu.memory_space<vmem>>, %arg7: memref<1x256xf32, #tpu.memory_space<vmem>>, %arg8: memref<16x256xf32, #tpu.memory_space<vmem>>, %arg9: memref<16x256xf32, #tpu.memory_space<vmem>>) attributes {dimension_semantics = [#tpu.dimension_semantics<parallel>, #tpu.dimension_semantics<parallel>, #tpu.dimension_semantics<arbitrary>], iteration_bounds = array<i64: 1, 3, 1>, scalar_prefetch = 0 : i64, scratch_operands = 1 : i64, tpu.core_type = #tpu.core_type<tc>, window_params = [{transform_indices = @transform_0, window_bounds = array<i64: 16, 256>}, {transform_indices = @transform_1, window_bounds = array<i64: 256, 256>}, {transform_indices = @transform_2, window_bounds = array<i64: 1, 256>}, {transform_indices = @transform_3, window_bounds = array<i64: 1, 256>}, {transform_indices = @transform_4, window_bounds = array<i64: 1, 256>}, {transform_indices = @transform_5, window_bounds = array<i64: 16, 256>}]} {
    %c0_i32 = arith.constant 0 : i32
    %0 = arith.cmpi eq, %arg2, %c0_i32 : i32
    %1 = arith.extui %0 : i1 to i32
    %c0_i32_0 = arith.constant 0 : i32
    %2 = arith.cmpi ne, %1, %c0_i32_0 : i32
    scf.if %2 {
      %cst_19 = arith.constant 0.000000e+00 : f32
      %35 = vector.broadcast %cst_19 : f32 to vector<16x256xf32>
      %c0_20 = arith.constant 0 : index
      %c0_21 = arith.constant 0 : index
      %36 = vector.load %arg9[%c0_20, %c0_21] : memref<16x256xf32, #tpu.memory_space<vmem>>, vector<16x256xf32>
      tpu.vector_store %arg9[%c0_20, %c0_21], %35 {strides = array<i32>} : memref<16x256xf32, #tpu.memory_space<vmem>>, vector<16x256xf32>,
    } else {
    }
    %c0 = arith.constant 0 : index
    %c0_1 = arith.constant 0 : index
    %3 = vector.load %arg3[%c0, %c0_1] : memref<16x256xf32, #tpu.memory_space<vmem>>, vector<16x256xf32>
    %cst = arith.constant dense<0.000000e+00> : vector<16xf32>
    %4 = vector.multi_reduction <add>, %3, %cst [1] : vector<16x256xf32> to vector<16xf32>
    %5 = vector.shape_cast %4 : vector<16xf32> to vector<16x1xf32>
    %cst_2 = arith.constant 2.560000e+02 : f32
    %6 = vector.broadcast %cst_2 : f32 to vector<16x1xf32>
    %7 = arith.divf %5, %6 : vector<16x1xf32>
    %8 = vector.broadcast %7 : vector<16x1xf32> to vector<16x256xf32>
    %9 = arith.subf %3, %8 : vector<16x256xf32>
    %10 = arith.mulf %9, %9 : vector<16x256xf32>
    %cst_3 = arith.constant dense<0.000000e+00> : vector<16xf32>
    %11 = vector.multi_reduction <add>, %10, %cst_3 [1] : vector<16x256xf32> to vector<16xf32>
    %12 = vector.shape_cast %11 : vector<16xf32> to vector<16x1xf32>
    %cst_4 = arith.constant 2.560000e+02 : f32
    %13 = vector.broadcast %cst_4 : f32 to vector<16x1xf32>
    %14 = arith.divf %12, %13 : vector<16x1xf32>
    %cst_5 = arith.constant 9.99999997E-7 : f32
    %15 = vector.broadcast %cst_5 : f32 to vector<16x1xf32>
    %16 = arith.addf %14, %15 : vector<16x1xf32>
    %17 = math.rsqrt %16 : vector<16x1xf32>
    %18 = vector.broadcast %17 : vector<16x1xf32> to vector<16x256xf32>
    %19 = arith.mulf %9, %18 : vector<16x256xf32>
    %c0_6 = arith.constant 0 : index
    %c0_7 = arith.constant 0 : index
    %20 = vector.load %arg6[%c0_6, %c0_7] : memref<1x256xf32, #tpu.memory_space<vmem>>, vector<1x256xf32>
    %21 = vector.broadcast %20 : vector<1x256xf32> to vector<16x256xf32>
    %22 = arith.mulf %19, %21 : vector<16x256xf32>
    %c0_8 = arith.constant 0 : index
    %c0_9 = arith.constant 0 : index
    %23 = vector.load %arg7[%c0_8, %c0_9] : memref<1x256xf32, #tpu.memory_space<vmem>>, vector<1x256xf32>
    %24 = vector.broadcast %23 : vector<1x256xf32> to vector<16x256xf32>
    %25 = arith.addf %22, %24 : vector<16x256xf32>
    %26 = arith.truncf %25 : vector<16x256xf32> to vector<16x256xbf16>
    %c0_10 = arith.constant 0 : index
    %c0_11 = arith.constant 0 : index
    %27 = vector.load %arg9[%c0_10, %c0_11] : memref<16x256xf32, #tpu.memory_space<vmem>>, vector<16x256xf32>
    %c0_12 = arith.constant 0 : index
    %c0_13 = arith.constant 0 : index
    %28 = vector.load %arg4[%c0_12, %c0_13] : memref<256x256xbf16, #tpu.memory_space<vmem>>, vector<256x256xbf16>
    %cst_14 = arith.constant dense<0.000000e+00> : vector<16x256xf32>
    %29 = tpu.matmul %26, %28, %cst_14 {dimension_numbers = #tpu.dot_dimension_numbers<[1], [0], [0], [1], [0, 0, 1, 1], [], []>} : vector<16x256xbf16>, vector<256x256xbf16>, vector<16x256xf32> -> vector<16x256xf32>
    %30 = arith.addf %27, %29 : vector<16x256xf32>
    %c0_15 = arith.constant 0 : index
    %c0_16 = arith.constant 0 : index
    %31 = vector.load %arg9[%c0_15, %c0_16] : memref<16x256xf32, #tpu.memory_space<vmem>>, vector<16x256xf32>
    tpu.vector_store %arg9[%c0_15, %c0_16], %30 {strides = array<i32>} : memref<16x256xf32, #tpu.memory_space<vmem>>, vector<16x256xf32>,
    %c0_i32_17 = arith.constant 0 : i32
    %32 = arith.cmpi eq, %arg2, %c0_i32_17 : i32
    %33 = arith.extui %32 : i1 to i32
    %c0_i32_18 = arith.constant 0 : i32
    %34 = arith.cmpi ne, %33, %c0_i32_18 : i32
    scf.if %34 {
      %c0_19 = arith.constant 0 : index
      %c0_20 = arith.constant 0 : index
      %35 = vector.load %arg9[%c0_19, %c0_20] : memref<16x256xf32, #tpu.memory_space<vmem>>, vector<16x256xf32>
      %c0_21 = arith.constant 0 : index
      %c0_22 = arith.constant 0 : index
      %36 = vector.load %arg5[%c0_21, %c0_22] : memref<1x256xf32, #tpu.memory_space<vmem>>, vector<1x256xf32>
      %37 = vector.broadcast %36 : vector<1x256xf32> to vector<16x256xf32>
      %38 = arith.addf %35, %37 : vector<16x256xf32>
      %c0_23 = arith.constant 0 : index
      %c0_24 = arith.constant 0 : index
      %39 = vector.load %arg8[%c0_23, %c0_24] : memref<16x256xf32, #tpu.memory_space<vmem>>, vector<16x256xf32>
      tpu.vector_store %arg8[%c0_23, %c0_24], %38 {strides = array<i32>} : memref<16x256xf32, #tpu.memory_space<vmem>>, vector<16x256xf32>,
    } else {
    }
    return
  }
  func.func @transform_0(%arg0: i32, %arg1: i32, %arg2: i32) -> (i32, i32) {
    %c0_i32 = arith.constant 0 : i32
    return %arg0, %arg2 : i32, i32
  }
  func.func @transform_1(%arg0: i32, %arg1: i32, %arg2: i32) -> (i32, i32) {
    %c0_i32 = arith.constant 0 : i32
    return %arg2, %arg1 : i32, i32
  }
  func.func @transform_2(%arg0: i32, %arg1: i32, %arg2: i32) -> (i32, i32) {
    %c0_i32 = arith.constant 0 : i32
    %c0_i32_0 = arith.constant 0 : i32
    return %c0_i32, %arg1 : i32, i32
  }
  func.func @transform_3(%arg0: i32, %arg1: i32, %arg2: i32) -> (i32, i32) {
    %c0_i32 = arith.constant 0 : i32
    %c0_i32_0 = arith.constant 0 : i32
    return %c0_i32, %arg2 : i32, i32
  }
  func.func @transform_4(%arg0: i32, %arg1: i32, %arg2: i32) -> (i32, i32) {
    %c0_i32 = arith.constant 0 : i32
    %c0_i32_0 = arith.constant 0 : i32
    return %c0_i32, %arg2 : i32, i32
  }
  func.func @transform_5(%arg0: i32, %arg1: i32, %arg2: i32) -> (i32, i32) {
    %c0_i32 = arith.constant 0 : i32
    return %arg0, %arg1 : i32, i32
  }
}

module attributes {stable_mosaic.version = 11 : i64} {
  func.func @kernel(%arg0: i32, %arg1: i32, %arg2: i32, %arg3: memref<8x256xbf16, #tpu.memory_space<vmem>>, %arg4: memref<256x256xbf16, #tpu.memory_space<vmem>>, %arg5: memref<1x256xf32, #tpu.memory_space<vmem>>, %arg6: memref<8x256xf32, #tpu.memory_space<vmem>>, %arg7: memref<8x256xf32, #tpu.memory_space<vmem>>) attributes {dimension_semantics = [#tpu.dimension_semantics<parallel>, #tpu.dimension_semantics<parallel>, #tpu.dimension_semantics<arbitrary>], iteration_bounds = array<i64: 1, 1, 3>, scalar_prefetch = 0 : i64, scratch_operands = 1 : i64, tpu.core_type = #tpu.core_type<tc>, window_params = [{transform_indices = @transform_0, window_bounds = array<i64: 8, 256>}, {transform_indices = @transform_1, window_bounds = array<i64: 256, 256>}, {transform_indices = @transform_2, window_bounds = array<i64: 1, 256>}, {transform_indices = @transform_3, window_bounds = array<i64: 8, 256>}]} {
    %c0_i32 = arith.constant 0 : i32
    %0 = arith.cmpi eq, %arg2, %c0_i32 : i32
    %1 = arith.extui %0 : i1 to i32
    %c0_i32_0 = arith.constant 0 : i32
    %2 = arith.cmpi ne, %1, %c0_i32_0 : i32
    scf.if %2 {
      %cst_9 = arith.constant 0.000000e+00 : f32
      %12 = vector.broadcast %cst_9 : f32 to vector<8x256xf32>
      %c0_10 = arith.constant 0 : index
      %c0_11 = arith.constant 0 : index
      %13 = vector.load %arg7[%c0_10, %c0_11] : memref<8x256xf32, #tpu.memory_space<vmem>>, vector<8x256xf32>
      tpu.vector_store %arg7[%c0_10, %c0_11], %12 {strides = array<i32>} : memref<8x256xf32, #tpu.memory_space<vmem>>, vector<8x256xf32>,
    } else {
    }
    %c0 = arith.constant 0 : index
    %c0_1 = arith.constant 0 : index
    %3 = vector.load %arg3[%c0, %c0_1] : memref<8x256xbf16, #tpu.memory_space<vmem>>, vector<8x256xbf16>
    %c0_2 = arith.constant 0 : index
    %c0_3 = arith.constant 0 : index
    %4 = vector.load %arg7[%c0_2, %c0_3] : memref<8x256xf32, #tpu.memory_space<vmem>>, vector<8x256xf32>
    %c0_4 = arith.constant 0 : index
    %c0_5 = arith.constant 0 : index
    %5 = vector.load %arg4[%c0_4, %c0_5] : memref<256x256xbf16, #tpu.memory_space<vmem>>, vector<256x256xbf16>
    %cst = arith.constant dense<0.000000e+00> : vector<8x256xf32>
    %6 = tpu.matmul %3, %5, %cst {dimension_numbers = #tpu.dot_dimension_numbers<[1], [0], [0], [1], [0, 0, 1, 1], [], []>} : vector<8x256xbf16>, vector<256x256xbf16>, vector<8x256xf32> -> vector<8x256xf32>
    %7 = arith.addf %4, %6 : vector<8x256xf32>
    %c0_6 = arith.constant 0 : index
    %c0_7 = arith.constant 0 : index
    %8 = vector.load %arg7[%c0_6, %c0_7] : memref<8x256xf32, #tpu.memory_space<vmem>>, vector<8x256xf32>
    tpu.vector_store %arg7[%c0_6, %c0_7], %7 {strides = array<i32>} : memref<8x256xf32, #tpu.memory_space<vmem>>, vector<8x256xf32>,
    %c2_i32 = arith.constant 2 : i32
    %9 = arith.cmpi eq, %arg2, %c2_i32 : i32
    %10 = arith.extui %9 : i1 to i32
    %c0_i32_8 = arith.constant 0 : i32
    %11 = arith.cmpi ne, %10, %c0_i32_8 : i32
    scf.if %11 {
      %c0_9 = arith.constant 0 : index
      %c0_10 = arith.constant 0 : index
      %12 = vector.load %arg7[%c0_9, %c0_10] : memref<8x256xf32, #tpu.memory_space<vmem>>, vector<8x256xf32>
      %c0_11 = arith.constant 0 : index
      %c0_12 = arith.constant 0 : index
      %13 = vector.load %arg5[%c0_11, %c0_12] : memref<1x256xf32, #tpu.memory_space<vmem>>, vector<1x256xf32>
      %14 = vector.broadcast %13 : vector<1x256xf32> to vector<8x256xf32>
      %15 = arith.addf %12, %14 : vector<8x256xf32>
      %c0_13 = arith.constant 0 : index
      %c0_14 = arith.constant 0 : index
      %16 = vector.load %arg6[%c0_13, %c0_14] : memref<8x256xf32, #tpu.memory_space<vmem>>, vector<8x256xf32>
      tpu.vector_store %arg6[%c0_13, %c0_14], %15 {strides = array<i32>} : memref<8x256xf32, #tpu.memory_space<vmem>>, vector<8x256xf32>,
    } else {
    }
    return
  }
  func.func @transform_0(%arg0: i32, %arg1: i32, %arg2: i32) -> (i32, i32) {
    %c0_i32 = arith.constant 0 : i32
    return %arg0, %arg2 : i32, i32
  }
  func.func @transform_1(%arg0: i32, %arg1: i32, %arg2: i32) -> (i32, i32) {
    %c0_i32 = arith.constant 0 : i32
    return %arg2, %arg1 : i32, i32
  }
  func.func @transform_2(%arg0: i32, %arg1: i32, %arg2: i32) -> (i32, i32) {
    %c0_i32 = arith.constant 0 : i32
    %c0_i32_0 = arith.constant 0 : i32
    return %c0_i32, %arg1 : i32, i32
  }
  func.func @transform_3(%arg0: i32, %arg1: i32, %arg2: i32) -> (i32, i32) {
    %c0_i32 = arith.constant 0 : i32
    return %arg0, %arg1 : i32, i32
  }
}

module attributes {stable_mosaic.version = 11 : i64} {
  func.func @_attention_kernel(%arg0: memref<4x8x128xf32, #tpu.memory_space<vmem>>, %arg1: memref<4x8x128xf32, #tpu.memory_space<vmem>>, %arg2: memref<4x8x128xf32, #tpu.memory_space<vmem>>, %arg3: memref<4x8x128xf32, #tpu.memory_space<vmem>>) attributes {dimension_semantics = [], scalar_prefetch = 0 : i64, scratch_operands = 0 : i64, tpu.core_type = #tpu.core_type<tc>} {
    %c0 = arith.constant 0 : index
    %c0_0 = arith.constant 0 : index
    %c0_1 = arith.constant 0 : index
    %0 = vector.load %arg0[%c0, %c0_0, %c0_1] : memref<4x8x128xf32, #tpu.memory_space<vmem>>, vector<4x8x128xf32>
    %1 = arith.truncf %0 : vector<4x8x128xf32> to vector<4x8x128xbf16>
    %c0_2 = arith.constant 0 : index
    %c0_3 = arith.constant 0 : index
    %c0_4 = arith.constant 0 : index
    %2 = vector.load %arg1[%c0_2, %c0_3, %c0_4] : memref<4x8x128xf32, #tpu.memory_space<vmem>>, vector<4x8x128xf32>
    %3 = arith.truncf %2 : vector<4x8x128xf32> to vector<4x8x128xbf16>
    %c0_5 = arith.constant 0 : index
    %c0_6 = arith.constant 0 : index
    %c0_7 = arith.constant 0 : index
    %4 = vector.load %arg2[%c0_5, %c0_6, %c0_7] : memref<4x8x128xf32, #tpu.memory_space<vmem>>, vector<4x8x128xf32>
    %5 = arith.truncf %4 : vector<4x8x128xf32> to vector<4x8x128xbf16>
    "tpu.trace_start"() <{level = 10 : i32, message = "bqd,bkd->bqk"}> : () -> ()
    %cst = arith.constant dense<0.000000e+00> : vector<4x8x8xf32>
    %6 = tpu.matmul %1, %3, %cst {dimension_numbers = #tpu.dot_dimension_numbers<[2], [2], [1], [1], [0, 0, 0, 1, 1, 1], [0], [0]>} : vector<4x8x128xbf16>, vector<4x8x128xbf16>, vector<4x8x8xf32> -> vector<4x8x8xf32>
    "tpu.trace_stop"() : () -> ()
    %cst_8 = arith.constant 0.0883883461 : f32
    %7 = vector.broadcast %cst_8 : f32 to vector<4x8x8xf32>
    %8 = arith.mulf %6, %7 : vector<4x8x8xf32>
    %9 = tpu.iota {dimensions = array<i32: 2>} : vector<4x8x8xi32>
    %c5_i32 = arith.constant 5 : i32
    %10 = vector.broadcast %c5_i32 : i32 to vector<4x8x8xi32>
    %11 = arith.cmpi slt, %9, %10 : vector<4x8x8xi32>
    %cst_9 = arith.constant -1.000000e+30 : f32
    %12 = vector.broadcast %cst_9 : f32 to vector<4x8x8xf32>
    %13 = arith.select %11, %8, %12 : vector<4x8x8xi1>, vector<4x8x8xf32>
    %cst_10 = arith.constant dense<0xFF800000> : vector<4x8xf32>
    %14 = vector.multi_reduction <maximumf>, %13, %cst_10 [2] : vector<4x8x8xf32> to vector<4x8xf32>
    %15 = vector.shape_cast %14 : vector<4x8xf32> to vector<4x8x1xf32>
    %16 = vector.broadcast %15 : vector<4x8x1xf32> to vector<4x8x8xf32>
    %17 = arith.subf %13, %16 : vector<4x8x8xf32>
    %18 = math.exp %17 : vector<4x8x8xf32>
    %cst_11 = arith.constant dense<0.000000e+00> : vector<4x8xf32>
    %19 = vector.multi_reduction <add>, %18, %cst_11 [2] : vector<4x8x8xf32> to vector<4x8xf32>
    %20 = vector.shape_cast %19 : vector<4x8xf32> to vector<4x8x1xf32>
    %21 = vector.broadcast %20 : vector<4x8x1xf32> to vector<4x8x8xf32>
    %22 = arith.divf %18, %21 : vector<4x8x8xf32>
    %23 = arith.truncf %22 : vector<4x8x8xf32> to vector<4x8x8xbf16>
    "tpu.trace_start"() <{level = 10 : i32, message = "bqk,bkd->bqd"}> : () -> ()
    %cst_12 = arith.constant dense<0.000000e+00> : vector<4x8x128xf32>
    %24 = tpu.matmul %23, %5, %cst_12 {dimension_numbers = #tpu.dot_dimension_numbers<[2], [1], [1], [2], [0, 0, 0, 1, 1, 2], [0], [0]>} : vector<4x8x8xbf16>, vector<4x8x128xbf16>, vector<4x8x128xf32> -> vector<4x8x128xf32>
    "tpu.trace_stop"() : () -> ()
    %c0_13 = arith.constant 0 : index
    %c0_14 = arith.constant 0 : index
    %c0_15 = arith.constant 0 : index
    %25 = vector.load %arg3[%c0_13, %c0_14, %c0_15] : memref<4x8x128xf32, #tpu.memory_space<vmem>>, vector<4x8x128xf32>
    tpu.vector_store %arg3[%c0_13, %c0_14, %c0_15], %24 {strides = array<i32>} : memref<4x8x128xf32, #tpu.memory_space<vmem>>, vector<4x8x128xf32>,
    return
  }
}

module attributes {stable_mosaic.version = 11 : i64} {
  func.func @kernel(%arg0: i32, %arg1: i32, %arg2: i32, %arg3: memref<16x256xbf16, #tpu.memory_space<vmem>>, %arg4: memref<256x256xbf16, #tpu.memory_space<vmem>>, %arg5: memref<1x256xf32, #tpu.memory_space<vmem>>, %arg6: memref<16x256xf32, #tpu.memory_space<vmem>>, %arg7: memref<16x256xf32, #tpu.memory_space<vmem>>, %arg8: memref<16x256xf32, #tpu.memory_space<vmem>>) attributes {dimension_semantics = [#tpu.dimension_semantics<parallel>, #tpu.dimension_semantics<parallel>, #tpu.dimension_semantics<arbitrary>], iteration_bounds = array<i64: 1, 1, 1>, scalar_prefetch = 0 : i64, scratch_operands = 1 : i64, tpu.core_type = #tpu.core_type<tc>, window_params = [{transform_indices = @transform_0, window_bounds = array<i64: 16, 256>}, {transform_indices = @transform_1, window_bounds = array<i64: 256, 256>}, {transform_indices = @transform_2, window_bounds = array<i64: 1, 256>}, {transform_indices = @transform_3, window_bounds = array<i64: 16, 256>}, {transform_indices = @transform_4, window_bounds = array<i64: 16, 256>}]} {
    %c0_i32 = arith.constant 0 : i32
    %0 = arith.cmpi eq, %arg2, %c0_i32 : i32
    %1 = arith.extui %0 : i1 to i32
    %c0_i32_0 = arith.constant 0 : i32
    %2 = arith.cmpi ne, %1, %c0_i32_0 : i32
    scf.if %2 {
      %cst_10 = arith.constant 0.000000e+00 : f32
      %12 = vector.broadcast %cst_10 : f32 to vector<16x256xf32>
      %c0_11 = arith.constant 0 : index
      %c0_12 = arith.constant 0 : index
      %13 = vector.load %arg8[%c0_11, %c0_12] : memref<16x256xf32, #tpu.memory_space<vmem>>, vector<16x256xf32>
      tpu.vector_store %arg8[%c0_11, %c0_12], %12 {strides = array<i32>} : memref<16x256xf32, #tpu.memory_space<vmem>>, vector<16x256xf32>,
    } else {
    }
    %c0 = arith.constant 0 : index
    %c0_1 = arith.constant 0 : index
    %3 = vector.load %arg3[%c0, %c0_1] : memref<16x256xbf16, #tpu.memory_space<vmem>>, vector<16x256xbf16>
    %c0_2 = arith.constant 0 : index
    %c0_3 = arith.constant 0 : index
    %4 = vector.load %arg8[%c0_2, %c0_3] : memref<16x256xf32, #tpu.memory_space<vmem>>, vector<16x256xf32>
    %c0_4 = arith.constant 0 : index
    %c0_5 = arith.constant 0 : index
    %5 = vector.load %arg4[%c0_4, %c0_5] : memref<256x256xbf16, #tpu.memory_space<vmem>>, vector<256x256xbf16>
    %cst = arith.constant dense<0.000000e+00> : vector<16x256xf32>
    %6 = tpu.matmul %3, %5, %cst {dimension_numbers = #tpu.dot_dimension_numbers<[1], [0], [0], [1], [0, 0, 1, 1], [], []>} : vector<16x256xbf16>, vector<256x256xbf16>, vector<16x256xf32> -> vector<16x256xf32>
    %7 = arith.addf %4, %6 : vector<16x256xf32>
    %c0_6 = arith.constant 0 : index
    %c0_7 = arith.constant 0 : index
    %8 = vector.load %arg8[%c0_6, %c0_7] : memref<16x256xf32, #tpu.memory_space<vmem>>, vector<16x256xf32>
    tpu.vector_store %arg8[%c0_6, %c0_7], %7 {strides = array<i32>} : memref<16x256xf32, #tpu.memory_space<vmem>>, vector<16x256xf32>,
    %c0_i32_8 = arith.constant 0 : i32
    %9 = arith.cmpi eq, %arg2, %c0_i32_8 : i32
    %10 = arith.extui %9 : i1 to i32
    %c0_i32_9 = arith.constant 0 : i32
    %11 = arith.cmpi ne, %10, %c0_i32_9 : i32
    scf.if %11 {
      %c0_10 = arith.constant 0 : index
      %c0_11 = arith.constant 0 : index
      %12 = vector.load %arg8[%c0_10, %c0_11] : memref<16x256xf32, #tpu.memory_space<vmem>>, vector<16x256xf32>
      %c0_12 = arith.constant 0 : index
      %c0_13 = arith.constant 0 : index
      %13 = vector.load %arg5[%c0_12, %c0_13] : memref<1x256xf32, #tpu.memory_space<vmem>>, vector<1x256xf32>
      %14 = vector.broadcast %13 : vector<1x256xf32> to vector<16x256xf32>
      %15 = arith.addf %12, %14 : vector<16x256xf32>
      %c0_14 = arith.constant 0 : index
      %c0_15 = arith.constant 0 : index
      %16 = vector.load %arg6[%c0_14, %c0_15] : memref<16x256xf32, #tpu.memory_space<vmem>>, vector<16x256xf32>
      %17 = arith.addf %15, %16 : vector<16x256xf32>
      %c0_16 = arith.constant 0 : index
      %c0_17 = arith.constant 0 : index
      %18 = vector.load %arg7[%c0_16, %c0_17] : memref<16x256xf32, #tpu.memory_space<vmem>>, vector<16x256xf32>
      tpu.vector_store %arg7[%c0_16, %c0_17], %17 {strides = array<i32>} : memref<16x256xf32, #tpu.memory_space<vmem>>, vector<16x256xf32>,
    } else {
    }
    return
  }
  func.func @transform_0(%arg0: i32, %arg1: i32, %arg2: i32) -> (i32, i32) {
    %c0_i32 = arith.constant 0 : i32
    return %arg0, %arg2 : i32, i32
  }
  func.func @transform_1(%arg0: i32, %arg1: i32, %arg2: i32) -> (i32, i32) {
    %c0_i32 = arith.constant 0 : i32
    return %arg2, %arg1 : i32, i32
  }
  func.func @transform_2(%arg0: i32, %arg1: i32, %arg2: i32) -> (i32, i32) {
    %c0_i32 = arith.constant 0 : i32
    %c0_i32_0 = arith.constant 0 : i32
    return %c0_i32, %arg1 : i32, i32
  }
  func.func @transform_3(%arg0: i32, %arg1: i32, %arg2: i32) -> (i32, i32) {
    %c0_i32 = arith.constant 0 : i32
    return %arg0, %arg1 : i32, i32
  }
  func.func @transform_4(%arg0: i32, %arg1: i32, %arg2: i32) -> (i32, i32) {
    %c0_i32 = arith.constant 0 : i32
    return %arg0, %arg1 : i32, i32
  }
}

module attributes {stable_mosaic.version = 11 : i64} {
  func.func @kernel(%arg0: i32, %arg1: i32, %arg2: i32, %arg3: memref<16x256xf32, #tpu.memory_space<vmem>>, %arg4: memref<256x256xbf16, #tpu.memory_space<vmem>>, %arg5: memref<1x256xf32, #tpu.memory_space<vmem>>, %arg6: memref<1x256xf32, #tpu.memory_space<vmem>>, %arg7: memref<1x256xf32, #tpu.memory_space<vmem>>, %arg8: memref<16x256xf32, #tpu.memory_space<vmem>>, %arg9: memref<16x256xf32, #tpu.memory_space<vmem>>) attributes {dimension_semantics = [#tpu.dimension_semantics<parallel>, #tpu.dimension_semantics<parallel>, #tpu.dimension_semantics<arbitrary>], iteration_bounds = array<i64: 1, 4, 1>, scalar_prefetch = 0 : i64, scratch_operands = 1 : i64, tpu.core_type = #tpu.core_type<tc>, window_params = [{transform_indices = @transform_0, window_bounds = array<i64: 16, 256>}, {transform_indices = @transform_1, window_bounds = array<i64: 256, 256>}, {transform_indices = @transform_2, window_bounds = array<i64: 1, 256>}, {transform_indices = @transform_3, window_bounds = array<i64: 1, 256>}, {transform_indices = @transform_4, window_bounds = array<i64: 1, 256>}, {transform_indices = @transform_5, window_bounds = array<i64: 16, 256>}]} {
    %c0_i32 = arith.constant 0 : i32
    %0 = arith.cmpi eq, %arg2, %c0_i32 : i32
    %1 = arith.extui %0 : i1 to i32
    %c0_i32_0 = arith.constant 0 : i32
    %2 = arith.cmpi ne, %1, %c0_i32_0 : i32
    scf.if %2 {
      %cst_19 = arith.constant 0.000000e+00 : f32
      %35 = vector.broadcast %cst_19 : f32 to vector<16x256xf32>
      %c0_20 = arith.constant 0 : index
      %c0_21 = arith.constant 0 : index
      %36 = vector.load %arg9[%c0_20, %c0_21] : memref<16x256xf32, #tpu.memory_space<vmem>>, vector<16x256xf32>
      tpu.vector_store %arg9[%c0_20, %c0_21], %35 {strides = array<i32>} : memref<16x256xf32, #tpu.memory_space<vmem>>, vector<16x256xf32>,
    } else {
    }
    %c0 = arith.constant 0 : index
    %c0_1 = arith.constant 0 : index
    %3 = vector.load %arg3[%c0, %c0_1] : memref<16x256xf32, #tpu.memory_space<vmem>>, vector<16x256xf32>
    %cst = arith.constant dense<0.000000e+00> : vector<16xf32>
    %4 = vector.multi_reduction <add>, %3, %cst [1] : vector<16x256xf32> to vector<16xf32>
    %5 = vector.shape_cast %4 : vector<16xf32> to vector<16x1xf32>
    %cst_2 = arith.constant 2.560000e+02 : f32
    %6 = vector.broadcast %cst_2 : f32 to vector<16x1xf32>
    %7 = arith.divf %5, %6 : vector<16x1xf32>
    %8 = vector.broadcast %7 : vector<16x1xf32> to vector<16x256xf32>
    %9 = arith.subf %3, %8 : vector<16x256xf32>
    %10 = arith.mulf %9, %9 : vector<16x256xf32>
    %cst_3 = arith.constant dense<0.000000e+00> : vector<16xf32>
    %11 = vector.multi_reduction <add>, %10, %cst_3 [1] : vector<16x256xf32> to vector<16xf32>
    %12 = vector.shape_cast %11 : vector<16xf32> to vector<16x1xf32>
    %cst_4 = arith.constant 2.560000e+02 : f32
    %13 = vector.broadcast %cst_4 : f32 to vector<16x1xf32>
    %14 = arith.divf %12, %13 : vector<16x1xf32>
    %cst_5 = arith.constant 9.99999997E-7 : f32
    %15 = vector.broadcast %cst_5 : f32 to vector<16x1xf32>
    %16 = arith.addf %14, %15 : vector<16x1xf32>
    %17 = math.rsqrt %16 : vector<16x1xf32>
    %18 = vector.broadcast %17 : vector<16x1xf32> to vector<16x256xf32>
    %19 = arith.mulf %9, %18 : vector<16x256xf32>
    %c0_6 = arith.constant 0 : index
    %c0_7 = arith.constant 0 : index
    %20 = vector.load %arg6[%c0_6, %c0_7] : memref<1x256xf32, #tpu.memory_space<vmem>>, vector<1x256xf32>
    %21 = vector.broadcast %20 : vector<1x256xf32> to vector<16x256xf32>
    %22 = arith.mulf %19, %21 : vector<16x256xf32>
    %c0_8 = arith.constant 0 : index
    %c0_9 = arith.constant 0 : index
    %23 = vector.load %arg7[%c0_8, %c0_9] : memref<1x256xf32, #tpu.memory_space<vmem>>, vector<1x256xf32>
    %24 = vector.broadcast %23 : vector<1x256xf32> to vector<16x256xf32>
    %25 = arith.addf %22, %24 : vector<16x256xf32>
    %26 = arith.truncf %25 : vector<16x256xf32> to vector<16x256xbf16>
    %c0_10 = arith.constant 0 : index
    %c0_11 = arith.constant 0 : index
    %27 = vector.load %arg9[%c0_10, %c0_11] : memref<16x256xf32, #tpu.memory_space<vmem>>, vector<16x256xf32>
    %c0_12 = arith.constant 0 : index
    %c0_13 = arith.constant 0 : index
    %28 = vector.load %arg4[%c0_12, %c0_13] : memref<256x256xbf16, #tpu.memory_space<vmem>>, vector<256x256xbf16>
    %cst_14 = arith.constant dense<0.000000e+00> : vector<16x256xf32>
    %29 = tpu.matmul %26, %28, %cst_14 {dimension_numbers = #tpu.dot_dimension_numbers<[1], [0], [0], [1], [0, 0, 1, 1], [], []>} : vector<16x256xbf16>, vector<256x256xbf16>, vector<16x256xf32> -> vector<16x256xf32>
    %30 = arith.addf %27, %29 : vector<16x256xf32>
    %c0_15 = arith.constant 0 : index
    %c0_16 = arith.constant 0 : index
    %31 = vector.load %arg9[%c0_15, %c0_16] : memref<16x256xf32, #tpu.memory_space<vmem>>, vector<16x256xf32>
    tpu.vector_store %arg9[%c0_15, %c0_16], %30 {strides = array<i32>} : memref<16x256xf32, #tpu.memory_space<vmem>>, vector<16x256xf32>,
    %c0_i32_17 = arith.constant 0 : i32
    %32 = arith.cmpi eq, %arg2, %c0_i32_17 : i32
    %33 = arith.extui %32 : i1 to i32
    %c0_i32_18 = arith.constant 0 : i32
    %34 = arith.cmpi ne, %33, %c0_i32_18 : i32
    scf.if %34 {
      %c0_19 = arith.constant 0 : index
      %c0_20 = arith.constant 0 : index
      %35 = vector.load %arg9[%c0_19, %c0_20] : memref<16x256xf32, #tpu.memory_space<vmem>>, vector<16x256xf32>
      %c0_21 = arith.constant 0 : index
      %c0_22 = arith.constant 0 : index
      %36 = vector.load %arg5[%c0_21, %c0_22] : memref<1x256xf32, #tpu.memory_space<vmem>>, vector<1x256xf32>
      %37 = vector.broadcast %36 : vector<1x256xf32> to vector<16x256xf32>
      %38 = arith.addf %35, %37 : vector<16x256xf32>
      %cst_23 = arith.constant 5.000000e-01 : f32
      %39 = vector.broadcast %cst_23 : f32 to vector<16x256xf32>
      %40 = arith.mulf %39, %38 : vector<16x256xf32>
      %cst_24 = arith.constant 4.471500e-02 : f32
      %41 = vector.broadcast %cst_24 : f32 to vector<16x256xf32>
      %42 = arith.mulf %41, %38 : vector<16x256xf32>
      %43 = arith.mulf %42, %38 : vector<16x256xf32>
      %44 = arith.mulf %43, %38 : vector<16x256xf32>
      %45 = arith.addf %38, %44 : vector<16x256xf32>
      %cst_25 = arith.constant 0.797884583 : f32
      %46 = vector.broadcast %cst_25 : f32 to vector<16x256xf32>
      %47 = arith.mulf %46, %45 : vector<16x256xf32>
      %48 = math.tanh %47 : vector<16x256xf32>
      %cst_26 = arith.constant 1.000000e+00 : f32
      %49 = vector.broadcast %cst_26 : f32 to vector<16x256xf32>
      %50 = arith.addf %49, %48 : vector<16x256xf32>
      %51 = arith.mulf %40, %50 : vector<16x256xf32>
      %c0_27 = arith.constant 0 : index
      %c0_28 = arith.constant 0 : index
      %52 = vector.load %arg8[%c0_27, %c0_28] : memref<16x256xf32, #tpu.memory_space<vmem>>, vector<16x256xf32>
      tpu.vector_store %arg8[%c0_27, %c0_28], %51 {strides = array<i32>} : memref<16x256xf32, #tpu.memory_space<vmem>>, vector<16x256xf32>,
    } else {
    }
    return
  }
  func.func @transform_0(%arg0: i32, %arg1: i32, %arg2: i32) -> (i32, i32) {
    %c0_i32 = arith.constant 0 : i32
    return %arg0, %arg2 : i32, i32
  }
  func.func @transform_1(%arg0: i32, %arg1: i32, %arg2: i32) -> (i32, i32) {
    %c0_i32 = arith.constant 0 : i32
    return %arg2, %arg1 : i32, i32
  }
  func.func @transform_2(%arg0: i32, %arg1: i32, %arg2: i32) -> (i32, i32) {
    %c0_i32 = arith.constant 0 : i32
    %c0_i32_0 = arith.constant 0 : i32
    return %c0_i32, %arg1 : i32, i32
  }
  func.func @transform_3(%arg0: i32, %arg1: i32, %arg2: i32) -> (i32, i32) {
    %c0_i32 = arith.constant 0 : i32
    %c0_i32_0 = arith.constant 0 : i32
    return %c0_i32, %arg2 : i32, i32
  }
  func.func @transform_4(%arg0: i32, %arg1: i32, %arg2: i32) -> (i32, i32) {
    %c0_i32 = arith.constant 0 : i32
    %c0_i32_0 = arith.constant 0 : i32
    return %c0_i32, %arg2 : i32, i32
  }
  func.func @transform_5(%arg0: i32, %arg1: i32, %arg2: i32) -> (i32, i32) {
    %c0_i32 = arith.constant 0 : i32
    return %arg0, %arg1 : i32, i32
  }
}

module attributes {stable_mosaic.version = 11 : i64} {
  func.func @kernel(%arg0: i32, %arg1: i32, %arg2: i32, %arg3: memref<16x256xbf16, #tpu.memory_space<vmem>>, %arg4: memref<256x256xbf16, #tpu.memory_space<vmem>>, %arg5: memref<1x256xf32, #tpu.memory_space<vmem>>, %arg6: memref<16x256xf32, #tpu.memory_space<vmem>>, %arg7: memref<16x256xf32, #tpu.memory_space<vmem>>, %arg8: memref<16x256xf32, #tpu.memory_space<vmem>>) attributes {dimension_semantics = [#tpu.dimension_semantics<parallel>, #tpu.dimension_semantics<parallel>, #tpu.dimension_semantics<arbitrary>], iteration_bounds = array<i64: 1, 1, 4>, scalar_prefetch = 0 : i64, scratch_operands = 1 : i64, tpu.core_type = #tpu.core_type<tc>, window_params = [{transform_indices = @transform_0, window_bounds = array<i64: 16, 256>}, {transform_indices = @transform_1, window_bounds = array<i64: 256, 256>}, {transform_indices = @transform_2, window_bounds = array<i64: 1, 256>}, {transform_indices = @transform_3, window_bounds = array<i64: 16, 256>}, {transform_indices = @transform_4, window_bounds = array<i64: 16, 256>}]} {
    %c0_i32 = arith.constant 0 : i32
    %0 = arith.cmpi eq, %arg2, %c0_i32 : i32
    %1 = arith.extui %0 : i1 to i32
    %c0_i32_0 = arith.constant 0 : i32
    %2 = arith.cmpi ne, %1, %c0_i32_0 : i32
    scf.if %2 {
      %cst_9 = arith.constant 0.000000e+00 : f32
      %12 = vector.broadcast %cst_9 : f32 to vector<16x256xf32>
      %c0_10 = arith.constant 0 : index
      %c0_11 = arith.constant 0 : index
      %13 = vector.load %arg8[%c0_10, %c0_11] : memref<16x256xf32, #tpu.memory_space<vmem>>, vector<16x256xf32>
      tpu.vector_store %arg8[%c0_10, %c0_11], %12 {strides = array<i32>} : memref<16x256xf32, #tpu.memory_space<vmem>>, vector<16x256xf32>,
    } else {
    }
    %c0 = arith.constant 0 : index
    %c0_1 = arith.constant 0 : index
    %3 = vector.load %arg3[%c0, %c0_1] : memref<16x256xbf16, #tpu.memory_space<vmem>>, vector<16x256xbf16>
    %c0_2 = arith.constant 0 : index
    %c0_3 = arith.constant 0 : index
    %4 = vector.load %arg8[%c0_2, %c0_3] : memref<16x256xf32, #tpu.memory_space<vmem>>, vector<16x256xf32>
    %c0_4 = arith.constant 0 : index
    %c0_5 = arith.constant 0 : index
    %5 = vector.load %arg4[%c0_4, %c0_5] : memref<256x256xbf16, #tpu.memory_space<vmem>>, vector<256x256xbf16>
    %cst = arith.constant dense<0.000000e+00> : vector<16x256xf32>
    %6 = tpu.matmul %3, %5, %cst {dimension_numbers = #tpu.dot_dimension_numbers<[1], [0], [0], [1], [0, 0, 1, 1], [], []>} : vector<16x256xbf16>, vector<256x256xbf16>, vector<16x256xf32> -> vector<16x256xf32>
    %7 = arith.addf %4, %6 : vector<16x256xf32>
    %c0_6 = arith.constant 0 : index
    %c0_7 = arith.constant 0 : index
    %8 = vector.load %arg8[%c0_6, %c0_7] : memref<16x256xf32, #tpu.memory_space<vmem>>, vector<16x256xf32>
    tpu.vector_store %arg8[%c0_6, %c0_7], %7 {strides = array<i32>} : memref<16x256xf32, #tpu.memory_space<vmem>>, vector<16x256xf32>,
    %c3_i32 = arith.constant 3 : i32
    %9 = arith.cmpi eq, %arg2, %c3_i32 : i32
    %10 = arith.extui %9 : i1 to i32
    %c0_i32_8 = arith.constant 0 : i32
    %11 = arith.cmpi ne, %10, %c0_i32_8 : i32
    scf.if %11 {
      %c0_9 = arith.constant 0 : index
      %c0_10 = arith.constant 0 : index
      %12 = vector.load %arg8[%c0_9, %c0_10] : memref<16x256xf32, #tpu.memory_space<vmem>>, vector<16x256xf32>
      %c0_11 = arith.constant 0 : index
      %c0_12 = arith.constant 0 : index
      %13 = vector.load %arg5[%c0_11, %c0_12] : memref<1x256xf32, #tpu.memory_space<vmem>>, vector<1x256xf32>
      %14 = vector.broadcast %13 : vector<1x256xf32> to vector<16x256xf32>
      %15 = arith.addf %12, %14 : vector<16x256xf32>
      %c0_13 = arith.constant 0 : index
      %c0_14 = arith.constant 0 : index
      %16 = vector.load %arg6[%c0_13, %c0_14] : memref<16x256xf32, #tpu.memory_space<vmem>>, vector<16x256xf32>
      %17 = arith.addf %15, %16 : vector<16x256xf32>
      %c0_15 = arith.constant 0 : index
      %c0_16 = arith.constant 0 : index
      %18 = vector.load %arg7[%c0_15, %c0_16] : memref<16x256xf32, #tpu.memory_space<vmem>>, vector<16x256xf32>
      tpu.vector_store %arg7[%c0_15, %c0_16], %17 {strides = array<i32>} : memref<16x256xf32, #tpu.memory_space<vmem>>, vector<16x256xf32>,
    } else {
    }
    return
  }
  func.func @transform_0(%arg0: i32, %arg1: i32, %arg2: i32) -> (i32, i32) {
    %c0_i32 = arith.constant 0 : i32
    return %arg0, %arg2 : i32, i32
  }
  func.func @transform_1(%arg0: i32, %arg1: i32, %arg2: i32) -> (i32, i32) {
    %c0_i32 = arith.constant 0 : i32
    return %arg2, %arg1 : i32, i32
  }
  func.func @transform_2(%arg0: i32, %arg1: i32, %arg2: i32) -> (i32, i32) {
    %c0_i32 = arith.constant 0 : i32
    %c0_i32_0 = arith.constant 0 : i32
    return %c0_i32, %arg1 : i32, i32
  }
  func.func @transform_3(%arg0: i32, %arg1: i32, %arg2: i32) -> (i32, i32) {
    %c0_i32 = arith.constant 0 : i32
    return %arg0, %arg1 : i32, i32
  }
  func.func @transform_4(%arg0: i32, %arg1: i32, %arg2: i32) -> (i32, i32) {
    %c0_i32 = arith.constant 0 : i32
    return %arg0, %arg1 : i32, i32
  }
}

module attributes {stable_mosaic.version = 11 : i64} {
  func.func @kernel(%arg0: i32, %arg1: i32, %arg2: i32, %arg3: memref<16x256xf32, #tpu.memory_space<vmem>>, %arg4: memref<256x256xbf16, #tpu.memory_space<vmem>>, %arg5: memref<1x256xf32, #tpu.memory_space<vmem>>, %arg6: memref<1x256xf32, #tpu.memory_space<vmem>>, %arg7: memref<1x256xf32, #tpu.memory_space<vmem>>, %arg8: memref<16x256xf32, #tpu.memory_space<vmem>>, %arg9: memref<16x256xf32, #tpu.memory_space<vmem>>) attributes {dimension_semantics = [#tpu.dimension_semantics<parallel>, #tpu.dimension_semantics<parallel>, #tpu.dimension_semantics<arbitrary>], iteration_bounds = array<i64: 1, 3, 1>, scalar_prefetch = 0 : i64, scratch_operands = 1 : i64, tpu.core_type = #tpu.core_type<tc>, window_params = [{transform_indices = @transform_0, window_bounds = array<i64: 16, 256>}, {transform_indices = @transform_1, window_bounds = array<i64: 256, 256>}, {transform_indices = @transform_2, window_bounds = array<i64: 1, 256>}, {transform_indices = @transform_3, window_bounds = array<i64: 1, 256>}, {transform_indices = @transform_4, window_bounds = array<i64: 1, 256>}, {transform_indices = @transform_5, window_bounds = array<i64: 16, 256>}]} {
    %c0_i32 = arith.constant 0 : i32
    %0 = arith.cmpi eq, %arg2, %c0_i32 : i32
    %1 = arith.extui %0 : i1 to i32
    %c0_i32_0 = arith.constant 0 : i32
    %2 = arith.cmpi ne, %1, %c0_i32_0 : i32
    scf.if %2 {
      %cst_19 = arith.constant 0.000000e+00 : f32
      %35 = vector.broadcast %cst_19 : f32 to vector<16x256xf32>
      %c0_20 = arith.constant 0 : index
      %c0_21 = arith.constant 0 : index
      %36 = vector.load %arg9[%c0_20, %c0_21] : memref<16x256xf32, #tpu.memory_space<vmem>>, vector<16x256xf32>
      tpu.vector_store %arg9[%c0_20, %c0_21], %35 {strides = array<i32>} : memref<16x256xf32, #tpu.memory_space<vmem>>, vector<16x256xf32>,
    } else {
    }
    %c0 = arith.constant 0 : index
    %c0_1 = arith.constant 0 : index
    %3 = vector.load %arg3[%c0, %c0_1] : memref<16x256xf32, #tpu.memory_space<vmem>>, vector<16x256xf32>
    %cst = arith.constant dense<0.000000e+00> : vector<16xf32>
    %4 = vector.multi_reduction <add>, %3, %cst [1] : vector<16x256xf32> to vector<16xf32>
    %5 = vector.shape_cast %4 : vector<16xf32> to vector<16x1xf32>
    %cst_2 = arith.constant 2.560000e+02 : f32
    %6 = vector.broadcast %cst_2 : f32 to vector<16x1xf32>
    %7 = arith.divf %5, %6 : vector<16x1xf32>
    %8 = vector.broadcast %7 : vector<16x1xf32> to vector<16x256xf32>
    %9 = arith.subf %3, %8 : vector<16x256xf32>
    %10 = arith.mulf %9, %9 : vector<16x256xf32>
    %cst_3 = arith.constant dense<0.000000e+00> : vector<16xf32>
    %11 = vector.multi_reduction <add>, %10, %cst_3 [1] : vector<16x256xf32> to vector<16xf32>
    %12 = vector.shape_cast %11 : vector<16xf32> to vector<16x1xf32>
    %cst_4 = arith.constant 2.560000e+02 : f32
    %13 = vector.broadcast %cst_4 : f32 to vector<16x1xf32>
    %14 = arith.divf %12, %13 : vector<16x1xf32>
    %cst_5 = arith.constant 9.99999997E-7 : f32
    %15 = vector.broadcast %cst_5 : f32 to vector<16x1xf32>
    %16 = arith.addf %14, %15 : vector<16x1xf32>
    %17 = math.rsqrt %16 : vector<16x1xf32>
    %18 = vector.broadcast %17 : vector<16x1xf32> to vector<16x256xf32>
    %19 = arith.mulf %9, %18 : vector<16x256xf32>
    %c0_6 = arith.constant 0 : index
    %c0_7 = arith.constant 0 : index
    %20 = vector.load %arg6[%c0_6, %c0_7] : memref<1x256xf32, #tpu.memory_space<vmem>>, vector<1x256xf32>
    %21 = vector.broadcast %20 : vector<1x256xf32> to vector<16x256xf32>
    %22 = arith.mulf %19, %21 : vector<16x256xf32>
    %c0_8 = arith.constant 0 : index
    %c0_9 = arith.constant 0 : index
    %23 = vector.load %arg7[%c0_8, %c0_9] : memref<1x256xf32, #tpu.memory_space<vmem>>, vector<1x256xf32>
    %24 = vector.broadcast %23 : vector<1x256xf32> to vector<16x256xf32>
    %25 = arith.addf %22, %24 : vector<16x256xf32>
    %26 = arith.truncf %25 : vector<16x256xf32> to vector<16x256xbf16>
    %c0_10 = arith.constant 0 : index
    %c0_11 = arith.constant 0 : index
    %27 = vector.load %arg9[%c0_10, %c0_11] : memref<16x256xf32, #tpu.memory_space<vmem>>, vector<16x256xf32>
    %c0_12 = arith.constant 0 : index
    %c0_13 = arith.constant 0 : index
    %28 = vector.load %arg4[%c0_12, %c0_13] : memref<256x256xbf16, #tpu.memory_space<vmem>>, vector<256x256xbf16>
    %cst_14 = arith.constant dense<0.000000e+00> : vector<16x256xf32>
    %29 = tpu.matmul %26, %28, %cst_14 {dimension_numbers = #tpu.dot_dimension_numbers<[1], [0], [0], [1], [0, 0, 1, 1], [], []>} : vector<16x256xbf16>, vector<256x256xbf16>, vector<16x256xf32> -> vector<16x256xf32>
    %30 = arith.addf %27, %29 : vector<16x256xf32>
    %c0_15 = arith.constant 0 : index
    %c0_16 = arith.constant 0 : index
    %31 = vector.load %arg9[%c0_15, %c0_16] : memref<16x256xf32, #tpu.memory_space<vmem>>, vector<16x256xf32>
    tpu.vector_store %arg9[%c0_15, %c0_16], %30 {strides = array<i32>} : memref<16x256xf32, #tpu.memory_space<vmem>>, vector<16x256xf32>,
    %c0_i32_17 = arith.constant 0 : i32
    %32 = arith.cmpi eq, %arg2, %c0_i32_17 : i32
    %33 = arith.extui %32 : i1 to i32
    %c0_i32_18 = arith.constant 0 : i32
    %34 = arith.cmpi ne, %33, %c0_i32_18 : i32
    scf.if %34 {
      %c0_19 = arith.constant 0 : index
      %c0_20 = arith.constant 0 : index
      %35 = vector.load %arg9[%c0_19, %c0_20] : memref<16x256xf32, #tpu.memory_space<vmem>>, vector<16x256xf32>
      %c0_21 = arith.constant 0 : index
      %c0_22 = arith.constant 0 : index
      %36 = vector.load %arg5[%c0_21, %c0_22] : memref<1x256xf32, #tpu.memory_space<vmem>>, vector<1x256xf32>
      %37 = vector.broadcast %36 : vector<1x256xf32> to vector<16x256xf32>
      %38 = arith.addf %35, %37 : vector<16x256xf32>
      %c0_23 = arith.constant 0 : index
      %c0_24 = arith.constant 0 : index
      %39 = vector.load %arg8[%c0_23, %c0_24] : memref<16x256xf32, #tpu.memory_space<vmem>>, vector<16x256xf32>
      tpu.vector_store %arg8[%c0_23, %c0_24], %38 {strides = array<i32>} : memref<16x256xf32, #tpu.memory_space<vmem>>, vector<16x256xf32>,
    } else {
    }
    return
  }
  func.func @transform_0(%arg0: i32, %arg1: i32, %arg2: i32) -> (i32, i32) {
    %c0_i32 = arith.constant 0 : i32
    return %arg0, %arg2 : i32, i32
  }
  func.func @transform_1(%arg0: i32, %arg1: i32, %arg2: i32) -> (i32, i32) {
    %c0_i32 = arith.constant 0 : i32
    return %arg2, %arg1 : i32, i32
  }
  func.func @transform_2(%arg0: i32, %arg1: i32, %arg2: i32) -> (i32, i32) {
    %c0_i32 = arith.constant 0 : i32
    %c0_i32_0 = arith.constant 0 : i32
    return %c0_i32, %arg1 : i32, i32
  }
  func.func @transform_3(%arg0: i32, %arg1: i32, %arg2: i32) -> (i32, i32) {
    %c0_i32 = arith.constant 0 : i32
    %c0_i32_0 = arith.constant 0 : i32
    return %c0_i32, %arg2 : i32, i32
  }
  func.func @transform_4(%arg0: i32, %arg1: i32, %arg2: i32) -> (i32, i32) {
    %c0_i32 = arith.constant 0 : i32
    %c0_i32_0 = arith.constant 0 : i32
    return %c0_i32, %arg2 : i32, i32
  }
  func.func @transform_5(%arg0: i32, %arg1: i32, %arg2: i32) -> (i32, i32) {
    %c0_i32 = arith.constant 0 : i32
    return %arg0, %arg1 : i32, i32
  }
}

module attributes {stable_mosaic.version = 11 : i64} {
  func.func @kernel(%arg0: i32, %arg1: i32, %arg2: i32, %arg3: memref<16x256xbf16, #tpu.memory_space<vmem>>, %arg4: memref<256x256xbf16, #tpu.memory_space<vmem>>, %arg5: memref<1x256xf32, #tpu.memory_space<vmem>>, %arg6: memref<16x256xf32, #tpu.memory_space<vmem>>, %arg7: memref<16x256xf32, #tpu.memory_space<vmem>>, %arg8: memref<16x256xf32, #tpu.memory_space<vmem>>) attributes {dimension_semantics = [#tpu.dimension_semantics<parallel>, #tpu.dimension_semantics<parallel>, #tpu.dimension_semantics<arbitrary>], iteration_bounds = array<i64: 1, 1, 1>, scalar_prefetch = 0 : i64, scratch_operands = 1 : i64, tpu.core_type = #tpu.core_type<tc>, window_params = [{transform_indices = @transform_0, window_bounds = array<i64: 16, 256>}, {transform_indices = @transform_1, window_bounds = array<i64: 256, 256>}, {transform_indices = @transform_2, window_bounds = array<i64: 1, 256>}, {transform_indices = @transform_3, window_bounds = array<i64: 16, 256>}, {transform_indices = @transform_4, window_bounds = array<i64: 16, 256>}]} {
    %c0_i32 = arith.constant 0 : i32
    %0 = arith.cmpi eq, %arg2, %c0_i32 : i32
    %1 = arith.extui %0 : i1 to i32
    %c0_i32_0 = arith.constant 0 : i32
    %2 = arith.cmpi ne, %1, %c0_i32_0 : i32
    scf.if %2 {
      %cst_10 = arith.constant 0.000000e+00 : f32
      %12 = vector.broadcast %cst_10 : f32 to vector<16x256xf32>
      %c0_11 = arith.constant 0 : index
      %c0_12 = arith.constant 0 : index
      %13 = vector.load %arg8[%c0_11, %c0_12] : memref<16x256xf32, #tpu.memory_space<vmem>>, vector<16x256xf32>
      tpu.vector_store %arg8[%c0_11, %c0_12], %12 {strides = array<i32>} : memref<16x256xf32, #tpu.memory_space<vmem>>, vector<16x256xf32>,
    } else {
    }
    %c0 = arith.constant 0 : index
    %c0_1 = arith.constant 0 : index
    %3 = vector.load %arg3[%c0, %c0_1] : memref<16x256xbf16, #tpu.memory_space<vmem>>, vector<16x256xbf16>
    %c0_2 = arith.constant 0 : index
    %c0_3 = arith.constant 0 : index
    %4 = vector.load %arg8[%c0_2, %c0_3] : memref<16x256xf32, #tpu.memory_space<vmem>>, vector<16x256xf32>
    %c0_4 = arith.constant 0 : index
    %c0_5 = arith.constant 0 : index
    %5 = vector.load %arg4[%c0_4, %c0_5] : memref<256x256xbf16, #tpu.memory_space<vmem>>, vector<256x256xbf16>
    %cst = arith.constant dense<0.000000e+00> : vector<16x256xf32>
    %6 = tpu.matmul %3, %5, %cst {dimension_numbers = #tpu.dot_dimension_numbers<[1], [0], [0], [1], [0, 0, 1, 1], [], []>} : vector<16x256xbf16>, vector<256x256xbf16>, vector<16x256xf32> -> vector<16x256xf32>
    %7 = arith.addf %4, %6 : vector<16x256xf32>
    %c0_6 = arith.constant 0 : index
    %c0_7 = arith.constant 0 : index
    %8 = vector.load %arg8[%c0_6, %c0_7] : memref<16x256xf32, #tpu.memory_space<vmem>>, vector<16x256xf32>
    tpu.vector_store %arg8[%c0_6, %c0_7], %7 {strides = array<i32>} : memref<16x256xf32, #tpu.memory_space<vmem>>, vector<16x256xf32>,
    %c0_i32_8 = arith.constant 0 : i32
    %9 = arith.cmpi eq, %arg2, %c0_i32_8 : i32
    %10 = arith.extui %9 : i1 to i32
    %c0_i32_9 = arith.constant 0 : i32
    %11 = arith.cmpi ne, %10, %c0_i32_9 : i32
    scf.if %11 {
      %c0_10 = arith.constant 0 : index
      %c0_11 = arith.constant 0 : index
      %12 = vector.load %arg8[%c0_10, %c0_11] : memref<16x256xf32, #tpu.memory_space<vmem>>, vector<16x256xf32>
      %c0_12 = arith.constant 0 : index
      %c0_13 = arith.constant 0 : index
      %13 = vector.load %arg5[%c0_12, %c0_13] : memref<1x256xf32, #tpu.memory_space<vmem>>, vector<1x256xf32>
      %14 = vector.broadcast %13 : vector<1x256xf32> to vector<16x256xf32>
      %15 = arith.addf %12, %14 : vector<16x256xf32>
      %c0_14 = arith.constant 0 : index
      %c0_15 = arith.constant 0 : index
      %16 = vector.load %arg6[%c0_14, %c0_15] : memref<16x256xf32, #tpu.memory_space<vmem>>, vector<16x256xf32>
      %17 = arith.addf %15, %16 : vector<16x256xf32>
      %c0_16 = arith.constant 0 : index
      %c0_17 = arith.constant 0 : index
      %18 = vector.load %arg7[%c0_16, %c0_17] : memref<16x256xf32, #tpu.memory_space<vmem>>, vector<16x256xf32>
      tpu.vector_store %arg7[%c0_16, %c0_17], %17 {strides = array<i32>} : memref<16x256xf32, #tpu.memory_space<vmem>>, vector<16x256xf32>,
    } else {
    }
    return
  }
  func.func @transform_0(%arg0: i32, %arg1: i32, %arg2: i32) -> (i32, i32) {
    %c0_i32 = arith.constant 0 : i32
    return %arg0, %arg2 : i32, i32
  }
  func.func @transform_1(%arg0: i32, %arg1: i32, %arg2: i32) -> (i32, i32) {
    %c0_i32 = arith.constant 0 : i32
    return %arg2, %arg1 : i32, i32
  }
  func.func @transform_2(%arg0: i32, %arg1: i32, %arg2: i32) -> (i32, i32) {
    %c0_i32 = arith.constant 0 : i32
    %c0_i32_0 = arith.constant 0 : i32
    return %c0_i32, %arg1 : i32, i32
  }
  func.func @transform_3(%arg0: i32, %arg1: i32, %arg2: i32) -> (i32, i32) {
    %c0_i32 = arith.constant 0 : i32
    return %arg0, %arg1 : i32, i32
  }
  func.func @transform_4(%arg0: i32, %arg1: i32, %arg2: i32) -> (i32, i32) {
    %c0_i32 = arith.constant 0 : i32
    return %arg0, %arg1 : i32, i32
  }
}

module attributes {stable_mosaic.version = 11 : i64} {
  func.func @kernel(%arg0: i32, %arg1: i32, %arg2: i32, %arg3: memref<16x256xf32, #tpu.memory_space<vmem>>, %arg4: memref<256x256xbf16, #tpu.memory_space<vmem>>, %arg5: memref<1x256xf32, #tpu.memory_space<vmem>>, %arg6: memref<1x256xf32, #tpu.memory_space<vmem>>, %arg7: memref<1x256xf32, #tpu.memory_space<vmem>>, %arg8: memref<16x256xf32, #tpu.memory_space<vmem>>, %arg9: memref<16x256xf32, #tpu.memory_space<vmem>>) attributes {dimension_semantics = [#tpu.dimension_semantics<parallel>, #tpu.dimension_semantics<parallel>, #tpu.dimension_semantics<arbitrary>], iteration_bounds = array<i64: 1, 4, 1>, scalar_prefetch = 0 : i64, scratch_operands = 1 : i64, tpu.core_type = #tpu.core_type<tc>, window_params = [{transform_indices = @transform_0, window_bounds = array<i64: 16, 256>}, {transform_indices = @transform_1, window_bounds = array<i64: 256, 256>}, {transform_indices = @transform_2, window_bounds = array<i64: 1, 256>}, {transform_indices = @transform_3, window_bounds = array<i64: 1, 256>}, {transform_indices = @transform_4, window_bounds = array<i64: 1, 256>}, {transform_indices = @transform_5, window_bounds = array<i64: 16, 256>}]} {
    %c0_i32 = arith.constant 0 : i32
    %0 = arith.cmpi eq, %arg2, %c0_i32 : i32
    %1 = arith.extui %0 : i1 to i32
    %c0_i32_0 = arith.constant 0 : i32
    %2 = arith.cmpi ne, %1, %c0_i32_0 : i32
    scf.if %2 {
      %cst_19 = arith.constant 0.000000e+00 : f32
      %35 = vector.broadcast %cst_19 : f32 to vector<16x256xf32>
      %c0_20 = arith.constant 0 : index
      %c0_21 = arith.constant 0 : index
      %36 = vector.load %arg9[%c0_20, %c0_21] : memref<16x256xf32, #tpu.memory_space<vmem>>, vector<16x256xf32>
      tpu.vector_store %arg9[%c0_20, %c0_21], %35 {strides = array<i32>} : memref<16x256xf32, #tpu.memory_space<vmem>>, vector<16x256xf32>,
    } else {
    }
    %c0 = arith.constant 0 : index
    %c0_1 = arith.constant 0 : index
    %3 = vector.load %arg3[%c0, %c0_1] : memref<16x256xf32, #tpu.memory_space<vmem>>, vector<16x256xf32>
    %cst = arith.constant dense<0.000000e+00> : vector<16xf32>
    %4 = vector.multi_reduction <add>, %3, %cst [1] : vector<16x256xf32> to vector<16xf32>
    %5 = vector.shape_cast %4 : vector<16xf32> to vector<16x1xf32>
    %cst_2 = arith.constant 2.560000e+02 : f32
    %6 = vector.broadcast %cst_2 : f32 to vector<16x1xf32>
    %7 = arith.divf %5, %6 : vector<16x1xf32>
    %8 = vector.broadcast %7 : vector<16x1xf32> to vector<16x256xf32>
    %9 = arith.subf %3, %8 : vector<16x256xf32>
    %10 = arith.mulf %9, %9 : vector<16x256xf32>
    %cst_3 = arith.constant dense<0.000000e+00> : vector<16xf32>
    %11 = vector.multi_reduction <add>, %10, %cst_3 [1] : vector<16x256xf32> to vector<16xf32>
    %12 = vector.shape_cast %11 : vector<16xf32> to vector<16x1xf32>
    %cst_4 = arith.constant 2.560000e+02 : f32
    %13 = vector.broadcast %cst_4 : f32 to vector<16x1xf32>
    %14 = arith.divf %12, %13 : vector<16x1xf32>
    %cst_5 = arith.constant 9.99999997E-7 : f32
    %15 = vector.broadcast %cst_5 : f32 to vector<16x1xf32>
    %16 = arith.addf %14, %15 : vector<16x1xf32>
    %17 = math.rsqrt %16 : vector<16x1xf32>
    %18 = vector.broadcast %17 : vector<16x1xf32> to vector<16x256xf32>
    %19 = arith.mulf %9, %18 : vector<16x256xf32>
    %c0_6 = arith.constant 0 : index
    %c0_7 = arith.constant 0 : index
    %20 = vector.load %arg6[%c0_6, %c0_7] : memref<1x256xf32, #tpu.memory_space<vmem>>, vector<1x256xf32>
    %21 = vector.broadcast %20 : vector<1x256xf32> to vector<16x256xf32>
    %22 = arith.mulf %19, %21 : vector<16x256xf32>
    %c0_8 = arith.constant 0 : index
    %c0_9 = arith.constant 0 : index
    %23 = vector.load %arg7[%c0_8, %c0_9] : memref<1x256xf32, #tpu.memory_space<vmem>>, vector<1x256xf32>
    %24 = vector.broadcast %23 : vector<1x256xf32> to vector<16x256xf32>
    %25 = arith.addf %22, %24 : vector<16x256xf32>
    %26 = arith.truncf %25 : vector<16x256xf32> to vector<16x256xbf16>
    %c0_10 = arith.constant 0 : index
    %c0_11 = arith.constant 0 : index
    %27 = vector.load %arg9[%c0_10, %c0_11] : memref<16x256xf32, #tpu.memory_space<vmem>>, vector<16x256xf32>
    %c0_12 = arith.constant 0 : index
    %c0_13 = arith.constant 0 : index
    %28 = vector.load %arg4[%c0_12, %c0_13] : memref<256x256xbf16, #tpu.memory_space<vmem>>, vector<256x256xbf16>
    %cst_14 = arith.constant dense<0.000000e+00> : vector<16x256xf32>
    %29 = tpu.matmul %26, %28, %cst_14 {dimension_numbers = #tpu.dot_dimension_numbers<[1], [0], [0], [1], [0, 0, 1, 1], [], []>} : vector<16x256xbf16>, vector<256x256xbf16>, vector<16x256xf32> -> vector<16x256xf32>
    %30 = arith.addf %27, %29 : vector<16x256xf32>
    %c0_15 = arith.constant 0 : index
    %c0_16 = arith.constant 0 : index
    %31 = vector.load %arg9[%c0_15, %c0_16] : memref<16x256xf32, #tpu.memory_space<vmem>>, vector<16x256xf32>
    tpu.vector_store %arg9[%c0_15, %c0_16], %30 {strides = array<i32>} : memref<16x256xf32, #tpu.memory_space<vmem>>, vector<16x256xf32>,
    %c0_i32_17 = arith.constant 0 : i32
    %32 = arith.cmpi eq, %arg2, %c0_i32_17 : i32
    %33 = arith.extui %32 : i1 to i32
    %c0_i32_18 = arith.constant 0 : i32
    %34 = arith.cmpi ne, %33, %c0_i32_18 : i32
    scf.if %34 {
      %c0_19 = arith.constant 0 : index
      %c0_20 = arith.constant 0 : index
      %35 = vector.load %arg9[%c0_19, %c0_20] : memref<16x256xf32, #tpu.memory_space<vmem>>, vector<16x256xf32>
      %c0_21 = arith.constant 0 : index
      %c0_22 = arith.constant 0 : index
      %36 = vector.load %arg5[%c0_21, %c0_22] : memref<1x256xf32, #tpu.memory_space<vmem>>, vector<1x256xf32>
      %37 = vector.broadcast %36 : vector<1x256xf32> to vector<16x256xf32>
      %38 = arith.addf %35, %37 : vector<16x256xf32>
      %cst_23 = arith.constant 5.000000e-01 : f32
      %39 = vector.broadcast %cst_23 : f32 to vector<16x256xf32>
      %40 = arith.mulf %39, %38 : vector<16x256xf32>
      %cst_24 = arith.constant 4.471500e-02 : f32
      %41 = vector.broadcast %cst_24 : f32 to vector<16x256xf32>
      %42 = arith.mulf %41, %38 : vector<16x256xf32>
      %43 = arith.mulf %42, %38 : vector<16x256xf32>
      %44 = arith.mulf %43, %38 : vector<16x256xf32>
      %45 = arith.addf %38, %44 : vector<16x256xf32>
      %cst_25 = arith.constant 0.797884583 : f32
      %46 = vector.broadcast %cst_25 : f32 to vector<16x256xf32>
      %47 = arith.mulf %46, %45 : vector<16x256xf32>
      %48 = math.tanh %47 : vector<16x256xf32>
      %cst_26 = arith.constant 1.000000e+00 : f32
      %49 = vector.broadcast %cst_26 : f32 to vector<16x256xf32>
      %50 = arith.addf %49, %48 : vector<16x256xf32>
      %51 = arith.mulf %40, %50 : vector<16x256xf32>
      %c0_27 = arith.constant 0 : index
      %c0_28 = arith.constant 0 : index
      %52 = vector.load %arg8[%c0_27, %c0_28] : memref<16x256xf32, #tpu.memory_space<vmem>>, vector<16x256xf32>
      tpu.vector_store %arg8[%c0_27, %c0_28], %51 {strides = array<i32>} : memref<16x256xf32, #tpu.memory_space<vmem>>, vector<16x256xf32>,
    } else {
    }
    return
  }
  func.func @transform_0(%arg0: i32, %arg1: i32, %arg2: i32) -> (i32, i32) {
    %c0_i32 = arith.constant 0 : i32
    return %arg0, %arg2 : i32, i32
  }
  func.func @transform_1(%arg0: i32, %arg1: i32, %arg2: i32) -> (i32, i32) {
    %c0_i32 = arith.constant 0 : i32
    return %arg2, %arg1 : i32, i32
  }
  func.func @transform_2(%arg0: i32, %arg1: i32, %arg2: i32) -> (i32, i32) {
    %c0_i32 = arith.constant 0 : i32
    %c0_i32_0 = arith.constant 0 : i32
    return %c0_i32, %arg1 : i32, i32
  }
  func.func @transform_3(%arg0: i32, %arg1: i32, %arg2: i32) -> (i32, i32) {
    %c0_i32 = arith.constant 0 : i32
    %c0_i32_0 = arith.constant 0 : i32
    return %c0_i32, %arg2 : i32, i32
  }
  func.func @transform_4(%arg0: i32, %arg1: i32, %arg2: i32) -> (i32, i32) {
    %c0_i32 = arith.constant 0 : i32
    %c0_i32_0 = arith.constant 0 : i32
    return %c0_i32, %arg2 : i32, i32
  }
  func.func @transform_5(%arg0: i32, %arg1: i32, %arg2: i32) -> (i32, i32) {
    %c0_i32 = arith.constant 0 : i32
    return %arg0, %arg1 : i32, i32
  }
}

module attributes {stable_mosaic.version = 11 : i64} {
  func.func @kernel(%arg0: i32, %arg1: i32, %arg2: i32, %arg3: memref<8x256xf32, #tpu.memory_space<vmem>>, %arg4: memref<256x128xbf16, #tpu.memory_space<vmem>>, %arg5: memref<1x128xf32, #tpu.memory_space<vmem>>, %arg6: memref<1x256xf32, #tpu.memory_space<vmem>>, %arg7: memref<1x256xf32, #tpu.memory_space<vmem>>, %arg8: memref<8x128xf32, #tpu.memory_space<vmem>>, %arg9: memref<8x128xf32, #tpu.memory_space<vmem>>) attributes {dimension_semantics = [#tpu.dimension_semantics<parallel>, #tpu.dimension_semantics<parallel>, #tpu.dimension_semantics<arbitrary>], iteration_bounds = array<i64: 1, 1, 1>, scalar_prefetch = 0 : i64, scratch_operands = 1 : i64, tpu.core_type = #tpu.core_type<tc>, window_params = [{transform_indices = @transform_0, window_bounds = array<i64: 8, 256>}, {transform_indices = @transform_1, window_bounds = array<i64: 256, 128>}, {transform_indices = @transform_2, window_bounds = array<i64: 1, 128>}, {transform_indices = @transform_3, window_bounds = array<i64: 1, 256>}, {transform_indices = @transform_4, window_bounds = array<i64: 1, 256>}, {transform_indices = @transform_5, window_bounds = array<i64: 8, 128>}]} {
    %c0_i32 = arith.constant 0 : i32
    %0 = arith.cmpi eq, %arg2, %c0_i32 : i32
    %1 = arith.extui %0 : i1 to i32
    %c0_i32_0 = arith.constant 0 : i32
    %2 = arith.cmpi ne, %1, %c0_i32_0 : i32
    scf.if %2 {
      %cst_19 = arith.constant 0.000000e+00 : f32
      %35 = vector.broadcast %cst_19 : f32 to vector<8x128xf32>
      %c0_20 = arith.constant 0 : index
      %c0_21 = arith.constant 0 : index
      %36 = vector.load %arg9[%c0_20, %c0_21] : memref<8x128xf32, #tpu.memory_space<vmem>>, vector<8x128xf32>
      tpu.vector_store %arg9[%c0_20, %c0_21], %35 {strides = array<i32>} : memref<8x128xf32, #tpu.memory_space<vmem>>, vector<8x128xf32>,
    } else {
    }
    %c0 = arith.constant 0 : index
    %c0_1 = arith.constant 0 : index
    %3 = vector.load %arg3[%c0, %c0_1] : memref<8x256xf32, #tpu.memory_space<vmem>>, vector<8x256xf32>
    %cst = arith.constant dense<0.000000e+00> : vector<8xf32>
    %4 = vector.multi_reduction <add>, %3, %cst [1] : vector<8x256xf32> to vector<8xf32>
    %5 = vector.shape_cast %4 : vector<8xf32> to vector<8x1xf32>
    %cst_2 = arith.constant 2.560000e+02 : f32
    %6 = vector.broadcast %cst_2 : f32 to vector<8x1xf32>
    %7 = arith.divf %5, %6 : vector<8x1xf32>
    %8 = vector.broadcast %7 : vector<8x1xf32> to vector<8x256xf32>
    %9 = arith.subf %3, %8 : vector<8x256xf32>
    %10 = arith.mulf %9, %9 : vector<8x256xf32>
    %cst_3 = arith.constant dense<0.000000e+00> : vector<8xf32>
    %11 = vector.multi_reduction <add>, %10, %cst_3 [1] : vector<8x256xf32> to vector<8xf32>
    %12 = vector.shape_cast %11 : vector<8xf32> to vector<8x1xf32>
    %cst_4 = arith.constant 2.560000e+02 : f32
    %13 = vector.broadcast %cst_4 : f32 to vector<8x1xf32>
    %14 = arith.divf %12, %13 : vector<8x1xf32>
    %cst_5 = arith.constant 9.99999997E-7 : f32
    %15 = vector.broadcast %cst_5 : f32 to vector<8x1xf32>
    %16 = arith.addf %14, %15 : vector<8x1xf32>
    %17 = math.rsqrt %16 : vector<8x1xf32>
    %18 = vector.broadcast %17 : vector<8x1xf32> to vector<8x256xf32>
    %19 = arith.mulf %9, %18 : vector<8x256xf32>
    %c0_6 = arith.constant 0 : index
    %c0_7 = arith.constant 0 : index
    %20 = vector.load %arg6[%c0_6, %c0_7] : memref<1x256xf32, #tpu.memory_space<vmem>>, vector<1x256xf32>
    %21 = vector.broadcast %20 : vector<1x256xf32> to vector<8x256xf32>
    %22 = arith.mulf %19, %21 : vector<8x256xf32>
    %c0_8 = arith.constant 0 : index
    %c0_9 = arith.constant 0 : index
    %23 = vector.load %arg7[%c0_8, %c0_9] : memref<1x256xf32, #tpu.memory_space<vmem>>, vector<1x256xf32>
    %24 = vector.broadcast %23 : vector<1x256xf32> to vector<8x256xf32>
    %25 = arith.addf %22, %24 : vector<8x256xf32>
    %26 = arith.truncf %25 : vector<8x256xf32> to vector<8x256xbf16>
    %c0_10 = arith.constant 0 : index
    %c0_11 = arith.constant 0 : index
    %27 = vector.load %arg9[%c0_10, %c0_11] : memref<8x128xf32, #tpu.memory_space<vmem>>, vector<8x128xf32>
    %c0_12 = arith.constant 0 : index
    %c0_13 = arith.constant 0 : index
    %28 = vector.load %arg4[%c0_12, %c0_13] : memref<256x128xbf16, #tpu.memory_space<vmem>>, vector<256x128xbf16>
    %cst_14 = arith.constant dense<0.000000e+00> : vector<8x128xf32>
    %29 = tpu.matmul %26, %28, %cst_14 {dimension_numbers = #tpu.dot_dimension_numbers<[1], [0], [0], [1], [0, 0, 1, 1], [], []>} : vector<8x256xbf16>, vector<256x128xbf16>, vector<8x128xf32> -> vector<8x128xf32>
    %30 = arith.addf %27, %29 : vector<8x128xf32>
    %c0_15 = arith.constant 0 : index
    %c0_16 = arith.constant 0 : index
    %31 = vector.load %arg9[%c0_15, %c0_16] : memref<8x128xf32, #tpu.memory_space<vmem>>, vector<8x128xf32>
    tpu.vector_store %arg9[%c0_15, %c0_16], %30 {strides = array<i32>} : memref<8x128xf32, #tpu.memory_space<vmem>>, vector<8x128xf32>,
    %c0_i32_17 = arith.constant 0 : i32
    %32 = arith.cmpi eq, %arg2, %c0_i32_17 : i32
    %33 = arith.extui %32 : i1 to i32
    %c0_i32_18 = arith.constant 0 : i32
    %34 = arith.cmpi ne, %33, %c0_i32_18 : i32
    scf.if %34 {
      %c0_19 = arith.constant 0 : index
      %c0_20 = arith.constant 0 : index
      %35 = vector.load %arg9[%c0_19, %c0_20] : memref<8x128xf32, #tpu.memory_space<vmem>>, vector<8x128xf32>
      %c0_21 = arith.constant 0 : index
      %c0_22 = arith.constant 0 : index
      %36 = vector.load %arg5[%c0_21, %c0_22] : memref<1x128xf32, #tpu.memory_space<vmem>>, vector<1x128xf32>
      %37 = vector.broadcast %36 : vector<1x128xf32> to vector<8x128xf32>
      %38 = arith.addf %35, %37 : vector<8x128xf32>
      %39 = tpu.iota {dimensions = array<i32: 1>} : vector<8x128xi32>
      %c6_i32 = arith.constant 6 : i32
      %40 = vector.broadcast %c6_i32 : i32 to vector<8x128xi32>
      %41 = arith.cmpi slt, %39, %40 : vector<8x128xi32>
      %cst_23 = arith.constant -1.000000e+30 : f32
      %42 = vector.broadcast %cst_23 : f32 to vector<8x128xf32>
      %43 = arith.select %41, %38, %42 : vector<8x128xi1>, vector<8x128xf32>
      %cst_24 = arith.constant dense<0xFF800000> : vector<8xf32>
      %44 = vector.multi_reduction <maximumf>, %43, %cst_24 [1] : vector<8x128xf32> to vector<8xf32>
      %45 = vector.shape_cast %44 : vector<8xf32> to vector<8x1xf32>
      %46 = vector.broadcast %45 : vector<8x1xf32> to vector<8x128xf32>
      %47 = arith.subf %43, %46 : vector<8x128xf32>
      %48 = math.exp %47 : vector<8x128xf32>
      %cst_25 = arith.constant dense<0.000000e+00> : vector<8xf32>
      %49 = vector.multi_reduction <add>, %48, %cst_25 [1] : vector<8x128xf32> to vector<8xf32>
      %50 = vector.shape_cast %49 : vector<8xf32> to vector<8x1xf32>
      %51 = vector.broadcast %50 : vector<8x1xf32> to vector<8x128xf32>
      %52 = arith.divf %48, %51 : vector<8x128xf32>
      %c0_26 = arith.constant 0 : index
      %c0_27 = arith.constant 0 : index
      %53 = vector.load %arg8[%c0_26, %c0_27] : memref<8x128xf32, #tpu.memory_space<vmem>>, vector<8x128xf32>
      tpu.vector_store %arg8[%c0_26, %c0_27], %52 {strides = array<i32>} : memref<8x128xf32, #tpu.memory_space<vmem>>, vector<8x128xf32>,
    } else {
    }
    return
  }
  func.func @transform_0(%arg0: i32, %arg1: i32, %arg2: i32) -> (i32, i32) {
    %c0_i32 = arith.constant 0 : i32
    return %arg0, %arg2 : i32, i32
  }
  func.func @transform_1(%arg0: i32, %arg1: i32, %arg2: i32) -> (i32, i32) {
    %c0_i32 = arith.constant 0 : i32
    return %arg2, %arg1 : i32, i32
  }
  func.func @transform_2(%arg0: i32, %arg1: i32, %arg2: i32) -> (i32, i32) {
    %c0_i32 = arith.constant 0 : i32
    %c0_i32_0 = arith.constant 0 : i32
    return %c0_i32, %arg1 : i32, i32
  }
  func.func @transform_3(%arg0: i32, %arg1: i32, %arg2: i32) -> (i32, i32) {
    %c0_i32 = arith.constant 0 : i32
    %c0_i32_0 = arith.constant 0 : i32
    return %c0_i32, %arg2 : i32, i32
  }
  func.func @transform_4(%arg0: i32, %arg1: i32, %arg2: i32) -> (i32, i32) {
    %c0_i32 = arith.constant 0 : i32
    %c0_i32_0 = arith.constant 0 : i32
    return %c0_i32, %arg2 : i32, i32
  }
  func.func @transform_5(%arg0: i32, %arg1: i32, %arg2: i32) -> (i32, i32) {
    %c0_i32 = arith.constant 0 : i32
    return %arg0, %arg1 : i32, i32
  }
}

</mosaic_0001>

<llo_original>
// kernel: _lambda_.12
$region0: #{_lambda_.12}
  #allocation0 [shape = 'u32[]', space=smem, size = 0x4, offset = 0x4, fixed_abs, tag = 'smem constant byte address 0x4 - core index']
  #allocation1 [shape = 'u32[72,128]{1,0:T(1,128)}', space=vmem, size = 0x9000, scoped, tag = 'internal scratch']
  #allocation2 [shape = 'f32[8,256]{1,0:T(8,128)}', space=vmem, size = 0x2000, scoped, tag = 'scratch operand']
  %s0 = inlined_call_operand.vmem [shape: bf16[8,768], index: 0, kind: input, shape index: {}]
  %s1 = inlined_call_operand.hbm [shape: bf16[768,256], index: 1, kind: input, shape index: {}]
  %s2 = inlined_call_operand.vmem [shape: f32[1,256], index: 2, kind: input, shape index: {}]
  %s3 = inlined_call_operand.vmem [shape: f32[8,256], index: 3, kind: output, shape index: {}]
  %s4 = sld [smem:[#allocation0]]
  $region57: #{_lambda_.12} parent=0
    _
  %s6 = ssub.s32 1, %s4
  %s7 = scalar_select 0, %s6, %s4
  $region1: #{_lambda_.12} parent=0
    #allocation3 [shape = 'u8[262144]{0}', space=vmem, size = 0x40000, scoped, tag = 'input window, operand 1']
    #allocation4 [shape = 's32[2]{0}', space=sflag, size = 0x8, scoped, tag = 'scoped memory for _lambda_.12']
    %8 = vsyncpa [#allocation4], 0
    %s9 = scalar_lea.sflag [#allocation4], 1
    %10 = vsyncpa %s9, 0
    loop: start=0, step=1, limit=5
    $region2: #{_lambda_.12} parent=1 // loop_pre_header
      _
    $region3: #{_lambda_.12} parent=1 // loop_header
      %s12 = sphi 0, %s16
      %p13 = scmp.ge.s32.totalorder %s12, 5
      %s19 = sphi 0, %s38
      %s20 = sphi 0, %s34
      %s21 = sphi 0, %s30
      %s22 = sphi 0, %s19
      %s23 = sphi 0, %s20
      %s24 = sphi 0, %s21
      %s25 = sphi 0, %s22
      %s26 = sphi 0, %s23
      %s27 = sphi 0, %s24
      %s43 = sphi 0, %s45
      %s46 = sphi 0, %s43
      %s47 = sphi 0, %s46
      %s63 = sphi 0, %s47
      %s71 = sphi 0, %s73
      %s74 = sphi 0, %s71
      %s75 = sphi 0, %s74
      %s91 = sphi 0, %s75
      %s97 = sphi 0, %s99
      %s100 = sphi 0, %s97
      %s101 = sphi 0, %s100
      %s117 = sphi 0, %s101
      %s125 = sphi 0, %s127
      %s128 = sphi 0, %s125
      %s129 = sphi 0, %s128
      %s145 = sphi 0, %s129
    $region4: #{_lambda_.12} parent=1 // loop_header_branch
      %15 = sbr.rel (%p13) target = $region8
    $region5: #{_lambda_.12} parent=1 // loop_body
      %s17 = ssub.s32 %s12, 1
      %s18 = ssub.s32 %s12, 2
      %s28 = sadd.s32 1, %s21
      %p29 = scmp.ge.s32.totalorder %s28, 3
      %s30 = scalar_select %p29, 0, %s28
      %s31 = sadd.s32 1, %s20
      %s32 = scalar_select %p29, %s31, %s20
      %p33 = scmp.ge.s32.totalorder %s32, 1
      %s34 = scalar_select %p33, 0, %s32
      %s35 = sadd.s32 1, %s19
      %s36 = scalar_select %p33, %s35, %s19
      %p37 = scmp.ge.s32.totalorder %s36, 1
      %s38 = scalar_select %p37, 0, %s36
      %s39 = ssub.s32 %s19, %s38
      %s40 = ssub.s32 %s21, %s30
      %s41 = sor.u32 %s39, %s40
      %p42 = scmp.eq.s32.totalorder %s41, 0
      %s44 = sadd.s32 %s43, 1
      %s45 = scalar_select %p42, %s43, %s44
      %p48 = pneg %p42
      %p49 = scmp.eq.s32.totalorder %s12, 2
      %p50 = por %p48, %p49
      %p51 = scmp.ne.s32.totalorder %s43, %s46
      %p52 = scmp.eq.s32.totalorder %s12, 0
      %p53 = por %p51, %p52
      %p54 = scmp.ne.s32.totalorder %s43, %s46
      %p55 = scmp.eq.s32.totalorder %s17, 2
      %p56 = por %p54, %p55
      %p57 = scmp.ne.s32.totalorder %s46, %s47
      %p58 = scmp.eq.s32.totalorder %s17, 0
      %p59 = por %p57, %p58
      %p60 = scmp.ne.s32.totalorder %s46, %s47
      %p61 = scmp.eq.s32.totalorder %s18, 2
      %p62 = por %p60, %p61
      %p64 = scmp.ne.s32.totalorder %s47, %s63
      %p65 = scmp.eq.s32.totalorder %s18, 0
      %p66 = por %p64, %p65
      %s67 = ssub.s32 %s21, %s30
      %s68 = ssub.s32 %s20, %s34
      %s69 = sor.u32 %s67, %s68
      %p70 = scmp.eq.s32.totalorder %s69, 0
      %s72 = sadd.s32 %s71, 1
      %s73 = scalar_select %p70, %s71, %s72
      %p76 = pneg %p70
      %p77 = scmp.eq.s32.totalorder %s12, 2
      %p78 = por %p76, %p77
      %p79 = scmp.ne.s32.totalorder %s71, %s74
      %p80 = scmp.eq.s32.totalorder %s12, 0
      %p81 = por %p79, %p80
      %p82 = scmp.ne.s32.totalorder %s71, %s74
      %p83 = scmp.eq.s32.totalorder %s17, 2
      %p84 = por %p82, %p83
      %p85 = scmp.ne.s32.totalorder %s74, %s75
      %p86 = scmp.eq.s32.totalorder %s17, 0
      %p87 = por %p85, %p86
      %p88 = scmp.ne.s32.totalorder %s74, %s75
      %p89 = scmp.eq.s32.totalorder %s18, 2
      %p90 = por %p88, %p89
      %p92 = scmp.ne.s32.totalorder %s75, %s91
      %p93 = scmp.eq.s32.totalorder %s18, 0
      %p94 = por %p92, %p93
      %s95 = ssub.s32 %s20, %s34
      %p96 = scmp.eq.s32.totalorder %s95, 0
      %s98 = sadd.s32 %s97, 1
      %s99 = scalar_select %p96, %s97, %s98
      %p102 = pneg %p96
      %p103 = scmp.eq.s32.totalorder %s12, 2
      %p104 = por %p102, %p103
      %p105 = scmp.ne.s32.totalorder %s97, %s100
      %p106 = scmp.eq.s32.totalorder %s12, 0
      %p107 = por %p105, %p106
      %p108 = scmp.ne.s32.totalorder %s97, %s100
      %p109 = scmp.eq.s32.totalorder %s17, 2
      %p110 = por %p108, %p109
      %p111 = scmp.ne.s32.totalorder %s100, %s101
      %p112 = scmp.eq.s32.totalorder %s17, 0
      %p113 = por %p111, %p112
      %p114 = scmp.ne.s32.totalorder %s100, %s101
      %p115 = scmp.eq.s32.totalorder %s18, 2
      %p116 = por %p114, %p115
      %p118 = scmp.ne.s32.totalorder %s101, %s117
      %p119 = scmp.eq.s32.totalorder %s18, 0
      %p120 = por %p118, %p119
      %s121 = ssub.s32 %s19, %s38
      %s122 = ssub.s32 %s20, %s34
      %s123 = sor.u32 %s121, %s122
      %p124 = scmp.eq.s32.totalorder %s123, 0
      %s126 = sadd.s32 %s125, 1
      %s127 = scalar_select %p124, %s125, %s126
      %p130 = pneg %p124
      %p131 = scmp.eq.s32.totalorder %s12, 2
      %p132 = por %p130, %p131
      %p133 = scmp.ne.s32.totalorder %s125, %s128
      %p134 = scmp.eq.s32.totalorder %s12, 0
      %p135 = por %p133, %p134
      %p136 = scmp.ne.s32.totalorder %s125, %s128
      %p137 = scmp.eq.s32.totalorder %s17, 2
      %p138 = por %p136, %p137
      %p139 = scmp.ne.s32.totalorder %s128, %s129
      %p140 = scmp.eq.s32.totalorder %s17, 0
      %p141 = por %p139, %p140
      %p142 = scmp.ne.s32.totalorder %s128, %s129
      %p143 = scmp.eq.s32.totalorder %s18, 2
      %p144 = por %p142, %p143
      %p146 = scmp.ne.s32.totalorder %s129, %s145
      %p147 = scmp.eq.s32.totalorder %s18, 0
      %p148 = por %p146, %p147
      %p149 = scmp.le.s32.totalorder 1, %s12
      %p150 = scmp.lt.s32.totalorder %s12, 4
      %p151 = pnand %p149, %p150
      %p152 = pneg %p151
      // Predicated region
      $region9: #{_lambda_.12} parent=5 // pred_check
        _
      $region10: #{_lambda_.12} parent=5 // pred_check_branch
        %154 = sbr.rel (%p151) target = $region12
      $region11: #{_lambda_.12} parent=5 // pred_region
        %s155 = ssub.s32 %s12, 1
        // Predicated region
        $region13: #{_lambda_.12} parent=11 // pred_check
          %p156 = pneg %p113
        $region14: #{_lambda_.12} parent=11 // pred_check_branch
          %158 = sbr.rel (%p156) target = $region16
        $region15: #{_lambda_.12} parent=11 // pred_region
          %s159 = smul.u32 2, %s23
          %p160 = scmp.lt.s32.totalorder %s159, 1
          %s161 = scalar_select %p160, %s159, 1
          %s162 = scalar_lea.vmem %s2, %s161
          %s163 = smul.u32 2, %s23
        $region16: #{_lambda_.12} parent=11 // pred_fallthru
          _
      $region12: #{_lambda_.12} parent=5 // pred_fallthru
        _
      %p164 = scmp.lt.s32.totalorder %s12, 3
      // Predicated region
      $region17: #{_lambda_.12} parent=5 // pred_check
        %p165 = pneg %p164
      $region18: #{_lambda_.12} parent=5 // pred_check_branch
        %167 = sbr.rel (%p165) target = $region20
      $region19: #{_lambda_.12} parent=5 // pred_region
        // Predicated region
        $region21: #{_lambda_.12} parent=19 // pred_check
          %p168 = pneg %p53
        $region22: #{_lambda_.12} parent=19 // pred_check_branch
          %170 = sbr.rel (%p168) target = $region24
        $region23: #{_lambda_.12} parent=19 // pred_region
          %s171 = smul.u32 2, %s21
          %p172 = scmp.lt.s32.totalorder %s19, 0
          %s173 = scalar_select %p172, %s19, 0
          %p174 = scmp.lt.s32.totalorder %s171, 5
          %s175 = scalar_select %p174, %s171, 5
          %s176 = smul.addr %s173, 6
          %s177 = sadd.s32 %s175, %s176
          %s178 = smul.addr %s177, 4
          %s179 = scalar_lea.vmem %s0, %s178
          %s180 = smul.u32 2, %s21
        $region24: #{_lambda_.12} parent=19 // pred_fallthru
          _
        // Predicated region
        $region25: #{_lambda_.12} parent=19 // pred_check
          %p181 = pneg %p81
        $region26: #{_lambda_.12} parent=19 // pred_check_branch
          %183 = sbr.rel (%p181) target = $region28
        $region27: #{_lambda_.12} parent=19 // pred_region
          %s184 = sand.u32 %s71, 1
          %s185 = scalar_lea.sflag [#allocation4], %s184
          %s186 = sand.u32 %s71, 1
          %s187 = smul.addr %s186, 256
          %s188 = scalar_lea.vmem [#allocation3], %s187
          %s189 = smul.u32 32, %s21
          %s190 = smul.u32 2, %s20
          %192 = vsyncadd %s185, 0
          %s193 = smul.addr %s189, 2
          %s194 = sadd.s32 %s190, %s193
          %s195 = smul.addr %s194, 4
          %s196 = scalar_lea.hbm %s1, %s195
          %s197 = sshll.u32 %s196, 4
          %s198 = int_to_ptr.hbm [resolvable:$true] %s197
          %s199 = sshll.u32 %s188, 4
          %s200 = int_to_ptr.vmem [resolvable:$true] %s199
          %205 = dma.hbm_to_vmem [thread:$0]  %s198, 4096, %s200, %s185, 128, 128, 8
        $region28: #{_lambda_.12} parent=19 // pred_fallthru
          _
      $region20: #{_lambda_.12} parent=5 // pred_fallthru
        _
      %p206 = scmp.le.s32.totalorder 1, %s12
      %p207 = scmp.lt.s32.totalorder %s12, 4
      %p208 = pnand %p206, %p207
      %p209 = pneg %p208
      // Predicated region
      $region29: #{_lambda_.12} parent=5 // pred_check
        _
      $region30: #{_lambda_.12} parent=5 // pred_check_branch
        %211 = sbr.rel (%p208) target = $region32
      $region31: #{_lambda_.12} parent=5 // pred_region
        %s212 = ssub.s32 %s12, 1
        %s213 = sand.u32 %s74, 1
        %s214 = scalar_lea.sflag [#allocation4], %s213
        %s215 = sand.u32 %s74, 1
        %s216 = smul.addr %s215, 256
        %s217 = scalar_lea.vmem [#allocation3], %s216
        // Predicated region
        $region33: #{_lambda_.12} parent=31 // pred_check
          %p218 = pneg %p87
        $region34: #{_lambda_.12} parent=31 // pred_check_branch
          %220 = sbr.rel (%p218) target = $region36
        $region35: #{_lambda_.12} parent=31 // pred_region
          %222 = dma.done %s214, 4096
        $region36: #{_lambda_.12} parent=31 // pred_fallthru
          _
        %s223 = smul.u32 2, %s24
        %p224 = scmp.lt.s32.totalorder %s22, 0
        %s225 = scalar_select %p224, %s22, 0
        %p226 = scmp.lt.s32.totalorder %s223, 5
        %s227 = scalar_select %p226, %s223, 5
        %s228 = smul.addr %s225, 6
        %s229 = sadd.s32 %s227, %s228
        %s230 = smul.addr %s229, 4
        %s231 = scalar_lea.vmem %s0, %s230
        %p232 = pneg %p59
        %p233 = pneg %p56
        %s234 = sand.u32 %s74, 1
        %s235 = scalar_lea.sflag [#allocation4], %s234
        %s236 = sand.u32 %s74, 1
        %s237 = smul.addr %s236, 256
        %s238 = scalar_lea.vmem [#allocation3], %s237
        %p239 = pneg %p87
        %p240 = pneg %p84
        %s241 = smul.u32 2, %s23
        %p242 = scmp.lt.s32.totalorder %s241, 1
        %s243 = scalar_select %p242, %s241, 1
        %s244 = scalar_lea.vmem %s2, %s243
        %p245 = pneg %p113
        %p246 = pneg %p110
        %p247 = pneg %p141
        %p248 = pneg %p138
        %s249 = smul.u32 2, %s23
        %p250 = scmp.lt.s32.totalorder %s22, 0
        %s251 = scalar_select %p250, %s22, 0
        %p252 = scmp.lt.s32.totalorder %s249, 1
        %s253 = scalar_select %p252, %s249, 1
        %s254 = smul.addr %s251, 2
        %s255 = sadd.s32 %s253, %s254
        %s256 = smul.addr %s255, 8
        %s257 = scalar_lea.vmem %s3, %s256
        %s258 = smul.u32 2, %s24
        %p259 = scmp.lt.s32.totalorder %s22, 0
        %s260 = scalar_select %p259, %s22, 0
        %p261 = scmp.lt.s32.totalorder %s258, 5
        %s262 = scalar_select %p261, %s258, 5
        %s263 = smul.addr %s260, 6
        %s264 = sadd.s32 %s262, %s263
        %s265 = smul.addr %s264, 4
        %s266 = scalar_lea.vmem %s0, %s265
        %s267 = smul.u32 2, %s24
        %s268 = smul.u32 32, %s24
        %s269 = smul.u32 2, %s23
        %s270 = smul.u32 2, %s23
        %p271 = scmp.lt.s32.totalorder %s270, 1
        %s272 = scalar_select %p271, %s270, 1
        %s273 = scalar_lea.vmem %s2, %s272
        %s274 = smul.u32 2, %s23
        %s275 = smul.u32 2, %s23
        %p276 = scmp.lt.s32.totalorder %s22, 0
        %s277 = scalar_select %p276, %s22, 0
        %p278 = scmp.lt.s32.totalorder %s275, 1
        %s279 = scalar_select %p278, %s275, 1
        %s280 = smul.addr %s277, 2
        %s281 = sadd.s32 %s279, %s280
        %s282 = smul.addr %s281, 8
        %s283 = scalar_lea.vmem %s3, %s282
        %s284 = smul.u32 2, %s23
        %p285 = scmp.eq.s32.totalorder %s24, 0
        // Predicated region
        $region37: #{_lambda_.12} parent=31 // pred_check
          %p286 = pneg %p285
        $region38: #{_lambda_.12} parent=31 // pred_check_branch
          %288 = sbr.rel (%p286) target = $region40
        $region39: #{_lambda_.12} parent=31 // pred_region
          %289 = vst [vmem:[#allocation2] sm:$0xff] 0.0
          %290 = vst [vmem:[#allocation2 + $0x8] sm:$0xff] 0.0
        $region40: #{_lambda_.12} parent=31 // pred_fallthru
          _
        %v291 = vld [vmem:[%s266] sm:$0xff]
        %v292 = vld [vmem:[#allocation2] sm:$0xff]
        %v293 = vld [vmem:[#allocation2 + $0x8] sm:$0xff]
        %v294 = vld [vmem:[%s217] sm:$0xff]
        %v295 = vld [vmem:[%s217 + $0x8] sm:$0xff]
        %v296 = vld [vmem:[%s217 + $0x10] sm:$0xff]
        %v297 = vld [vmem:[%s217 + $0x18] sm:$0xff]
        %v298 = vld [vmem:[%s217 + $0x20] sm:$0xff]
        %v299 = vld [vmem:[%s217 + $0x28] sm:$0xff]
        %v300 = vld [vmem:[%s217 + $0x30] sm:$0xff]
        %v301 = vld [vmem:[%s217 + $0x38] sm:$0xff]
        %v302 = vld [vmem:[%s217 + $0x40] sm:$0xff]
        %v303 = vld [vmem:[%s217 + $0x48] sm:$0xff]
        %v304 = vld [vmem:[%s217 + $0x50] sm:$0xff]
        %v305 = vld [vmem:[%s217 + $0x58] sm:$0xff]
        %v306 = vld [vmem:[%s217 + $0x60] sm:$0xff]
        %v307 = vld [vmem:[%s217 + $0x68] sm:$0xff]
        %v308 = vld [vmem:[%s217 + $0x70] sm:$0xff]
        %v309 = vld [vmem:[%s217 + $0x78] sm:$0xff]
        %v310 = vld [vmem:[%s217 + $0x80] sm:$0xff]
        %v311 = vld [vmem:[%s217 + $0x88] sm:$0xff]
        %v312 = vld [vmem:[%s217 + $0x90] sm:$0xff]
        %v313 = vld [vmem:[%s217 + $0x98] sm:$0xff]
        %v314 = vld [vmem:[%s217 + $0xa0] sm:$0xff]
        %v315 = vld [vmem:[%s217 + $0xa8] sm:$0xff]
        %v316 = vld [vmem:[%s217 + $0xb0] sm:$0xff]
        %v317 = vld [vmem:[%s217 + $0xb8] sm:$0xff]
        %v318 = vld [vmem:[%s217 + $0xc0] sm:$0xff]
        %v319 = vld [vmem:[%s217 + $0xc8] sm:$0xff]
        %v320 = vld [vmem:[%s217 + $0xd0] sm:$0xff]
        %v321 = vld [vmem:[%s217 + $0xd8] sm:$0xff]
        %v322 = vld [vmem:[%s217 + $0xe0] sm:$0xff]
        %v323 = vld [vmem:[%s217 + $0xe8] sm:$0xff]
        %v324 = vld [vmem:[%s217 + $0xf0] sm:$0xff]
        %v325 = vld [vmem:[%s217 + $0xf8] sm:$0xff]
        %v327 = vunpack.c.l.b16 %v291
        %v328 = vunpack.c.h.b16 %v291
        %v329 = vpack.c.b16 %v327, %v327
        %v330 = vpack.c.b16 %v328, %v328
        %v365 = vunpack.c.l.b16 %v294
        %v366 = vunpack.c.h.b16 %v294
        %v367 = vunpack.c.l.b16 %v295
        %v368 = vunpack.c.h.b16 %v295
        %v369 = vunpack.c.l.b16 %v296
        %v370 = vunpack.c.h.b16 %v296
        %v371 = vunpack.c.l.b16 %v297
        %v372 = vunpack.c.h.b16 %v297
        %v373 = vunpack.c.l.b16 %v298
        %v374 = vunpack.c.h.b16 %v298
        %v375 = vunpack.c.l.b16 %v299
        %v376 = vunpack.c.h.b16 %v299
        %v377 = vunpack.c.l.b16 %v300
        %v378 = vunpack.c.h.b16 %v300
        %v379 = vunpack.c.l.b16 %v301
        %v380 = vunpack.c.h.b16 %v301
        %v381 = vunpack.c.l.b16 %v302
        %v382 = vunpack.c.h.b16 %v302
        %v383 = vunpack.c.l.b16 %v303
        %v384 = vunpack.c.h.b16 %v303
        %v385 = vunpack.c.l.b16 %v304
        %v386 = vunpack.c.h.b16 %v304
        %v387 = vunpack.c.l.b16 %v305
        %v388 = vunpack.c.h.b16 %v305
        %v389 = vunpack.c.l.b16 %v306
        %v390 = vunpack.c.h.b16 %v306
        %v391 = vunpack.c.l.b16 %v307
        %v392 = vunpack.c.h.b16 %v307
        %v393 = vunpack.c.l.b16 %v308
        %v394 = vunpack.c.h.b16 %v308
        %v395 = vunpack.c.l.b16 %v309
        %v396 = vunpack.c.h.b16 %v309
        %v397 = vunpack.c.l.b16 %v310
        %v398 = vunpack.c.h.b16 %v310
        %v399 = vunpack.c.l.b16 %v311
        %v400 = vunpack.c.h.b16 %v311
        %v401 = vunpack.c.l.b16 %v312
        %v402 = vunpack.c.h.b16 %v312
        %v403 = vunpack.c.l.b16 %v313
        %v404 = vunpack.c.h.b16 %v313
        %v405 = vunpack.c.l.b16 %v314
        %v406 = vunpack.c.h.b16 %v314
        %v407 = vunpack.c.l.b16 %v315
        %v408 = vunpack.c.h.b16 %v315
        %v409 = vunpack.c.l.b16 %v316
        %v410 = vunpack.c.h.b16 %v316
        %v411 = vunpack.c.l.b16 %v317
        %v412 = vunpack.c.h.b16 %v317
        %v413 = vunpack.c.l.b16 %v318
        %v414 = vunpack.c.h.b16 %v318
        %v415 = vunpack.c.l.b16 %v319
        %v416 = vunpack.c.h.b16 %v319
        %v417 = vunpack.c.l.b16 %v320
        %v418 = vunpack.c.h.b16 %v320
        %v419 = vunpack.c.l.b16 %v321
        %v420 = vunpack.c.h.b16 %v321
        %v421 = vunpack.c.l.b16 %v322
        %v422 = vunpack.c.h.b16 %v322
        %v423 = vunpack.c.l.b16 %v323
        %v424 = vunpack.c.h.b16 %v323
        %v425 = vunpack.c.l.b16 %v324
        %v426 = vunpack.c.h.b16 %v324
        %v427 = vunpack.c.l.b16 %v325
        %v428 = vunpack.c.h.b16 %v325
        %v429 = vpack.c.b16 %v367, %v365
        %v430 = vpack.c.b16 %v368, %v366
        %v431 = vpack.c.b16 %v371, %v369
        %v432 = vpack.c.b16 %v372, %v370
        %v433 = vpack.c.b16 %v375, %v373
        %v434 = vpack.c.b16 %v376, %v374
        %v435 = vpack.c.b16 %v379, %v377
        %v436 = vpack.c.b16 %v380, %v378
        %v437 = vpack.c.b16 %v383, %v381
        %v438 = vpack.c.b16 %v384, %v382
        %v439 = vpack.c.b16 %v387, %v385
        %v440 = vpack.c.b16 %v388, %v386
        %v441 = vpack.c.b16 %v391, %v389
        %v442 = vpack.c.b16 %v392, %v390
        %v443 = vpack.c.b16 %v395, %v393
        %v444 = vpack.c.b16 %v396, %v394
        %v445 = vpack.c.b16 %v399, %v397
        %v446 = vpack.c.b16 %v400, %v398
        %v447 = vpack.c.b16 %v403, %v401
        %v448 = vpack.c.b16 %v404, %v402
        %v449 = vpack.c.b16 %v407, %v405
        %v450 = vpack.c.b16 %v408, %v406
        %v451 = vpack.c.b16 %v411, %v409
        %v452 = vpack.c.b16 %v412, %v410
        %v453 = vpack.c.b16 %v415, %v413
        %v454 = vpack.c.b16 %v416, %v414
        %v455 = vpack.c.b16 %v419, %v417
        %v456 = vpack.c.b16 %v420, %v418
        %v457 = vpack.c.b16 %v423, %v421
        %v458 = vpack.c.b16 %v424, %v422
        %v459 = vpack.c.b16 %v427, %v425
        %v460 = vpack.c.b16 %v428, %v426
        %493 = vmatpush.bf16.msra.mxu0 %v443
        %494 = vmatpush.bf16.msra.mxu0 %v441
        %495 = vmatpush.bf16.msra.mxu0 %v439
        %496 = vmatpush.bf16.msra.mxu0 %v437
        %497 = vmatpush.bf16.msra.mxu0 %v435
        %498 = vmatpush.bf16.msra.mxu0 %v433
        %499 = vmatpush.bf16.msra.mxu0 %v431
        %500 = vmatpush.bf16.msra.mxu0 %v429
        %501 = vmatmul.bf16.gmra.mxu0 %v329
        %v502 = vpop.f32.mrf.mxu0
        %v503 = vadd.f32 0.0, %v502
        %v504 = vpop.f32.mrf.mxu0
        %505 = vdwg.mxu0
        %506 = vmatpush.bf16.msra.mxu0 %v459
        %507 = vmatpush.bf16.msra.mxu0 %v457
        %508 = vmatpush.bf16.msra.mxu0 %v455
        %509 = vmatpush.bf16.msra.mxu0 %v453
        %510 = vmatpush.bf16.msra.mxu0 %v451
        %511 = vmatpush.bf16.msra.mxu0 %v449
        %512 = vmatpush.bf16.msra.mxu0 %v447
        %513 = vmatpush.bf16.msra.mxu0 %v445
        %514 = vmatmul.bf16.gmra.mxu0 %v330
        %v515 = vpop.f32.mrf.mxu0
        %v516 = vadd.f32 %v503, %v515
        %v517 = vpop.f32.mrf.mxu0
        %518 = vdwg.mxu0
        %519 = vmatpush.bf16.msra.mxu0 %v444
        %520 = vmatpush.bf16.msra.mxu0 %v442
        %521 = vmatpush.bf16.msra.mxu0 %v440
        %522 = vmatpush.bf16.msra.mxu0 %v438
        %523 = vmatpush.bf16.msra.mxu0 %v436
        %524 = vmatpush.bf16.msra.mxu0 %v434
        %525 = vmatpush.bf16.msra.mxu0 %v432
        %526 = vmatpush.bf16.msra.mxu0 %v430
        %527 = vmatmul.bf16.gmra.mxu0 %v329
        %v528 = vpop.f32.mrf.mxu0
        %v529 = vadd.f32 0.0, %v528
        %v530 = vpop.f32.mrf.mxu0
        %531 = vdwg.mxu0
        %532 = vmatpush.bf16.msra.mxu0 %v460
        %533 = vmatpush.bf16.msra.mxu0 %v458
        %534 = vmatpush.bf16.msra.mxu0 %v456
        %535 = vmatpush.bf16.msra.mxu0 %v454
        %536 = vmatpush.bf16.msra.mxu0 %v452
        %537 = vmatpush.bf16.msra.mxu0 %v450
        %538 = vmatpush.bf16.msra.mxu0 %v448
        %539 = vmatpush.bf16.msra.mxu0 %v446
        %540 = vmatmul.bf16.gmra.mxu0 %v330
        %v541 = vpop.f32.mrf.mxu0
        %v542 = vadd.f32 %v529, %v541
        %v543 = vpop.f32.mrf.mxu0
        %544 = vdwg.mxu0
        %v545 = vadd.f32 %v292, %v516
        %v546 = vadd.f32 %v293, %v542
        %547 = vst [vmem:[#allocation2] sm:$0xff] %v545
        %548 = vst [vmem:[#allocation2 + $0x8] sm:$0xff] %v546
        %p549 = scmp.eq.s32.totalorder %s24, 2
        // Predicated region
        $region41: #{_lambda_.12} parent=31 // pred_check
          %p550 = pneg %p549
        $region42: #{_lambda_.12} parent=31 // pred_check_branch
          %552 = sbr.rel (%p550) target = $region44
        $region43: #{_lambda_.12} parent=31 // pred_region
          %v553 = vld [vmem:[#allocation2] sm:$0xff]
          %v554 = vld [vmem:[#allocation2 + $0x8] sm:$0xff]
          %v555 = vld [vmem:[%s273] sm:$0x3]
          %v557 = vperm.slane %v555, 0
          %v558 = vperm.slane %v555, 1
          %v561 = vadd.f32 %v553, %v557
          %v562 = vadd.f32 %v554, %v558
          %563 = vst [vmem:[%s283] sm:$0xff] %v561
          %564 = vst [vmem:[%s283 + $0x8] sm:$0xff] %v562
        $region44: #{_lambda_.12} parent=31 // pred_fallthru
          _
        %s565 = smul.u32 2, %s23
        %p566 = scmp.lt.s32.totalorder %s22, 0
        %s567 = scalar_select %p566, %s22, 0
        %p568 = scmp.lt.s32.totalorder %s565, 1
        %s569 = scalar_select %p568, %s565, 1
        %s570 = smul.addr %s567, 2
        %s571 = sadd.s32 %s569, %s570
        %s572 = smul.addr %s571, 8
        %s573 = scalar_lea.vmem %s3, %s572
        // Predicated region
        $region45: #{_lambda_.12} parent=31 // pred_check
          %p574 = pneg %p138
        $region46: #{_lambda_.12} parent=31 // pred_check_branch
          %576 = sbr.rel (%p574) target = $region48
        $region47: #{_lambda_.12} parent=31 // pred_region
          %s577 = smul.u32 2, %s23
        $region48: #{_lambda_.12} parent=31 // pred_fallthru
          _
        // Predicated region
        $region49: #{_lambda_.12} parent=31 // pred_check
          %p578 = pneg %p138
        $region50: #{_lambda_.12} parent=31 // pred_check_branch
          %580 = sbr.rel (%p578) target = $region52
        $region51: #{_lambda_.12} parent=31 // pred_region
          %s581 = smul.u32 2, %s23
          %p582 = scmp.lt.s32.totalorder %s22, 0
          %s583 = scalar_select %p582, %s22, 0
          %p584 = scmp.lt.s32.totalorder %s581, 1
          %s585 = scalar_select %p584, %s581, 1
          %s586 = smul.addr %s583, 2
          %s587 = sadd.s32 %s585, %s586
          %s588 = smul.addr %s587, 8
          %s589 = scalar_lea.vmem %s3, %s588
        $region52: #{_lambda_.12} parent=31 // pred_fallthru
          _
      $region32: #{_lambda_.12} parent=5 // pred_fallthru
        _
      %p590 = scmp.le.s32.totalorder 2, %s12
      // Predicated region
      $region53: #{_lambda_.12} parent=5 // pred_check
        %p591 = pneg %p590
      $region54: #{_lambda_.12} parent=5 // pred_check_branch
        %593 = sbr.rel (%p591) target = $region56
      $region55: #{_lambda_.12} parent=5 // pred_region
        %s594 = ssub.s32 %s12, 2
      $region56: #{_lambda_.12} parent=5 // pred_fallthru
        _
    $region6: #{_lambda_.12} parent=1 // loop_footer
      %s16 = sadd.s32 1, %s12
    $region7: #{_lambda_.12} parent=1 // loop_footer_branch
      %11 = sbr.rel target = $region3
    $region8: #{_lambda_.12} parent=1 // loop_exit
      _
    %595 = vsyncpa [#allocation4], 1
    %s596 = scalar_lea.sflag [#allocation4], 1
    %597 = vsyncpa %s596, 1

// kernel: _lambda_.13
$region0: #{_lambda_.13}
  #allocation0 [shape = 'u32[]', space=smem, size = 0x4, offset = 0x4, fixed_abs, tag = 'smem constant byte address 0x4 - core index']
  #allocation1 [shape = 'u32[72,128]{1,0:T(1,128)}', space=vmem, size = 0x9000, scoped, tag = 'internal scratch']
  #allocation2 [shape = 'f32[16,256]{1,0:T(8,128)}', space=vmem, size = 0x4000, scoped, tag = 'scratch operand']
  %s0 = inlined_call_operand.vmem [shape: f32[16,256], index: 0, kind: input, shape index: {}]
  %s1 = inlined_call_operand.hbm [shape: bf16[256,768], index: 1, kind: input, shape index: {}]
  %s2 = inlined_call_operand.vmem [shape: f32[1,768], index: 2, kind: input, shape index: {}]
  %s3 = inlined_call_operand.vmem [shape: f32[1,256], index: 3, kind: input, shape index: {}]
  %s4 = inlined_call_operand.vmem [shape: f32[1,256], index: 4, kind: input, shape index: {}]
  %s5 = inlined_call_operand.vmem [shape: f32[16,768], index: 5, kind: output, shape index: {}]
  %s6 = sld [smem:[#allocation0]]
  $region84: #{_lambda_.13} parent=0
    _
  %s8 = ssub.s32 1, %s6
  %s9 = scalar_select 0, %s8, %s6
  $region1: #{_lambda_.13} parent=0
    #allocation3 [shape = 'u8[262144]{0}', space=vmem, size = 0x40000, scoped, tag = 'input window, operand 1']
    #allocation4 [shape = 's32[2]{0}', space=sflag, size = 0x8, scoped, tag = 'scoped memory for _lambda_.13']
    #allocation5 [shape = 'u8[32768]{0}', space=vmem, size = 0x8000, scoped, tag = 'output window, operand 0']
    %10 = vsyncpa [#allocation4], 0
    %s11 = scalar_lea.sflag [#allocation4], 1
    %12 = vsyncpa %s11, 0
    loop: start=0, step=1, limit=5
    $region2: #{_lambda_.13} parent=1 // loop_pre_header
      _
    $region3: #{_lambda_.13} parent=1 // loop_header
      %s14 = sphi 0, %s18
      %p15 = scmp.ge.s32.totalorder %s14, 5
      %s21 = sphi 0, %s40
      %s22 = sphi 0, %s36
      %s23 = sphi 0, %s32
      %s24 = sphi 0, %s21
      %s25 = sphi 0, %s22
      %s26 = sphi 0, %s23
      %s27 = sphi 0, %s24
      %s28 = sphi 0, %s25
      %s29 = sphi 0, %s26
      %s45 = sphi 0, %s47
      %s48 = sphi 0, %s45
      %s49 = sphi 0, %s48
      %s65 = sphi 0, %s49
      %s73 = sphi 0, %s75
      %s76 = sphi 0, %s73
      %s77 = sphi 0, %s76
      %s93 = sphi 0, %s77
      %s99 = sphi 0, %s101
      %s102 = sphi 0, %s99
      %s103 = sphi 0, %s102
      %s119 = sphi 0, %s103
      %s125 = sphi 0, %s127
      %s128 = sphi 0, %s125
      %s129 = sphi 0, %s128
      %s145 = sphi 0, %s129
      %s151 = sphi 0, %s153
      %s154 = sphi 0, %s151
      %s155 = sphi 0, %s154
      %s171 = sphi 0, %s155
      %s179 = sphi 0, %s181
      %s182 = sphi 0, %s179
      %s183 = sphi 0, %s182
      %s199 = sphi 0, %s183
    $region4: #{_lambda_.13} parent=1 // loop_header_branch
      %17 = sbr.rel (%p15) target = $region8
    $region5: #{_lambda_.13} parent=1 // loop_body
      %s19 = ssub.s32 %s14, 1
      %s20 = ssub.s32 %s14, 2
      %s30 = sadd.s32 1, %s23
      %p31 = scmp.ge.s32.totalorder %s30, 1
      %s32 = scalar_select %p31, 0, %s30
      %s33 = sadd.s32 1, %s22
      %s34 = scalar_select %p31, %s33, %s22
      %p35 = scmp.ge.s32.totalorder %s34, 3
      %s36 = scalar_select %p35, 0, %s34
      %s37 = sadd.s32 1, %s21
      %s38 = scalar_select %p35, %s37, %s21
      %p39 = scmp.ge.s32.totalorder %s38, 1
      %s40 = scalar_select %p39, 0, %s38
      %s41 = ssub.s32 %s21, %s40
      %s42 = ssub.s32 %s23, %s32
      %s43 = sor.u32 %s41, %s42
      %p44 = scmp.eq.s32.totalorder %s43, 0
      %s46 = sadd.s32 %s45, 1
      %s47 = scalar_select %p44, %s45, %s46
      %p50 = pneg %p44
      %p51 = scmp.eq.s32.totalorder %s14, 2
      %p52 = por %p50, %p51
      %p53 = scmp.ne.s32.totalorder %s45, %s48
      %p54 = scmp.eq.s32.totalorder %s14, 0
      %p55 = por %p53, %p54
      %p56 = scmp.ne.s32.totalorder %s45, %s48
      %p57 = scmp.eq.s32.totalorder %s19, 2
      %p58 = por %p56, %p57
      %p59 = scmp.ne.s32.totalorder %s48, %s49
      %p60 = scmp.eq.s32.totalorder %s19, 0
      %p61 = por %p59, %p60
      %p62 = scmp.ne.s32.totalorder %s48, %s49
      %p63 = scmp.eq.s32.totalorder %s20, 2
      %p64 = por %p62, %p63
      %p66 = scmp.ne.s32.totalorder %s49, %s65
      %p67 = scmp.eq.s32.totalorder %s20, 0
      %p68 = por %p66, %p67
      %s69 = ssub.s32 %s23, %s32
      %s70 = ssub.s32 %s22, %s36
      %s71 = sor.u32 %s69, %s70
      %p72 = scmp.eq.s32.totalorder %s71, 0
      %s74 = sadd.s32 %s73, 1
      %s75 = scalar_select %p72, %s73, %s74
      %p78 = pneg %p72
      %p79 = scmp.eq.s32.totalorder %s14, 2
      %p80 = por %p78, %p79
      %p81 = scmp.ne.s32.totalorder %s73, %s76
      %p82 = scmp.eq.s32.totalorder %s14, 0
      %p83 = por %p81, %p82
      %p84 = scmp.ne.s32.totalorder %s73, %s76
      %p85 = scmp.eq.s32.totalorder %s19, 2
      %p86 = por %p84, %p85
      %p87 = scmp.ne.s32.totalorder %s76, %s77
      %p88 = scmp.eq.s32.totalorder %s19, 0
      %p89 = por %p87, %p88
      %p90 = scmp.ne.s32.totalorder %s76, %s77
      %p91 = scmp.eq.s32.totalorder %s20, 2
      %p92 = por %p90, %p91
      %p94 = scmp.ne.s32.totalorder %s77, %s93
      %p95 = scmp.eq.s32.totalorder %s20, 0
      %p96 = por %p94, %p95
      %s97 = ssub.s32 %s22, %s36
      %p98 = scmp.eq.s32.totalorder %s97, 0
      %s100 = sadd.s32 %s99, 1
      %s101 = scalar_select %p98, %s99, %s100
      %p104 = pneg %p98
      %p105 = scmp.eq.s32.totalorder %s14, 2
      %p106 = por %p104, %p105
      %p107 = scmp.ne.s32.totalorder %s99, %s102
      %p108 = scmp.eq.s32.totalorder %s14, 0
      %p109 = por %p107, %p108
      %p110 = scmp.ne.s32.totalorder %s99, %s102
      %p111 = scmp.eq.s32.totalorder %s19, 2
      %p112 = por %p110, %p111
      %p113 = scmp.ne.s32.totalorder %s102, %s103
      %p114 = scmp.eq.s32.totalorder %s19, 0
      %p115 = por %p113, %p114
      %p116 = scmp.ne.s32.totalorder %s102, %s103
      %p117 = scmp.eq.s32.totalorder %s20, 2
      %p118 = por %p116, %p117
      %p120 = scmp.ne.s32.totalorder %s103, %s119
      %p121 = scmp.eq.s32.totalorder %s20, 0
      %p122 = por %p120, %p121
      %s123 = ssub.s32 %s23, %s32
      %p124 = scmp.eq.s32.totalorder %s123, 0
      %s126 = sadd.s32 %s125, 1
      %s127 = scalar_select %p124, %s125, %s126
      %p130 = pneg %p124
      %p131 = scmp.eq.s32.totalorder %s14, 2
      %p132 = por %p130, %p131
      %p133 = scmp.ne.s32.totalorder %s125, %s128
      %p134 = scmp.eq.s32.totalorder %s14, 0
      %p135 = por %p133, %p134
      %p136 = scmp.ne.s32.totalorder %s125, %s128
      %p137 = scmp.eq.s32.totalorder %s19, 2
      %p138 = por %p136, %p137
      %p139 = scmp.ne.s32.totalorder %s128, %s129
      %p140 = scmp.eq.s32.totalorder %s19, 0
      %p141 = por %p139, %p140
      %p142 = scmp.ne.s32.totalorder %s128, %s129
      %p143 = scmp.eq.s32.totalorder %s20, 2
      %p144 = por %p142, %p143
      %p146 = scmp.ne.s32.totalorder %s129, %s145
      %p147 = scmp.eq.s32.totalorder %s20, 0
      %p148 = por %p146, %p147
      %s149 = ssub.s32 %s23, %s32
      %p150 = scmp.eq.s32.totalorder %s149, 0
      %s152 = sadd.s32 %s151, 1
      %s153 = scalar_select %p150, %s151, %s152
      %p156 = pneg %p150
      %p157 = scmp.eq.s32.totalorder %s14, 2
      %p158 = por %p156, %p157
      %p159 = scmp.ne.s32.totalorder %s151, %s154
      %p160 = scmp.eq.s32.totalorder %s14, 0
      %p161 = por %p159, %p160
      %p162 = scmp.ne.s32.totalorder %s151, %s154
      %p163 = scmp.eq.s32.totalorder %s19, 2
      %p164 = por %p162, %p163
      %p165 = scmp.ne.s32.totalorder %s154, %s155
      %p166 = scmp.eq.s32.totalorder %s19, 0
      %p167 = por %p165, %p166
      %p168 = scmp.ne.s32.totalorder %s154, %s155
      %p169 = scmp.eq.s32.totalorder %s20, 2
      %p170 = por %p168, %p169
      %p172 = scmp.ne.s32.totalorder %s155, %s171
      %p173 = scmp.eq.s32.totalorder %s20, 0
      %p174 = por %p172, %p173
      %s175 = ssub.s32 %s21, %s40
      %s176 = ssub.s32 %s22, %s36
      %s177 = sor.u32 %s175, %s176
      %p178 = scmp.eq.s32.totalorder %s177, 0
      %s180 = sadd.s32 %s179, 1
      %s181 = scalar_select %p178, %s179, %s180
      %p184 = pneg %p178
      %p185 = scmp.eq.s32.totalorder %s14, 2
      %p186 = por %p184, %p185
      %p187 = scmp.ne.s32.totalorder %s179, %s182
      %p188 = scmp.eq.s32.totalorder %s14, 0
      %p189 = por %p187, %p188
      %p190 = scmp.ne.s32.totalorder %s179, %s182
      %p191 = scmp.eq.s32.totalorder %s19, 2
      %p192 = por %p190, %p191
      %p193 = scmp.ne.s32.totalorder %s182, %s183
      %p194 = scmp.eq.s32.totalorder %s19, 0
      %p195 = por %p193, %p194
      %p196 = scmp.ne.s32.totalorder %s182, %s183
      %p197 = scmp.eq.s32.totalorder %s20, 2
      %p198 = por %p196, %p197
      %p200 = scmp.ne.s32.totalorder %s183, %s199
      %p201 = scmp.eq.s32.totalorder %s20, 0
      %p202 = por %p200, %p201
      %p203 = scmp.le.s32.totalorder 1, %s14
      %p204 = scmp.lt.s32.totalorder %s14, 4
      %p205 = pnand %p203, %p204
      %p206 = pneg %p205
      // Predicated region
      $region9: #{_lambda_.13} parent=5 // pred_check
        _
      $region10: #{_lambda_.13} parent=5 // pred_check_branch
        %208 = sbr.rel (%p205) target = $region12
      $region11: #{_lambda_.13} parent=5 // pred_region
        %s209 = ssub.s32 %s14, 1
        // Predicated region
        $region13: #{_lambda_.13} parent=11 // pred_check
          %p210 = pneg %p61
        $region14: #{_lambda_.13} parent=11 // pred_check_branch
          %212 = sbr.rel (%p210) target = $region16
        $region15: #{_lambda_.13} parent=11 // pred_region
          %s213 = smul.u32 2, %s24
          %s214 = smul.u32 2, %s26
          %p215 = scmp.lt.s32.totalorder %s213, 1
          %s216 = scalar_select %p215, %s213, 1
          %p217 = scmp.lt.s32.totalorder %s214, 1
          %s218 = scalar_select %p217, %s214, 1
          %s219 = smul.addr %s216, 2
          %s220 = sadd.s32 %s218, %s219
          %s221 = smul.addr %s220, 8
          %s222 = scalar_lea.vmem %s0, %s221
          %s223 = smul.u32 2, %s24
          %s224 = smul.u32 2, %s26
        $region16: #{_lambda_.13} parent=11 // pred_fallthru
          _
        // Predicated region
        $region17: #{_lambda_.13} parent=11 // pred_check
          %p225 = pneg %p141
        $region18: #{_lambda_.13} parent=11 // pred_check_branch
          %227 = sbr.rel (%p225) target = $region20
        $region19: #{_lambda_.13} parent=11 // pred_region
          %s228 = smul.u32 2, %s26
          %p229 = scmp.lt.s32.totalorder %s228, 1
          %s230 = scalar_select %p229, %s228, 1
          %s231 = scalar_lea.vmem %s3, %s230
          %s232 = smul.u32 2, %s26
        $region20: #{_lambda_.13} parent=11 // pred_fallthru
          _
        // Predicated region
        $region21: #{_lambda_.13} parent=11 // pred_check
          %p233 = pneg %p167
        $region22: #{_lambda_.13} parent=11 // pred_check_branch
          %235 = sbr.rel (%p233) target = $region24
        $region23: #{_lambda_.13} parent=11 // pred_region
          %s236 = smul.u32 2, %s26
          %p237 = scmp.lt.s32.totalorder %s236, 1
          %s238 = scalar_select %p237, %s236, 1
          %s239 = scalar_lea.vmem %s4, %s238
          %s240 = smul.u32 2, %s26
        $region24: #{_lambda_.13} parent=11 // pred_fallthru
          _
      $region12: #{_lambda_.13} parent=5 // pred_fallthru
        _
      %p241 = scmp.lt.s32.totalorder %s14, 3
      // Predicated region
      $region25: #{_lambda_.13} parent=5 // pred_check
        %p242 = pneg %p241
      $region26: #{_lambda_.13} parent=5 // pred_check_branch
        %244 = sbr.rel (%p242) target = $region28
      $region27: #{_lambda_.13} parent=5 // pred_region
        // Predicated region
        $region29: #{_lambda_.13} parent=27 // pred_check
          %p245 = pneg %p83
        $region30: #{_lambda_.13} parent=27 // pred_check_branch
          %247 = sbr.rel (%p245) target = $region32
        $region31: #{_lambda_.13} parent=27 // pred_region
          %s248 = sand.u32 %s73, 1
          %s249 = scalar_lea.sflag [#allocation4], %s248
          %s250 = sand.u32 %s73, 1
          %s251 = smul.addr %s250, 256
          %s252 = scalar_lea.vmem [#allocation3], %s251
          %s253 = smul.u32 32, %s23
          %s254 = smul.u32 2, %s22
          %256 = vsyncadd %s249, 0
          %s257 = smul.addr %s253, 6
          %s258 = sadd.s32 %s254, %s257
          %s259 = smul.addr %s258, 4
          %s260 = scalar_lea.hbm %s1, %s259
          %s261 = sshll.u32 %s260, 4
          %s262 = int_to_ptr.hbm [resolvable:$true] %s261
          %s263 = sshll.u32 %s252, 4
          %s264 = int_to_ptr.vmem [resolvable:$true] %s263
          %269 = dma.hbm_to_vmem [thread:$0]  %s262, 4096, %s264, %s249, 384, 128, 8
        $region32: #{_lambda_.13} parent=27 // pred_fallthru
          _
        // Predicated region
        $region33: #{_lambda_.13} parent=27 // pred_check
          %p270 = pneg %p109
        $region34: #{_lambda_.13} parent=27 // pred_check_branch
          %272 = sbr.rel (%p270) target = $region36
        $region35: #{_lambda_.13} parent=27 // pred_region
          %s273 = smul.u32 2, %s22
          %p274 = scmp.lt.s32.totalorder %s273, 5
          %s275 = scalar_select %p274, %s273, 5
          %s276 = scalar_lea.vmem %s2, %s275
          %s277 = smul.u32 2, %s22
        $region36: #{_lambda_.13} parent=27 // pred_fallthru
          _
      $region28: #{_lambda_.13} parent=5 // pred_fallthru
        _
      %p278 = scmp.le.s32.totalorder 1, %s14
      %p279 = scmp.lt.s32.totalorder %s14, 4
      %p280 = pnand %p278, %p279
      %p281 = pneg %p280
      // Predicated region
      $region37: #{_lambda_.13} parent=5 // pred_check
        _
      $region38: #{_lambda_.13} parent=5 // pred_check_branch
        %283 = sbr.rel (%p280) target = $region40
      $region39: #{_lambda_.13} parent=5 // pred_region
        %s284 = ssub.s32 %s14, 1
        %s285 = sand.u32 %s76, 1
        %s286 = scalar_lea.sflag [#allocation4], %s285
        %s287 = sand.u32 %s76, 1
        %s288 = smul.addr %s287, 256
        %s289 = scalar_lea.vmem [#allocation3], %s288
        // Predicated region
        $region41: #{_lambda_.13} parent=39 // pred_check
          %p290 = pneg %p89
        $region42: #{_lambda_.13} parent=39 // pred_check_branch
          %292 = sbr.rel (%p290) target = $region44
        $region43: #{_lambda_.13} parent=39 // pred_region
          %294 = dma.done %s286, 4096
        $region44: #{_lambda_.13} parent=39 // pred_fallthru
          _
        %s295 = smul.u32 2, %s24
        %s296 = smul.u32 2, %s26
        %p297 = scmp.lt.s32.totalorder %s295, 1
        %s298 = scalar_select %p297, %s295, 1
        %p299 = scmp.lt.s32.totalorder %s296, 1
        %s300 = scalar_select %p299, %s296, 1
        %s301 = smul.addr %s298, 2
        %s302 = sadd.s32 %s300, %s301
        %s303 = smul.addr %s302, 8
        %s304 = scalar_lea.vmem %s0, %s303
        %p305 = pneg %p61
        %p306 = pneg %p58
        %s307 = sand.u32 %s76, 1
        %s308 = scalar_lea.sflag [#allocation4], %s307
        %s309 = sand.u32 %s76, 1
        %s310 = smul.addr %s309, 256
        %s311 = scalar_lea.vmem [#allocation3], %s310
        %p312 = pneg %p89
        %p313 = pneg %p86
        %s314 = smul.u32 2, %s25
        %p315 = scmp.lt.s32.totalorder %s314, 5
        %s316 = scalar_select %p315, %s314, 5
        %s317 = scalar_lea.vmem %s2, %s316
        %p318 = pneg %p115
        %p319 = pneg %p112
        %s320 = smul.u32 2, %s26
        %p321 = scmp.lt.s32.totalorder %s320, 1
        %s322 = scalar_select %p321, %s320, 1
        %s323 = scalar_lea.vmem %s3, %s322
        %p324 = pneg %p141
        %p325 = pneg %p138
        %s326 = smul.u32 2, %s26
        %p327 = scmp.lt.s32.totalorder %s326, 1
        %s328 = scalar_select %p327, %s326, 1
        %s329 = scalar_lea.vmem %s4, %s328
        %p330 = pneg %p167
        %p331 = pneg %p164
        %p332 = pneg %p195
        %p333 = pneg %p192
        %s334 = sand.u32 %s182, 1
        %s335 = sand.u32 %s182, 1
        %s336 = smul.addr %s335, 32
        %s337 = scalar_lea.vmem [#allocation5], %s336
        %s338 = smul.u32 2, %s24
        %s339 = smul.u32 2, %s26
        %p340 = scmp.lt.s32.totalorder %s338, 1
        %s341 = scalar_select %p340, %s338, 1
        %p342 = scmp.lt.s32.totalorder %s339, 1
        %s343 = scalar_select %p342, %s339, 1
        %s344 = smul.addr %s341, 2
        %s345 = sadd.s32 %s343, %s344
        %s346 = smul.addr %s345, 8
        %s347 = scalar_lea.vmem %s0, %s346
        %s348 = smul.u32 2, %s24
        %s349 = smul.u32 2, %s26
        %s350 = smul.u32 32, %s26
        %s351 = smul.u32 2, %s25
        %s352 = smul.u32 2, %s25
        %p353 = scmp.lt.s32.totalorder %s352, 5
        %s354 = scalar_select %p353, %s352, 5
        %s355 = scalar_lea.vmem %s2, %s354
        %s356 = smul.u32 2, %s25
        %s357 = smul.u32 2, %s26
        %p358 = scmp.lt.s32.totalorder %s357, 1
        %s359 = scalar_select %p358, %s357, 1
        %s360 = scalar_lea.vmem %s3, %s359
        %s361 = smul.u32 2, %s26
        %s362 = smul.u32 2, %s26
        %p363 = scmp.lt.s32.totalorder %s362, 1
        %s364 = scalar_select %p363, %s362, 1
        %s365 = scalar_lea.vmem %s4, %s364
        %s366 = smul.u32 2, %s26
        %s367 = smul.u32 2, %s24
        %s368 = smul.u32 2, %s25
        %p369 = scmp.eq.s32.totalorder %s26, 0
        // Predicated region
        $region45: #{_lambda_.13} parent=39 // pred_check
          %p370 = pneg %p369
        $region46: #{_lambda_.13} parent=39 // pred_check_branch
          %372 = sbr.rel (%p370) target = $region48
        $region47: #{_lambda_.13} parent=39 // pred_region
          %373 = vst [vmem:[#allocation2] sm:$0xff] 0.0
          %374 = vst [vmem:[#allocation2 + $0x8] sm:$0xff] 0.0
          %375 = vst [vmem:[#allocation2 + $0x10] sm:$0xff] 0.0
          %376 = vst [vmem:[#allocation2 + $0x18] sm:$0xff] 0.0
        $region48: #{_lambda_.13} parent=39 // pred_fallthru
          _
        %v377 = vld [vmem:[%s347] sm:$0xff]
        %v378 = vld [vmem:[%s347 + $0x8] sm:$0xff]
        %v379 = vld [vmem:[%s347 + $0x10] sm:$0xff]
        %v380 = vld [vmem:[%s347 + $0x18] sm:$0xff]
        %v381 = vadd.f32 %v377, %v378
        %382 = vadd.xlane.f32.xlu0 %v381
        %v383 = vpop.xlane.xlu0 %382
        %v384 = vadd.f32 %v379, %v380
        %385 = vadd.xlane.f32.xlu0 %v384
        %v386 = vpop.xlane.xlu0 %385
        %v387 = vrcp.pop 256.0
        %v388 = vmul.f32 256.0, %v387
        %v389 = vsub.f32 1.0, %v388
        %v390 = vmul.f32 %v387, %v389
        %v391 = vadd.f32 %v387, %v390
        %vm392 = vweird.f32 %v387
        %v393 = vsel %vm392, %v387, %v391
        %v394 = vmul.f32 %v383, %v393
        %v395 = vmul.f32 %v386, %v393
        %v396 = vsub.f32 %v377, %v394
        %v397 = vsub.f32 %v378, %v394
        %v398 = vsub.f32 %v379, %v395
        %v399 = vsub.f32 %v380, %v395
        %v400 = vmul.f32 %v396, %v396
        %v401 = vmul.f32 %v397, %v397
        %v402 = vmul.f32 %v398, %v398
        %v403 = vmul.f32 %v399, %v399
        %v404 = vadd.f32 %v400, %v401
        %405 = vadd.xlane.f32.xlu0 %v404
        %v406 = vpop.xlane.xlu0 %405
        %v407 = vadd.f32 %v402, %v403
        %408 = vadd.xlane.f32.xlu0 %v407
        %v409 = vpop.xlane.xlu0 %408
        %v410 = vmul.f32 %v406, %v393
        %v411 = vmul.f32 %v409, %v393
        %v412 = vadd.f32 %v410, 1e-06
        %v413 = vadd.f32 %v411, 1e-06
        %v414 = vrsqrt.pop %v412
        %v415 = vmul.f32 %v414, %v412
        %v416 = vmul.f32 %v415, %v414
        %v417 = vmul.f32 0.5, %v416
        %v418 = vsub.f32 1.5, %v417
        %v419 = vmul.f32 %v414, %v418
        %vm420 = vweird.f32 %v412
        %vm421 = vweird.f32 %v414
        %vm422 = vmor %vm420, %vm421
        %v423 = vsel %vm422, %v414, %v419
        %v424 = vrsqrt.pop %v413
        %v425 = vmul.f32 %v424, %v413
        %v426 = vmul.f32 %v425, %v424
        %v427 = vmul.f32 0.5, %v426
        %v428 = vsub.f32 1.5, %v427
        %v429 = vmul.f32 %v424, %v428
        %vm430 = vweird.f32 %v413
        %vm431 = vweird.f32 %v424
        %vm432 = vmor %vm430, %vm431
        %v433 = vsel %vm432, %v424, %v429
        %v434 = vmul.f32 %v396, %v423
        %v435 = vmul.f32 %v397, %v423
        %v436 = vmul.f32 %v398, %v433
        %v437 = vmul.f32 %v399, %v433
        %v438 = vld [vmem:[%s360] sm:$0x3]
        %v440 = vperm.slane %v438, 0
        %v441 = vperm.slane %v438, 1
        %v444 = vmul.f32 %v434, %v440
        %v445 = vmul.f32 %v435, %v441
        %v446 = vmul.f32 %v436, %v440
        %v447 = vmul.f32 %v437, %v441
        %v448 = vld [vmem:[%s365] sm:$0x3]
        %v450 = vperm.slane %v448, 0
        %v451 = vperm.slane %v448, 1
        %v454 = vadd.f32 %v444, %v450
        %v455 = vadd.f32 %v445, %v451
        %v456 = vadd.f32 %v446, %v450
        %v457 = vadd.f32 %v447, %v451
        %v458 = vpack.c.bf16 %v456, %v454
        %v459 = vpack.c.bf16 %v457, %v455
        %v460 = vld [vmem:[#allocation2] sm:$0xff]
        %v461 = vld [vmem:[#allocation2 + $0x8] sm:$0xff]
        %v462 = vld [vmem:[#allocation2 + $0x10] sm:$0xff]
        %v463 = vld [vmem:[#allocation2 + $0x18] sm:$0xff]
        %v464 = vld [vmem:[%s289] sm:$0xff]
        %v465 = vld [vmem:[%s289 + $0x8] sm:$0xff]
        %v466 = vld [vmem:[%s289 + $0x10] sm:$0xff]
        %v467 = vld [vmem:[%s289 + $0x18] sm:$0xff]
        %v468 = vld [vmem:[%s289 + $0x20] sm:$0xff]
        %v469 = vld [vmem:[%s289 + $0x28] sm:$0xff]
        %v470 = vld [vmem:[%s289 + $0x30] sm:$0xff]
        %v471 = vld [vmem:[%s289 + $0x38] sm:$0xff]
        %v472 = vld [vmem:[%s289 + $0x40] sm:$0xff]
        %v473 = vld [vmem:[%s289 + $0x48] sm:$0xff]
        %v474 = vld [vmem:[%s289 + $0x50] sm:$0xff]
        %v475 = vld [vmem:[%s289 + $0x58] sm:$0xff]
        %v476 = vld [vmem:[%s289 + $0x60] sm:$0xff]
        %v477 = vld [vmem:[%s289 + $0x68] sm:$0xff]
        %v478 = vld [vmem:[%s289 + $0x70] sm:$0xff]
        %v479 = vld [vmem:[%s289 + $0x78] sm:$0xff]
        %v480 = vld [vmem:[%s289 + $0x80] sm:$0xff]
        %v481 = vld [vmem:[%s289 + $0x88] sm:$0xff]
        %v482 = vld [vmem:[%s289 + $0x90] sm:$0xff]
        %v483 = vld [vmem:[%s289 + $0x98] sm:$0xff]
        %v484 = vld [vmem:[%s289 + $0xa0] sm:$0xff]
        %v485 = vld [vmem:[%s289 + $0xa8] sm:$0xff]
        %v486 = vld [vmem:[%s289 + $0xb0] sm:$0xff]
        %v487 = vld [vmem:[%s289 + $0xb8] sm:$0xff]
        %v488 = vld [vmem:[%s289 + $0xc0] sm:$0xff]
        %v489 = vld [vmem:[%s289 + $0xc8] sm:$0xff]
        %v490 = vld [vmem:[%s289 + $0xd0] sm:$0xff]
        %v491 = vld [vmem:[%s289 + $0xd8] sm:$0xff]
        %v492 = vld [vmem:[%s289 + $0xe0] sm:$0xff]
        %v493 = vld [vmem:[%s289 + $0xe8] sm:$0xff]
        %v494 = vld [vmem:[%s289 + $0xf0] sm:$0xff]
        %v495 = vld [vmem:[%s289 + $0xf8] sm:$0xff]
        %v528 = vunpack.c.l.b16 %v464
        %v529 = vunpack.c.h.b16 %v464
        %v530 = vunpack.c.l.b16 %v465
        %v531 = vunpack.c.h.b16 %v465
        %v532 = vunpack.c.l.b16 %v466
        %v533 = vunpack.c.h.b16 %v466
        %v534 = vunpack.c.l.b16 %v467
        %v535 = vunpack.c.h.b16 %v467
        %v536 = vunpack.c.l.b16 %v468
        %v537 = vunpack.c.h.b16 %v468
        %v538 = vunpack.c.l.b16 %v469
        %v539 = vunpack.c.h.b16 %v469
        %v540 = vunpack.c.l.b16 %v470
        %v541 = vunpack.c.h.b16 %v470
        %v542 = vunpack.c.l.b16 %v471
        %v543 = vunpack.c.h.b16 %v471
        %v544 = vunpack.c.l.b16 %v472
        %v545 = vunpack.c.h.b16 %v472
        %v546 = vunpack.c.l.b16 %v473
        %v547 = vunpack.c.h.b16 %v473
        %v548 = vunpack.c.l.b16 %v474
        %v549 = vunpack.c.h.b16 %v474
        %v550 = vunpack.c.l.b16 %v475
        %v551 = vunpack.c.h.b16 %v475
        %v552 = vunpack.c.l.b16 %v476
        %v553 = vunpack.c.h.b16 %v476
        %v554 = vunpack.c.l.b16 %v477
        %v555 = vunpack.c.h.b16 %v477
        %v556 = vunpack.c.l.b16 %v478
        %v557 = vunpack.c.h.b16 %v478
        %v558 = vunpack.c.l.b16 %v479
        %v559 = vunpack.c.h.b16 %v479
        %v560 = vunpack.c.l.b16 %v480
        %v561 = vunpack.c.h.b16 %v480
        %v562 = vunpack.c.l.b16 %v481
        %v563 = vunpack.c.h.b16 %v481
        %v564 = vunpack.c.l.b16 %v482
        %v565 = vunpack.c.h.b16 %v482
        %v566 = vunpack.c.l.b16 %v483
        %v567 = vunpack.c.h.b16 %v483
        %v568 = vunpack.c.l.b16 %v484
        %v569 = vunpack.c.h.b16 %v484
        %v570 = vunpack.c.l.b16 %v485
        %v571 = vunpack.c.h.b16 %v485
        %v572 = vunpack.c.l.b16 %v486
        %v573 = vunpack.c.h.b16 %v486
        %v574 = vunpack.c.l.b16 %v487
        %v575 = vunpack.c.h.b16 %v487
        %v576 = vunpack.c.l.b16 %v488
        %v577 = vunpack.c.h.b16 %v488
        %v578 = vunpack.c.l.b16 %v489
        %v579 = vunpack.c.h.b16 %v489
        %v580 = vunpack.c.l.b16 %v490
        %v581 = vunpack.c.h.b16 %v490
        %v582 = vunpack.c.l.b16 %v491
        %v583 = vunpack.c.h.b16 %v491
        %v584 = vunpack.c.l.b16 %v492
        %v585 = vunpack.c.h.b16 %v492
        %v586 = vunpack.c.l.b16 %v493
        %v587 = vunpack.c.h.b16 %v493
        %v588 = vunpack.c.l.b16 %v494
        %v589 = vunpack.c.h.b16 %v494
        %v590 = vunpack.c.l.b16 %v495
        %v591 = vunpack.c.h.b16 %v495
        %v592 = vpack.c.b16 %v530, %v528
        %v593 = vpack.c.b16 %v531, %v529
        %v594 = vpack.c.b16 %v534, %v532
        %v595 = vpack.c.b16 %v535, %v533
        %v596 = vpack.c.b16 %v538, %v536
        %v597 = vpack.c.b16 %v539, %v537
        %v598 = vpack.c.b16 %v542, %v540
        %v599 = vpack.c.b16 %v543, %v541
        %v600 = vpack.c.b16 %v546, %v544
        %v601 = vpack.c.b16 %v547, %v545
        %v602 = vpack.c.b16 %v550, %v548
        %v603 = vpack.c.b16 %v551, %v549
        %v604 = vpack.c.b16 %v554, %v552
        %v605 = vpack.c.b16 %v555, %v553
        %v606 = vpack.c.b16 %v558, %v556
        %v607 = vpack.c.b16 %v559, %v557
        %v608 = vpack.c.b16 %v562, %v560
        %v609 = vpack.c.b16 %v563, %v561
        %v610 = vpack.c.b16 %v566, %v564
        %v611 = vpack.c.b16 %v567, %v565
        %v612 = vpack.c.b16 %v570, %v568
        %v613 = vpack.c.b16 %v571, %v569
        %v614 = vpack.c.b16 %v574, %v572
        %v615 = vpack.c.b16 %v575, %v573
        %v616 = vpack.c.b16 %v578, %v576
        %v617 = vpack.c.b16 %v579, %v577
        %v618 = vpack.c.b16 %v582, %v580
        %v619 = vpack.c.b16 %v583, %v581
        %v620 = vpack.c.b16 %v586, %v584
        %v621 = vpack.c.b16 %v587, %v585
        %v622 = vpack.c.b16 %v590, %v588
        %v623 = vpack.c.b16 %v591, %v589
        %656 = vmatpush.bf16.msra.mxu0 %v606
        %657 = vmatpush.bf16.msra.mxu0 %v604
        %658 = vmatpush.bf16.msra.mxu0 %v602
        %659 = vmatpush.bf16.msra.mxu0 %v600
        %660 = vmatpush.bf16.msra.mxu0 %v598
        %661 = vmatpush.bf16.msra.mxu0 %v596
        %662 = vmatpush.bf16.msra.mxu0 %v594
        %663 = vmatpush.bf16.msra.mxu0 %v592
        %664 = vmatmul.bf16.gmra.mxu0 %v458
        %v665 = vpop.f32.mrf.mxu0
        %v666 = vadd.f32 0.0, %v665
        %v667 = vpop.f32.mrf.mxu0
        %v668 = vadd.f32 0.0, %v667
        %669 = vdwg.mxu0
        %670 = vmatpush.bf16.msra.mxu0 %v622
        %671 = vmatpush.bf16.msra.mxu0 %v620
        %672 = vmatpush.bf16.msra.mxu0 %v618
        %673 = vmatpush.bf16.msra.mxu0 %v616
        %674 = vmatpush.bf16.msra.mxu0 %v614
        %675 = vmatpush.bf16.msra.mxu0 %v612
        %676 = vmatpush.bf16.msra.mxu0 %v610
        %677 = vmatpush.bf16.msra.mxu0 %v608
        %678 = vmatmul.bf16.gmra.mxu0 %v459
        %v679 = vpop.f32.mrf.mxu0
        %v680 = vadd.f32 %v666, %v679
        %v681 = vpop.f32.mrf.mxu0
        %v682 = vadd.f32 %v668, %v681
        %683 = vdwg.mxu0
        %684 = vmatpush.bf16.msra.mxu0 %v607
        %685 = vmatpush.bf16.msra.mxu0 %v605
        %686 = vmatpush.bf16.msra.mxu0 %v603
        %687 = vmatpush.bf16.msra.mxu0 %v601
        %688 = vmatpush.bf16.msra.mxu0 %v599
        %689 = vmatpush.bf16.msra.mxu0 %v597
        %690 = vmatpush.bf16.msra.mxu0 %v595
        %691 = vmatpush.bf16.msra.mxu0 %v593
        %692 = vmatmul.bf16.gmra.mxu0 %v458
        %v693 = vpop.f32.mrf.mxu0
        %v694 = vadd.f32 0.0, %v693
        %v695 = vpop.f32.mrf.mxu0
        %v696 = vadd.f32 0.0, %v695
        %697 = vdwg.mxu0
        %698 = vmatpush.bf16.msra.mxu0 %v623
        %699 = vmatpush.bf16.msra.mxu0 %v621
        %700 = vmatpush.bf16.msra.mxu0 %v619
        %701 = vmatpush.bf16.msra.mxu0 %v617
        %702 = vmatpush.bf16.msra.mxu0 %v615
        %703 = vmatpush.bf16.msra.mxu0 %v613
        %704 = vmatpush.bf16.msra.mxu0 %v611
        %705 = vmatpush.bf16.msra.mxu0 %v609
        %706 = vmatmul.bf16.gmra.mxu0 %v459
        %v707 = vpop.f32.mrf.mxu0
        %v708 = vadd.f32 %v694, %v707
        %v709 = vpop.f32.mrf.mxu0
        %v710 = vadd.f32 %v696, %v709
        %711 = vdwg.mxu0
        %v712 = vadd.f32 %v460, %v680
        %v713 = vadd.f32 %v461, %v708
        %v714 = vadd.f32 %v462, %v682
        %v715 = vadd.f32 %v463, %v710
        %716 = vst [vmem:[#allocation2] sm:$0xff] %v712
        %717 = vst [vmem:[#allocation2 + $0x8] sm:$0xff] %v713
        %718 = vst [vmem:[#allocation2 + $0x10] sm:$0xff] %v714
        %719 = vst [vmem:[#allocation2 + $0x18] sm:$0xff] %v715
        // Predicated region
        $region49: #{_lambda_.13} parent=39 // pred_check
          %p720 = pneg %p369
        $region50: #{_lambda_.13} parent=39 // pred_check_branch
          %722 = sbr.rel (%p720) target = $region52
        $region51: #{_lambda_.13} parent=39 // pred_region
          %v723 = vld [vmem:[#allocation2] sm:$0xff]
          %v724 = vld [vmem:[#allocation2 + $0x8] sm:$0xff]
          %v725 = vld [vmem:[#allocation2 + $0x10] sm:$0xff]
          %v726 = vld [vmem:[#allocation2 + $0x18] sm:$0xff]
          %v727 = vld [vmem:[%s355] sm:$0x3]
          %v729 = vperm.slane %v727, 0
          %v730 = vperm.slane %v727, 1
          %v733 = vadd.f32 %v723, %v729
          %v734 = vadd.f32 %v724, %v730
          %v735 = vadd.f32 %v725, %v729
          %v736 = vadd.f32 %v726, %v730
          %737 = vst [vmem:[%s337] sm:$0xff] %v733
          %738 = vst [vmem:[%s337 + $0x8] sm:$0xff] %v734
          %739 = vst [vmem:[%s337 + $0x10] sm:$0xff] %v735
          %740 = vst [vmem:[%s337 + $0x18] sm:$0xff] %v736
        $region52: #{_lambda_.13} parent=39 // pred_fallthru
          _
        %s741 = sand.u32 %s182, 1
        %s742 = sand.u32 %s182, 1
        %s743 = smul.addr %s742, 32
        %s744 = scalar_lea.vmem [#allocation5], %s743
        // Predicated region
        $region53: #{_lambda_.13} parent=39 // pred_check
          %p745 = pneg %p192
        $region54: #{_lambda_.13} parent=39 // pred_check_branch
          %747 = sbr.rel (%p745) target = $region56
        $region55: #{_lambda_.13} parent=39 // pred_region
          %s748 = smul.u32 2, %s24
          %s749 = smul.u32 2, %s25
          %s750 = smul.addr %s748, 6
          %s751 = sadd.s32 %s749, %s750
          %s752 = smul.addr %s751, 8
          %s753 = scalar_lea.vmem %s5, %s752
          // Predicated region
          $region57: #{_lambda_.13} parent=55 // pred_check
            _
          $region58: #{_lambda_.13} parent=55 // pred_check_branch
            %755 = sbr.rel (0) target = $region60
          $region59: #{_lambda_.13} parent=55 // pred_region
            // Predicated region
            $region61: #{_lambda_.13} parent=59 // pred_check
              _
            $region62: #{_lambda_.13} parent=59 // pred_check_branch
              %757 = sbr.rel (0) target = $region64
            $region63: #{_lambda_.13} parent=59 // pred_region
              loop: start=0, step=1, limit=1
              $region65: #{_lambda_.13} parent=63 // loop_pre_header
                _
              $region66: #{_lambda_.13} parent=63 // loop_header
                %s759 = sphi 0, %s763
                %p760 = scmp.ge.s32.totalorder %s759, 1
                %s764 = sphi %s744, %s744
                %s765 = sphi %s753, %s753
              $region67: #{_lambda_.13} parent=63 // loop_header_branch
                %762 = sbr.rel (%p760) target = $region71
              $region68: #{_lambda_.13} parent=63 // loop_body
                %v766 = vld [vmem:[%s764] sm:$0xff]
                %767 = vst [vmem:[%s765] sm:$0xff] %v766
                %v768 = vld [vmem:[%s764 + $0x8] sm:$0xff]
                %769 = vst [vmem:[%s765 + $0x8] sm:$0xff] %v768
                %v770 = vld [vmem:[%s764 + $0x10] sm:$0xff]
                %771 = vst [vmem:[%s765 + $0x30] sm:$0xff] %v770
                %v772 = vld [vmem:[%s764 + $0x18] sm:$0xff]
                %773 = vst [vmem:[%s765 + $0x38] sm:$0xff] %v772
              $region69: #{_lambda_.13} parent=63 // loop_footer
                %s763 = sadd.s32 1, %s759
              $region70: #{_lambda_.13} parent=63 // loop_footer_branch
                %758 = sbr.rel target = $region66
              $region71: #{_lambda_.13} parent=63 // loop_exit
                _
            $region64: #{_lambda_.13} parent=59 // pred_fallthru
              _
            // Predicated region
            $region72: #{_lambda_.13} parent=59 // pred_check
              _
            $region73: #{_lambda_.13} parent=59 // pred_check_branch
              %775 = sbr.rel target = $region75
            $region74: #{_lambda_.13} parent=59 // pred_region
              _
            $region75: #{_lambda_.13} parent=59 // pred_fallthru
              _
          $region60: #{_lambda_.13} parent=55 // pred_fallthru
            _
          %776 = vnop
        $region56: #{_lambda_.13} parent=39 // pred_fallthru
          _
      $region40: #{_lambda_.13} parent=5 // pred_fallthru
        _
      %p777 = scmp.le.s32.totalorder 2, %s14
      // Predicated region
      $region76: #{_lambda_.13} parent=5 // pred_check
        %p778 = pneg %p777
      $region77: #{_lambda_.13} parent=5 // pred_check_branch
        %780 = sbr.rel (%p778) target = $region79
      $region78: #{_lambda_.13} parent=5 // pred_region
        %s781 = ssub.s32 %s14, 2
        // Predicated region
        $region80: #{_lambda_.13} parent=78 // pred_check
          %p782 = pneg %p198
        $region81: #{_lambda_.13} parent=78 // pred_check_branch
          %784 = sbr.rel (%p782) target = $region83
        $region82: #{_lambda_.13} parent=78 // pred_region
          %s785 = sand.u32 %s183, 1
          %s786 = sand.u32 %s183, 1
          %s787 = smul.addr %s786, 32
          %s788 = scalar_lea.vmem [#allocation5], %s787
        $region83: #{_lambda_.13} parent=78 // pred_fallthru
          _
      $region79: #{_lambda_.13} parent=5 // pred_fallthru
        _
    $region6: #{_lambda_.13} parent=1 // loop_footer
      %s18 = sadd.s32 1, %s14
    $region7: #{_lambda_.13} parent=1 // loop_footer_branch
      %13 = sbr.rel target = $region3
    $region8: #{_lambda_.13} parent=1 // loop_exit
      _
    %789 = vsyncpa [#allocation4], 1
    %s790 = scalar_lea.sflag [#allocation4], 1
    %791 = vsyncpa %s790, 1

// kernel: _lambda_.14
$region0: #{_lambda_.14}
  #allocation0 [shape = 'u32[]', space=smem, size = 0x4, offset = 0x4, fixed_abs, tag = 'smem constant byte address 0x4 - core index']
  #allocation1 [shape = 'u32[72,128]{1,0:T(1,128)}', space=vmem, size = 0x9000, scoped, tag = 'internal scratch']
  %s0 = inlined_call_operand.vmem [shape: f32[4,8,128], index: 0, kind: input, shape index: {}]
  %s1 = inlined_call_operand.vmem [shape: f32[4,8,128], index: 1, kind: input, shape index: {}]
  %s2 = inlined_call_operand.vmem [shape: f32[4,8,128], index: 2, kind: input, shape index: {}]
  %s3 = inlined_call_operand.vmem [shape: f32[4,8,128], index: 3, kind: output, shape index: {}]
  %s4 = sld [smem:[#allocation0]]
  $region22: #{_lambda_.14} parent=0
    _
  %s6 = ssub.s32 1, %s4
  %s7 = scalar_select 0, %s6, %s4
  // Predicated region
  $region2: #{_lambda_.14} parent=0 // pred_check
    _
  $region3: #{_lambda_.14} parent=0 // pred_check_branch
    %9 = sbr.rel (0) target = $region5
  $region4: #{_lambda_.14} parent=0 // pred_region
    _
  $region5: #{_lambda_.14} parent=0 // pred_fallthru
    _
  // Predicated region
  $region6: #{_lambda_.14} parent=0 // pred_check
    _
  $region7: #{_lambda_.14} parent=0 // pred_check_branch
    %11 = sbr.rel (0) target = $region9
  $region8: #{_lambda_.14} parent=0 // pred_region
    _
  $region9: #{_lambda_.14} parent=0 // pred_fallthru
    _
  // Predicated region
  $region10: #{_lambda_.14} parent=0 // pred_check
    _
  $region11: #{_lambda_.14} parent=0 // pred_check_branch
    %13 = sbr.rel (0) target = $region13
  $region12: #{_lambda_.14} parent=0 // pred_region
    _
  $region13: #{_lambda_.14} parent=0 // pred_fallthru
    _
  %v15 = vld [vmem:[%s0] sm:$0xff]
  %v16 = vld [vmem:[%s0 + $0x8] sm:$0xff]
  %v17 = vld [vmem:[%s0 + $0x10] sm:$0xff]
  %v18 = vld [vmem:[%s0 + $0x18] sm:$0xff]
  %v19 = vpack.c.bf16 %v15, %v15
  %v20 = vpack.c.bf16 %v16, %v16
  %v21 = vpack.c.bf16 %v17, %v17
  %v22 = vpack.c.bf16 %v18, %v18
  %v23 = vld [vmem:[%s1] sm:$0xff]
  %v24 = vld [vmem:[%s1 + $0x8] sm:$0xff]
  %v25 = vld [vmem:[%s1 + $0x10] sm:$0xff]
  %v26 = vld [vmem:[%s1 + $0x18] sm:$0xff]
  %v27 = vpack.c.bf16 %v23, %v23
  %v28 = vpack.c.bf16 %v24, %v24
  %v29 = vpack.c.bf16 %v25, %v25
  %v30 = vpack.c.bf16 %v26, %v26
  %v31 = vld [vmem:[%s2] sm:$0xff]
  %v32 = vld [vmem:[%s2 + $0x8] sm:$0xff]
  %v33 = vld [vmem:[%s2 + $0x10] sm:$0xff]
  %v34 = vld [vmem:[%s2 + $0x18] sm:$0xff]
  %v35 = vpack.c.bf16 %v31, %v31
  %v36 = vpack.c.bf16 %v32, %v32
  %v37 = vpack.c.bf16 %v33, %v33
  %v38 = vpack.c.bf16 %v34, %v34
  %39 = vmatpush.bf16.xpose.msra.mxu0 0
  %40 = vmatpush.bf16.xpose.msra.mxu0 0
  %41 = vmatpush.bf16.xpose.msra.mxu0 0
  %42 = vmatpush.bf16.xpose.msra.mxu0 0
  %43 = vmatpush.bf16.xpose.msra.mxu0 0
  %44 = vmatpush.bf16.xpose.msra.mxu0 0
  %45 = vmatpush.bf16.xpose.msra.mxu0 0
  %46 = vmatpush.bf16.xpose.msra.mxu0 %v27
  %47 = vmatmul.bf16.gmra.mxu0 %v19
  %v48 = vpop.f32.mrf.mxu0
  %v49 = vadd.f32 0.0, %v48
  %v50 = vpop.f32.mrf.mxu0
  %51 = vdwg.mxu0
  %52 = vmatpush.bf16.xpose.msra.mxu0 0
  %53 = vmatpush.bf16.xpose.msra.mxu0 0
  %54 = vmatpush.bf16.xpose.msra.mxu0 0
  %55 = vmatpush.bf16.xpose.msra.mxu0 0
  %56 = vmatpush.bf16.xpose.msra.mxu0 0
  %57 = vmatpush.bf16.xpose.msra.mxu0 0
  %58 = vmatpush.bf16.xpose.msra.mxu0 0
  %59 = vmatpush.bf16.xpose.msra.mxu0 %v28
  %60 = vmatmul.bf16.gmra.mxu0 %v20
  %v61 = vpop.f32.mrf.mxu0
  %v62 = vadd.f32 0.0, %v61
  %v63 = vpop.f32.mrf.mxu0
  %64 = vdwg.mxu0
  %65 = vmatpush.bf16.xpose.msra.mxu0 0
  %66 = vmatpush.bf16.xpose.msra.mxu0 0
  %67 = vmatpush.bf16.xpose.msra.mxu0 0
  %68 = vmatpush.bf16.xpose.msra.mxu0 0
  %69 = vmatpush.bf16.xpose.msra.mxu0 0
  %70 = vmatpush.bf16.xpose.msra.mxu0 0
  %71 = vmatpush.bf16.xpose.msra.mxu0 0
  %72 = vmatpush.bf16.xpose.msra.mxu0 %v29
  %73 = vmatmul.bf16.gmra.mxu0 %v21
  %v74 = vpop.f32.mrf.mxu0
  %v75 = vadd.f32 0.0, %v74
  %v76 = vpop.f32.mrf.mxu0
  %77 = vdwg.mxu0
  %78 = vmatpush.bf16.xpose.msra.mxu0 0
  %79 = vmatpush.bf16.xpose.msra.mxu0 0
  %80 = vmatpush.bf16.xpose.msra.mxu0 0
  %81 = vmatpush.bf16.xpose.msra.mxu0 0
  %82 = vmatpush.bf16.xpose.msra.mxu0 0
  %83 = vmatpush.bf16.xpose.msra.mxu0 0
  %84 = vmatpush.bf16.xpose.msra.mxu0 0
  %85 = vmatpush.bf16.xpose.msra.mxu0 %v30
  %86 = vmatmul.bf16.gmra.mxu0 %v22
  %v87 = vpop.f32.mrf.mxu0
  %v88 = vadd.f32 0.0, %v87
  %v89 = vpop.f32.mrf.mxu0
  %90 = vdwg.mxu0
  %v91 = vmul.f32 %v49, 0.088388346
  %v92 = vmul.f32 %v62, 0.088388346
  %v93 = vmul.f32 %v75, 0.088388346
  %v94 = vmul.f32 %v88, 0.088388346
  %v95 = vlaneseq
  %v96 = vand.u32 %v95, 127
  %vm97 = vcmp.lt.s32.totalorder %v96, 5
  %v98 = vsel %vm97, %v91, -1e+30
  %v99 = vsel %vm97, %v92, -1e+30
  %v100 = vsel %vm97, %v93, -1e+30
  %v101 = vsel %vm97, %v94, -1e+30
  %vm102 = vcmask 64512
  %v103 = vsel %vm102, %v98, -inf
  %104 = vmax.xlane.f32.xlu0 %v103
  %v105 = vpop.xlane.xlu0 %104
  %v106 = vsel %vm102, %v99, -inf
  %107 = vmax.xlane.f32.xlu0 %v106
  %v108 = vpop.xlane.xlu0 %107
  %v109 = vsel %vm102, %v100, -inf
  %110 = vmax.xlane.f32.xlu0 %v109
  %v111 = vpop.xlane.xlu0 %110
  %v112 = vsel %vm102, %v101, -inf
  %113 = vmax.xlane.f32.xlu0 %v112
  %v114 = vpop.xlane.xlu0 %113
  %v115 = vsub.f32 %v98, %v105
  %v116 = vsub.f32 %v99, %v108
  %v117 = vsub.f32 %v100, %v111
  %v118 = vsub.f32 %v101, %v114
  %v119 = vmul.f32 %v115, 1.442695
  %v120 = vpow.pop %v119
  %v121 = vmul.f32 %v116, 1.442695
  %v122 = vpow.pop %v121
  %v123 = vmul.f32 %v117, 1.442695
  %v124 = vpow.pop %v123
  %v125 = vmul.f32 %v118, 1.442695
  %v126 = vpow.pop %v125
  %v127 = vsel %vm102, %v120, 0.0
  %128 = vadd.xlane.f32.xlu0 %v127
  %v129 = vpop.xlane.xlu0 %128
  %v130 = vsel %vm102, %v122, 0.0
  %131 = vadd.xlane.f32.xlu0 %v130
  %v132 = vpop.xlane.xlu0 %131
  %v133 = vsel %vm102, %v124, 0.0
  %134 = vadd.xlane.f32.xlu0 %v133
  %v135 = vpop.xlane.xlu0 %134
  %v136 = vsel %vm102, %v126, 0.0
  %137 = vadd.xlane.f32.xlu0 %v136
  %v138 = vpop.xlane.xlu0 %137
  %v139 = vrcp.pop %v129
  %v140 = vmul.f32 %v129, %v139
  %v141 = vsub.f32 1.0, %v140
  %v142 = vmul.f32 %v139, %v141
  %v143 = vadd.f32 %v139, %v142
  %vm144 = vweird.f32 %v129
  %vm145 = vweird.f32 %v139
  %vm146 = vmor %vm144, %vm145
  %v147 = vsel %vm146, %v139, %v143
  %v148 = vand.u32 2147483647, %v129
  %vm149 = vcmp.eq.f32.partialorder %v148, 8.507059e+37
  %v150 = vand.u32 %v129, 2147483648
  %v151 = vor.u32 1.1754944e-38, %v150
  %v152 = vsel %vm149, %v151, %v147
  %v153 = vmul.f32 %v120, %v152
  %v154 = vrcp.pop %v132
  %v155 = vmul.f32 %v132, %v154
  %v156 = vsub.f32 1.0, %v155
  %v157 = vmul.f32 %v154, %v156
  %v158 = vadd.f32 %v154, %v157
  %vm159 = vweird.f32 %v132
  %vm160 = vweird.f32 %v154
  %vm161 = vmor %vm159, %vm160
  %v162 = vsel %vm161, %v154, %v158
  %v163 = vand.u32 2147483647, %v132
  %vm164 = vcmp.eq.f32.partialorder %v163, 8.507059e+37
  %v165 = vand.u32 %v132, 2147483648
  %v166 = vor.u32 1.1754944e-38, %v165
  %v167 = vsel %vm164, %v166, %v162
  %v168 = vmul.f32 %v122, %v167
  %v169 = vrcp.pop %v135
  %v170 = vmul.f32 %v135, %v169
  %v171 = vsub.f32 1.0, %v170
  %v172 = vmul.f32 %v169, %v171
  %v173 = vadd.f32 %v169, %v172
  %vm174 = vweird.f32 %v135
  %vm175 = vweird.f32 %v169
  %vm176 = vmor %vm174, %vm175
  %v177 = vsel %vm176, %v169, %v173
  %v178 = vand.u32 2147483647, %v135
  %vm179 = vcmp.eq.f32.partialorder %v178, 8.507059e+37
  %v180 = vand.u32 %v135, 2147483648
  %v181 = vor.u32 1.1754944e-38, %v180
  %v182 = vsel %vm179, %v181, %v177
  %v183 = vmul.f32 %v124, %v182
  %v184 = vrcp.pop %v138
  %v185 = vmul.f32 %v138, %v184
  %v186 = vsub.f32 1.0, %v185
  %v187 = vmul.f32 %v184, %v186
  %v188 = vadd.f32 %v184, %v187
  %vm189 = vweird.f32 %v138
  %vm190 = vweird.f32 %v184
  %vm191 = vmor %vm189, %vm190
  %v192 = vsel %vm191, %v184, %v188
  %v193 = vand.u32 2147483647, %v138
  %vm194 = vcmp.eq.f32.partialorder %v193, 8.507059e+37
  %v195 = vand.u32 %v138, 2147483648
  %v196 = vor.u32 1.1754944e-38, %v195
  %v197 = vsel %vm194, %v196, %v192
  %v198 = vmul.f32 %v126, %v197
  %v199 = vpack.c.bf16 %v153, %v153
  %v200 = vpack.c.bf16 %v168, %v168
  %v201 = vpack.c.bf16 %v183, %v183
  %v202 = vpack.c.bf16 %v198, %v198
  %v204 = vsel %vm102, %v199, 0
  %vm206 = vcmask 1043456
  %v208 = vsel %vm206, %v35, 0
  %210 = vmatpush.bf16.msra.mxu0 0
  %211 = vmatpush.bf16.msra.mxu0 0
  %212 = vmatpush.bf16.msra.mxu0 0
  %213 = vmatpush.bf16.msra.mxu0 0
  %214 = vmatpush.bf16.msra.mxu0 0
  %215 = vmatpush.bf16.msra.mxu0 0
  %216 = vmatpush.bf16.msra.mxu0 0
  %217 = vmatpush.bf16.msra.mxu0 %v208
  %218 = vmatmul.bf16.gmra.mxu0 %v204
  %v219 = vpop.f32.mrf.mxu0
  %v220 = vadd.f32 0.0, %v219
  %v221 = vpop.f32.mrf.mxu0
  %222 = vdwg.mxu0
  %v224 = vsel %vm102, %v200, 0
  %v227 = vsel %vm206, %v36, 0
  %229 = vmatpush.bf16.msra.mxu0 0
  %230 = vmatpush.bf16.msra.mxu0 0
  %231 = vmatpush.bf16.msra.mxu0 0
  %232 = vmatpush.bf16.msra.mxu0 0
  %233 = vmatpush.bf16.msra.mxu0 0
  %234 = vmatpush.bf16.msra.mxu0 0
  %235 = vmatpush.bf16.msra.mxu0 0
  %236 = vmatpush.bf16.msra.mxu0 %v227
  %237 = vmatmul.bf16.gmra.mxu0 %v224
  %v238 = vpop.f32.mrf.mxu0
  %v239 = vadd.f32 0.0, %v238
  %v240 = vpop.f32.mrf.mxu0
  %241 = vdwg.mxu0
  %v243 = vsel %vm102, %v201, 0
  %v246 = vsel %vm206, %v37, 0
  %248 = vmatpush.bf16.msra.mxu0 0
  %249 = vmatpush.bf16.msra.mxu0 0
  %250 = vmatpush.bf16.msra.mxu0 0
  %251 = vmatpush.bf16.msra.mxu0 0
  %252 = vmatpush.bf16.msra.mxu0 0
  %253 = vmatpush.bf16.msra.mxu0 0
  %254 = vmatpush.bf16.msra.mxu0 0
  %255 = vmatpush.bf16.msra.mxu0 %v246
  %256 = vmatmul.bf16.gmra.mxu0 %v243
  %v257 = vpop.f32.mrf.mxu0
  %v258 = vadd.f32 0.0, %v257
  %v259 = vpop.f32.mrf.mxu0
  %260 = vdwg.mxu0
  %v262 = vsel %vm102, %v202, 0
  %v265 = vsel %vm206, %v38, 0
  %267 = vmatpush.bf16.msra.mxu0 0
  %268 = vmatpush.bf16.msra.mxu0 0
  %269 = vmatpush.bf16.msra.mxu0 0
  %270 = vmatpush.bf16.msra.mxu0 0
  %271 = vmatpush.bf16.msra.mxu0 0
  %272 = vmatpush.bf16.msra.mxu0 0
  %273 = vmatpush.bf16.msra.mxu0 0
  %274 = vmatpush.bf16.msra.mxu0 %v265
  %275 = vmatmul.bf16.gmra.mxu0 %v262
  %v276 = vpop.f32.mrf.mxu0
  %v277 = vadd.f32 0.0, %v276
  %v278 = vpop.f32.mrf.mxu0
  %279 = vdwg.mxu0
  %280 = vst [vmem:[%s3] sm:$0xff] %v220
  %281 = vst [vmem:[%s3 + $0x8] sm:$0xff] %v239
  %282 = vst [vmem:[%s3 + $0x10] sm:$0xff] %v258
  %283 = vst [vmem:[%s3 + $0x18] sm:$0xff] %v277
  // Predicated region
  $region14: #{_lambda_.14} parent=0 // pred_check
    _
  $region15: #{_lambda_.14} parent=0 // pred_check_branch
    %285 = sbr.rel (0) target = $region17
  $region16: #{_lambda_.14} parent=0 // pred_region
    _
  $region17: #{_lambda_.14} parent=0 // pred_fallthru
    _
  // Predicated region
  $region18: #{_lambda_.14} parent=0 // pred_check
    _
  $region19: #{_lambda_.14} parent=0 // pred_check_branch
    %287 = sbr.rel (0) target = $region21
  $region20: #{_lambda_.14} parent=0 // pred_region
    _
  $region21: #{_lambda_.14} parent=0 // pred_fallthru
    _

// kernel: _lambda_.15
$region0: #{_lambda_.15}
  #allocation0 [shape = 'u32[]', space=smem, size = 0x4, offset = 0x4, fixed_abs, tag = 'smem constant byte address 0x4 - core index']
  #allocation1 [shape = 'u32[72,128]{1,0:T(1,128)}', space=vmem, size = 0x9000, scoped, tag = 'internal scratch']
  #allocation2 [shape = 'f32[16,256]{1,0:T(8,128)}', space=vmem, size = 0x4000, scoped, tag = 'scratch operand']
  %s0 = inlined_call_operand.vmem [shape: bf16[16,256], index: 0, kind: input, shape index: {}]
  %s1 = inlined_call_operand.hbm [shape: bf16[256,256], index: 1, kind: input, shape index: {}]
  %s2 = inlined_call_operand.vmem [shape: f32[1,256], index: 2, kind: input, shape index: {}]
  %s3 = inlined_call_operand.vmem [shape: f32[16,256], index: 3, kind: input, shape index: {}]
  %s4 = inlined_call_operand.vmem [shape: f32[16,256], index: 4, kind: output, shape index: {}]
  %s5 = sld [smem:[#allocation0]]
  $region38: #{_lambda_.15} parent=0
    _
  %s7 = ssub.s32 1, %s5
  %s8 = scalar_select 0, %s7, %s5
  $region1: #{_lambda_.15} parent=0
    #allocation3 [shape = 'u8[131072]{0}', space=vmem, size = 0x20000, scoped, tag = 'input window, operand 1, single buffered']
    #allocation4 [shape = 's32[1]{0}', space=sflag, size = 0x4, scoped, tag = 'scoped memory for _lambda_.15']
    %9 = vsyncpa [#allocation4], 0
    // Predicated region
    $region2: #{_lambda_.15} parent=1 // pred_check
      _
    $region3: #{_lambda_.15} parent=1 // pred_check_branch
      %11 = sbr.rel (0) target = $region5
    $region4: #{_lambda_.15} parent=1 // pred_region
      _
    $region5: #{_lambda_.15} parent=1 // pred_fallthru
      _
    // Predicated region
    $region6: #{_lambda_.15} parent=1 // pred_check
      _
    $region7: #{_lambda_.15} parent=1 // pred_check_branch
      %13 = sbr.rel (0) target = $region9
    $region8: #{_lambda_.15} parent=1 // pred_region
      %15 = vsyncadd [#allocation4], 0
      %s16 = sshll.u32 %s1, 4
      %s17 = int_to_ptr.hbm [resolvable:$true] %s16
      %s18 = sshll.u32 [#allocation3], 4
      %s19 = int_to_ptr.vmem [resolvable:$true] %s18
      %24 = dma.hbm_to_vmem [thread:$0]  %s17, 4096, %s19, [#allocation4], 128, 128, 8
    $region9: #{_lambda_.15} parent=1 // pred_fallthru
      _
    // Predicated region
    $region10: #{_lambda_.15} parent=1 // pred_check
      _
    $region11: #{_lambda_.15} parent=1 // pred_check_branch
      %26 = sbr.rel (0) target = $region13
    $region12: #{_lambda_.15} parent=1 // pred_region
      _
    $region13: #{_lambda_.15} parent=1 // pred_fallthru
      _
    // Predicated region
    $region14: #{_lambda_.15} parent=1 // pred_check
      _
    $region15: #{_lambda_.15} parent=1 // pred_check_branch
      %28 = sbr.rel (0) target = $region17
    $region16: #{_lambda_.15} parent=1 // pred_region
      _
    $region17: #{_lambda_.15} parent=1 // pred_fallthru
      _
    // Predicated region
    $region18: #{_lambda_.15} parent=1 // pred_check
      _
    $region19: #{_lambda_.15} parent=1 // pred_check_branch
      %30 = sbr.rel (0) target = $region21
    $region20: #{_lambda_.15} parent=1 // pred_region
      %32 = dma.done [#allocation4], 4096
    $region21: #{_lambda_.15} parent=1 // pred_fallthru
      _
    %p33 = scmp.eq.s32.totalorder 0, 0
    // Predicated region
    $region22: #{_lambda_.15} parent=1 // pred_check
      %p34 = pneg %p33
    $region23: #{_lambda_.15} parent=1 // pred_check_branch
      %36 = sbr.rel (%p34) target = $region25
    $region24: #{_lambda_.15} parent=1 // pred_region
      %37 = vst [vmem:[#allocation2] sm:$0xff] 0.0
      %38 = vst [vmem:[#allocation2 + $0x8] sm:$0xff] 0.0
      %39 = vst [vmem:[#allocation2 + $0x10] sm:$0xff] 0.0
      %40 = vst [vmem:[#allocation2 + $0x18] sm:$0xff] 0.0
    $region25: #{_lambda_.15} parent=1 // pred_fallthru
      _
    %v41 = vld [vmem:[%s0] sm:$0xff]
    %v42 = vld [vmem:[%s0 + $0x8] sm:$0xff]
    %v43 = vld [vmem:[#allocation2] sm:$0xff]
    %v44 = vld [vmem:[#allocation2 + $0x8] sm:$0xff]
    %v45 = vld [vmem:[#allocation2 + $0x10] sm:$0xff]
    %v46 = vld [vmem:[#allocation2 + $0x18] sm:$0xff]
    %v47 = vld [vmem:[#allocation3] sm:$0xff]
    %v48 = vld [vmem:[#allocation3 + $0x8] sm:$0xff]
    %v49 = vld [vmem:[#allocation3 + $0x10] sm:$0xff]
    %v50 = vld [vmem:[#allocation3 + $0x18] sm:$0xff]
    %v51 = vld [vmem:[#allocation3 + $0x20] sm:$0xff]
    %v52 = vld [vmem:[#allocation3 + $0x28] sm:$0xff]
    %v53 = vld [vmem:[#allocation3 + $0x30] sm:$0xff]
    %v54 = vld [vmem:[#allocation3 + $0x38] sm:$0xff]
    %v55 = vld [vmem:[#allocation3 + $0x40] sm:$0xff]
    %v56 = vld [vmem:[#allocation3 + $0x48] sm:$0xff]
    %v57 = vld [vmem:[#allocation3 + $0x50] sm:$0xff]
    %v58 = vld [vmem:[#allocation3 + $0x58] sm:$0xff]
    %v59 = vld [vmem:[#allocation3 + $0x60] sm:$0xff]
    %v60 = vld [vmem:[#allocation3 + $0x68] sm:$0xff]
    %v61 = vld [vmem:[#allocation3 + $0x70] sm:$0xff]
    %v62 = vld [vmem:[#allocation3 + $0x78] sm:$0xff]
    %v63 = vld [vmem:[#allocation3 + $0x80] sm:$0xff]
    %v64 = vld [vmem:[#allocation3 + $0x88] sm:$0xff]
    %v65 = vld [vmem:[#allocation3 + $0x90] sm:$0xff]
    %v66 = vld [vmem:[#allocation3 + $0x98] sm:$0xff]
    %v67 = vld [vmem:[#allocation3 + $0xa0] sm:$0xff]
    %v68 = vld [vmem:[#allocation3 + $0xa8] sm:$0xff]
    %v69 = vld [vmem:[#allocation3 + $0xb0] sm:$0xff]
    %v70 = vld [vmem:[#allocation3 + $0xb8] sm:$0xff]
    %v71 = vld [vmem:[#allocation3 + $0xc0] sm:$0xff]
    %v72 = vld [vmem:[#allocation3 + $0xc8] sm:$0xff]
    %v73 = vld [vmem:[#allocation3 + $0xd0] sm:$0xff]
    %v74 = vld [vmem:[#allocation3 + $0xd8] sm:$0xff]
    %v75 = vld [vmem:[#allocation3 + $0xe0] sm:$0xff]
    %v76 = vld [vmem:[#allocation3 + $0xe8] sm:$0xff]
    %v77 = vld [vmem:[#allocation3 + $0xf0] sm:$0xff]
    %v78 = vld [vmem:[#allocation3 + $0xf8] sm:$0xff]
    %v81 = vunpack.c.l.b16 %v41
    %v82 = vunpack.c.h.b16 %v41
    %v83 = vunpack.c.l.b16 %v42
    %v84 = vunpack.c.h.b16 %v42
    %v85 = vpack.c.b16 %v83, %v81
    %v86 = vpack.c.b16 %v84, %v82
    %v121 = vunpack.c.l.b16 %v47
    %v122 = vunpack.c.h.b16 %v47
    %v123 = vunpack.c.l.b16 %v48
    %v124 = vunpack.c.h.b16 %v48
    %v125 = vunpack.c.l.b16 %v49
    %v126 = vunpack.c.h.b16 %v49
    %v127 = vunpack.c.l.b16 %v50
    %v128 = vunpack.c.h.b16 %v50
    %v129 = vunpack.c.l.b16 %v51
    %v130 = vunpack.c.h.b16 %v51
    %v131 = vunpack.c.l.b16 %v52
    %v132 = vunpack.c.h.b16 %v52
    %v133 = vunpack.c.l.b16 %v53
    %v134 = vunpack.c.h.b16 %v53
    %v135 = vunpack.c.l.b16 %v54
    %v136 = vunpack.c.h.b16 %v54
    %v137 = vunpack.c.l.b16 %v55
    %v138 = vunpack.c.h.b16 %v55
    %v139 = vunpack.c.l.b16 %v56
    %v140 = vunpack.c.h.b16 %v56
    %v141 = vunpack.c.l.b16 %v57
    %v142 = vunpack.c.h.b16 %v57
    %v143 = vunpack.c.l.b16 %v58
    %v144 = vunpack.c.h.b16 %v58
    %v145 = vunpack.c.l.b16 %v59
    %v146 = vunpack.c.h.b16 %v59
    %v147 = vunpack.c.l.b16 %v60
    %v148 = vunpack.c.h.b16 %v60
    %v149 = vunpack.c.l.b16 %v61
    %v150 = vunpack.c.h.b16 %v61
    %v151 = vunpack.c.l.b16 %v62
    %v152 = vunpack.c.h.b16 %v62
    %v153 = vunpack.c.l.b16 %v63
    %v154 = vunpack.c.h.b16 %v63
    %v155 = vunpack.c.l.b16 %v64
    %v156 = vunpack.c.h.b16 %v64
    %v157 = vunpack.c.l.b16 %v65
    %v158 = vunpack.c.h.b16 %v65
    %v159 = vunpack.c.l.b16 %v66
    %v160 = vunpack.c.h.b16 %v66
    %v161 = vunpack.c.l.b16 %v67
    %v162 = vunpack.c.h.b16 %v67
    %v163 = vunpack.c.l.b16 %v68
    %v164 = vunpack.c.h.b16 %v68
    %v165 = vunpack.c.l.b16 %v69
    %v166 = vunpack.c.h.b16 %v69
    %v167 = vunpack.c.l.b16 %v70
    %v168 = vunpack.c.h.b16 %v70
    %v169 = vunpack.c.l.b16 %v71
    %v170 = vunpack.c.h.b16 %v71
    %v171 = vunpack.c.l.b16 %v72
    %v172 = vunpack.c.h.b16 %v72
    %v173 = vunpack.c.l.b16 %v73
    %v174 = vunpack.c.h.b16 %v73
    %v175 = vunpack.c.l.b16 %v74
    %v176 = vunpack.c.h.b16 %v74
    %v177 = vunpack.c.l.b16 %v75
    %v178 = vunpack.c.h.b16 %v75
    %v179 = vunpack.c.l.b16 %v76
    %v180 = vunpack.c.h.b16 %v76
    %v181 = vunpack.c.l.b16 %v77
    %v182 = vunpack.c.h.b16 %v77
    %v183 = vunpack.c.l.b16 %v78
    %v184 = vunpack.c.h.b16 %v78
    %v185 = vpack.c.b16 %v123, %v121
    %v186 = vpack.c.b16 %v124, %v122
    %v187 = vpack.c.b16 %v127, %v125
    %v188 = vpack.c.b16 %v128, %v126
    %v189 = vpack.c.b16 %v131, %v129
    %v190 = vpack.c.b16 %v132, %v130
    %v191 = vpack.c.b16 %v135, %v133
    %v192 = vpack.c.b16 %v136, %v134
    %v193 = vpack.c.b16 %v139, %v137
    %v194 = vpack.c.b16 %v140, %v138
    %v195 = vpack.c.b16 %v143, %v141
    %v196 = vpack.c.b16 %v144, %v142
    %v197 = vpack.c.b16 %v147, %v145
    %v198 = vpack.c.b16 %v148, %v146
    %v199 = vpack.c.b16 %v151, %v149
    %v200 = vpack.c.b16 %v152, %v150
    %v201 = vpack.c.b16 %v155, %v153
    %v202 = vpack.c.b16 %v156, %v154
    %v203 = vpack.c.b16 %v159, %v157
    %v204 = vpack.c.b16 %v160, %v158
    %v205 = vpack.c.b16 %v163, %v161
    %v206 = vpack.c.b16 %v164, %v162
    %v207 = vpack.c.b16 %v167, %v165
    %v208 = vpack.c.b16 %v168, %v166
    %v209 = vpack.c.b16 %v171, %v169
    %v210 = vpack.c.b16 %v172, %v170
    %v211 = vpack.c.b16 %v175, %v173
    %v212 = vpack.c.b16 %v176, %v174
    %v213 = vpack.c.b16 %v179, %v177
    %v214 = vpack.c.b16 %v180, %v178
    %v215 = vpack.c.b16 %v183, %v181
    %v216 = vpack.c.b16 %v184, %v182
    %249 = vmatpush.bf16.msra.mxu0 %v199
    %250 = vmatpush.bf16.msra.mxu0 %v197
    %251 = vmatpush.bf16.msra.mxu0 %v195
    %252 = vmatpush.bf16.msra.mxu0 %v193
    %253 = vmatpush.bf16.msra.mxu0 %v191
    %254 = vmatpush.bf16.msra.mxu0 %v189
    %255 = vmatpush.bf16.msra.mxu0 %v187
    %256 = vmatpush.bf16.msra.mxu0 %v185
    %257 = vmatmul.bf16.gmra.mxu0 %v85
    %v258 = vpop.f32.mrf.mxu0
    %v259 = vadd.f32 0.0, %v258
    %v260 = vpop.f32.mrf.mxu0
    %v261 = vadd.f32 0.0, %v260
    %262 = vdwg.mxu0
    %263 = vmatpush.bf16.msra.mxu0 %v215
    %264 = vmatpush.bf16.msra.mxu0 %v213
    %265 = vmatpush.bf16.msra.mxu0 %v211
    %266 = vmatpush.bf16.msra.mxu0 %v209
    %267 = vmatpush.bf16.msra.mxu0 %v207
    %268 = vmatpush.bf16.msra.mxu0 %v205
    %269 = vmatpush.bf16.msra.mxu0 %v203
    %270 = vmatpush.bf16.msra.mxu0 %v201
    %271 = vmatmul.bf16.gmra.mxu0 %v86
    %v272 = vpop.f32.mrf.mxu0
    %v273 = vadd.f32 %v259, %v272
    %v274 = vpop.f32.mrf.mxu0
    %v275 = vadd.f32 %v261, %v274
    %276 = vdwg.mxu0
    %277 = vmatpush.bf16.msra.mxu0 %v200
    %278 = vmatpush.bf16.msra.mxu0 %v198
    %279 = vmatpush.bf16.msra.mxu0 %v196
    %280 = vmatpush.bf16.msra.mxu0 %v194
    %281 = vmatpush.bf16.msra.mxu0 %v192
    %282 = vmatpush.bf16.msra.mxu0 %v190
    %283 = vmatpush.bf16.msra.mxu0 %v188
    %284 = vmatpush.bf16.msra.mxu0 %v186
    %285 = vmatmul.bf16.gmra.mxu0 %v85
    %v286 = vpop.f32.mrf.mxu0
    %v287 = vadd.f32 0.0, %v286
    %v288 = vpop.f32.mrf.mxu0
    %v289 = vadd.f32 0.0, %v288
    %290 = vdwg.mxu0
    %291 = vmatpush.bf16.msra.mxu0 %v216
    %292 = vmatpush.bf16.msra.mxu0 %v214
    %293 = vmatpush.bf16.msra.mxu0 %v212
    %294 = vmatpush.bf16.msra.mxu0 %v210
    %295 = vmatpush.bf16.msra.mxu0 %v208
    %296 = vmatpush.bf16.msra.mxu0 %v206
    %297 = vmatpush.bf16.msra.mxu0 %v204
    %298 = vmatpush.bf16.msra.mxu0 %v202
    %299 = vmatmul.bf16.gmra.mxu0 %v86
    %v300 = vpop.f32.mrf.mxu0
    %v301 = vadd.f32 %v287, %v300
    %v302 = vpop.f32.mrf.mxu0
    %v303 = vadd.f32 %v289, %v302
    %304 = vdwg.mxu0
    %v305 = vadd.f32 %v43, %v273
    %v306 = vadd.f32 %v44, %v301
    %v307 = vadd.f32 %v45, %v275
    %v308 = vadd.f32 %v46, %v303
    %309 = vst [vmem:[#allocation2] sm:$0xff] %v305
    %310 = vst [vmem:[#allocation2 + $0x8] sm:$0xff] %v306
    %311 = vst [vmem:[#allocation2 + $0x10] sm:$0xff] %v307
    %312 = vst [vmem:[#allocation2 + $0x18] sm:$0xff] %v308
    // Predicated region
    $region26: #{_lambda_.15} parent=1 // pred_check
      %p313 = pneg %p33
    $region27: #{_lambda_.15} parent=1 // pred_check_branch
      %315 = sbr.rel (%p313) target = $region29
    $region28: #{_lambda_.15} parent=1 // pred_region
      %v316 = vld [vmem:[#allocation2] sm:$0xff]
      %v317 = vld [vmem:[#allocation2 + $0x8] sm:$0xff]
      %v318 = vld [vmem:[#allocation2 + $0x10] sm:$0xff]
      %v319 = vld [vmem:[#allocation2 + $0x18] sm:$0xff]
      %v320 = vld [vmem:[%s2] sm:$0x3]
      %v322 = vperm.slane %v320, 0
      %v323 = vperm.slane %v320, 1
      %v326 = vadd.f32 %v316, %v322
      %v327 = vadd.f32 %v317, %v323
      %v328 = vadd.f32 %v318, %v322
      %v329 = vadd.f32 %v319, %v323
      %v330 = vld [vmem:[%s3] sm:$0xff]
      %v331 = vld [vmem:[%s3 + $0x8] sm:$0xff]
      %v332 = vld [vmem:[%s3 + $0x10] sm:$0xff]
      %v333 = vld [vmem:[%s3 + $0x18] sm:$0xff]
      %v334 = vadd.f32 %v326, %v330
      %v335 = vadd.f32 %v327, %v331
      %v336 = vadd.f32 %v328, %v332
      %v337 = vadd.f32 %v329, %v333
      %338 = vst [vmem:[%s4] sm:$0xff] %v334
      %339 = vst [vmem:[%s4 + $0x8] sm:$0xff] %v335
      %340 = vst [vmem:[%s4 + $0x10] sm:$0xff] %v336
      %341 = vst [vmem:[%s4 + $0x18] sm:$0xff] %v337
    $region29: #{_lambda_.15} parent=1 // pred_fallthru
      _
    // Predicated region
    $region30: #{_lambda_.15} parent=1 // pred_check
      _
    $region31: #{_lambda_.15} parent=1 // pred_check_branch
      %343 = sbr.rel (0) target = $region33
    $region32: #{_lambda_.15} parent=1 // pred_region
      _
    $region33: #{_lambda_.15} parent=1 // pred_fallthru
      _
    // Predicated region
    $region34: #{_lambda_.15} parent=1 // pred_check
      _
    $region35: #{_lambda_.15} parent=1 // pred_check_branch
      %345 = sbr.rel (0) target = $region37
    $region36: #{_lambda_.15} parent=1 // pred_region
      _
    $region37: #{_lambda_.15} parent=1 // pred_fallthru
      _
    %346 = vsyncpa [#allocation4], 1

// kernel: _lambda_.16
$region0: #{_lambda_.16}
  #allocation0 [shape = 'u32[]', space=smem, size = 0x4, offset = 0x4, fixed_abs, tag = 'smem constant byte address 0x4 - core index']
  #allocation1 [shape = 'u32[72,128]{1,0:T(1,128)}', space=vmem, size = 0x9000, scoped, tag = 'internal scratch']
  #allocation2 [shape = 'f32[16,256]{1,0:T(8,128)}', space=vmem, size = 0x4000, scoped, tag = 'scratch operand']
  %s0 = inlined_call_operand.vmem [shape: f32[16,256], index: 0, kind: input, shape index: {}]
  %s1 = inlined_call_operand.hbm [shape: bf16[256,1024], index: 1, kind: input, shape index: {}]
  %s2 = inlined_call_operand.vmem [shape: f32[1,1024], index: 2, kind: input, shape index: {}]
  %s3 = inlined_call_operand.vmem [shape: f32[1,256], index: 3, kind: input, shape index: {}]
  %s4 = inlined_call_operand.vmem [shape: f32[1,256], index: 4, kind: input, shape index: {}]
  %s5 = inlined_call_operand.vmem [shape: f32[16,1024], index: 5, kind: output, shape index: {}]
  %s6 = sld [smem:[#allocation0]]
  $region84: #{_lambda_.16} parent=0
    _
  %s8 = ssub.s32 1, %s6
  %s9 = scalar_select 0, %s8, %s6
  $region1: #{_lambda_.16} parent=0
    #allocation3 [shape = 'u8[262144]{0}', space=vmem, size = 0x40000, scoped, tag = 'input window, operand 1']
    #allocation4 [shape = 's32[2]{0}', space=sflag, size = 0x8, scoped, tag = 'scoped memory for _lambda_.16']
    #allocation5 [shape = 'u8[32768]{0}', space=vmem, size = 0x8000, scoped, tag = 'output window, operand 0']
    %10 = vsyncpa [#allocation4], 0
    %s11 = scalar_lea.sflag [#allocation4], 1
    %12 = vsyncpa %s11, 0
    loop: start=0, step=1, limit=6
    $region2: #{_lambda_.16} parent=1 // loop_pre_header
      _
    $region3: #{_lambda_.16} parent=1 // loop_header
      %s14 = sphi 0, %s18
      %p15 = scmp.ge.s32.totalorder %s14, 6
      %s21 = sphi 0, %s40
      %s22 = sphi 0, %s36
      %s23 = sphi 0, %s32
      %s24 = sphi 0, %s21
      %s25 = sphi 0, %s22
      %s26 = sphi 0, %s23
      %s27 = sphi 0, %s24
      %s28 = sphi 0, %s25
      %s29 = sphi 0, %s26
      %s45 = sphi 0, %s47
      %s48 = sphi 0, %s45
      %s49 = sphi 0, %s48
      %s65 = sphi 0, %s49
      %s73 = sphi 0, %s75
      %s76 = sphi 0, %s73
      %s77 = sphi 0, %s76
      %s93 = sphi 0, %s77
      %s99 = sphi 0, %s101
      %s102 = sphi 0, %s99
      %s103 = sphi 0, %s102
      %s119 = sphi 0, %s103
      %s125 = sphi 0, %s127
      %s128 = sphi 0, %s125
      %s129 = sphi 0, %s128
      %s145 = sphi 0, %s129
      %s151 = sphi 0, %s153
      %s154 = sphi 0, %s151
      %s155 = sphi 0, %s154
      %s171 = sphi 0, %s155
      %s179 = sphi 0, %s181
      %s182 = sphi 0, %s179
      %s183 = sphi 0, %s182
      %s199 = sphi 0, %s183
    $region4: #{_lambda_.16} parent=1 // loop_header_branch
      %17 = sbr.rel (%p15) target = $region8
    $region5: #{_lambda_.16} parent=1 // loop_body
      %s19 = ssub.s32 %s14, 1
      %s20 = ssub.s32 %s14, 2
      %s30 = sadd.s32 1, %s23
      %p31 = scmp.ge.s32.totalorder %s30, 1
      %s32 = scalar_select %p31, 0, %s30
      %s33 = sadd.s32 1, %s22
      %s34 = scalar_select %p31, %s33, %s22
      %p35 = scmp.ge.s32.totalorder %s34, 4
      %s36 = scalar_select %p35, 0, %s34
      %s37 = sadd.s32 1, %s21
      %s38 = scalar_select %p35, %s37, %s21
      %p39 = scmp.ge.s32.totalorder %s38, 1
      %s40 = scalar_select %p39, 0, %s38
      %s41 = ssub.s32 %s21, %s40
      %s42 = ssub.s32 %s23, %s32
      %s43 = sor.u32 %s41, %s42
      %p44 = scmp.eq.s32.totalorder %s43, 0
      %s46 = sadd.s32 %s45, 1
      %s47 = scalar_select %p44, %s45, %s46
      %p50 = pneg %p44
      %p51 = scmp.eq.s32.totalorder %s14, 3
      %p52 = por %p50, %p51
      %p53 = scmp.ne.s32.totalorder %s45, %s48
      %p54 = scmp.eq.s32.totalorder %s14, 0
      %p55 = por %p53, %p54
      %p56 = scmp.ne.s32.totalorder %s45, %s48
      %p57 = scmp.eq.s32.totalorder %s19, 3
      %p58 = por %p56, %p57
      %p59 = scmp.ne.s32.totalorder %s48, %s49
      %p60 = scmp.eq.s32.totalorder %s19, 0
      %p61 = por %p59, %p60
      %p62 = scmp.ne.s32.totalorder %s48, %s49
      %p63 = scmp.eq.s32.totalorder %s20, 3
      %p64 = por %p62, %p63
      %p66 = scmp.ne.s32.totalorder %s49, %s65
      %p67 = scmp.eq.s32.totalorder %s20, 0
      %p68 = por %p66, %p67
      %s69 = ssub.s32 %s23, %s32
      %s70 = ssub.s32 %s22, %s36
      %s71 = sor.u32 %s69, %s70
      %p72 = scmp.eq.s32.totalorder %s71, 0
      %s74 = sadd.s32 %s73, 1
      %s75 = scalar_select %p72, %s73, %s74
      %p78 = pneg %p72
      %p79 = scmp.eq.s32.totalorder %s14, 3
      %p80 = por %p78, %p79
      %p81 = scmp.ne.s32.totalorder %s73, %s76
      %p82 = scmp.eq.s32.totalorder %s14, 0
      %p83 = por %p81, %p82
      %p84 = scmp.ne.s32.totalorder %s73, %s76
      %p85 = scmp.eq.s32.totalorder %s19, 3
      %p86 = por %p84, %p85
      %p87 = scmp.ne.s32.totalorder %s76, %s77
      %p88 = scmp.eq.s32.totalorder %s19, 0
      %p89 = por %p87, %p88
      %p90 = scmp.ne.s32.totalorder %s76, %s77
      %p91 = scmp.eq.s32.totalorder %s20, 3
      %p92 = por %p90, %p91
      %p94 = scmp.ne.s32.totalorder %s77, %s93
      %p95 = scmp.eq.s32.totalorder %s20, 0
      %p96 = por %p94, %p95
      %s97 = ssub.s32 %s22, %s36
      %p98 = scmp.eq.s32.totalorder %s97, 0
      %s100 = sadd.s32 %s99, 1
      %s101 = scalar_select %p98, %s99, %s100
      %p104 = pneg %p98
      %p105 = scmp.eq.s32.totalorder %s14, 3
      %p106 = por %p104, %p105
      %p107 = scmp.ne.s32.totalorder %s99, %s102
      %p108 = scmp.eq.s32.totalorder %s14, 0
      %p109 = por %p107, %p108
      %p110 = scmp.ne.s32.totalorder %s99, %s102
      %p111 = scmp.eq.s32.totalorder %s19, 3
      %p112 = por %p110, %p111
      %p113 = scmp.ne.s32.totalorder %s102, %s103
      %p114 = scmp.eq.s32.totalorder %s19, 0
      %p115 = por %p113, %p114
      %p116 = scmp.ne.s32.totalorder %s102, %s103
      %p117 = scmp.eq.s32.totalorder %s20, 3
      %p118 = por %p116, %p117
      %p120 = scmp.ne.s32.totalorder %s103, %s119
      %p121 = scmp.eq.s32.totalorder %s20, 0
      %p122 = por %p120, %p121
      %s123 = ssub.s32 %s23, %s32
      %p124 = scmp.eq.s32.totalorder %s123, 0
      %s126 = sadd.s32 %s125, 1
      %s127 = scalar_select %p124, %s125, %s126
      %p130 = pneg %p124
      %p131 = scmp.eq.s32.totalorder %s14, 3
      %p132 = por %p130, %p131
      %p133 = scmp.ne.s32.totalorder %s125, %s128
      %p134 = scmp.eq.s32.totalorder %s14, 0
      %p135 = por %p133, %p134
      %p136 = scmp.ne.s32.totalorder %s125, %s128
      %p137 = scmp.eq.s32.totalorder %s19, 3
      %p138 = por %p136, %p137
      %p139 = scmp.ne.s32.totalorder %s128, %s129
      %p140 = scmp.eq.s32.totalorder %s19, 0
      %p141 = por %p139, %p140
      %p142 = scmp.ne.s32.totalorder %s128, %s129
      %p143 = scmp.eq.s32.totalorder %s20, 3
      %p144 = por %p142, %p143
      %p146 = scmp.ne.s32.totalorder %s129, %s145
      %p147 = scmp.eq.s32.totalorder %s20, 0
      %p148 = por %p146, %p147
      %s149 = ssub.s32 %s23, %s32
      %p150 = scmp.eq.s32.totalorder %s149, 0
      %s152 = sadd.s32 %s151, 1
      %s153 = scalar_select %p150, %s151, %s152
      %p156 = pneg %p150
      %p157 = scmp.eq.s32.totalorder %s14, 3
      %p158 = por %p156, %p157
      %p159 = scmp.ne.s32.totalorder %s151, %s154
      %p160 = scmp.eq.s32.totalorder %s14, 0
      %p161 = por %p159, %p160
      %p162 = scmp.ne.s32.totalorder %s151, %s154
      %p163 = scmp.eq.s32.totalorder %s19, 3
      %p164 = por %p162, %p163
      %p165 = scmp.ne.s32.totalorder %s154, %s155
      %p166 = scmp.eq.s32.totalorder %s19, 0
      %p167 = por %p165, %p166
      %p168 = scmp.ne.s32.totalorder %s154, %s155
      %p169 = scmp.eq.s32.totalorder %s20, 3
      %p170 = por %p168, %p169
      %p172 = scmp.ne.s32.totalorder %s155, %s171
      %p173 = scmp.eq.s32.totalorder %s20, 0
      %p174 = por %p172, %p173
      %s175 = ssub.s32 %s21, %s40
      %s176 = ssub.s32 %s22, %s36
      %s177 = sor.u32 %s175, %s176
      %p178 = scmp.eq.s32.totalorder %s177, 0
      %s180 = sadd.s32 %s179, 1
      %s181 = scalar_select %p178, %s179, %s180
      %p184 = pneg %p178
      %p185 = scmp.eq.s32.totalorder %s14, 3
      %p186 = por %p184, %p185
      %p187 = scmp.ne.s32.totalorder %s179, %s182
      %p188 = scmp.eq.s32.totalorder %s14, 0
      %p189 = por %p187, %p188
      %p190 = scmp.ne.s32.totalorder %s179, %s182
      %p191 = scmp.eq.s32.totalorder %s19, 3
      %p192 = por %p190, %p191
      %p193 = scmp.ne.s32.totalorder %s182, %s183
      %p194 = scmp.eq.s32.totalorder %s19, 0
      %p195 = por %p193, %p194
      %p196 = scmp.ne.s32.totalorder %s182, %s183
      %p197 = scmp.eq.s32.totalorder %s20, 3
      %p198 = por %p196, %p197
      %p200 = scmp.ne.s32.totalorder %s183, %s199
      %p201 = scmp.eq.s32.totalorder %s20, 0
      %p202 = por %p200, %p201
      %p203 = scmp.le.s32.totalorder 1, %s14
      %p204 = scmp.lt.s32.totalorder %s14, 5
      %p205 = pnand %p203, %p204
      %p206 = pneg %p205
      // Predicated region
      $region9: #{_lambda_.16} parent=5 // pred_check
        _
      $region10: #{_lambda_.16} parent=5 // pred_check_branch
        %208 = sbr.rel (%p205) target = $region12
      $region11: #{_lambda_.16} parent=5 // pred_region
        %s209 = ssub.s32 %s14, 1
        // Predicated region
        $region13: #{_lambda_.16} parent=11 // pred_check
          %p210 = pneg %p61
        $region14: #{_lambda_.16} parent=11 // pred_check_branch
          %212 = sbr.rel (%p210) target = $region16
        $region15: #{_lambda_.16} parent=11 // pred_region
          %s213 = smul.u32 2, %s24
          %s214 = smul.u32 2, %s26
          %p215 = scmp.lt.s32.totalorder %s213, 1
          %s216 = scalar_select %p215, %s213, 1
          %p217 = scmp.lt.s32.totalorder %s214, 1
          %s218 = scalar_select %p217, %s214, 1
          %s219 = smul.addr %s216, 2
          %s220 = sadd.s32 %s218, %s219
          %s221 = smul.addr %s220, 8
          %s222 = scalar_lea.vmem %s0, %s221
          %s223 = smul.u32 2, %s24
          %s224 = smul.u32 2, %s26
        $region16: #{_lambda_.16} parent=11 // pred_fallthru
          _
        // Predicated region
        $region17: #{_lambda_.16} parent=11 // pred_check
          %p225 = pneg %p141
        $region18: #{_lambda_.16} parent=11 // pred_check_branch
          %227 = sbr.rel (%p225) target = $region20
        $region19: #{_lambda_.16} parent=11 // pred_region
          %s228 = smul.u32 2, %s26
          %p229 = scmp.lt.s32.totalorder %s228, 1
          %s230 = scalar_select %p229, %s228, 1
          %s231 = scalar_lea.vmem %s3, %s230
          %s232 = smul.u32 2, %s26
        $region20: #{_lambda_.16} parent=11 // pred_fallthru
          _
        // Predicated region
        $region21: #{_lambda_.16} parent=11 // pred_check
          %p233 = pneg %p167
        $region22: #{_lambda_.16} parent=11 // pred_check_branch
          %235 = sbr.rel (%p233) target = $region24
        $region23: #{_lambda_.16} parent=11 // pred_region
          %s236 = smul.u32 2, %s26
          %p237 = scmp.lt.s32.totalorder %s236, 1
          %s238 = scalar_select %p237, %s236, 1
          %s239 = scalar_lea.vmem %s4, %s238
          %s240 = smul.u32 2, %s26
        $region24: #{_lambda_.16} parent=11 // pred_fallthru
          _
      $region12: #{_lambda_.16} parent=5 // pred_fallthru
        _
      %p241 = scmp.lt.s32.totalorder %s14, 4
      // Predicated region
      $region25: #{_lambda_.16} parent=5 // pred_check
        %p242 = pneg %p241
      $region26: #{_lambda_.16} parent=5 // pred_check_branch
        %244 = sbr.rel (%p242) target = $region28
      $region27: #{_lambda_.16} parent=5 // pred_region
        // Predicated region
        $region29: #{_lambda_.16} parent=27 // pred_check
          %p245 = pneg %p83
        $region30: #{_lambda_.16} parent=27 // pred_check_branch
          %247 = sbr.rel (%p245) target = $region32
        $region31: #{_lambda_.16} parent=27 // pred_region
          %s248 = sand.u32 %s73, 1
          %s249 = scalar_lea.sflag [#allocation4], %s248
          %s250 = sand.u32 %s73, 1
          %s251 = smul.addr %s250, 256
          %s252 = scalar_lea.vmem [#allocation3], %s251
          %s253 = smul.u32 32, %s23
          %s254 = smul.u32 2, %s22
          %256 = vsyncadd %s249, 0
          %s257 = smul.addr %s253, 8
          %s258 = sadd.s32 %s254, %s257
          %s259 = smul.addr %s258, 4
          %s260 = scalar_lea.hbm %s1, %s259
          %s261 = sshll.u32 %s260, 4
          %s262 = int_to_ptr.hbm [resolvable:$true] %s261
          %s263 = sshll.u32 %s252, 4
          %s264 = int_to_ptr.vmem [resolvable:$true] %s263
          %269 = dma.hbm_to_vmem [thread:$0]  %s262, 4096, %s264, %s249, 512, 128, 8
        $region32: #{_lambda_.16} parent=27 // pred_fallthru
          _
        // Predicated region
        $region33: #{_lambda_.16} parent=27 // pred_check
          %p270 = pneg %p109
        $region34: #{_lambda_.16} parent=27 // pred_check_branch
          %272 = sbr.rel (%p270) target = $region36
        $region35: #{_lambda_.16} parent=27 // pred_region
          %s273 = smul.u32 2, %s22
          %p274 = scmp.lt.s32.totalorder %s273, 7
          %s275 = scalar_select %p274, %s273, 7
          %s276 = scalar_lea.vmem %s2, %s275
          %s277 = smul.u32 2, %s22
        $region36: #{_lambda_.16} parent=27 // pred_fallthru
          _
      $region28: #{_lambda_.16} parent=5 // pred_fallthru
        _
      %p278 = scmp.le.s32.totalorder 1, %s14
      %p279 = scmp.lt.s32.totalorder %s14, 5
      %p280 = pnand %p278, %p279
      %p281 = pneg %p280
      // Predicated region
      $region37: #{_lambda_.16} parent=5 // pred_check
        _
      $region38: #{_lambda_.16} parent=5 // pred_check_branch
        %283 = sbr.rel (%p280) target = $region40
      $region39: #{_lambda_.16} parent=5 // pred_region
        %s284 = ssub.s32 %s14, 1
        %s285 = sand.u32 %s76, 1
        %s286 = scalar_lea.sflag [#allocation4], %s285
        %s287 = sand.u32 %s76, 1
        %s288 = smul.addr %s287, 256
        %s289 = scalar_lea.vmem [#allocation3], %s288
        // Predicated region
        $region41: #{_lambda_.16} parent=39 // pred_check
          %p290 = pneg %p89
        $region42: #{_lambda_.16} parent=39 // pred_check_branch
          %292 = sbr.rel (%p290) target = $region44
        $region43: #{_lambda_.16} parent=39 // pred_region
          %294 = dma.done %s286, 4096
        $region44: #{_lambda_.16} parent=39 // pred_fallthru
          _
        %s295 = smul.u32 2, %s24
        %s296 = smul.u32 2, %s26
        %p297 = scmp.lt.s32.totalorder %s295, 1
        %s298 = scalar_select %p297, %s295, 1
        %p299 = scmp.lt.s32.totalorder %s296, 1
        %s300 = scalar_select %p299, %s296, 1
        %s301 = smul.addr %s298, 2
        %s302 = sadd.s32 %s300, %s301
        %s303 = smul.addr %s302, 8
        %s304 = scalar_lea.vmem %s0, %s303
        %p305 = pneg %p61
        %p306 = pneg %p58
        %s307 = sand.u32 %s76, 1
        %s308 = scalar_lea.sflag [#allocation4], %s307
        %s309 = sand.u32 %s76, 1
        %s310 = smul.addr %s309, 256
        %s311 = scalar_lea.vmem [#allocation3], %s310
        %p312 = pneg %p89
        %p313 = pneg %p86
        %s314 = smul.u32 2, %s25
        %p315 = scmp.lt.s32.totalorder %s314, 7
        %s316 = scalar_select %p315, %s314, 7
        %s317 = scalar_lea.vmem %s2, %s316
        %p318 = pneg %p115
        %p319 = pneg %p112
        %s320 = smul.u32 2, %s26
        %p321 = scmp.lt.s32.totalorder %s320, 1
        %s322 = scalar_select %p321, %s320, 1
        %s323 = scalar_lea.vmem %s3, %s322
        %p324 = pneg %p141
        %p325 = pneg %p138
        %s326 = smul.u32 2, %s26
        %p327 = scmp.lt.s32.totalorder %s326, 1
        %s328 = scalar_select %p327, %s326, 1
        %s329 = scalar_lea.vmem %s4, %s328
        %p330 = pneg %p167
        %p331 = pneg %p164
        %p332 = pneg %p195
        %p333 = pneg %p192
        %s334 = sand.u32 %s182, 1
        %s335 = sand.u32 %s182, 1
        %s336 = smul.addr %s335, 32
        %s337 = scalar_lea.vmem [#allocation5], %s336
        %s338 = smul.u32 2, %s24
        %s339 = smul.u32 2, %s26
        %p340 = scmp.lt.s32.totalorder %s338, 1
        %s341 = scalar_select %p340, %s338, 1
        %p342 = scmp.lt.s32.totalorder %s339, 1
        %s343 = scalar_select %p342, %s339, 1
        %s344 = smul.addr %s341, 2
        %s345 = sadd.s32 %s343, %s344
        %s346 = smul.addr %s345, 8
        %s347 = scalar_lea.vmem %s0, %s346
        %s348 = smul.u32 2, %s24
        %s349 = smul.u32 2, %s26
        %s350 = smul.u32 32, %s26
        %s351 = smul.u32 2, %s25
        %s352 = smul.u32 2, %s25
        %p353 = scmp.lt.s32.totalorder %s352, 7
        %s354 = scalar_select %p353, %s352, 7
        %s355 = scalar_lea.vmem %s2, %s354
        %s356 = smul.u32 2, %s25
        %s357 = smul.u32 2, %s26
        %p358 = scmp.lt.s32.totalorder %s357, 1
        %s359 = scalar_select %p358, %s357, 1
        %s360 = scalar_lea.vmem %s3, %s359
        %s361 = smul.u32 2, %s26
        %s362 = smul.u32 2, %s26
        %p363 = scmp.lt.s32.totalorder %s362, 1
        %s364 = scalar_select %p363, %s362, 1
        %s365 = scalar_lea.vmem %s4, %s364
        %s366 = smul.u32 2, %s26
        %s367 = smul.u32 2, %s24
        %s368 = smul.u32 2, %s25
        %p369 = scmp.eq.s32.totalorder %s26, 0
        // Predicated region
        $region45: #{_lambda_.16} parent=39 // pred_check
          %p370 = pneg %p369
        $region46: #{_lambda_.16} parent=39 // pred_check_branch
          %372 = sbr.rel (%p370) target = $region48
        $region47: #{_lambda_.16} parent=39 // pred_region
          %373 = vst [vmem:[#allocation2] sm:$0xff] 0.0
          %374 = vst [vmem:[#allocation2 + $0x8] sm:$0xff] 0.0
          %375 = vst [vmem:[#allocation2 + $0x10] sm:$0xff] 0.0
          %376 = vst [vmem:[#allocation2 + $0x18] sm:$0xff] 0.0
        $region48: #{_lambda_.16} parent=39 // pred_fallthru
          _
        %v377 = vld [vmem:[%s347] sm:$0xff]
        %v378 = vld [vmem:[%s347 + $0x8] sm:$0xff]
        %v379 = vld [vmem:[%s347 + $0x10] sm:$0xff]
        %v380 = vld [vmem:[%s347 + $0x18] sm:$0xff]
        %v381 = vadd.f32 %v377, %v378
        %382 = vadd.xlane.f32.xlu0 %v381
        %v383 = vpop.xlane.xlu0 %382
        %v384 = vadd.f32 %v379, %v380
        %385 = vadd.xlane.f32.xlu0 %v384
        %v386 = vpop.xlane.xlu0 %385
        %v387 = vrcp.pop 256.0
        %v388 = vmul.f32 256.0, %v387
        %v389 = vsub.f32 1.0, %v388
        %v390 = vmul.f32 %v387, %v389
        %v391 = vadd.f32 %v387, %v390
        %vm392 = vweird.f32 %v387
        %v393 = vsel %vm392, %v387, %v391
        %v394 = vmul.f32 %v383, %v393
        %v395 = vmul.f32 %v386, %v393
        %v396 = vsub.f32 %v377, %v394
        %v397 = vsub.f32 %v378, %v394
        %v398 = vsub.f32 %v379, %v395
        %v399 = vsub.f32 %v380, %v395
        %v400 = vmul.f32 %v396, %v396
        %v401 = vmul.f32 %v397, %v397
        %v402 = vmul.f32 %v398, %v398
        %v403 = vmul.f32 %v399, %v399
        %v404 = vadd.f32 %v400, %v401
        %405 = vadd.xlane.f32.xlu0 %v404
        %v406 = vpop.xlane.xlu0 %405
        %v407 = vadd.f32 %v402, %v403
        %408 = vadd.xlane.f32.xlu0 %v407
        %v409 = vpop.xlane.xlu0 %408
        %v410 = vmul.f32 %v406, %v393
        %v411 = vmul.f32 %v409, %v393
        %v412 = vadd.f32 %v410, 1e-06
        %v413 = vadd.f32 %v411, 1e-06
        %v414 = vrsqrt.pop %v412
        %v415 = vmul.f32 %v414, %v412
        %v416 = vmul.f32 %v415, %v414
        %v417 = vmul.f32 0.5, %v416
        %v418 = vsub.f32 1.5, %v417
        %v419 = vmul.f32 %v414, %v418
        %vm420 = vweird.f32 %v412
        %vm421 = vweird.f32 %v414
        %vm422 = vmor %vm420, %vm421
        %v423 = vsel %vm422, %v414, %v419
        %v424 = vrsqrt.pop %v413
        %v425 = vmul.f32 %v424, %v413
        %v426 = vmul.f32 %v425, %v424
        %v427 = vmul.f32 0.5, %v426
        %v428 = vsub.f32 1.5, %v427
        %v429 = vmul.f32 %v424, %v428
        %vm430 = vweird.f32 %v413
        %vm431 = vweird.f32 %v424
        %vm432 = vmor %vm430, %vm431
        %v433 = vsel %vm432, %v424, %v429
        %v434 = vmul.f32 %v396, %v423
        %v435 = vmul.f32 %v397, %v423
        %v436 = vmul.f32 %v398, %v433
        %v437 = vmul.f32 %v399, %v433
        %v438 = vld [vmem:[%s360] sm:$0x3]
        %v440 = vperm.slane %v438, 0
        %v441 = vperm.slane %v438, 1
        %v444 = vmul.f32 %v434, %v440
        %v445 = vmul.f32 %v435, %v441
        %v446 = vmul.f32 %v436, %v440
        %v447 = vmul.f32 %v437, %v441
        %v448 = vld [vmem:[%s365] sm:$0x3]
        %v450 = vperm.slane %v448, 0
        %v451 = vperm.slane %v448, 1
        %v454 = vadd.f32 %v444, %v450
        %v455 = vadd.f32 %v445, %v451
        %v456 = vadd.f32 %v446, %v450
        %v457 = vadd.f32 %v447, %v451
        %v458 = vpack.c.bf16 %v456, %v454
        %v459 = vpack.c.bf16 %v457, %v455
        %v460 = vld [vmem:[#allocation2] sm:$0xff]
        %v461 = vld [vmem:[#allocation2 + $0x8] sm:$0xff]
        %v462 = vld [vmem:[#allocation2 + $0x10] sm:$0xff]
        %v463 = vld [vmem:[#allocation2 + $0x18] sm:$0xff]
        %v464 = vld [vmem:[%s289] sm:$0xff]
        %v465 = vld [vmem:[%s289 + $0x8] sm:$0xff]
        %v466 = vld [vmem:[%s289 + $0x10] sm:$0xff]
        %v467 = vld [vmem:[%s289 + $0x18] sm:$0xff]
        %v468 = vld [vmem:[%s289 + $0x20] sm:$0xff]
        %v469 = vld [vmem:[%s289 + $0x28] sm:$0xff]
        %v470 = vld [vmem:[%s289 + $0x30] sm:$0xff]
        %v471 = vld [vmem:[%s289 + $0x38] sm:$0xff]
        %v472 = vld [vmem:[%s289 + $0x40] sm:$0xff]
        %v473 = vld [vmem:[%s289 + $0x48] sm:$0xff]
        %v474 = vld [vmem:[%s289 + $0x50] sm:$0xff]
        %v475 = vld [vmem:[%s289 + $0x58] sm:$0xff]
        %v476 = vld [vmem:[%s289 + $0x60] sm:$0xff]
        %v477 = vld [vmem:[%s289 + $0x68] sm:$0xff]
        %v478 = vld [vmem:[%s289 + $0x70] sm:$0xff]
        %v479 = vld [vmem:[%s289 + $0x78] sm:$0xff]
        %v480 = vld [vmem:[%s289 + $0x80] sm:$0xff]
        %v481 = vld [vmem:[%s289 + $0x88] sm:$0xff]
        %v482 = vld [vmem:[%s289 + $0x90] sm:$0xff]
        %v483 = vld [vmem:[%s289 + $0x98] sm:$0xff]
        %v484 = vld [vmem:[%s289 + $0xa0] sm:$0xff]
        %v485 = vld [vmem:[%s289 + $0xa8] sm:$0xff]
        %v486 = vld [vmem:[%s289 + $0xb0] sm:$0xff]
        %v487 = vld [vmem:[%s289 + $0xb8] sm:$0xff]
        %v488 = vld [vmem:[%s289 + $0xc0] sm:$0xff]
        %v489 = vld [vmem:[%s289 + $0xc8] sm:$0xff]
        %v490 = vld [vmem:[%s289 + $0xd0] sm:$0xff]
        %v491 = vld [vmem:[%s289 + $0xd8] sm:$0xff]
        %v492 = vld [vmem:[%s289 + $0xe0] sm:$0xff]
        %v493 = vld [vmem:[%s289 + $0xe8] sm:$0xff]
        %v494 = vld [vmem:[%s289 + $0xf0] sm:$0xff]
        %v495 = vld [vmem:[%s289 + $0xf8] sm:$0xff]
        %v528 = vunpack.c.l.b16 %v464
        %v529 = vunpack.c.h.b16 %v464
        %v530 = vunpack.c.l.b16 %v465
        %v531 = vunpack.c.h.b16 %v465
        %v532 = vunpack.c.l.b16 %v466
        %v533 = vunpack.c.h.b16 %v466
        %v534 = vunpack.c.l.b16 %v467
        %v535 = vunpack.c.h.b16 %v467
        %v536 = vunpack.c.l.b16 %v468
        %v537 = vunpack.c.h.b16 %v468
        %v538 = vunpack.c.l.b16 %v469
        %v539 = vunpack.c.h.b16 %v469
        %v540 = vunpack.c.l.b16 %v470
        %v541 = vunpack.c.h.b16 %v470
        %v542 = vunpack.c.l.b16 %v471
        %v543 = vunpack.c.h.b16 %v471
        %v544 = vunpack.c.l.b16 %v472
        %v545 = vunpack.c.h.b16 %v472
        %v546 = vunpack.c.l.b16 %v473
        %v547 = vunpack.c.h.b16 %v473
        %v548 = vunpack.c.l.b16 %v474
        %v549 = vunpack.c.h.b16 %v474
        %v550 = vunpack.c.l.b16 %v475
        %v551 = vunpack.c.h.b16 %v475
        %v552 = vunpack.c.l.b16 %v476
        %v553 = vunpack.c.h.b16 %v476
        %v554 = vunpack.c.l.b16 %v477
        %v555 = vunpack.c.h.b16 %v477
        %v556 = vunpack.c.l.b16 %v478
        %v557 = vunpack.c.h.b16 %v478
        %v558 = vunpack.c.l.b16 %v479
        %v559 = vunpack.c.h.b16 %v479
        %v560 = vunpack.c.l.b16 %v480
        %v561 = vunpack.c.h.b16 %v480
        %v562 = vunpack.c.l.b16 %v481
        %v563 = vunpack.c.h.b16 %v481
        %v564 = vunpack.c.l.b16 %v482
        %v565 = vunpack.c.h.b16 %v482
        %v566 = vunpack.c.l.b16 %v483
        %v567 = vunpack.c.h.b16 %v483
        %v568 = vunpack.c.l.b16 %v484
        %v569 = vunpack.c.h.b16 %v484
        %v570 = vunpack.c.l.b16 %v485
        %v571 = vunpack.c.h.b16 %v485
        %v572 = vunpack.c.l.b16 %v486
        %v573 = vunpack.c.h.b16 %v486
        %v574 = vunpack.c.l.b16 %v487
        %v575 = vunpack.c.h.b16 %v487
        %v576 = vunpack.c.l.b16 %v488
        %v577 = vunpack.c.h.b16 %v488
        %v578 = vunpack.c.l.b16 %v489
        %v579 = vunpack.c.h.b16 %v489
        %v580 = vunpack.c.l.b16 %v490
        %v581 = vunpack.c.h.b16 %v490
        %v582 = vunpack.c.l.b16 %v491
        %v583 = vunpack.c.h.b16 %v491
        %v584 = vunpack.c.l.b16 %v492
        %v585 = vunpack.c.h.b16 %v492
        %v586 = vunpack.c.l.b16 %v493
        %v587 = vunpack.c.h.b16 %v493
        %v588 = vunpack.c.l.b16 %v494
        %v589 = vunpack.c.h.b16 %v494
        %v590 = vunpack.c.l.b16 %v495
        %v591 = vunpack.c.h.b16 %v495
        %v592 = vpack.c.b16 %v530, %v528
        %v593 = vpack.c.b16 %v531, %v529
        %v594 = vpack.c.b16 %v534, %v532
        %v595 = vpack.c.b16 %v535, %v533
        %v596 = vpack.c.b16 %v538, %v536
        %v597 = vpack.c.b16 %v539, %v537
        %v598 = vpack.c.b16 %v542, %v540
        %v599 = vpack.c.b16 %v543, %v541
        %v600 = vpack.c.b16 %v546, %v544
        %v601 = vpack.c.b16 %v547, %v545
        %v602 = vpack.c.b16 %v550, %v548
        %v603 = vpack.c.b16 %v551, %v549
        %v604 = vpack.c.b16 %v554, %v552
        %v605 = vpack.c.b16 %v555, %v553
        %v606 = vpack.c.b16 %v558, %v556
        %v607 = vpack.c.b16 %v559, %v557
        %v608 = vpack.c.b16 %v562, %v560
        %v609 = vpack.c.b16 %v563, %v561
        %v610 = vpack.c.b16 %v566, %v564
        %v611 = vpack.c.b16 %v567, %v565
        %v612 = vpack.c.b16 %v570, %v568
        %v613 = vpack.c.b16 %v571, %v569
        %v614 = vpack.c.b16 %v574, %v572
        %v615 = vpack.c.b16 %v575, %v573
        %v616 = vpack.c.b16 %v578, %v576
        %v617 = vpack.c.b16 %v579, %v577
        %v618 = vpack.c.b16 %v582, %v580
        %v619 = vpack.c.b16 %v583, %v581
        %v620 = vpack.c.b16 %v586, %v584
        %v621 = vpack.c.b16 %v587, %v585
        %v622 = vpack.c.b16 %v590, %v588
        %v623 = vpack.c.b16 %v591, %v589
        %656 = vmatpush.bf16.msra.mxu0 %v606
        %657 = vmatpush.bf16.msra.mxu0 %v604
        %658 = vmatpush.bf16.msra.mxu0 %v602
        %659 = vmatpush.bf16.msra.mxu0 %v600
        %660 = vmatpush.bf16.msra.mxu0 %v598
        %661 = vmatpush.bf16.msra.mxu0 %v596
        %662 = vmatpush.bf16.msra.mxu0 %v594
        %663 = vmatpush.bf16.msra.mxu0 %v592
        %664 = vmatmul.bf16.gmra.mxu0 %v458
        %v665 = vpop.f32.mrf.mxu0
        %v666 = vadd.f32 0.0, %v665
        %v667 = vpop.f32.mrf.mxu0
        %v668 = vadd.f32 0.0, %v667
        %669 = vdwg.mxu0
        %670 = vmatpush.bf16.msra.mxu0 %v622
        %671 = vmatpush.bf16.msra.mxu0 %v620
        %672 = vmatpush.bf16.msra.mxu0 %v618
        %673 = vmatpush.bf16.msra.mxu0 %v616
        %674 = vmatpush.bf16.msra.mxu0 %v614
        %675 = vmatpush.bf16.msra.mxu0 %v612
        %676 = vmatpush.bf16.msra.mxu0 %v610
        %677 = vmatpush.bf16.msra.mxu0 %v608
        %678 = vmatmul.bf16.gmra.mxu0 %v459
        %v679 = vpop.f32.mrf.mxu0
        %v680 = vadd.f32 %v666, %v679
        %v681 = vpop.f32.mrf.mxu0
        %v682 = vadd.f32 %v668, %v681
        %683 = vdwg.mxu0
        %684 = vmatpush.bf16.msra.mxu0 %v607
        %685 = vmatpush.bf16.msra.mxu0 %v605
        %686 = vmatpush.bf16.msra.mxu0 %v603
        %687 = vmatpush.bf16.msra.mxu0 %v601
        %688 = vmatpush.bf16.msra.mxu0 %v599
        %689 = vmatpush.bf16.msra.mxu0 %v597
        %690 = vmatpush.bf16.msra.mxu0 %v595
        %691 = vmatpush.bf16.msra.mxu0 %v593
        %692 = vmatmul.bf16.gmra.mxu0 %v458
        %v693 = vpop.f32.mrf.mxu0
        %v694 = vadd.f32 0.0, %v693
        %v695 = vpop.f32.mrf.mxu0
        %v696 = vadd.f32 0.0, %v695
        %697 = vdwg.mxu0
        %698 = vmatpush.bf16.msra.mxu0 %v623
        %699 = vmatpush.bf16.msra.mxu0 %v621
        %700 = vmatpush.bf16.msra.mxu0 %v619
        %701 = vmatpush.bf16.msra.mxu0 %v617
        %702 = vmatpush.bf16.msra.mxu0 %v615
        %703 = vmatpush.bf16.msra.mxu0 %v613
        %704 = vmatpush.bf16.msra.mxu0 %v611
        %705 = vmatpush.bf16.msra.mxu0 %v609
        %706 = vmatmul.bf16.gmra.mxu0 %v459
        %v707 = vpop.f32.mrf.mxu0
        %v708 = vadd.f32 %v694, %v707
        %v709 = vpop.f32.mrf.mxu0
        %v710 = vadd.f32 %v696, %v709
        %711 = vdwg.mxu0
        %v712 = vadd.f32 %v460, %v680
        %v713 = vadd.f32 %v461, %v708
        %v714 = vadd.f32 %v462, %v682
        %v715 = vadd.f32 %v463, %v710
        %716 = vst [vmem:[#allocation2] sm:$0xff] %v712
        %717 = vst [vmem:[#allocation2 + $0x8] sm:$0xff] %v713
        %718 = vst [vmem:[#allocation2 + $0x10] sm:$0xff] %v714
        %719 = vst [vmem:[#allocation2 + $0x18] sm:$0xff] %v715
        // Predicated region
        $region49: #{_lambda_.16} parent=39 // pred_check
          %p720 = pneg %p369
        $region50: #{_lambda_.16} parent=39 // pred_check_branch
          %722 = sbr.rel (%p720) target = $region52
        $region51: #{_lambda_.16} parent=39 // pred_region
          %v723 = vld [vmem:[#allocation2] sm:$0xff]
          %v724 = vld [vmem:[#allocation2 + $0x8] sm:$0xff]
          %v725 = vld [vmem:[#allocation2 + $0x10] sm:$0xff]
          %v726 = vld [vmem:[#allocation2 + $0x18] sm:$0xff]
          %v727 = vld [vmem:[%s355] sm:$0x3]
          %v729 = vperm.slane %v727, 0
          %v730 = vperm.slane %v727, 1
          %v733 = vadd.f32 %v723, %v729
          %v734 = vadd.f32 %v724, %v730
          %v735 = vadd.f32 %v725, %v729
          %v736 = vadd.f32 %v726, %v730
          %v737 = vmul.f32 %v733, 0.5
          %v738 = vmul.f32 %v734, 0.5
          %v739 = vmul.f32 %v735, 0.5
          %v740 = vmul.f32 %v736, 0.5
          %v741 = vmul.f32 %v733, 0.044715
          %v742 = vmul.f32 %v734, 0.044715
          %v743 = vmul.f32 %v735, 0.044715
          %v744 = vmul.f32 %v736, 0.044715
          %v745 = vmul.f32 %v741, %v733
          %v746 = vmul.f32 %v742, %v734
          %v747 = vmul.f32 %v743, %v735
          %v748 = vmul.f32 %v744, %v736
          %v749 = vmul.f32 %v745, %v733
          %v750 = vmul.f32 %v746, %v734
          %v751 = vmul.f32 %v747, %v735
          %v752 = vmul.f32 %v748, %v736
          %v753 = vadd.f32 %v733, %v749
          %v754 = vadd.f32 %v734, %v750
          %v755 = vadd.f32 %v735, %v751
          %v756 = vadd.f32 %v736, %v752
          %v757 = vmul.f32 %v753, 0.7978846
          %v758 = vmul.f32 %v754, 0.7978846
          %v759 = vmul.f32 %v755, 0.7978846
          %v760 = vmul.f32 %v756, 0.7978846
          %v761 = vtanh.pop %v757
          %v762 = vtanh.pop %v758
          %v763 = vtanh.pop %v759
          %v764 = vtanh.pop %v760
          %v765 = vadd.f32 %v761, 1.0
          %v766 = vadd.f32 %v762, 1.0
          %v767 = vadd.f32 %v763, 1.0
          %v768 = vadd.f32 %v764, 1.0
          %v769 = vmul.f32 %v737, %v765
          %v770 = vmul.f32 %v738, %v766
          %v771 = vmul.f32 %v739, %v767
          %v772 = vmul.f32 %v740, %v768
          %773 = vst [vmem:[%s337] sm:$0xff] %v769
          %774 = vst [vmem:[%s337 + $0x8] sm:$0xff] %v770
          %775 = vst [vmem:[%s337 + $0x10] sm:$0xff] %v771
          %776 = vst [vmem:[%s337 + $0x18] sm:$0xff] %v772
        $region52: #{_lambda_.16} parent=39 // pred_fallthru
          _
        %s777 = sand.u32 %s182, 1
        %s778 = sand.u32 %s182, 1
        %s779 = smul.addr %s778, 32
        %s780 = scalar_lea.vmem [#allocation5], %s779
        // Predicated region
        $region53: #{_lambda_.16} parent=39 // pred_check
          %p781 = pneg %p192
        $region54: #{_lambda_.16} parent=39 // pred_check_branch
          %783 = sbr.rel (%p781) target = $region56
        $region55: #{_lambda_.16} parent=39 // pred_region
          %s784 = smul.u32 2, %s24
          %s785 = smul.u32 2, %s25
          %s786 = smul.addr %s784, 8
          %s787 = sadd.s32 %s785, %s786
          %s788 = smul.addr %s787, 8
          %s789 = scalar_lea.vmem %s5, %s788
          // Predicated region
          $region57: #{_lambda_.16} parent=55 // pred_check
            _
          $region58: #{_lambda_.16} parent=55 // pred_check_branch
            %791 = sbr.rel (0) target = $region60
          $region59: #{_lambda_.16} parent=55 // pred_region
            // Predicated region
            $region61: #{_lambda_.16} parent=59 // pred_check
              _
            $region62: #{_lambda_.16} parent=59 // pred_check_branch
              %793 = sbr.rel (0) target = $region64
            $region63: #{_lambda_.16} parent=59 // pred_region
              loop: start=0, step=1, limit=1
              $region65: #{_lambda_.16} parent=63 // loop_pre_header
                _
              $region66: #{_lambda_.16} parent=63 // loop_header
                %s795 = sphi 0, %s799
                %p796 = scmp.ge.s32.totalorder %s795, 1
                %s800 = sphi %s780, %s780
                %s801 = sphi %s789, %s789
              $region67: #{_lambda_.16} parent=63 // loop_header_branch
                %798 = sbr.rel (%p796) target = $region71
              $region68: #{_lambda_.16} parent=63 // loop_body
                %v802 = vld [vmem:[%s800] sm:$0xff]
                %803 = vst [vmem:[%s801] sm:$0xff] %v802
                %v804 = vld [vmem:[%s800 + $0x8] sm:$0xff]
                %805 = vst [vmem:[%s801 + $0x8] sm:$0xff] %v804
                %v806 = vld [vmem:[%s800 + $0x10] sm:$0xff]
                %807 = vst [vmem:[%s801 + $0x40] sm:$0xff] %v806
                %v808 = vld [vmem:[%s800 + $0x18] sm:$0xff]
                %809 = vst [vmem:[%s801 + $0x48] sm:$0xff] %v808
              $region69: #{_lambda_.16} parent=63 // loop_footer
                %s799 = sadd.s32 1, %s795
              $region70: #{_lambda_.16} parent=63 // loop_footer_branch
                %794 = sbr.rel target = $region66
              $region71: #{_lambda_.16} parent=63 // loop_exit
                _
            $region64: #{_lambda_.16} parent=59 // pred_fallthru
              _
            // Predicated region
            $region72: #{_lambda_.16} parent=59 // pred_check
              _
            $region73: #{_lambda_.16} parent=59 // pred_check_branch
              %811 = sbr.rel target = $region75
            $region74: #{_lambda_.16} parent=59 // pred_region
              _
            $region75: #{_lambda_.16} parent=59 // pred_fallthru
              _
          $region60: #{_lambda_.16} parent=55 // pred_fallthru
            _
          %812 = vnop
        $region56: #{_lambda_.16} parent=39 // pred_fallthru
          _
      $region40: #{_lambda_.16} parent=5 // pred_fallthru
        _
      %p813 = scmp.le.s32.totalorder 2, %s14
      // Predicated region
      $region76: #{_lambda_.16} parent=5 // pred_check
        %p814 = pneg %p813
      $region77: #{_lambda_.16} parent=5 // pred_check_branch
        %816 = sbr.rel (%p814) target = $region79
      $region78: #{_lambda_.16} parent=5 // pred_region
        %s817 = ssub.s32 %s14, 2
        // Predicated region
        $region80: #{_lambda_.16} parent=78 // pred_check
          %p818 = pneg %p198
        $region81: #{_lambda_.16} parent=78 // pred_check_branch
          %820 = sbr.rel (%p818) target = $region83
        $region82: #{_lambda_.16} parent=78 // pred_region
          %s821 = sand.u32 %s183, 1
          %s822 = sand.u32 %s183, 1
          %s823 = smul.addr %s822, 32
          %s824 = scalar_lea.vmem [#allocation5], %s823
        $region83: #{_lambda_.16} parent=78 // pred_fallthru
          _
      $region79: #{_lambda_.16} parent=5 // pred_fallthru
        _
    $region6: #{_lambda_.16} parent=1 // loop_footer
      %s18 = sadd.s32 1, %s14
    $region7: #{_lambda_.16} parent=1 // loop_footer_branch
      %13 = sbr.rel target = $region3
    $region8: #{_lambda_.16} parent=1 // loop_exit
      _
    %825 = vsyncpa [#allocation4], 1
    %s826 = scalar_lea.sflag [#allocation4], 1
    %827 = vsyncpa %s826, 1

// kernel: _lambda_.17
$region0: #{_lambda_.17}
  #allocation0 [shape = 'u32[]', space=smem, size = 0x4, offset = 0x4, fixed_abs, tag = 'smem constant byte address 0x4 - core index']
  #allocation1 [shape = 'u32[72,128]{1,0:T(1,128)}', space=vmem, size = 0x9000, scoped, tag = 'internal scratch']
  #allocation2 [shape = 'f32[16,256]{1,0:T(8,128)}', space=vmem, size = 0x4000, scoped, tag = 'scratch operand']
  %s0 = inlined_call_operand.vmem [shape: bf16[16,1024], index: 0, kind: input, shape index: {}]
  %s1 = inlined_call_operand.vmem [shape: bf16[1024,256], index: 1, kind: input, shape index: {}]
  %s2 = inlined_call_operand.vmem [shape: f32[1,256], index: 2, kind: input, shape index: {}]
  %s3 = inlined_call_operand.vmem [shape: f32[16,256], index: 3, kind: input, shape index: {}]
  %s4 = inlined_call_operand.vmem [shape: f32[16,256], index: 4, kind: output, shape index: {}]
  %s5 = sld [smem:[#allocation0]]
  $region95: #{_lambda_.17} parent=0
    _
  %s7 = ssub.s32 1, %s5
  %s8 = scalar_select 0, %s7, %s5
  $region1: #{_lambda_.17} parent=0
    #allocation3 [shape = 'u8[16384]{0}', space=vmem, size = 0x4000, scoped, tag = 'input window, operand 0']
    loop: start=0, step=1, limit=6
    $region2: #{_lambda_.17} parent=1 // loop_pre_header
      _
    $region3: #{_lambda_.17} parent=1 // loop_header
      %s10 = sphi 0, %s14
      %p11 = scmp.ge.s32.totalorder %s10, 6
      %s17 = sphi 0, %s36
      %s18 = sphi 0, %s32
      %s19 = sphi 0, %s28
      %s20 = sphi 0, %s17
      %s21 = sphi 0, %s18
      %s22 = sphi 0, %s19
      %s23 = sphi 0, %s20
      %s24 = sphi 0, %s21
      %s25 = sphi 0, %s22
      %s41 = sphi 0, %s43
      %s44 = sphi 0, %s41
      %s45 = sphi 0, %s44
      %s61 = sphi 0, %s45
      %s69 = sphi 0, %s71
      %s72 = sphi 0, %s69
      %s73 = sphi 0, %s72
      %s89 = sphi 0, %s73
      %s95 = sphi 0, %s97
      %s98 = sphi 0, %s95
      %s99 = sphi 0, %s98
      %s115 = sphi 0, %s99
      %s123 = sphi 0, %s125
      %s126 = sphi 0, %s123
      %s127 = sphi 0, %s126
      %s143 = sphi 0, %s127
      %s151 = sphi 0, %s153
      %s154 = sphi 0, %s151
      %s155 = sphi 0, %s154
      %s171 = sphi 0, %s155
    $region4: #{_lambda_.17} parent=1 // loop_header_branch
      %13 = sbr.rel (%p11) target = $region8
    $region5: #{_lambda_.17} parent=1 // loop_body
      %s15 = ssub.s32 %s10, 1
      %s16 = ssub.s32 %s10, 2
      %s26 = sadd.s32 1, %s19
      %p27 = scmp.ge.s32.totalorder %s26, 4
      %s28 = scalar_select %p27, 0, %s26
      %s29 = sadd.s32 1, %s18
      %s30 = scalar_select %p27, %s29, %s18
      %p31 = scmp.ge.s32.totalorder %s30, 1
      %s32 = scalar_select %p31, 0, %s30
      %s33 = sadd.s32 1, %s17
      %s34 = scalar_select %p31, %s33, %s17
      %p35 = scmp.ge.s32.totalorder %s34, 1
      %s36 = scalar_select %p35, 0, %s34
      %s37 = ssub.s32 %s17, %s36
      %s38 = ssub.s32 %s19, %s28
      %s39 = sor.u32 %s37, %s38
      %p40 = scmp.eq.s32.totalorder %s39, 0
      %s42 = sadd.s32 %s41, 1
      %s43 = scalar_select %p40, %s41, %s42
      %p46 = pneg %p40
      %p47 = scmp.eq.s32.totalorder %s10, 3
      %p48 = por %p46, %p47
      %p49 = scmp.ne.s32.totalorder %s41, %s44
      %p50 = scmp.eq.s32.totalorder %s10, 0
      %p51 = por %p49, %p50
      %p52 = scmp.ne.s32.totalorder %s41, %s44
      %p53 = scmp.eq.s32.totalorder %s15, 3
      %p54 = por %p52, %p53
      %p55 = scmp.ne.s32.totalorder %s44, %s45
      %p56 = scmp.eq.s32.totalorder %s15, 0
      %p57 = por %p55, %p56
      %p58 = scmp.ne.s32.totalorder %s44, %s45
      %p59 = scmp.eq.s32.totalorder %s16, 3
      %p60 = por %p58, %p59
      %p62 = scmp.ne.s32.totalorder %s45, %s61
      %p63 = scmp.eq.s32.totalorder %s16, 0
      %p64 = por %p62, %p63
      %s65 = ssub.s32 %s19, %s28
      %s66 = ssub.s32 %s18, %s32
      %s67 = sor.u32 %s65, %s66
      %p68 = scmp.eq.s32.totalorder %s67, 0
      %s70 = sadd.s32 %s69, 1
      %s71 = scalar_select %p68, %s69, %s70
      %p74 = pneg %p68
      %p75 = scmp.eq.s32.totalorder %s10, 3
      %p76 = por %p74, %p75
      %p77 = scmp.ne.s32.totalorder %s69, %s72
      %p78 = scmp.eq.s32.totalorder %s10, 0
      %p79 = por %p77, %p78
      %p80 = scmp.ne.s32.totalorder %s69, %s72
      %p81 = scmp.eq.s32.totalorder %s15, 3
      %p82 = por %p80, %p81
      %p83 = scmp.ne.s32.totalorder %s72, %s73
      %p84 = scmp.eq.s32.totalorder %s15, 0
      %p85 = por %p83, %p84
      %p86 = scmp.ne.s32.totalorder %s72, %s73
      %p87 = scmp.eq.s32.totalorder %s16, 3
      %p88 = por %p86, %p87
      %p90 = scmp.ne.s32.totalorder %s73, %s89
      %p91 = scmp.eq.s32.totalorder %s16, 0
      %p92 = por %p90, %p91
      %s93 = ssub.s32 %s18, %s32
      %p94 = scmp.eq.s32.totalorder %s93, 0
      %s96 = sadd.s32 %s95, 1
      %s97 = scalar_select %p94, %s95, %s96
      %p100 = pneg %p94
      %p101 = scmp.eq.s32.totalorder %s10, 3
      %p102 = por %p100, %p101
      %p103 = scmp.ne.s32.totalorder %s95, %s98
      %p104 = scmp.eq.s32.totalorder %s10, 0
      %p105 = por %p103, %p104
      %p106 = scmp.ne.s32.totalorder %s95, %s98
      %p107 = scmp.eq.s32.totalorder %s15, 3
      %p108 = por %p106, %p107
      %p109 = scmp.ne.s32.totalorder %s98, %s99
      %p110 = scmp.eq.s32.totalorder %s15, 0
      %p111 = por %p109, %p110
      %p112 = scmp.ne.s32.totalorder %s98, %s99
      %p113 = scmp.eq.s32.totalorder %s16, 3
      %p114 = por %p112, %p113
      %p116 = scmp.ne.s32.totalorder %s99, %s115
      %p117 = scmp.eq.s32.totalorder %s16, 0
      %p118 = por %p116, %p117
      %s119 = ssub.s32 %s17, %s36
      %s120 = ssub.s32 %s18, %s32
      %s121 = sor.u32 %s119, %s120
      %p122 = scmp.eq.s32.totalorder %s121, 0
      %s124 = sadd.s32 %s123, 1
      %s125 = scalar_select %p122, %s123, %s124
      %p128 = pneg %p122
      %p129 = scmp.eq.s32.totalorder %s10, 3
      %p130 = por %p128, %p129
      %p131 = scmp.ne.s32.totalorder %s123, %s126
      %p132 = scmp.eq.s32.totalorder %s10, 0
      %p133 = por %p131, %p132
      %p134 = scmp.ne.s32.totalorder %s123, %s126
      %p135 = scmp.eq.s32.totalorder %s15, 3
      %p136 = por %p134, %p135
      %p137 = scmp.ne.s32.totalorder %s126, %s127
      %p138 = scmp.eq.s32.totalorder %s15, 0
      %p139 = por %p137, %p138
      %p140 = scmp.ne.s32.totalorder %s126, %s127
      %p141 = scmp.eq.s32.totalorder %s16, 3
      %p142 = por %p140, %p141
      %p144 = scmp.ne.s32.totalorder %s127, %s143
      %p145 = scmp.eq.s32.totalorder %s16, 0
      %p146 = por %p144, %p145
      %s147 = ssub.s32 %s17, %s36
      %s148 = ssub.s32 %s18, %s32
      %s149 = sor.u32 %s147, %s148
      %p150 = scmp.eq.s32.totalorder %s149, 0
      %s152 = sadd.s32 %s151, 1
      %s153 = scalar_select %p150, %s151, %s152
      %p156 = pneg %p150
      %p157 = scmp.eq.s32.totalorder %s10, 3
      %p158 = por %p156, %p157
      %p159 = scmp.ne.s32.totalorder %s151, %s154
      %p160 = scmp.eq.s32.totalorder %s10, 0
      %p161 = por %p159, %p160
      %p162 = scmp.ne.s32.totalorder %s151, %s154
      %p163 = scmp.eq.s32.totalorder %s15, 3
      %p164 = por %p162, %p163
      %p165 = scmp.ne.s32.totalorder %s154, %s155
      %p166 = scmp.eq.s32.totalorder %s15, 0
      %p167 = por %p165, %p166
      %p168 = scmp.ne.s32.totalorder %s154, %s155
      %p169 = scmp.eq.s32.totalorder %s16, 3
      %p170 = por %p168, %p169
      %p172 = scmp.ne.s32.totalorder %s155, %s171
      %p173 = scmp.eq.s32.totalorder %s16, 0
      %p174 = por %p172, %p173
      %p175 = scmp.le.s32.totalorder 1, %s10
      %p176 = scmp.lt.s32.totalorder %s10, 5
      %p177 = pnand %p175, %p176
      %p178 = pneg %p177
      // Predicated region
      $region9: #{_lambda_.17} parent=5 // pred_check
        _
      $region10: #{_lambda_.17} parent=5 // pred_check_branch
        %180 = sbr.rel (%p177) target = $region12
      $region11: #{_lambda_.17} parent=5 // pred_region
        %s181 = ssub.s32 %s10, 1
        // Predicated region
        $region13: #{_lambda_.17} parent=11 // pred_check
          %p182 = pneg %p111
        $region14: #{_lambda_.17} parent=11 // pred_check_branch
          %184 = sbr.rel (%p182) target = $region16
        $region15: #{_lambda_.17} parent=11 // pred_region
          %s185 = smul.u32 2, %s21
          %p186 = scmp.lt.s32.totalorder %s185, 1
          %s187 = scalar_select %p186, %s185, 1
          %s188 = scalar_lea.vmem %s2, %s187
          %s189 = smul.u32 2, %s21
        $region16: #{_lambda_.17} parent=11 // pred_fallthru
          _
        // Predicated region
        $region17: #{_lambda_.17} parent=11 // pred_check
          %p190 = pneg %p139
        $region18: #{_lambda_.17} parent=11 // pred_check_branch
          %192 = sbr.rel (%p190) target = $region20
        $region19: #{_lambda_.17} parent=11 // pred_region
          %s193 = smul.u32 2, %s20
          %s194 = smul.u32 2, %s21
          %p195 = scmp.lt.s32.totalorder %s193, 1
          %s196 = scalar_select %p195, %s193, 1
          %p197 = scmp.lt.s32.totalorder %s194, 1
          %s198 = scalar_select %p197, %s194, 1
          %s199 = smul.addr %s196, 2
          %s200 = sadd.s32 %s198, %s199
          %s201 = smul.addr %s200, 8
          %s202 = scalar_lea.vmem %s3, %s201
          %s203 = smul.u32 2, %s20
          %s204 = smul.u32 2, %s21
        $region20: #{_lambda_.17} parent=11 // pred_fallthru
          _
      $region12: #{_lambda_.17} parent=5 // pred_fallthru
        _
      %p205 = scmp.lt.s32.totalorder %s10, 4
      // Predicated region
      $region21: #{_lambda_.17} parent=5 // pred_check
        %p206 = pneg %p205
      $region22: #{_lambda_.17} parent=5 // pred_check_branch
        %208 = sbr.rel (%p206) target = $region24
      $region23: #{_lambda_.17} parent=5 // pred_region
        // Predicated region
        $region25: #{_lambda_.17} parent=23 // pred_check
          %p209 = pneg %p51
        $region26: #{_lambda_.17} parent=23 // pred_check_branch
          %211 = sbr.rel (%p209) target = $region28
        $region27: #{_lambda_.17} parent=23 // pred_region
          %s212 = sand.u32 %s41, 1
          %s213 = sand.u32 %s41, 1
          %s214 = smul.addr %s213, 16
          %s215 = scalar_lea.vmem [#allocation3], %s214
          %s216 = smul.u32 2, %s17
          %s217 = smul.u32 2, %s19
          %s218 = smul.addr %s216, 8
          %s219 = sadd.s32 %s217, %s218
          %s220 = smul.addr %s219, 4
          %s221 = scalar_lea.vmem %s0, %s220
          // Predicated region
          $region29: #{_lambda_.17} parent=27 // pred_check
            _
          $region30: #{_lambda_.17} parent=27 // pred_check_branch
            %223 = sbr.rel (0) target = $region32
          $region31: #{_lambda_.17} parent=27 // pred_region
            // Predicated region
            $region33: #{_lambda_.17} parent=31 // pred_check
              _
            $region34: #{_lambda_.17} parent=31 // pred_check_branch
              %225 = sbr.rel (0) target = $region36
            $region35: #{_lambda_.17} parent=31 // pred_region
              // Predicated region
              $region48: #{_lambda_.17} parent=35 // pred_check
                _
              $region49: #{_lambda_.17} parent=35 // pred_check_branch
                %243 = sbr.rel (0) target = $region51
              $region50: #{_lambda_.17} parent=35 // pred_region
                loop: start=0, step=1, limit=1
                $region52: #{_lambda_.17} parent=50 // loop_pre_header
                  _
                $region53: #{_lambda_.17} parent=50 // loop_header
                  %s245 = sphi 0, %s249
                  %p246 = scmp.ge.s32.totalorder %s245, 1
                  %s250 = sphi %s221, %s221
                  %s251 = sphi %s215, %s215
                $region54: #{_lambda_.17} parent=50 // loop_header_branch
                  %248 = sbr.rel (%p246) target = $region58
                $region55: #{_lambda_.17} parent=50 // loop_body
                  %v252 = vld [vmem:[%s250] sm:$0xff]
                  %253 = vst [vmem:[%s251] sm:$0xff] %v252
                  %v254 = vld [vmem:[%s250 + $0x20] sm:$0xff]
                  %255 = vst [vmem:[%s251 + $0x8] sm:$0xff] %v254
                $region56: #{_lambda_.17} parent=50 // loop_footer
                  %s249 = sadd.s32 1, %s245
                $region57: #{_lambda_.17} parent=50 // loop_footer_branch
                  %244 = sbr.rel target = $region53
                $region58: #{_lambda_.17} parent=50 // loop_exit
                  _
              $region51: #{_lambda_.17} parent=35 // pred_fallthru
                _
              // Predicated region
              $region59: #{_lambda_.17} parent=35 // pred_check
                _
              $region60: #{_lambda_.17} parent=35 // pred_check_branch
                %257 = sbr.rel target = $region62
              $region61: #{_lambda_.17} parent=35 // pred_region
                _
              $region62: #{_lambda_.17} parent=35 // pred_fallthru
                _
            $region36: #{_lambda_.17} parent=31 // pred_fallthru
              _
            // Predicated region
            $region37: #{_lambda_.17} parent=31 // pred_check
              _
            $region38: #{_lambda_.17} parent=31 // pred_check_branch
              %227 = sbr.rel target = $region40
            $region39: #{_lambda_.17} parent=31 // pred_region
              %s229 = ssub.s32 256, 1
              loop: start=0, step=1, limit=1
              $region41: #{_lambda_.17} parent=39 // loop_pre_header
                _
              $region42: #{_lambda_.17} parent=39 // loop_header
                %s231 = sphi 0, %s235
                %p232 = scmp.ge.s32.totalorder %s231, 1
                %s236 = sphi %s221, %s221
                %s237 = sphi %s215, %s215
              $region43: #{_lambda_.17} parent=39 // loop_header_branch
                %234 = sbr.rel (%p232) target = $region47
              $region44: #{_lambda_.17} parent=39 // loop_body
                %v238 = vld [vmem:[%s236] sm:%s229]
                %239 = vst [vmem:[%s237] sm:%s229] %v238
                %v240 = vld [vmem:[%s236 + $0x20] sm:%s229]
                %241 = vst [vmem:[%s237 + $0x8] sm:%s229] %v240
              $region45: #{_lambda_.17} parent=39 // loop_footer
                %s235 = sadd.s32 1, %s231
              $region46: #{_lambda_.17} parent=39 // loop_footer_branch
                %230 = sbr.rel target = $region42
              $region47: #{_lambda_.17} parent=39 // loop_exit
                _
            $region40: #{_lambda_.17} parent=31 // pred_fallthru
              _
          $region32: #{_lambda_.17} parent=27 // pred_fallthru
            _
          %258 = vnop
        $region28: #{_lambda_.17} parent=23 // pred_fallthru
          _
        // Predicated region
        $region63: #{_lambda_.17} parent=23 // pred_check
          %p259 = pneg %p79
        $region64: #{_lambda_.17} parent=23 // pred_check_branch
          %261 = sbr.rel (%p259) target = $region66
        $region65: #{_lambda_.17} parent=23 // pred_region
          %s262 = smul.u32 32, %s19
          %s263 = smul.u32 2, %s18
          %p264 = scmp.lt.s32.totalorder %s262, 127
          %s265 = scalar_select %p264, %s262, 127
          %p266 = scmp.lt.s32.totalorder %s263, 1
          %s267 = scalar_select %p266, %s263, 1
          %s268 = smul.addr %s265, 2
          %s269 = sadd.s32 %s267, %s268
          %s270 = smul.addr %s269, 4
          %s271 = scalar_lea.vmem %s1, %s270
          %s272 = smul.u32 32, %s19
          %s273 = smul.u32 2, %s18
        $region66: #{_lambda_.17} parent=23 // pred_fallthru
          _
      $region24: #{_lambda_.17} parent=5 // pred_fallthru
        _
      %p274 = scmp.le.s32.totalorder 1, %s10
      %p275 = scmp.lt.s32.totalorder %s10, 5
      %p276 = pnand %p274, %p275
      %p277 = pneg %p276
      // Predicated region
      $region67: #{_lambda_.17} parent=5 // pred_check
        _
      $region68: #{_lambda_.17} parent=5 // pred_check_branch
        %279 = sbr.rel (%p276) target = $region70
      $region69: #{_lambda_.17} parent=5 // pred_region
        %s280 = ssub.s32 %s10, 1
        %s281 = sand.u32 %s44, 1
        %s282 = sand.u32 %s44, 1
        %s283 = smul.addr %s282, 16
        %s284 = scalar_lea.vmem [#allocation3], %s283
        // Predicated region
        $region71: #{_lambda_.17} parent=69 // pred_check
          %p285 = pneg %p57
        $region72: #{_lambda_.17} parent=69 // pred_check_branch
          %287 = sbr.rel (%p285) target = $region74
        $region73: #{_lambda_.17} parent=69 // pred_region
          _
        $region74: #{_lambda_.17} parent=69 // pred_fallthru
          _
        %s288 = sand.u32 %s44, 1
        %s289 = sand.u32 %s44, 1
        %s290 = smul.addr %s289, 16
        %s291 = scalar_lea.vmem [#allocation3], %s290
        %p292 = pneg %p57
        %p293 = pneg %p54
        %s294 = smul.u32 32, %s22
        %s295 = smul.u32 2, %s21
        %p296 = scmp.lt.s32.totalorder %s294, 127
        %s297 = scalar_select %p296, %s294, 127
        %p298 = scmp.lt.s32.totalorder %s295, 1
        %s299 = scalar_select %p298, %s295, 1
        %s300 = smul.addr %s297, 2
        %s301 = sadd.s32 %s299, %s300
        %s302 = smul.addr %s301, 4
        %s303 = scalar_lea.vmem %s1, %s302
        %p304 = pneg %p85
        %p305 = pneg %p82
        %s306 = smul.u32 2, %s21
        %p307 = scmp.lt.s32.totalorder %s306, 1
        %s308 = scalar_select %p307, %s306, 1
        %s309 = scalar_lea.vmem %s2, %s308
        %p310 = pneg %p111
        %p311 = pneg %p108
        %s312 = smul.u32 2, %s20
        %s313 = smul.u32 2, %s21
        %p314 = scmp.lt.s32.totalorder %s312, 1
        %s315 = scalar_select %p314, %s312, 1
        %p316 = scmp.lt.s32.totalorder %s313, 1
        %s317 = scalar_select %p316, %s313, 1
        %s318 = smul.addr %s315, 2
        %s319 = sadd.s32 %s317, %s318
        %s320 = smul.addr %s319, 8
        %s321 = scalar_lea.vmem %s3, %s320
        %p322 = pneg %p139
        %p323 = pneg %p136
        %p324 = pneg %p167
        %p325 = pneg %p164
        %s326 = smul.u32 2, %s20
        %s327 = smul.u32 2, %s21
        %p328 = scmp.lt.s32.totalorder %s326, 1
        %s329 = scalar_select %p328, %s326, 1
        %p330 = scmp.lt.s32.totalorder %s327, 1
        %s331 = scalar_select %p330, %s327, 1
        %s332 = smul.addr %s329, 2
        %s333 = sadd.s32 %s331, %s332
        %s334 = smul.addr %s333, 8
        %s335 = scalar_lea.vmem %s4, %s334
        %s336 = smul.u32 2, %s20
        %s337 = smul.u32 2, %s22
        %s338 = smul.u32 32, %s22
        %s339 = smul.u32 2, %s21
        %p340 = scmp.lt.s32.totalorder %s338, 127
        %s341 = scalar_select %p340, %s338, 127
        %p342 = scmp.lt.s32.totalorder %s339, 1
        %s343 = scalar_select %p342, %s339, 1
        %s344 = smul.addr %s341, 2
        %s345 = sadd.s32 %s343, %s344
        %s346 = smul.addr %s345, 4
        %s347 = scalar_lea.vmem %s1, %s346
        %s348 = smul.u32 32, %s22
        %s349 = smul.u32 2, %s21
        %s350 = smul.u32 2, %s21
        %p351 = scmp.lt.s32.totalorder %s350, 1
        %s352 = scalar_select %p351, %s350, 1
        %s353 = scalar_lea.vmem %s2, %s352
        %s354 = smul.u32 2, %s21
        %s355 = smul.u32 2, %s20
        %s356 = smul.u32 2, %s21
        %p357 = scmp.lt.s32.totalorder %s355, 1
        %s358 = scalar_select %p357, %s355, 1
        %p359 = scmp.lt.s32.totalorder %s356, 1
        %s360 = scalar_select %p359, %s356, 1
        %s361 = smul.addr %s358, 2
        %s362 = sadd.s32 %s360, %s361
        %s363 = smul.addr %s362, 8
        %s364 = scalar_lea.vmem %s3, %s363
        %s365 = smul.u32 2, %s20
        %s366 = smul.u32 2, %s21
        %s367 = smul.u32 2, %s20
        %s368 = smul.u32 2, %s21
        %p369 = scmp.lt.s32.totalorder %s367, 1
        %s370 = scalar_select %p369, %s367, 1
        %p371 = scmp.lt.s32.totalorder %s368, 1
        %s372 = scalar_select %p371, %s368, 1
        %s373 = smul.addr %s370, 2
        %s374 = sadd.s32 %s372, %s373
        %s375 = smul.addr %s374, 8
        %s376 = scalar_lea.vmem %s4, %s375
        %s377 = smul.u32 2, %s20
        %s378 = smul.u32 2, %s21
        %p379 = scmp.eq.s32.totalorder %s22, 0
        // Predicated region
        $region75: #{_lambda_.17} parent=69 // pred_check
          %p380 = pneg %p379
        $region76: #{_lambda_.17} parent=69 // pred_check_branch
          %382 = sbr.rel (%p380) target = $region78
        $region77: #{_lambda_.17} parent=69 // pred_region
          %383 = vst [vmem:[#allocation2] sm:$0xff] 0.0
          %384 = vst [vmem:[#allocation2 + $0x8] sm:$0xff] 0.0
          %385 = vst [vmem:[#allocation2 + $0x10] sm:$0xff] 0.0
          %386 = vst [vmem:[#allocation2 + $0x18] sm:$0xff] 0.0
        $region78: #{_lambda_.17} parent=69 // pred_fallthru
          _
        %v387 = vld [vmem:[%s284] sm:$0xff]
        %v388 = vld [vmem:[%s284 + $0x8] sm:$0xff]
        %v389 = vld [vmem:[#allocation2] sm:$0xff]
        %v390 = vld [vmem:[#allocation2 + $0x8] sm:$0xff]
        %v391 = vld [vmem:[#allocation2 + $0x10] sm:$0xff]
        %v392 = vld [vmem:[#allocation2 + $0x18] sm:$0xff]
        %v393 = vld [vmem:[%s347] sm:$0xff]
        %v394 = vld [vmem:[%s347 + $0x8] sm:$0xff]
        %v395 = vld [vmem:[%s347 + $0x10] sm:$0xff]
        %v396 = vld [vmem:[%s347 + $0x18] sm:$0xff]
        %v397 = vld [vmem:[%s347 + $0x20] sm:$0xff]
        %v398 = vld [vmem:[%s347 + $0x28] sm:$0xff]
        %v399 = vld [vmem:[%s347 + $0x30] sm:$0xff]
        %v400 = vld [vmem:[%s347 + $0x38] sm:$0xff]
        %v401 = vld [vmem:[%s347 + $0x40] sm:$0xff]
        %v402 = vld [vmem:[%s347 + $0x48] sm:$0xff]
        %v403 = vld [vmem:[%s347 + $0x50] sm:$0xff]
        %v404 = vld [vmem:[%s347 + $0x58] sm:$0xff]
        %v405 = vld [vmem:[%s347 + $0x60] sm:$0xff]
        %v406 = vld [vmem:[%s347 + $0x68] sm:$0xff]
        %v407 = vld [vmem:[%s347 + $0x70] sm:$0xff]
        %v408 = vld [vmem:[%s347 + $0x78] sm:$0xff]
        %v409 = vld [vmem:[%s347 + $0x80] sm:$0xff]
        %v410 = vld [vmem:[%s347 + $0x88] sm:$0xff]
        %v411 = vld [vmem:[%s347 + $0x90] sm:$0xff]
        %v412 = vld [vmem:[%s347 + $0x98] sm:$0xff]
        %v413 = vld [vmem:[%s347 + $0xa0] sm:$0xff]
        %v414 = vld [vmem:[%s347 + $0xa8] sm:$0xff]
        %v415 = vld [vmem:[%s347 + $0xb0] sm:$0xff]
        %v416 = vld [vmem:[%s347 + $0xb8] sm:$0xff]
        %v417 = vld [vmem:[%s347 + $0xc0] sm:$0xff]
        %v418 = vld [vmem:[%s347 + $0xc8] sm:$0xff]
        %v419 = vld [vmem:[%s347 + $0xd0] sm:$0xff]
        %v420 = vld [vmem:[%s347 + $0xd8] sm:$0xff]
        %v421 = vld [vmem:[%s347 + $0xe0] sm:$0xff]
        %v422 = vld [vmem:[%s347 + $0xe8] sm:$0xff]
        %v423 = vld [vmem:[%s347 + $0xf0] sm:$0xff]
        %v424 = vld [vmem:[%s347 + $0xf8] sm:$0xff]
        %v427 = vunpack.c.l.b16 %v387
        %v428 = vunpack.c.h.b16 %v387
        %v429 = vunpack.c.l.b16 %v388
        %v430 = vunpack.c.h.b16 %v388
        %v431 = vpack.c.b16 %v429, %v427
        %v432 = vpack.c.b16 %v430, %v428
        %v467 = vunpack.c.l.b16 %v393
        %v468 = vunpack.c.h.b16 %v393
        %v469 = vunpack.c.l.b16 %v394
        %v470 = vunpack.c.h.b16 %v394
        %v471 = vunpack.c.l.b16 %v395
        %v472 = vunpack.c.h.b16 %v395
        %v473 = vunpack.c.l.b16 %v396
        %v474 = vunpack.c.h.b16 %v396
        %v475 = vunpack.c.l.b16 %v397
        %v476 = vunpack.c.h.b16 %v397
        %v477 = vunpack.c.l.b16 %v398
        %v478 = vunpack.c.h.b16 %v398
        %v479 = vunpack.c.l.b16 %v399
        %v480 = vunpack.c.h.b16 %v399
        %v481 = vunpack.c.l.b16 %v400
        %v482 = vunpack.c.h.b16 %v400
        %v483 = vunpack.c.l.b16 %v401
        %v484 = vunpack.c.h.b16 %v401
        %v485 = vunpack.c.l.b16 %v402
        %v486 = vunpack.c.h.b16 %v402
        %v487 = vunpack.c.l.b16 %v403
        %v488 = vunpack.c.h.b16 %v403
        %v489 = vunpack.c.l.b16 %v404
        %v490 = vunpack.c.h.b16 %v404
        %v491 = vunpack.c.l.b16 %v405
        %v492 = vunpack.c.h.b16 %v405
        %v493 = vunpack.c.l.b16 %v406
        %v494 = vunpack.c.h.b16 %v406
        %v495 = vunpack.c.l.b16 %v407
        %v496 = vunpack.c.h.b16 %v407
        %v497 = vunpack.c.l.b16 %v408
        %v498 = vunpack.c.h.b16 %v408
        %v499 = vunpack.c.l.b16 %v409
        %v500 = vunpack.c.h.b16 %v409
        %v501 = vunpack.c.l.b16 %v410
        %v502 = vunpack.c.h.b16 %v410
        %v503 = vunpack.c.l.b16 %v411
        %v504 = vunpack.c.h.b16 %v411
        %v505 = vunpack.c.l.b16 %v412
        %v506 = vunpack.c.h.b16 %v412
        %v507 = vunpack.c.l.b16 %v413
        %v508 = vunpack.c.h.b16 %v413
        %v509 = vunpack.c.l.b16 %v414
        %v510 = vunpack.c.h.b16 %v414
        %v511 = vunpack.c.l.b16 %v415
        %v512 = vunpack.c.h.b16 %v415
        %v513 = vunpack.c.l.b16 %v416
        %v514 = vunpack.c.h.b16 %v416
        %v515 = vunpack.c.l.b16 %v417
        %v516 = vunpack.c.h.b16 %v417
        %v517 = vunpack.c.l.b16 %v418
        %v518 = vunpack.c.h.b16 %v418
        %v519 = vunpack.c.l.b16 %v419
        %v520 = vunpack.c.h.b16 %v419
        %v521 = vunpack.c.l.b16 %v420
        %v522 = vunpack.c.h.b16 %v420
        %v523 = vunpack.c.l.b16 %v421
        %v524 = vunpack.c.h.b16 %v421
        %v525 = vunpack.c.l.b16 %v422
        %v526 = vunpack.c.h.b16 %v422
        %v527 = vunpack.c.l.b16 %v423
        %v528 = vunpack.c.h.b16 %v423
        %v529 = vunpack.c.l.b16 %v424
        %v530 = vunpack.c.h.b16 %v424
        %v531 = vpack.c.b16 %v469, %v467
        %v532 = vpack.c.b16 %v470, %v468
        %v533 = vpack.c.b16 %v473, %v471
        %v534 = vpack.c.b16 %v474, %v472
        %v535 = vpack.c.b16 %v477, %v475
        %v536 = vpack.c.b16 %v478, %v476
        %v537 = vpack.c.b16 %v481, %v479
        %v538 = vpack.c.b16 %v482, %v480
        %v539 = vpack.c.b16 %v485, %v483
        %v540 = vpack.c.b16 %v486, %v484
        %v541 = vpack.c.b16 %v489, %v487
        %v542 = vpack.c.b16 %v490, %v488
        %v543 = vpack.c.b16 %v493, %v491
        %v544 = vpack.c.b16 %v494, %v492
        %v545 = vpack.c.b16 %v497, %v495
        %v546 = vpack.c.b16 %v498, %v496
        %v547 = vpack.c.b16 %v501, %v499
        %v548 = vpack.c.b16 %v502, %v500
        %v549 = vpack.c.b16 %v505, %v503
        %v550 = vpack.c.b16 %v506, %v504
        %v551 = vpack.c.b16 %v509, %v507
        %v552 = vpack.c.b16 %v510, %v508
        %v553 = vpack.c.b16 %v513, %v511
        %v554 = vpack.c.b16 %v514, %v512
        %v555 = vpack.c.b16 %v517, %v515
        %v556 = vpack.c.b16 %v518, %v516
        %v557 = vpack.c.b16 %v521, %v519
        %v558 = vpack.c.b16 %v522, %v520
        %v559 = vpack.c.b16 %v525, %v523
        %v560 = vpack.c.b16 %v526, %v524
        %v561 = vpack.c.b16 %v529, %v527
        %v562 = vpack.c.b16 %v530, %v528
        %595 = vmatpush.bf16.msra.mxu0 %v545
        %596 = vmatpush.bf16.msra.mxu0 %v543
        %597 = vmatpush.bf16.msra.mxu0 %v541
        %598 = vmatpush.bf16.msra.mxu0 %v539
        %599 = vmatpush.bf16.msra.mxu0 %v537
        %600 = vmatpush.bf16.msra.mxu0 %v535
        %601 = vmatpush.bf16.msra.mxu0 %v533
        %602 = vmatpush.bf16.msra.mxu0 %v531
        %603 = vmatmul.bf16.gmra.mxu0 %v431
        %v604 = vpop.f32.mrf.mxu0
        %v605 = vadd.f32 0.0, %v604
        %v606 = vpop.f32.mrf.mxu0
        %v607 = vadd.f32 0.0, %v606
        %608 = vdwg.mxu0
        %609 = vmatpush.bf16.msra.mxu0 %v561
        %610 = vmatpush.bf16.msra.mxu0 %v559
        %611 = vmatpush.bf16.msra.mxu0 %v557
        %612 = vmatpush.bf16.msra.mxu0 %v555
        %613 = vmatpush.bf16.msra.mxu0 %v553
        %614 = vmatpush.bf16.msra.mxu0 %v551
        %615 = vmatpush.bf16.msra.mxu0 %v549
        %616 = vmatpush.bf16.msra.mxu0 %v547
        %617 = vmatmul.bf16.gmra.mxu0 %v432
        %v618 = vpop.f32.mrf.mxu0
        %v619 = vadd.f32 %v605, %v618
        %v620 = vpop.f32.mrf.mxu0
        %v621 = vadd.f32 %v607, %v620
        %622 = vdwg.mxu0
        %623 = vmatpush.bf16.msra.mxu0 %v546
        %624 = vmatpush.bf16.msra.mxu0 %v544
        %625 = vmatpush.bf16.msra.mxu0 %v542
        %626 = vmatpush.bf16.msra.mxu0 %v540
        %627 = vmatpush.bf16.msra.mxu0 %v538
        %628 = vmatpush.bf16.msra.mxu0 %v536
        %629 = vmatpush.bf16.msra.mxu0 %v534
        %630 = vmatpush.bf16.msra.mxu0 %v532
        %631 = vmatmul.bf16.gmra.mxu0 %v431
        %v632 = vpop.f32.mrf.mxu0
        %v633 = vadd.f32 0.0, %v632
        %v634 = vpop.f32.mrf.mxu0
        %v635 = vadd.f32 0.0, %v634
        %636 = vdwg.mxu0
        %637 = vmatpush.bf16.msra.mxu0 %v562
        %638 = vmatpush.bf16.msra.mxu0 %v560
        %639 = vmatpush.bf16.msra.mxu0 %v558
        %640 = vmatpush.bf16.msra.mxu0 %v556
        %641 = vmatpush.bf16.msra.mxu0 %v554
        %642 = vmatpush.bf16.msra.mxu0 %v552
        %643 = vmatpush.bf16.msra.mxu0 %v550
        %644 = vmatpush.bf16.msra.mxu0 %v548
        %645 = vmatmul.bf16.gmra.mxu0 %v432
        %v646 = vpop.f32.mrf.mxu0
        %v647 = vadd.f32 %v633, %v646
        %v648 = vpop.f32.mrf.mxu0
        %v649 = vadd.f32 %v635, %v648
        %650 = vdwg.mxu0
        %v651 = vadd.f32 %v389, %v619
        %v652 = vadd.f32 %v390, %v647
        %v653 = vadd.f32 %v391, %v621
        %v654 = vadd.f32 %v392, %v649
        %655 = vst [vmem:[#allocation2] sm:$0xff] %v651
        %656 = vst [vmem:[#allocation2 + $0x8] sm:$0xff] %v652
        %657 = vst [vmem:[#allocation2 + $0x10] sm:$0xff] %v653
        %658 = vst [vmem:[#allocation2 + $0x18] sm:$0xff] %v654
        %p659 = scmp.eq.s32.totalorder %s22, 3
        // Predicated region
        $region79: #{_lambda_.17} parent=69 // pred_check
          %p660 = pneg %p659
        $region80: #{_lambda_.17} parent=69 // pred_check_branch
          %662 = sbr.rel (%p660) target = $region82
        $region81: #{_lambda_.17} parent=69 // pred_region
          %v663 = vld [vmem:[#allocation2] sm:$0xff]
          %v664 = vld [vmem:[#allocation2 + $0x8] sm:$0xff]
          %v665 = vld [vmem:[#allocation2 + $0x10] sm:$0xff]
          %v666 = vld [vmem:[#allocation2 + $0x18] sm:$0xff]
          %v667 = vld [vmem:[%s353] sm:$0x3]
          %v669 = vperm.slane %v667, 0
          %v670 = vperm.slane %v667, 1
          %v673 = vadd.f32 %v663, %v669
          %v674 = vadd.f32 %v664, %v670
          %v675 = vadd.f32 %v665, %v669
          %v676 = vadd.f32 %v666, %v670
          %v677 = vld [vmem:[%s364] sm:$0xff]
          %v678 = vld [vmem:[%s364 + $0x8] sm:$0xff]
          %v679 = vld [vmem:[%s364 + $0x10] sm:$0xff]
          %v680 = vld [vmem:[%s364 + $0x18] sm:$0xff]
          %v681 = vadd.f32 %v673, %v677
          %v682 = vadd.f32 %v674, %v678
          %v683 = vadd.f32 %v675, %v679
          %v684 = vadd.f32 %v676, %v680
          %685 = vst [vmem:[%s376] sm:$0xff] %v681
          %686 = vst [vmem:[%s376 + $0x8] sm:$0xff] %v682
          %687 = vst [vmem:[%s376 + $0x10] sm:$0xff] %v683
          %688 = vst [vmem:[%s376 + $0x18] sm:$0xff] %v684
        $region82: #{_lambda_.17} parent=69 // pred_fallthru
          _
        %s689 = smul.u32 2, %s20
        %s690 = smul.u32 2, %s21
        %p691 = scmp.lt.s32.totalorder %s689, 1
        %s692 = scalar_select %p691, %s689, 1
        %p693 = scmp.lt.s32.totalorder %s690, 1
        %s694 = scalar_select %p693, %s690, 1
        %s695 = smul.addr %s692, 2
        %s696 = sadd.s32 %s694, %s695
        %s697 = smul.addr %s696, 8
        %s698 = scalar_lea.vmem %s4, %s697
        // Predicated region
        $region83: #{_lambda_.17} parent=69 // pred_check
          %p699 = pneg %p164
        $region84: #{_lambda_.17} parent=69 // pred_check_branch
          %701 = sbr.rel (%p699) target = $region86
        $region85: #{_lambda_.17} parent=69 // pred_region
          %s702 = smul.u32 2, %s20
          %s703 = smul.u32 2, %s21
        $region86: #{_lambda_.17} parent=69 // pred_fallthru
          _
        // Predicated region
        $region87: #{_lambda_.17} parent=69 // pred_check
          %p704 = pneg %p164
        $region88: #{_lambda_.17} parent=69 // pred_check_branch
          %706 = sbr.rel (%p704) target = $region90
        $region89: #{_lambda_.17} parent=69 // pred_region
          %s707 = smul.u32 2, %s20
          %s708 = smul.u32 2, %s21
          %p709 = scmp.lt.s32.totalorder %s707, 1
          %s710 = scalar_select %p709, %s707, 1
          %p711 = scmp.lt.s32.totalorder %s708, 1
          %s712 = scalar_select %p711, %s708, 1
          %s713 = smul.addr %s710, 2
          %s714 = sadd.s32 %s712, %s713
          %s715 = smul.addr %s714, 8
          %s716 = scalar_lea.vmem %s4, %s715
        $region90: #{_lambda_.17} parent=69 // pred_fallthru
          _
      $region70: #{_lambda_.17} parent=5 // pred_fallthru
        _
      %p717 = scmp.le.s32.totalorder 2, %s10
      // Predicated region
      $region91: #{_lambda_.17} parent=5 // pred_check
        %p718 = pneg %p717
      $region92: #{_lambda_.17} parent=5 // pred_check_branch
        %720 = sbr.rel (%p718) target = $region94
      $region93: #{_lambda_.17} parent=5 // pred_region
        %s721 = ssub.s32 %s10, 2
      $region94: #{_lambda_.17} parent=5 // pred_fallthru
        _
    $region6: #{_lambda_.17} parent=1 // loop_footer
      %s14 = sadd.s32 1, %s10
    $region7: #{_lambda_.17} parent=1 // loop_footer_branch
      %9 = sbr.rel target = $region3
    $region8: #{_lambda_.17} parent=1 // loop_exit
      _

// kernel: _lambda_.18
$region0: #{_lambda_.18}
  #allocation0 [shape = 'u32[]', space=smem, size = 0x4, offset = 0x4, fixed_abs, tag = 'smem constant byte address 0x4 - core index']
  #allocation1 [shape = 'u32[72,128]{1,0:T(1,128)}', space=vmem, size = 0x9000, scoped, tag = 'internal scratch']
  #allocation2 [shape = 'f32[16,256]{1,0:T(8,128)}', space=vmem, size = 0x4000, scoped, tag = 'scratch operand']
  %s0 = inlined_call_operand.vmem [shape: f32[16,256], index: 0, kind: input, shape index: {}]
  %s1 = inlined_call_operand.vmem [shape: bf16[256,768], index: 1, kind: input, shape index: {}]
  %s2 = inlined_call_operand.vmem [shape: f32[1,768], index: 2, kind: input, shape index: {}]
  %s3 = inlined_call_operand.vmem [shape: f32[1,256], index: 3, kind: input, shape index: {}]
  %s4 = inlined_call_operand.vmem [shape: f32[1,256], index: 4, kind: input, shape index: {}]
  %s5 = inlined_call_operand.vmem [shape: f32[16,768], index: 5, kind: output, shape index: {}]
  %s6 = sld [smem:[#allocation0]]
  $region118: #{_lambda_.18} parent=0
    _
  %s8 = ssub.s32 1, %s6
  %s9 = scalar_select 0, %s8, %s6
  $region1: #{_lambda_.18} parent=0
    #allocation3 [shape = 'u8[262144]{0}', space=vmem, size = 0x40000, scoped, tag = 'input window, operand 1']
    #allocation4 [shape = 'u8[32768]{0}', space=vmem, size = 0x8000, scoped, tag = 'output window, operand 0']
    loop: start=0, step=1, limit=5
    $region2: #{_lambda_.18} parent=1 // loop_pre_header
      _
    $region3: #{_lambda_.18} parent=1 // loop_header
      %s11 = sphi 0, %s15
      %p12 = scmp.ge.s32.totalorder %s11, 5
      %s18 = sphi 0, %s37
      %s19 = sphi 0, %s33
      %s20 = sphi 0, %s29
      %s21 = sphi 0, %s18
      %s22 = sphi 0, %s19
      %s23 = sphi 0, %s20
      %s24 = sphi 0, %s21
      %s25 = sphi 0, %s22
      %s26 = sphi 0, %s23
      %s42 = sphi 0, %s44
      %s45 = sphi 0, %s42
      %s46 = sphi 0, %s45
      %s62 = sphi 0, %s46
      %s70 = sphi 0, %s72
      %s73 = sphi 0, %s70
      %s74 = sphi 0, %s73
      %s90 = sphi 0, %s74
      %s96 = sphi 0, %s98
      %s99 = sphi 0, %s96
      %s100 = sphi 0, %s99
      %s116 = sphi 0, %s100
      %s122 = sphi 0, %s124
      %s125 = sphi 0, %s122
      %s126 = sphi 0, %s125
      %s142 = sphi 0, %s126
      %s148 = sphi 0, %s150
      %s151 = sphi 0, %s148
      %s152 = sphi 0, %s151
      %s168 = sphi 0, %s152
      %s176 = sphi 0, %s178
      %s179 = sphi 0, %s176
      %s180 = sphi 0, %s179
      %s196 = sphi 0, %s180
    $region4: #{_lambda_.18} parent=1 // loop_header_branch
      %14 = sbr.rel (%p12) target = $region8
    $region5: #{_lambda_.18} parent=1 // loop_body
      %s16 = ssub.s32 %s11, 1
      %s17 = ssub.s32 %s11, 2
      %s27 = sadd.s32 1, %s20
      %p28 = scmp.ge.s32.totalorder %s27, 1
      %s29 = scalar_select %p28, 0, %s27
      %s30 = sadd.s32 1, %s19
      %s31 = scalar_select %p28, %s30, %s19
      %p32 = scmp.ge.s32.totalorder %s31, 3
      %s33 = scalar_select %p32, 0, %s31
      %s34 = sadd.s32 1, %s18
      %s35 = scalar_select %p32, %s34, %s18
      %p36 = scmp.ge.s32.totalorder %s35, 1
      %s37 = scalar_select %p36, 0, %s35
      %s38 = ssub.s32 %s18, %s37
      %s39 = ssub.s32 %s20, %s29
      %s40 = sor.u32 %s38, %s39
      %p41 = scmp.eq.s32.totalorder %s40, 0
      %s43 = sadd.s32 %s42, 1
      %s44 = scalar_select %p41, %s42, %s43
      %p47 = pneg %p41
      %p48 = scmp.eq.s32.totalorder %s11, 2
      %p49 = por %p47, %p48
      %p50 = scmp.ne.s32.totalorder %s42, %s45
      %p51 = scmp.eq.s32.totalorder %s11, 0
      %p52 = por %p50, %p51
      %p53 = scmp.ne.s32.totalorder %s42, %s45
      %p54 = scmp.eq.s32.totalorder %s16, 2
      %p55 = por %p53, %p54
      %p56 = scmp.ne.s32.totalorder %s45, %s46
      %p57 = scmp.eq.s32.totalorder %s16, 0
      %p58 = por %p56, %p57
      %p59 = scmp.ne.s32.totalorder %s45, %s46
      %p60 = scmp.eq.s32.totalorder %s17, 2
      %p61 = por %p59, %p60
      %p63 = scmp.ne.s32.totalorder %s46, %s62
      %p64 = scmp.eq.s32.totalorder %s17, 0
      %p65 = por %p63, %p64
      %s66 = ssub.s32 %s20, %s29
      %s67 = ssub.s32 %s19, %s33
      %s68 = sor.u32 %s66, %s67
      %p69 = scmp.eq.s32.totalorder %s68, 0
      %s71 = sadd.s32 %s70, 1
      %s72 = scalar_select %p69, %s70, %s71
      %p75 = pneg %p69
      %p76 = scmp.eq.s32.totalorder %s11, 2
      %p77 = por %p75, %p76
      %p78 = scmp.ne.s32.totalorder %s70, %s73
      %p79 = scmp.eq.s32.totalorder %s11, 0
      %p80 = por %p78, %p79
      %p81 = scmp.ne.s32.totalorder %s70, %s73
      %p82 = scmp.eq.s32.totalorder %s16, 2
      %p83 = por %p81, %p82
      %p84 = scmp.ne.s32.totalorder %s73, %s74
      %p85 = scmp.eq.s32.totalorder %s16, 0
      %p86 = por %p84, %p85
      %p87 = scmp.ne.s32.totalorder %s73, %s74
      %p88 = scmp.eq.s32.totalorder %s17, 2
      %p89 = por %p87, %p88
      %p91 = scmp.ne.s32.totalorder %s74, %s90
      %p92 = scmp.eq.s32.totalorder %s17, 0
      %p93 = por %p91, %p92
      %s94 = ssub.s32 %s19, %s33
      %p95 = scmp.eq.s32.totalorder %s94, 0
      %s97 = sadd.s32 %s96, 1
      %s98 = scalar_select %p95, %s96, %s97
      %p101 = pneg %p95
      %p102 = scmp.eq.s32.totalorder %s11, 2
      %p103 = por %p101, %p102
      %p104 = scmp.ne.s32.totalorder %s96, %s99
      %p105 = scmp.eq.s32.totalorder %s11, 0
      %p106 = por %p104, %p105
      %p107 = scmp.ne.s32.totalorder %s96, %s99
      %p108 = scmp.eq.s32.totalorder %s16, 2
      %p109 = por %p107, %p108
      %p110 = scmp.ne.s32.totalorder %s99, %s100
      %p111 = scmp.eq.s32.totalorder %s16, 0
      %p112 = por %p110, %p111
      %p113 = scmp.ne.s32.totalorder %s99, %s100
      %p114 = scmp.eq.s32.totalorder %s17, 2
      %p115 = por %p113, %p114
      %p117 = scmp.ne.s32.totalorder %s100, %s116
      %p118 = scmp.eq.s32.totalorder %s17, 0
      %p119 = por %p117, %p118
      %s120 = ssub.s32 %s20, %s29
      %p121 = scmp.eq.s32.totalorder %s120, 0
      %s123 = sadd.s32 %s122, 1
      %s124 = scalar_select %p121, %s122, %s123
      %p127 = pneg %p121
      %p128 = scmp.eq.s32.totalorder %s11, 2
      %p129 = por %p127, %p128
      %p130 = scmp.ne.s32.totalorder %s122, %s125
      %p131 = scmp.eq.s32.totalorder %s11, 0
      %p132 = por %p130, %p131
      %p133 = scmp.ne.s32.totalorder %s122, %s125
      %p134 = scmp.eq.s32.totalorder %s16, 2
      %p135 = por %p133, %p134
      %p136 = scmp.ne.s32.totalorder %s125, %s126
      %p137 = scmp.eq.s32.totalorder %s16, 0
      %p138 = por %p136, %p137
      %p139 = scmp.ne.s32.totalorder %s125, %s126
      %p140 = scmp.eq.s32.totalorder %s17, 2
      %p141 = por %p139, %p140
      %p143 = scmp.ne.s32.totalorder %s126, %s142
      %p144 = scmp.eq.s32.totalorder %s17, 0
      %p145 = por %p143, %p144
      %s146 = ssub.s32 %s20, %s29
      %p147 = scmp.eq.s32.totalorder %s146, 0
      %s149 = sadd.s32 %s148, 1
      %s150 = scalar_select %p147, %s148, %s149
      %p153 = pneg %p147
      %p154 = scmp.eq.s32.totalorder %s11, 2
      %p155 = por %p153, %p154
      %p156 = scmp.ne.s32.totalorder %s148, %s151
      %p157 = scmp.eq.s32.totalorder %s11, 0
      %p158 = por %p156, %p157
      %p159 = scmp.ne.s32.totalorder %s148, %s151
      %p160 = scmp.eq.s32.totalorder %s16, 2
      %p161 = por %p159, %p160
      %p162 = scmp.ne.s32.totalorder %s151, %s152
      %p163 = scmp.eq.s32.totalorder %s16, 0
      %p164 = por %p162, %p163
      %p165 = scmp.ne.s32.totalorder %s151, %s152
      %p166 = scmp.eq.s32.totalorder %s17, 2
      %p167 = por %p165, %p166
      %p169 = scmp.ne.s32.totalorder %s152, %s168
      %p170 = scmp.eq.s32.totalorder %s17, 0
      %p171 = por %p169, %p170
      %s172 = ssub.s32 %s18, %s37
      %s173 = ssub.s32 %s19, %s33
      %s174 = sor.u32 %s172, %s173
      %p175 = scmp.eq.s32.totalorder %s174, 0
      %s177 = sadd.s32 %s176, 1
      %s178 = scalar_select %p175, %s176, %s177
      %p181 = pneg %p175
      %p182 = scmp.eq.s32.totalorder %s11, 2
      %p183 = por %p181, %p182
      %p184 = scmp.ne.s32.totalorder %s176, %s179
      %p185 = scmp.eq.s32.totalorder %s11, 0
      %p186 = por %p184, %p185
      %p187 = scmp.ne.s32.totalorder %s176, %s179
      %p188 = scmp.eq.s32.totalorder %s16, 2
      %p189 = por %p187, %p188
      %p190 = scmp.ne.s32.totalorder %s179, %s180
      %p191 = scmp.eq.s32.totalorder %s16, 0
      %p192 = por %p190, %p191
      %p193 = scmp.ne.s32.totalorder %s179, %s180
      %p194 = scmp.eq.s32.totalorder %s17, 2
      %p195 = por %p193, %p194
      %p197 = scmp.ne.s32.totalorder %s180, %s196
      %p198 = scmp.eq.s32.totalorder %s17, 0
      %p199 = por %p197, %p198
      %p200 = scmp.le.s32.totalorder 1, %s11
      %p201 = scmp.lt.s32.totalorder %s11, 4
      %p202 = pnand %p200, %p201
      %p203 = pneg %p202
      // Predicated region
      $region9: #{_lambda_.18} parent=5 // pred_check
        _
      $region10: #{_lambda_.18} parent=5 // pred_check_branch
        %205 = sbr.rel (%p202) target = $region12
      $region11: #{_lambda_.18} parent=5 // pred_region
        %s206 = ssub.s32 %s11, 1
        // Predicated region
        $region13: #{_lambda_.18} parent=11 // pred_check
          %p207 = pneg %p58
        $region14: #{_lambda_.18} parent=11 // pred_check_branch
          %209 = sbr.rel (%p207) target = $region16
        $region15: #{_lambda_.18} parent=11 // pred_region
          %s210 = smul.u32 2, %s21
          %s211 = smul.u32 2, %s23
          %p212 = scmp.lt.s32.totalorder %s210, 1
          %s213 = scalar_select %p212, %s210, 1
          %p214 = scmp.lt.s32.totalorder %s211, 1
          %s215 = scalar_select %p214, %s211, 1
          %s216 = smul.addr %s213, 2
          %s217 = sadd.s32 %s215, %s216
          %s218 = smul.addr %s217, 8
          %s219 = scalar_lea.vmem %s0, %s218
          %s220 = smul.u32 2, %s21
          %s221 = smul.u32 2, %s23
        $region16: #{_lambda_.18} parent=11 // pred_fallthru
          _
        // Predicated region
        $region17: #{_lambda_.18} parent=11 // pred_check
          %p222 = pneg %p138
        $region18: #{_lambda_.18} parent=11 // pred_check_branch
          %224 = sbr.rel (%p222) target = $region20
        $region19: #{_lambda_.18} parent=11 // pred_region
          %s225 = smul.u32 2, %s23
          %p226 = scmp.lt.s32.totalorder %s225, 1
          %s227 = scalar_select %p226, %s225, 1
          %s228 = scalar_lea.vmem %s3, %s227
          %s229 = smul.u32 2, %s23
        $region20: #{_lambda_.18} parent=11 // pred_fallthru
          _
        // Predicated region
        $region21: #{_lambda_.18} parent=11 // pred_check
          %p230 = pneg %p164
        $region22: #{_lambda_.18} parent=11 // pred_check_branch
          %232 = sbr.rel (%p230) target = $region24
        $region23: #{_lambda_.18} parent=11 // pred_region
          %s233 = smul.u32 2, %s23
          %p234 = scmp.lt.s32.totalorder %s233, 1
          %s235 = scalar_select %p234, %s233, 1
          %s236 = scalar_lea.vmem %s4, %s235
          %s237 = smul.u32 2, %s23
        $region24: #{_lambda_.18} parent=11 // pred_fallthru
          _
      $region12: #{_lambda_.18} parent=5 // pred_fallthru
        _
      %p238 = scmp.lt.s32.totalorder %s11, 3
      // Predicated region
      $region25: #{_lambda_.18} parent=5 // pred_check
        %p239 = pneg %p238
      $region26: #{_lambda_.18} parent=5 // pred_check_branch
        %241 = sbr.rel (%p239) target = $region28
      $region27: #{_lambda_.18} parent=5 // pred_region
        // Predicated region
        $region29: #{_lambda_.18} parent=27 // pred_check
          %p242 = pneg %p80
        $region30: #{_lambda_.18} parent=27 // pred_check_branch
          %244 = sbr.rel (%p242) target = $region32
        $region31: #{_lambda_.18} parent=27 // pred_region
          %s245 = sand.u32 %s70, 1
          %s246 = sand.u32 %s70, 1
          %s247 = smul.addr %s246, 256
          %s248 = scalar_lea.vmem [#allocation3], %s247
          %s249 = smul.u32 32, %s20
          %s250 = smul.u32 2, %s19
          %s251 = smul.addr %s249, 6
          %s252 = sadd.s32 %s250, %s251
          %s253 = smul.addr %s252, 4
          %s254 = scalar_lea.vmem %s1, %s253
          // Predicated region
          $region33: #{_lambda_.18} parent=31 // pred_check
            _
          $region34: #{_lambda_.18} parent=31 // pred_check_branch
            %256 = sbr.rel (0) target = $region36
          $region35: #{_lambda_.18} parent=31 // pred_region
            // Predicated region
            $region37: #{_lambda_.18} parent=35 // pred_check
              _
            $region38: #{_lambda_.18} parent=35 // pred_check_branch
              %258 = sbr.rel (0) target = $region40
            $region39: #{_lambda_.18} parent=35 // pred_region
              // Predicated region
              $region52: #{_lambda_.18} parent=39 // pred_check
                _
              $region53: #{_lambda_.18} parent=39 // pred_check_branch
                %336 = sbr.rel (0) target = $region55
              $region54: #{_lambda_.18} parent=39 // pred_region
                loop: start=0, step=1, limit=1
                $region56: #{_lambda_.18} parent=54 // loop_pre_header
                  _
                $region57: #{_lambda_.18} parent=54 // loop_header
                  %s338 = sphi 0, %s342
                  %p339 = scmp.ge.s32.totalorder %s338, 1
                  %s343 = sphi %s254, %s254
                  %s344 = sphi %s248, %s248
                $region58: #{_lambda_.18} parent=54 // loop_header_branch
                  %341 = sbr.rel (%p339) target = $region62
                $region59: #{_lambda_.18} parent=54 // loop_body
                  %v345 = vld [vmem:[%s343] sm:$0xff]
                  %346 = vst [vmem:[%s344] sm:$0xff] %v345
                  %v347 = vld [vmem:[%s343 + $0x18] sm:$0xff]
                  %348 = vst [vmem:[%s344 + $0x8] sm:$0xff] %v347
                  %v349 = vld [vmem:[%s343 + $0x30] sm:$0xff]
                  %350 = vst [vmem:[%s344 + $0x10] sm:$0xff] %v349
                  %v351 = vld [vmem:[%s343 + $0x48] sm:$0xff]
                  %352 = vst [vmem:[%s344 + $0x18] sm:$0xff] %v351
                  %v353 = vld [vmem:[%s343 + $0x60] sm:$0xff]
                  %354 = vst [vmem:[%s344 + $0x20] sm:$0xff] %v353
                  %v355 = vld [vmem:[%s343 + $0x78] sm:$0xff]
                  %356 = vst [vmem:[%s344 + $0x28] sm:$0xff] %v355
                  %v357 = vld [vmem:[%s343 + $0x90] sm:$0xff]
                  %358 = vst [vmem:[%s344 + $0x30] sm:$0xff] %v357
                  %v359 = vld [vmem:[%s343 + $0xa8] sm:$0xff]
                  %360 = vst [vmem:[%s344 + $0x38] sm:$0xff] %v359
                  %v361 = vld [vmem:[%s343 + $0xc0] sm:$0xff]
                  %362 = vst [vmem:[%s344 + $0x40] sm:$0xff] %v361
                  %v363 = vld [vmem:[%s343 + $0xd8] sm:$0xff]
                  %364 = vst [vmem:[%s344 + $0x48] sm:$0xff] %v363
                  %v365 = vld [vmem:[%s343 + $0xf0] sm:$0xff]
                  %366 = vst [vmem:[%s344 + $0x50] sm:$0xff] %v365
                  %v367 = vld [vmem:[%s343 + $0x108] sm:$0xff]
                  %368 = vst [vmem:[%s344 + $0x58] sm:$0xff] %v367
                  %v369 = vld [vmem:[%s343 + $0x120] sm:$0xff]
                  %370 = vst [vmem:[%s344 + $0x60] sm:$0xff] %v369
                  %v371 = vld [vmem:[%s343 + $0x138] sm:$0xff]
                  %372 = vst [vmem:[%s344 + $0x68] sm:$0xff] %v371
                  %v373 = vld [vmem:[%s343 + $0x150] sm:$0xff]
                  %374 = vst [vmem:[%s344 + $0x70] sm:$0xff] %v373
                  %v375 = vld [vmem:[%s343 + $0x168] sm:$0xff]
                  %376 = vst [vmem:[%s344 + $0x78] sm:$0xff] %v375
                  %v377 = vld [vmem:[%s343 + $0x180] sm:$0xff]
                  %378 = vst [vmem:[%s344 + $0x80] sm:$0xff] %v377
                  %v379 = vld [vmem:[%s343 + $0x198] sm:$0xff]
                  %380 = vst [vmem:[%s344 + $0x88] sm:$0xff] %v379
                  %v381 = vld [vmem:[%s343 + $0x1b0] sm:$0xff]
                  %382 = vst [vmem:[%s344 + $0x90] sm:$0xff] %v381
                  %v383 = vld [vmem:[%s343 + $0x1c8] sm:$0xff]
                  %384 = vst [vmem:[%s344 + $0x98] sm:$0xff] %v383
                  %v385 = vld [vmem:[%s343 + $0x1e0] sm:$0xff]
                  %386 = vst [vmem:[%s344 + $0xa0] sm:$0xff] %v385
                  %v387 = vld [vmem:[%s343 + $0x1f8] sm:$0xff]
                  %388 = vst [vmem:[%s344 + $0xa8] sm:$0xff] %v387
                  %v389 = vld [vmem:[%s343 + $0x210] sm:$0xff]
                  %390 = vst [vmem:[%s344 + $0xb0] sm:$0xff] %v389
                  %v391 = vld [vmem:[%s343 + $0x228] sm:$0xff]
                  %392 = vst [vmem:[%s344 + $0xb8] sm:$0xff] %v391
                  %v393 = vld [vmem:[%s343 + $0x240] sm:$0xff]
                  %394 = vst [vmem:[%s344 + $0xc0] sm:$0xff] %v393
                  %v395 = vld [vmem:[%s343 + $0x258] sm:$0xff]
                  %396 = vst [vmem:[%s344 + $0xc8] sm:$0xff] %v395
                  %v397 = vld [vmem:[%s343 + $0x270] sm:$0xff]
                  %398 = vst [vmem:[%s344 + $0xd0] sm:$0xff] %v397
                  %v399 = vld [vmem:[%s343 + $0x288] sm:$0xff]
                  %400 = vst [vmem:[%s344 + $0xd8] sm:$0xff] %v399
                  %v401 = vld [vmem:[%s343 + $0x2a0] sm:$0xff]
                  %402 = vst [vmem:[%s344 + $0xe0] sm:$0xff] %v401
                  %v403 = vld [vmem:[%s343 + $0x2b8] sm:$0xff]
                  %404 = vst [vmem:[%s344 + $0xe8] sm:$0xff] %v403
                  %v405 = vld [vmem:[%s343 + $0x2d0] sm:$0xff]
                  %406 = vst [vmem:[%s344 + $0xf0] sm:$0xff] %v405
                  %v407 = vld [vmem:[%s343 + $0x2e8] sm:$0xff]
                  %408 = vst [vmem:[%s344 + $0xf8] sm:$0xff] %v407
                $region60: #{_lambda_.18} parent=54 // loop_footer
                  %s342 = sadd.s32 1, %s338
                $region61: #{_lambda_.18} parent=54 // loop_footer_branch
                  %337 = sbr.rel target = $region57
                $region62: #{_lambda_.18} parent=54 // loop_exit
                  _
              $region55: #{_lambda_.18} parent=39 // pred_fallthru
                _
              // Predicated region
              $region63: #{_lambda_.18} parent=39 // pred_check
                _
              $region64: #{_lambda_.18} parent=39 // pred_check_branch
                %410 = sbr.rel target = $region66
              $region65: #{_lambda_.18} parent=39 // pred_region
                _
              $region66: #{_lambda_.18} parent=39 // pred_fallthru
                _
            $region40: #{_lambda_.18} parent=35 // pred_fallthru
              _
            // Predicated region
            $region41: #{_lambda_.18} parent=35 // pred_check
              _
            $region42: #{_lambda_.18} parent=35 // pred_check_branch
              %260 = sbr.rel target = $region44
            $region43: #{_lambda_.18} parent=35 // pred_region
              %s262 = ssub.s32 256, 1
              loop: start=0, step=1, limit=1
              $region45: #{_lambda_.18} parent=43 // loop_pre_header
                _
              $region46: #{_lambda_.18} parent=43 // loop_header
                %s264 = sphi 0, %s268
                %p265 = scmp.ge.s32.totalorder %s264, 1
                %s269 = sphi %s254, %s254
                %s270 = sphi %s248, %s248
              $region47: #{_lambda_.18} parent=43 // loop_header_branch
                %267 = sbr.rel (%p265) target = $region51
              $region48: #{_lambda_.18} parent=43 // loop_body
                %v271 = vld [vmem:[%s269] sm:%s262]
                %272 = vst [vmem:[%s270] sm:%s262] %v271
                %v273 = vld [vmem:[%s269 + $0x18] sm:%s262]
                %274 = vst [vmem:[%s270 + $0x8] sm:%s262] %v273
                %v275 = vld [vmem:[%s269 + $0x30] sm:%s262]
                %276 = vst [vmem:[%s270 + $0x10] sm:%s262] %v275
                %v277 = vld [vmem:[%s269 + $0x48] sm:%s262]
                %278 = vst [vmem:[%s270 + $0x18] sm:%s262] %v277
                %v279 = vld [vmem:[%s269 + $0x60] sm:%s262]
                %280 = vst [vmem:[%s270 + $0x20] sm:%s262] %v279
                %v281 = vld [vmem:[%s269 + $0x78] sm:%s262]
                %282 = vst [vmem:[%s270 + $0x28] sm:%s262] %v281
                %v283 = vld [vmem:[%s269 + $0x90] sm:%s262]
                %284 = vst [vmem:[%s270 + $0x30] sm:%s262] %v283
                %v285 = vld [vmem:[%s269 + $0xa8] sm:%s262]
                %286 = vst [vmem:[%s270 + $0x38] sm:%s262] %v285
                %v287 = vld [vmem:[%s269 + $0xc0] sm:%s262]
                %288 = vst [vmem:[%s270 + $0x40] sm:%s262] %v287
                %v289 = vld [vmem:[%s269 + $0xd8] sm:%s262]
                %290 = vst [vmem:[%s270 + $0x48] sm:%s262] %v289
                %v291 = vld [vmem:[%s269 + $0xf0] sm:%s262]
                %292 = vst [vmem:[%s270 + $0x50] sm:%s262] %v291
                %v293 = vld [vmem:[%s269 + $0x108] sm:%s262]
                %294 = vst [vmem:[%s270 + $0x58] sm:%s262] %v293
                %v295 = vld [vmem:[%s269 + $0x120] sm:%s262]
                %296 = vst [vmem:[%s270 + $0x60] sm:%s262] %v295
                %v297 = vld [vmem:[%s269 + $0x138] sm:%s262]
                %298 = vst [vmem:[%s270 + $0x68] sm:%s262] %v297
                %v299 = vld [vmem:[%s269 + $0x150] sm:%s262]
                %300 = vst [vmem:[%s270 + $0x70] sm:%s262] %v299
                %v301 = vld [vmem:[%s269 + $0x168] sm:%s262]
                %302 = vst [vmem:[%s270 + $0x78] sm:%s262] %v301
                %v303 = vld [vmem:[%s269 + $0x180] sm:%s262]
                %304 = vst [vmem:[%s270 + $0x80] sm:%s262] %v303
                %v305 = vld [vmem:[%s269 + $0x198] sm:%s262]
                %306 = vst [vmem:[%s270 + $0x88] sm:%s262] %v305
                %v307 = vld [vmem:[%s269 + $0x1b0] sm:%s262]
                %308 = vst [vmem:[%s270 + $0x90] sm:%s262] %v307
                %v309 = vld [vmem:[%s269 + $0x1c8] sm:%s262]
                %310 = vst [vmem:[%s270 + $0x98] sm:%s262] %v309
                %v311 = vld [vmem:[%s269 + $0x1e0] sm:%s262]
                %312 = vst [vmem:[%s270 + $0xa0] sm:%s262] %v311
                %v313 = vld [vmem:[%s269 + $0x1f8] sm:%s262]
                %314 = vst [vmem:[%s270 + $0xa8] sm:%s262] %v313
                %v315 = vld [vmem:[%s269 + $0x210] sm:%s262]
                %316 = vst [vmem:[%s270 + $0xb0] sm:%s262] %v315
                %v317 = vld [vmem:[%s269 + $0x228] sm:%s262]
                %318 = vst [vmem:[%s270 + $0xb8] sm:%s262] %v317
                %v319 = vld [vmem:[%s269 + $0x240] sm:%s262]
                %320 = vst [vmem:[%s270 + $0xc0] sm:%s262] %v319
                %v321 = vld [vmem:[%s269 + $0x258] sm:%s262]
                %322 = vst [vmem:[%s270 + $0xc8] sm:%s262] %v321
                %v323 = vld [vmem:[%s269 + $0x270] sm:%s262]
                %324 = vst [vmem:[%s270 + $0xd0] sm:%s262] %v323
                %v325 = vld [vmem:[%s269 + $0x288] sm:%s262]
                %326 = vst [vmem:[%s270 + $0xd8] sm:%s262] %v325
                %v327 = vld [vmem:[%s269 + $0x2a0] sm:%s262]
                %328 = vst [vmem:[%s270 + $0xe0] sm:%s262] %v327
                %v329 = vld [vmem:[%s269 + $0x2b8] sm:%s262]
                %330 = vst [vmem:[%s270 + $0xe8] sm:%s262] %v329
                %v331 = vld [vmem:[%s269 + $0x2d0] sm:%s262]
                %332 = vst [vmem:[%s270 + $0xf0] sm:%s262] %v331
                %v333 = vld [vmem:[%s269 + $0x2e8] sm:%s262]
                %334 = vst [vmem:[%s270 + $0xf8] sm:%s262] %v333
              $region49: #{_lambda_.18} parent=43 // loop_footer
                %s268 = sadd.s32 1, %s264
              $region50: #{_lambda_.18} parent=43 // loop_footer_branch
                %263 = sbr.rel target = $region46
              $region51: #{_lambda_.18} parent=43 // loop_exit
                _
            $region44: #{_lambda_.18} parent=35 // pred_fallthru
              _
          $region36: #{_lambda_.18} parent=31 // pred_fallthru
            _
          %411 = vnop
        $region32: #{_lambda_.18} parent=27 // pred_fallthru
          _
        // Predicated region
        $region67: #{_lambda_.18} parent=27 // pred_check
          %p412 = pneg %p106
        $region68: #{_lambda_.18} parent=27 // pred_check_branch
          %414 = sbr.rel (%p412) target = $region70
        $region69: #{_lambda_.18} parent=27 // pred_region
          %s415 = smul.u32 2, %s19
          %p416 = scmp.lt.s32.totalorder %s415, 5
          %s417 = scalar_select %p416, %s415, 5
          %s418 = scalar_lea.vmem %s2, %s417
          %s419 = smul.u32 2, %s19
        $region70: #{_lambda_.18} parent=27 // pred_fallthru
          _
      $region28: #{_lambda_.18} parent=5 // pred_fallthru
        _
      %p420 = scmp.le.s32.totalorder 1, %s11
      %p421 = scmp.lt.s32.totalorder %s11, 4
      %p422 = pnand %p420, %p421
      %p423 = pneg %p422
      // Predicated region
      $region71: #{_lambda_.18} parent=5 // pred_check
        _
      $region72: #{_lambda_.18} parent=5 // pred_check_branch
        %425 = sbr.rel (%p422) target = $region74
      $region73: #{_lambda_.18} parent=5 // pred_region
        %s426 = ssub.s32 %s11, 1
        %s427 = sand.u32 %s73, 1
        %s428 = sand.u32 %s73, 1
        %s429 = smul.addr %s428, 256
        %s430 = scalar_lea.vmem [#allocation3], %s429
        // Predicated region
        $region75: #{_lambda_.18} parent=73 // pred_check
          %p431 = pneg %p86
        $region76: #{_lambda_.18} parent=73 // pred_check_branch
          %433 = sbr.rel (%p431) target = $region78
        $region77: #{_lambda_.18} parent=73 // pred_region
          _
        $region78: #{_lambda_.18} parent=73 // pred_fallthru
          _
        %s434 = smul.u32 2, %s21
        %s435 = smul.u32 2, %s23
        %p436 = scmp.lt.s32.totalorder %s434, 1
        %s437 = scalar_select %p436, %s434, 1
        %p438 = scmp.lt.s32.totalorder %s435, 1
        %s439 = scalar_select %p438, %s435, 1
        %s440 = smul.addr %s437, 2
        %s441 = sadd.s32 %s439, %s440
        %s442 = smul.addr %s441, 8
        %s443 = scalar_lea.vmem %s0, %s442
        %p444 = pneg %p58
        %p445 = pneg %p55
        %s446 = sand.u32 %s73, 1
        %s447 = sand.u32 %s73, 1
        %s448 = smul.addr %s447, 256
        %s449 = scalar_lea.vmem [#allocation3], %s448
        %p450 = pneg %p86
        %p451 = pneg %p83
        %s452 = smul.u32 2, %s22
        %p453 = scmp.lt.s32.totalorder %s452, 5
        %s454 = scalar_select %p453, %s452, 5
        %s455 = scalar_lea.vmem %s2, %s454
        %p456 = pneg %p112
        %p457 = pneg %p109
        %s458 = smul.u32 2, %s23
        %p459 = scmp.lt.s32.totalorder %s458, 1
        %s460 = scalar_select %p459, %s458, 1
        %s461 = scalar_lea.vmem %s3, %s460
        %p462 = pneg %p138
        %p463 = pneg %p135
        %s464 = smul.u32 2, %s23
        %p465 = scmp.lt.s32.totalorder %s464, 1
        %s466 = scalar_select %p465, %s464, 1
        %s467 = scalar_lea.vmem %s4, %s466
        %p468 = pneg %p164
        %p469 = pneg %p161
        %p470 = pneg %p192
        %p471 = pneg %p189
        %s472 = sand.u32 %s179, 1
        %s473 = sand.u32 %s179, 1
        %s474 = smul.addr %s473, 32
        %s475 = scalar_lea.vmem [#allocation4], %s474
        %s476 = smul.u32 2, %s21
        %s477 = smul.u32 2, %s23
        %p478 = scmp.lt.s32.totalorder %s476, 1
        %s479 = scalar_select %p478, %s476, 1
        %p480 = scmp.lt.s32.totalorder %s477, 1
        %s481 = scalar_select %p480, %s477, 1
        %s482 = smul.addr %s479, 2
        %s483 = sadd.s32 %s481, %s482
        %s484 = smul.addr %s483, 8
        %s485 = scalar_lea.vmem %s0, %s484
        %s486 = smul.u32 2, %s21
        %s487 = smul.u32 2, %s23
        %s488 = smul.u32 32, %s23
        %s489 = smul.u32 2, %s22
        %s490 = smul.u32 2, %s22
        %p491 = scmp.lt.s32.totalorder %s490, 5
        %s492 = scalar_select %p491, %s490, 5
        %s493 = scalar_lea.vmem %s2, %s492
        %s494 = smul.u32 2, %s22
        %s495 = smul.u32 2, %s23
        %p496 = scmp.lt.s32.totalorder %s495, 1
        %s497 = scalar_select %p496, %s495, 1
        %s498 = scalar_lea.vmem %s3, %s497
        %s499 = smul.u32 2, %s23
        %s500 = smul.u32 2, %s23
        %p501 = scmp.lt.s32.totalorder %s500, 1
        %s502 = scalar_select %p501, %s500, 1
        %s503 = scalar_lea.vmem %s4, %s502
        %s504 = smul.u32 2, %s23
        %s505 = smul.u32 2, %s21
        %s506 = smul.u32 2, %s22
        %p507 = scmp.eq.s32.totalorder %s23, 0
        // Predicated region
        $region79: #{_lambda_.18} parent=73 // pred_check
          %p508 = pneg %p507
        $region80: #{_lambda_.18} parent=73 // pred_check_branch
          %510 = sbr.rel (%p508) target = $region82
        $region81: #{_lambda_.18} parent=73 // pred_region
          %511 = vst [vmem:[#allocation2] sm:$0xff] 0.0
          %512 = vst [vmem:[#allocation2 + $0x8] sm:$0xff] 0.0
          %513 = vst [vmem:[#allocation2 + $0x10] sm:$0xff] 0.0
          %514 = vst [vmem:[#allocation2 + $0x18] sm:$0xff] 0.0
        $region82: #{_lambda_.18} parent=73 // pred_fallthru
          _
        %v515 = vld [vmem:[%s485] sm:$0xff]
        %v516 = vld [vmem:[%s485 + $0x8] sm:$0xff]
        %v517 = vld [vmem:[%s485 + $0x10] sm:$0xff]
        %v518 = vld [vmem:[%s485 + $0x18] sm:$0xff]
        %v519 = vadd.f32 %v515, %v516
        %520 = vadd.xlane.f32.xlu0 %v519
        %v521 = vpop.xlane.xlu0 %520
        %v522 = vadd.f32 %v517, %v518
        %523 = vadd.xlane.f32.xlu0 %v522
        %v524 = vpop.xlane.xlu0 %523
        %v525 = vrcp.pop 256.0
        %v526 = vmul.f32 256.0, %v525
        %v527 = vsub.f32 1.0, %v526
        %v528 = vmul.f32 %v525, %v527
        %v529 = vadd.f32 %v525, %v528
        %vm530 = vweird.f32 %v525
        %v531 = vsel %vm530, %v525, %v529
        %v532 = vmul.f32 %v521, %v531
        %v533 = vmul.f32 %v524, %v531
        %v534 = vsub.f32 %v515, %v532
        %v535 = vsub.f32 %v516, %v532
        %v536 = vsub.f32 %v517, %v533
        %v537 = vsub.f32 %v518, %v533
        %v538 = vmul.f32 %v534, %v534
        %v539 = vmul.f32 %v535, %v535
        %v540 = vmul.f32 %v536, %v536
        %v541 = vmul.f32 %v537, %v537
        %v542 = vadd.f32 %v538, %v539
        %543 = vadd.xlane.f32.xlu0 %v542
        %v544 = vpop.xlane.xlu0 %543
        %v545 = vadd.f32 %v540, %v541
        %546 = vadd.xlane.f32.xlu0 %v545
        %v547 = vpop.xlane.xlu0 %546
        %v548 = vmul.f32 %v544, %v531
        %v549 = vmul.f32 %v547, %v531
        %v550 = vadd.f32 %v548, 1e-06
        %v551 = vadd.f32 %v549, 1e-06
        %v552 = vrsqrt.pop %v550
        %v553 = vmul.f32 %v552, %v550
        %v554 = vmul.f32 %v553, %v552
        %v555 = vmul.f32 0.5, %v554
        %v556 = vsub.f32 1.5, %v555
        %v557 = vmul.f32 %v552, %v556
        %vm558 = vweird.f32 %v550
        %vm559 = vweird.f32 %v552
        %vm560 = vmor %vm558, %vm559
        %v561 = vsel %vm560, %v552, %v557
        %v562 = vrsqrt.pop %v551
        %v563 = vmul.f32 %v562, %v551
        %v564 = vmul.f32 %v563, %v562
        %v565 = vmul.f32 0.5, %v564
        %v566 = vsub.f32 1.5, %v565
        %v567 = vmul.f32 %v562, %v566
        %vm568 = vweird.f32 %v551
        %vm569 = vweird.f32 %v562
        %vm570 = vmor %vm568, %vm569
        %v571 = vsel %vm570, %v562, %v567
        %v572 = vmul.f32 %v534, %v561
        %v573 = vmul.f32 %v535, %v561
        %v574 = vmul.f32 %v536, %v571
        %v575 = vmul.f32 %v537, %v571
        %v576 = vld [vmem:[%s498] sm:$0x3]
        %v578 = vperm.slane %v576, 0
        %v579 = vperm.slane %v576, 1
        %v582 = vmul.f32 %v572, %v578
        %v583 = vmul.f32 %v573, %v579
        %v584 = vmul.f32 %v574, %v578
        %v585 = vmul.f32 %v575, %v579
        %v586 = vld [vmem:[%s503] sm:$0x3]
        %v588 = vperm.slane %v586, 0
        %v589 = vperm.slane %v586, 1
        %v592 = vadd.f32 %v582, %v588
        %v593 = vadd.f32 %v583, %v589
        %v594 = vadd.f32 %v584, %v588
        %v595 = vadd.f32 %v585, %v589
        %v596 = vpack.c.bf16 %v594, %v592
        %v597 = vpack.c.bf16 %v595, %v593
        %v598 = vld [vmem:[#allocation2] sm:$0xff]
        %v599 = vld [vmem:[#allocation2 + $0x8] sm:$0xff]
        %v600 = vld [vmem:[#allocation2 + $0x10] sm:$0xff]
        %v601 = vld [vmem:[#allocation2 + $0x18] sm:$0xff]
        %v602 = vld [vmem:[%s430] sm:$0xff]
        %v603 = vld [vmem:[%s430 + $0x8] sm:$0xff]
        %v604 = vld [vmem:[%s430 + $0x10] sm:$0xff]
        %v605 = vld [vmem:[%s430 + $0x18] sm:$0xff]
        %v606 = vld [vmem:[%s430 + $0x20] sm:$0xff]
        %v607 = vld [vmem:[%s430 + $0x28] sm:$0xff]
        %v608 = vld [vmem:[%s430 + $0x30] sm:$0xff]
        %v609 = vld [vmem:[%s430 + $0x38] sm:$0xff]
        %v610 = vld [vmem:[%s430 + $0x40] sm:$0xff]
        %v611 = vld [vmem:[%s430 + $0x48] sm:$0xff]
        %v612 = vld [vmem:[%s430 + $0x50] sm:$0xff]
        %v613 = vld [vmem:[%s430 + $0x58] sm:$0xff]
        %v614 = vld [vmem:[%s430 + $0x60] sm:$0xff]
        %v615 = vld [vmem:[%s430 + $0x68] sm:$0xff]
        %v616 = vld [vmem:[%s430 + $0x70] sm:$0xff]
        %v617 = vld [vmem:[%s430 + $0x78] sm:$0xff]
        %v618 = vld [vmem:[%s430 + $0x80] sm:$0xff]
        %v619 = vld [vmem:[%s430 + $0x88] sm:$0xff]
        %v620 = vld [vmem:[%s430 + $0x90] sm:$0xff]
        %v621 = vld [vmem:[%s430 + $0x98] sm:$0xff]
        %v622 = vld [vmem:[%s430 + $0xa0] sm:$0xff]
        %v623 = vld [vmem:[%s430 + $0xa8] sm:$0xff]
        %v624 = vld [vmem:[%s430 + $0xb0] sm:$0xff]
        %v625 = vld [vmem:[%s430 + $0xb8] sm:$0xff]
        %v626 = vld [vmem:[%s430 + $0xc0] sm:$0xff]
        %v627 = vld [vmem:[%s430 + $0xc8] sm:$0xff]
        %v628 = vld [vmem:[%s430 + $0xd0] sm:$0xff]
        %v629 = vld [vmem:[%s430 + $0xd8] sm:$0xff]
        %v630 = vld [vmem:[%s430 + $0xe0] sm:$0xff]
        %v631 = vld [vmem:[%s430 + $0xe8] sm:$0xff]
        %v632 = vld [vmem:[%s430 + $0xf0] sm:$0xff]
        %v633 = vld [vmem:[%s430 + $0xf8] sm:$0xff]
        %v666 = vunpack.c.l.b16 %v602
        %v667 = vunpack.c.h.b16 %v602
        %v668 = vunpack.c.l.b16 %v603
        %v669 = vunpack.c.h.b16 %v603
        %v670 = vunpack.c.l.b16 %v604
        %v671 = vunpack.c.h.b16 %v604
        %v672 = vunpack.c.l.b16 %v605
        %v673 = vunpack.c.h.b16 %v605
        %v674 = vunpack.c.l.b16 %v606
        %v675 = vunpack.c.h.b16 %v606
        %v676 = vunpack.c.l.b16 %v607
        %v677 = vunpack.c.h.b16 %v607
        %v678 = vunpack.c.l.b16 %v608
        %v679 = vunpack.c.h.b16 %v608
        %v680 = vunpack.c.l.b16 %v609
        %v681 = vunpack.c.h.b16 %v609
        %v682 = vunpack.c.l.b16 %v610
        %v683 = vunpack.c.h.b16 %v610
        %v684 = vunpack.c.l.b16 %v611
        %v685 = vunpack.c.h.b16 %v611
        %v686 = vunpack.c.l.b16 %v612
        %v687 = vunpack.c.h.b16 %v612
        %v688 = vunpack.c.l.b16 %v613
        %v689 = vunpack.c.h.b16 %v613
        %v690 = vunpack.c.l.b16 %v614
        %v691 = vunpack.c.h.b16 %v614
        %v692 = vunpack.c.l.b16 %v615
        %v693 = vunpack.c.h.b16 %v615
        %v694 = vunpack.c.l.b16 %v616
        %v695 = vunpack.c.h.b16 %v616
        %v696 = vunpack.c.l.b16 %v617
        %v697 = vunpack.c.h.b16 %v617
        %v698 = vunpack.c.l.b16 %v618
        %v699 = vunpack.c.h.b16 %v618
        %v700 = vunpack.c.l.b16 %v619
        %v701 = vunpack.c.h.b16 %v619
        %v702 = vunpack.c.l.b16 %v620
        %v703 = vunpack.c.h.b16 %v620
        %v704 = vunpack.c.l.b16 %v621
        %v705 = vunpack.c.h.b16 %v621
        %v706 = vunpack.c.l.b16 %v622
        %v707 = vunpack.c.h.b16 %v622
        %v708 = vunpack.c.l.b16 %v623
        %v709 = vunpack.c.h.b16 %v623
        %v710 = vunpack.c.l.b16 %v624
        %v711 = vunpack.c.h.b16 %v624
        %v712 = vunpack.c.l.b16 %v625
        %v713 = vunpack.c.h.b16 %v625
        %v714 = vunpack.c.l.b16 %v626
        %v715 = vunpack.c.h.b16 %v626
        %v716 = vunpack.c.l.b16 %v627
        %v717 = vunpack.c.h.b16 %v627
        %v718 = vunpack.c.l.b16 %v628
        %v719 = vunpack.c.h.b16 %v628
        %v720 = vunpack.c.l.b16 %v629
        %v721 = vunpack.c.h.b16 %v629
        %v722 = vunpack.c.l.b16 %v630
        %v723 = vunpack.c.h.b16 %v630
        %v724 = vunpack.c.l.b16 %v631
        %v725 = vunpack.c.h.b16 %v631
        %v726 = vunpack.c.l.b16 %v632
        %v727 = vunpack.c.h.b16 %v632
        %v728 = vunpack.c.l.b16 %v633
        %v729 = vunpack.c.h.b16 %v633
        %v730 = vpack.c.b16 %v668, %v666
        %v731 = vpack.c.b16 %v669, %v667
        %v732 = vpack.c.b16 %v672, %v670
        %v733 = vpack.c.b16 %v673, %v671
        %v734 = vpack.c.b16 %v676, %v674
        %v735 = vpack.c.b16 %v677, %v675
        %v736 = vpack.c.b16 %v680, %v678
        %v737 = vpack.c.b16 %v681, %v679
        %v738 = vpack.c.b16 %v684, %v682
        %v739 = vpack.c.b16 %v685, %v683
        %v740 = vpack.c.b16 %v688, %v686
        %v741 = vpack.c.b16 %v689, %v687
        %v742 = vpack.c.b16 %v692, %v690
        %v743 = vpack.c.b16 %v693, %v691
        %v744 = vpack.c.b16 %v696, %v694
        %v745 = vpack.c.b16 %v697, %v695
        %v746 = vpack.c.b16 %v700, %v698
        %v747 = vpack.c.b16 %v701, %v699
        %v748 = vpack.c.b16 %v704, %v702
        %v749 = vpack.c.b16 %v705, %v703
        %v750 = vpack.c.b16 %v708, %v706
        %v751 = vpack.c.b16 %v709, %v707
        %v752 = vpack.c.b16 %v712, %v710
        %v753 = vpack.c.b16 %v713, %v711
        %v754 = vpack.c.b16 %v716, %v714
        %v755 = vpack.c.b16 %v717, %v715
        %v756 = vpack.c.b16 %v720, %v718
        %v757 = vpack.c.b16 %v721, %v719
        %v758 = vpack.c.b16 %v724, %v722
        %v759 = vpack.c.b16 %v725, %v723
        %v760 = vpack.c.b16 %v728, %v726
        %v761 = vpack.c.b16 %v729, %v727
        %794 = vmatpush.bf16.msra.mxu0 %v744
        %795 = vmatpush.bf16.msra.mxu0 %v742
        %796 = vmatpush.bf16.msra.mxu0 %v740
        %797 = vmatpush.bf16.msra.mxu0 %v738
        %798 = vmatpush.bf16.msra.mxu0 %v736
        %799 = vmatpush.bf16.msra.mxu0 %v734
        %800 = vmatpush.bf16.msra.mxu0 %v732
        %801 = vmatpush.bf16.msra.mxu0 %v730
        %802 = vmatmul.bf16.gmra.mxu0 %v596
        %v803 = vpop.f32.mrf.mxu0
        %v804 = vadd.f32 0.0, %v803
        %v805 = vpop.f32.mrf.mxu0
        %v806 = vadd.f32 0.0, %v805
        %807 = vdwg.mxu0
        %808 = vmatpush.bf16.msra.mxu0 %v760
        %809 = vmatpush.bf16.msra.mxu0 %v758
        %810 = vmatpush.bf16.msra.mxu0 %v756
        %811 = vmatpush.bf16.msra.mxu0 %v754
        %812 = vmatpush.bf16.msra.mxu0 %v752
        %813 = vmatpush.bf16.msra.mxu0 %v750
        %814 = vmatpush.bf16.msra.mxu0 %v748
        %815 = vmatpush.bf16.msra.mxu0 %v746
        %816 = vmatmul.bf16.gmra.mxu0 %v597
        %v817 = vpop.f32.mrf.mxu0
        %v818 = vadd.f32 %v804, %v817
        %v819 = vpop.f32.mrf.mxu0
        %v820 = vadd.f32 %v806, %v819
        %821 = vdwg.mxu0
        %822 = vmatpush.bf16.msra.mxu0 %v745
        %823 = vmatpush.bf16.msra.mxu0 %v743
        %824 = vmatpush.bf16.msra.mxu0 %v741
        %825 = vmatpush.bf16.msra.mxu0 %v739
        %826 = vmatpush.bf16.msra.mxu0 %v737
        %827 = vmatpush.bf16.msra.mxu0 %v735
        %828 = vmatpush.bf16.msra.mxu0 %v733
        %829 = vmatpush.bf16.msra.mxu0 %v731
        %830 = vmatmul.bf16.gmra.mxu0 %v596
        %v831 = vpop.f32.mrf.mxu0
        %v832 = vadd.f32 0.0, %v831
        %v833 = vpop.f32.mrf.mxu0
        %v834 = vadd.f32 0.0, %v833
        %835 = vdwg.mxu0
        %836 = vmatpush.bf16.msra.mxu0 %v761
        %837 = vmatpush.bf16.msra.mxu0 %v759
        %838 = vmatpush.bf16.msra.mxu0 %v757
        %839 = vmatpush.bf16.msra.mxu0 %v755
        %840 = vmatpush.bf16.msra.mxu0 %v753
        %841 = vmatpush.bf16.msra.mxu0 %v751
        %842 = vmatpush.bf16.msra.mxu0 %v749
        %843 = vmatpush.bf16.msra.mxu0 %v747
        %844 = vmatmul.bf16.gmra.mxu0 %v597
        %v845 = vpop.f32.mrf.mxu0
        %v846 = vadd.f32 %v832, %v845
        %v847 = vpop.f32.mrf.mxu0
        %v848 = vadd.f32 %v834, %v847
        %849 = vdwg.mxu0
        %v850 = vadd.f32 %v598, %v818
        %v851 = vadd.f32 %v599, %v846
        %v852 = vadd.f32 %v600, %v820
        %v853 = vadd.f32 %v601, %v848
        %854 = vst [vmem:[#allocation2] sm:$0xff] %v850
        %855 = vst [vmem:[#allocation2 + $0x8] sm:$0xff] %v851
        %856 = vst [vmem:[#allocation2 + $0x10] sm:$0xff] %v852
        %857 = vst [vmem:[#allocation2 + $0x18] sm:$0xff] %v853
        // Predicated region
        $region83: #{_lambda_.18} parent=73 // pred_check
          %p858 = pneg %p507
        $region84: #{_lambda_.18} parent=73 // pred_check_branch
          %860 = sbr.rel (%p858) target = $region86
        $region85: #{_lambda_.18} parent=73 // pred_region
          %v861 = vld [vmem:[#allocation2] sm:$0xff]
          %v862 = vld [vmem:[#allocation2 + $0x8] sm:$0xff]
          %v863 = vld [vmem:[#allocation2 + $0x10] sm:$0xff]
          %v864 = vld [vmem:[#allocation2 + $0x18] sm:$0xff]
          %v865 = vld [vmem:[%s493] sm:$0x3]
          %v867 = vperm.slane %v865, 0
          %v868 = vperm.slane %v865, 1
          %v871 = vadd.f32 %v861, %v867
          %v872 = vadd.f32 %v862, %v868
          %v873 = vadd.f32 %v863, %v867
          %v874 = vadd.f32 %v864, %v868
          %875 = vst [vmem:[%s475] sm:$0xff] %v871
          %876 = vst [vmem:[%s475 + $0x8] sm:$0xff] %v872
          %877 = vst [vmem:[%s475 + $0x10] sm:$0xff] %v873
          %878 = vst [vmem:[%s475 + $0x18] sm:$0xff] %v874
        $region86: #{_lambda_.18} parent=73 // pred_fallthru
          _
        %s879 = sand.u32 %s179, 1
        %s880 = sand.u32 %s179, 1
        %s881 = smul.addr %s880, 32
        %s882 = scalar_lea.vmem [#allocation4], %s881
        // Predicated region
        $region87: #{_lambda_.18} parent=73 // pred_check
          %p883 = pneg %p189
        $region88: #{_lambda_.18} parent=73 // pred_check_branch
          %885 = sbr.rel (%p883) target = $region90
        $region89: #{_lambda_.18} parent=73 // pred_region
          %s886 = smul.u32 2, %s21
          %s887 = smul.u32 2, %s22
          %s888 = smul.addr %s886, 6
          %s889 = sadd.s32 %s887, %s888
          %s890 = smul.addr %s889, 8
          %s891 = scalar_lea.vmem %s5, %s890
          // Predicated region
          $region91: #{_lambda_.18} parent=89 // pred_check
            _
          $region92: #{_lambda_.18} parent=89 // pred_check_branch
            %893 = sbr.rel (0) target = $region94
          $region93: #{_lambda_.18} parent=89 // pred_region
            // Predicated region
            $region95: #{_lambda_.18} parent=93 // pred_check
              _
            $region96: #{_lambda_.18} parent=93 // pred_check_branch
              %895 = sbr.rel (0) target = $region98
            $region97: #{_lambda_.18} parent=93 // pred_region
              loop: start=0, step=1, limit=1
              $region99: #{_lambda_.18} parent=97 // loop_pre_header
                _
              $region100: #{_lambda_.18} parent=97 // loop_header
                %s897 = sphi 0, %s901
                %p898 = scmp.ge.s32.totalorder %s897, 1
                %s902 = sphi %s882, %s882
                %s903 = sphi %s891, %s891
              $region101: #{_lambda_.18} parent=97 // loop_header_branch
                %900 = sbr.rel (%p898) target = $region105
              $region102: #{_lambda_.18} parent=97 // loop_body
                %v904 = vld [vmem:[%s902] sm:$0xff]
                %905 = vst [vmem:[%s903] sm:$0xff] %v904
                %v906 = vld [vmem:[%s902 + $0x8] sm:$0xff]
                %907 = vst [vmem:[%s903 + $0x8] sm:$0xff] %v906
                %v908 = vld [vmem:[%s902 + $0x10] sm:$0xff]
                %909 = vst [vmem:[%s903 + $0x30] sm:$0xff] %v908
                %v910 = vld [vmem:[%s902 + $0x18] sm:$0xff]
                %911 = vst [vmem:[%s903 + $0x38] sm:$0xff] %v910
              $region103: #{_lambda_.18} parent=97 // loop_footer
                %s901 = sadd.s32 1, %s897
              $region104: #{_lambda_.18} parent=97 // loop_footer_branch
                %896 = sbr.rel target = $region100
              $region105: #{_lambda_.18} parent=97 // loop_exit
                _
            $region98: #{_lambda_.18} parent=93 // pred_fallthru
              _
            // Predicated region
            $region106: #{_lambda_.18} parent=93 // pred_check
              _
            $region107: #{_lambda_.18} parent=93 // pred_check_branch
              %913 = sbr.rel target = $region109
            $region108: #{_lambda_.18} parent=93 // pred_region
              _
            $region109: #{_lambda_.18} parent=93 // pred_fallthru
              _
          $region94: #{_lambda_.18} parent=89 // pred_fallthru
            _
          %914 = vnop
        $region90: #{_lambda_.18} parent=73 // pred_fallthru
          _
      $region74: #{_lambda_.18} parent=5 // pred_fallthru
        _
      %p915 = scmp.le.s32.totalorder 2, %s11
      // Predicated region
      $region110: #{_lambda_.18} parent=5 // pred_check
        %p916 = pneg %p915
      $region111: #{_lambda_.18} parent=5 // pred_check_branch
        %918 = sbr.rel (%p916) target = $region113
      $region112: #{_lambda_.18} parent=5 // pred_region
        %s919 = ssub.s32 %s11, 2
        // Predicated region
        $region114: #{_lambda_.18} parent=112 // pred_check
          %p920 = pneg %p195
        $region115: #{_lambda_.18} parent=112 // pred_check_branch
          %922 = sbr.rel (%p920) target = $region117
        $region116: #{_lambda_.18} parent=112 // pred_region
          %s923 = sand.u32 %s180, 1
          %s924 = sand.u32 %s180, 1
          %s925 = smul.addr %s924, 32
          %s926 = scalar_lea.vmem [#allocation4], %s925
        $region117: #{_lambda_.18} parent=112 // pred_fallthru
          _
      $region113: #{_lambda_.18} parent=5 // pred_fallthru
        _
    $region6: #{_lambda_.18} parent=1 // loop_footer
      %s15 = sadd.s32 1, %s11
    $region7: #{_lambda_.18} parent=1 // loop_footer_branch
      %10 = sbr.rel target = $region3
    $region8: #{_lambda_.18} parent=1 // loop_exit
      _

// kernel: _lambda_.20
$region0: #{_lambda_.20}
  #allocation0 [shape = 'u32[]', space=smem, size = 0x4, offset = 0x4, fixed_abs, tag = 'smem constant byte address 0x4 - core index']
  #allocation1 [shape = 'u32[72,128]{1,0:T(1,128)}', space=vmem, size = 0x9000, scoped, tag = 'internal scratch']
  #allocation2 [shape = 'f32[16,256]{1,0:T(8,128)}', space=vmem, size = 0x4000, scoped, tag = 'scratch operand']
  %s0 = inlined_call_operand.vmem [shape: bf16[16,256], index: 0, kind: input, shape index: {}]
  %s1 = inlined_call_operand.vmem [shape: bf16[256,256], index: 1, kind: input, shape index: {}]
  %s2 = inlined_call_operand.vmem [shape: f32[1,256], index: 2, kind: input, shape index: {}]
  %s3 = inlined_call_operand.vmem [shape: f32[16,256], index: 3, kind: input, shape index: {}]
  %s4 = inlined_call_operand.vmem [shape: f32[16,256], index: 4, kind: output, shape index: {}]
  %s5 = sld [smem:[#allocation0]]
  $region34: #{_lambda_.20} parent=0
    _
  %s7 = ssub.s32 1, %s5
  %s8 = scalar_select 0, %s7, %s5
  // Predicated region
  $region2: #{_lambda_.20} parent=0 // pred_check
    _
  $region3: #{_lambda_.20} parent=0 // pred_check_branch
    %10 = sbr.rel (0) target = $region5
  $region4: #{_lambda_.20} parent=0 // pred_region
    _
  $region5: #{_lambda_.20} parent=0 // pred_fallthru
    _
  // Predicated region
  $region6: #{_lambda_.20} parent=0 // pred_check
    _
  $region7: #{_lambda_.20} parent=0 // pred_check_branch
    %12 = sbr.rel (0) target = $region9
  $region8: #{_lambda_.20} parent=0 // pred_region
    _
  $region9: #{_lambda_.20} parent=0 // pred_fallthru
    _
  // Predicated region
  $region10: #{_lambda_.20} parent=0 // pred_check
    _
  $region11: #{_lambda_.20} parent=0 // pred_check_branch
    %14 = sbr.rel (0) target = $region13
  $region12: #{_lambda_.20} parent=0 // pred_region
    _
  $region13: #{_lambda_.20} parent=0 // pred_fallthru
    _
  // Predicated region
  $region14: #{_lambda_.20} parent=0 // pred_check
    _
  $region15: #{_lambda_.20} parent=0 // pred_check_branch
    %16 = sbr.rel (0) target = $region17
  $region16: #{_lambda_.20} parent=0 // pred_region
    _
  $region17: #{_lambda_.20} parent=0 // pred_fallthru
    _
  %p17 = scmp.eq.s32.totalorder 0, 0
  // Predicated region
  $region18: #{_lambda_.20} parent=0 // pred_check
    %p18 = pneg %p17
  $region19: #{_lambda_.20} parent=0 // pred_check_branch
    %20 = sbr.rel (%p18) target = $region21
  $region20: #{_lambda_.20} parent=0 // pred_region
    %21 = vst [vmem:[#allocation2] sm:$0xff] 0.0
    %22 = vst [vmem:[#allocation2 + $0x8] sm:$0xff] 0.0
    %23 = vst [vmem:[#allocation2 + $0x10] sm:$0xff] 0.0
    %24 = vst [vmem:[#allocation2 + $0x18] sm:$0xff] 0.0
  $region21: #{_lambda_.20} parent=0 // pred_fallthru
    _
  %v25 = vld [vmem:[%s0] sm:$0xff]
  %v26 = vld [vmem:[%s0 + $0x8] sm:$0xff]
  %v27 = vld [vmem:[#allocation2] sm:$0xff]
  %v28 = vld [vmem:[#allocation2 + $0x8] sm:$0xff]
  %v29 = vld [vmem:[#allocation2 + $0x10] sm:$0xff]
  %v30 = vld [vmem:[#allocation2 + $0x18] sm:$0xff]
  %v31 = vld [vmem:[%s1] sm:$0xff]
  %v32 = vld [vmem:[%s1 + $0x8] sm:$0xff]
  %v33 = vld [vmem:[%s1 + $0x10] sm:$0xff]
  %v34 = vld [vmem:[%s1 + $0x18] sm:$0xff]
  %v35 = vld [vmem:[%s1 + $0x20] sm:$0xff]
  %v36 = vld [vmem:[%s1 + $0x28] sm:$0xff]
  %v37 = vld [vmem:[%s1 + $0x30] sm:$0xff]
  %v38 = vld [vmem:[%s1 + $0x38] sm:$0xff]
  %v39 = vld [vmem:[%s1 + $0x40] sm:$0xff]
  %v40 = vld [vmem:[%s1 + $0x48] sm:$0xff]
  %v41 = vld [vmem:[%s1 + $0x50] sm:$0xff]
  %v42 = vld [vmem:[%s1 + $0x58] sm:$0xff]
  %v43 = vld [vmem:[%s1 + $0x60] sm:$0xff]
  %v44 = vld [vmem:[%s1 + $0x68] sm:$0xff]
  %v45 = vld [vmem:[%s1 + $0x70] sm:$0xff]
  %v46 = vld [vmem:[%s1 + $0x78] sm:$0xff]
  %v47 = vld [vmem:[%s1 + $0x80] sm:$0xff]
  %v48 = vld [vmem:[%s1 + $0x88] sm:$0xff]
  %v49 = vld [vmem:[%s1 + $0x90] sm:$0xff]
  %v50 = vld [vmem:[%s1 + $0x98] sm:$0xff]
  %v51 = vld [vmem:[%s1 + $0xa0] sm:$0xff]
  %v52 = vld [vmem:[%s1 + $0xa8] sm:$0xff]
  %v53 = vld [vmem:[%s1 + $0xb0] sm:$0xff]
  %v54 = vld [vmem:[%s1 + $0xb8] sm:$0xff]
  %v55 = vld [vmem:[%s1 + $0xc0] sm:$0xff]
  %v56 = vld [vmem:[%s1 + $0xc8] sm:$0xff]
  %v57 = vld [vmem:[%s1 + $0xd0] sm:$0xff]
  %v58 = vld [vmem:[%s1 + $0xd8] sm:$0xff]
  %v59 = vld [vmem:[%s1 + $0xe0] sm:$0xff]
  %v60 = vld [vmem:[%s1 + $0xe8] sm:$0xff]
  %v61 = vld [vmem:[%s1 + $0xf0] sm:$0xff]
  %v62 = vld [vmem:[%s1 + $0xf8] sm:$0xff]
  %v65 = vunpack.c.l.b16 %v25
  %v66 = vunpack.c.h.b16 %v25
  %v67 = vunpack.c.l.b16 %v26
  %v68 = vunpack.c.h.b16 %v26
  %v69 = vpack.c.b16 %v67, %v65
  %v70 = vpack.c.b16 %v68, %v66
  %v105 = vunpack.c.l.b16 %v31
  %v106 = vunpack.c.h.b16 %v31
  %v107 = vunpack.c.l.b16 %v32
  %v108 = vunpack.c.h.b16 %v32
  %v109 = vunpack.c.l.b16 %v33
  %v110 = vunpack.c.h.b16 %v33
  %v111 = vunpack.c.l.b16 %v34
  %v112 = vunpack.c.h.b16 %v34
  %v113 = vunpack.c.l.b16 %v35
  %v114 = vunpack.c.h.b16 %v35
  %v115 = vunpack.c.l.b16 %v36
  %v116 = vunpack.c.h.b16 %v36
  %v117 = vunpack.c.l.b16 %v37
  %v118 = vunpack.c.h.b16 %v37
  %v119 = vunpack.c.l.b16 %v38
  %v120 = vunpack.c.h.b16 %v38
  %v121 = vunpack.c.l.b16 %v39
  %v122 = vunpack.c.h.b16 %v39
  %v123 = vunpack.c.l.b16 %v40
  %v124 = vunpack.c.h.b16 %v40
  %v125 = vunpack.c.l.b16 %v41
  %v126 = vunpack.c.h.b16 %v41
  %v127 = vunpack.c.l.b16 %v42
  %v128 = vunpack.c.h.b16 %v42
  %v129 = vunpack.c.l.b16 %v43
  %v130 = vunpack.c.h.b16 %v43
  %v131 = vunpack.c.l.b16 %v44
  %v132 = vunpack.c.h.b16 %v44
  %v133 = vunpack.c.l.b16 %v45
  %v134 = vunpack.c.h.b16 %v45
  %v135 = vunpack.c.l.b16 %v46
  %v136 = vunpack.c.h.b16 %v46
  %v137 = vunpack.c.l.b16 %v47
  %v138 = vunpack.c.h.b16 %v47
  %v139 = vunpack.c.l.b16 %v48
  %v140 = vunpack.c.h.b16 %v48
  %v141 = vunpack.c.l.b16 %v49
  %v142 = vunpack.c.h.b16 %v49
  %v143 = vunpack.c.l.b16 %v50
  %v144 = vunpack.c.h.b16 %v50
  %v145 = vunpack.c.l.b16 %v51
  %v146 = vunpack.c.h.b16 %v51
  %v147 = vunpack.c.l.b16 %v52
  %v148 = vunpack.c.h.b16 %v52
  %v149 = vunpack.c.l.b16 %v53
  %v150 = vunpack.c.h.b16 %v53
  %v151 = vunpack.c.l.b16 %v54
  %v152 = vunpack.c.h.b16 %v54
  %v153 = vunpack.c.l.b16 %v55
  %v154 = vunpack.c.h.b16 %v55
  %v155 = vunpack.c.l.b16 %v56
  %v156 = vunpack.c.h.b16 %v56
  %v157 = vunpack.c.l.b16 %v57
  %v158 = vunpack.c.h.b16 %v57
  %v159 = vunpack.c.l.b16 %v58
  %v160 = vunpack.c.h.b16 %v58
  %v161 = vunpack.c.l.b16 %v59
  %v162 = vunpack.c.h.b16 %v59
  %v163 = vunpack.c.l.b16 %v60
  %v164 = vunpack.c.h.b16 %v60
  %v165 = vunpack.c.l.b16 %v61
  %v166 = vunpack.c.h.b16 %v61
  %v167 = vunpack.c.l.b16 %v62
  %v168 = vunpack.c.h.b16 %v62
  %v169 = vpack.c.b16 %v107, %v105
  %v170 = vpack.c.b16 %v108, %v106
  %v171 = vpack.c.b16 %v111, %v109
  %v172 = vpack.c.b16 %v112, %v110
  %v173 = vpack.c.b16 %v115, %v113
  %v174 = vpack.c.b16 %v116, %v114
  %v175 = vpack.c.b16 %v119, %v117
  %v176 = vpack.c.b16 %v120, %v118
  %v177 = vpack.c.b16 %v123, %v121
  %v178 = vpack.c.b16 %v124, %v122
  %v179 = vpack.c.b16 %v127, %v125
  %v180 = vpack.c.b16 %v128, %v126
  %v181 = vpack.c.b16 %v131, %v129
  %v182 = vpack.c.b16 %v132, %v130
  %v183 = vpack.c.b16 %v135, %v133
  %v184 = vpack.c.b16 %v136, %v134
  %v185 = vpack.c.b16 %v139, %v137
  %v186 = vpack.c.b16 %v140, %v138
  %v187 = vpack.c.b16 %v143, %v141
  %v188 = vpack.c.b16 %v144, %v142
  %v189 = vpack.c.b16 %v147, %v145
  %v190 = vpack.c.b16 %v148, %v146
  %v191 = vpack.c.b16 %v151, %v149
  %v192 = vpack.c.b16 %v152, %v150
  %v193 = vpack.c.b16 %v155, %v153
  %v194 = vpack.c.b16 %v156, %v154
  %v195 = vpack.c.b16 %v159, %v157
  %v196 = vpack.c.b16 %v160, %v158
  %v197 = vpack.c.b16 %v163, %v161
  %v198 = vpack.c.b16 %v164, %v162
  %v199 = vpack.c.b16 %v167, %v165
  %v200 = vpack.c.b16 %v168, %v166
  %233 = vmatpush.bf16.msra.mxu0 %v183
  %234 = vmatpush.bf16.msra.mxu0 %v181
  %235 = vmatpush.bf16.msra.mxu0 %v179
  %236 = vmatpush.bf16.msra.mxu0 %v177
  %237 = vmatpush.bf16.msra.mxu0 %v175
  %238 = vmatpush.bf16.msra.mxu0 %v173
  %239 = vmatpush.bf16.msra.mxu0 %v171
  %240 = vmatpush.bf16.msra.mxu0 %v169
  %241 = vmatmul.bf16.gmra.mxu0 %v69
  %v242 = vpop.f32.mrf.mxu0
  %v243 = vadd.f32 0.0, %v242
  %v244 = vpop.f32.mrf.mxu0
  %v245 = vadd.f32 0.0, %v244
  %246 = vdwg.mxu0
  %247 = vmatpush.bf16.msra.mxu0 %v199
  %248 = vmatpush.bf16.msra.mxu0 %v197
  %249 = vmatpush.bf16.msra.mxu0 %v195
  %250 = vmatpush.bf16.msra.mxu0 %v193
  %251 = vmatpush.bf16.msra.mxu0 %v191
  %252 = vmatpush.bf16.msra.mxu0 %v189
  %253 = vmatpush.bf16.msra.mxu0 %v187
  %254 = vmatpush.bf16.msra.mxu0 %v185
  %255 = vmatmul.bf16.gmra.mxu0 %v70
  %v256 = vpop.f32.mrf.mxu0
  %v257 = vadd.f32 %v243, %v256
  %v258 = vpop.f32.mrf.mxu0
  %v259 = vadd.f32 %v245, %v258
  %260 = vdwg.mxu0
  %261 = vmatpush.bf16.msra.mxu0 %v184
  %262 = vmatpush.bf16.msra.mxu0 %v182
  %263 = vmatpush.bf16.msra.mxu0 %v180
  %264 = vmatpush.bf16.msra.mxu0 %v178
  %265 = vmatpush.bf16.msra.mxu0 %v176
  %266 = vmatpush.bf16.msra.mxu0 %v174
  %267 = vmatpush.bf16.msra.mxu0 %v172
  %268 = vmatpush.bf16.msra.mxu0 %v170
  %269 = vmatmul.bf16.gmra.mxu0 %v69
  %v270 = vpop.f32.mrf.mxu0
  %v271 = vadd.f32 0.0, %v270
  %v272 = vpop.f32.mrf.mxu0
  %v273 = vadd.f32 0.0, %v272
  %274 = vdwg.mxu0
  %275 = vmatpush.bf16.msra.mxu0 %v200
  %276 = vmatpush.bf16.msra.mxu0 %v198
  %277 = vmatpush.bf16.msra.mxu0 %v196
  %278 = vmatpush.bf16.msra.mxu0 %v194
  %279 = vmatpush.bf16.msra.mxu0 %v192
  %280 = vmatpush.bf16.msra.mxu0 %v190
  %281 = vmatpush.bf16.msra.mxu0 %v188
  %282 = vmatpush.bf16.msra.mxu0 %v186
  %283 = vmatmul.bf16.gmra.mxu0 %v70
  %v284 = vpop.f32.mrf.mxu0
  %v285 = vadd.f32 %v271, %v284
  %v286 = vpop.f32.mrf.mxu0
  %v287 = vadd.f32 %v273, %v286
  %288 = vdwg.mxu0
  %v289 = vadd.f32 %v27, %v257
  %v290 = vadd.f32 %v28, %v285
  %v291 = vadd.f32 %v29, %v259
  %v292 = vadd.f32 %v30, %v287
  %293 = vst [vmem:[#allocation2] sm:$0xff] %v289
  %294 = vst [vmem:[#allocation2 + $0x8] sm:$0xff] %v290
  %295 = vst [vmem:[#allocation2 + $0x10] sm:$0xff] %v291
  %296 = vst [vmem:[#allocation2 + $0x18] sm:$0xff] %v292
  // Predicated region
  $region22: #{_lambda_.20} parent=0 // pred_check
    %p297 = pneg %p17
  $region23: #{_lambda_.20} parent=0 // pred_check_branch
    %299 = sbr.rel (%p297) target = $region25
  $region24: #{_lambda_.20} parent=0 // pred_region
    %v300 = vld [vmem:[#allocation2] sm:$0xff]
    %v301 = vld [vmem:[#allocation2 + $0x8] sm:$0xff]
    %v302 = vld [vmem:[#allocation2 + $0x10] sm:$0xff]
    %v303 = vld [vmem:[#allocation2 + $0x18] sm:$0xff]
    %v304 = vld [vmem:[%s2] sm:$0x3]
    %v306 = vperm.slane %v304, 0
    %v307 = vperm.slane %v304, 1
    %v310 = vadd.f32 %v300, %v306
    %v311 = vadd.f32 %v301, %v307
    %v312 = vadd.f32 %v302, %v306
    %v313 = vadd.f32 %v303, %v307
    %v314 = vld [vmem:[%s3] sm:$0xff]
    %v315 = vld [vmem:[%s3 + $0x8] sm:$0xff]
    %v316 = vld [vmem:[%s3 + $0x10] sm:$0xff]
    %v317 = vld [vmem:[%s3 + $0x18] sm:$0xff]
    %v318 = vadd.f32 %v310, %v314
    %v319 = vadd.f32 %v311, %v315
    %v320 = vadd.f32 %v312, %v316
    %v321 = vadd.f32 %v313, %v317
    %322 = vst [vmem:[%s4] sm:$0xff] %v318
    %323 = vst [vmem:[%s4 + $0x8] sm:$0xff] %v319
    %324 = vst [vmem:[%s4 + $0x10] sm:$0xff] %v320
    %325 = vst [vmem:[%s4 + $0x18] sm:$0xff] %v321
  $region25: #{_lambda_.20} parent=0 // pred_fallthru
    _
  // Predicated region
  $region26: #{_lambda_.20} parent=0 // pred_check
    _
  $region27: #{_lambda_.20} parent=0 // pred_check_branch
    %327 = sbr.rel (0) target = $region29
  $region28: #{_lambda_.20} parent=0 // pred_region
    _
  $region29: #{_lambda_.20} parent=0 // pred_fallthru
    _
  // Predicated region
  $region30: #{_lambda_.20} parent=0 // pred_check
    _
  $region31: #{_lambda_.20} parent=0 // pred_check_branch
    %329 = sbr.rel (0) target = $region33
  $region32: #{_lambda_.20} parent=0 // pred_region
    _
  $region33: #{_lambda_.20} parent=0 // pred_fallthru
    _

// kernel: _lambda_.21
$region0: #{_lambda_.21}
  #allocation0 [shape = 'u32[]', space=smem, size = 0x4, offset = 0x4, fixed_abs, tag = 'smem constant byte address 0x4 - core index']
  #allocation1 [shape = 'u32[72,128]{1,0:T(1,128)}', space=vmem, size = 0x9000, scoped, tag = 'internal scratch']
  #allocation2 [shape = 'f32[16,256]{1,0:T(8,128)}', space=vmem, size = 0x4000, scoped, tag = 'scratch operand']
  %s0 = inlined_call_operand.vmem [shape: f32[16,256], index: 0, kind: input, shape index: {}]
  %s1 = inlined_call_operand.vmem [shape: bf16[256,1024], index: 1, kind: input, shape index: {}]
  %s2 = inlined_call_operand.vmem [shape: f32[1,1024], index: 2, kind: input, shape index: {}]
  %s3 = inlined_call_operand.vmem [shape: f32[1,256], index: 3, kind: input, shape index: {}]
  %s4 = inlined_call_operand.vmem [shape: f32[1,256], index: 4, kind: input, shape index: {}]
  %s5 = inlined_call_operand.vmem [shape: f32[16,1024], index: 5, kind: output, shape index: {}]
  %s6 = sld [smem:[#allocation0]]
  $region118: #{_lambda_.21} parent=0
    _
  %s8 = ssub.s32 1, %s6
  %s9 = scalar_select 0, %s8, %s6
  $region1: #{_lambda_.21} parent=0
    #allocation3 [shape = 'u8[262144]{0}', space=vmem, size = 0x40000, scoped, tag = 'input window, operand 1']
    #allocation4 [shape = 'u8[32768]{0}', space=vmem, size = 0x8000, scoped, tag = 'output window, operand 0']
    loop: start=0, step=1, limit=6
    $region2: #{_lambda_.21} parent=1 // loop_pre_header
      _
    $region3: #{_lambda_.21} parent=1 // loop_header
      %s11 = sphi 0, %s15
      %p12 = scmp.ge.s32.totalorder %s11, 6
      %s18 = sphi 0, %s37
      %s19 = sphi 0, %s33
      %s20 = sphi 0, %s29
      %s21 = sphi 0, %s18
      %s22 = sphi 0, %s19
      %s23 = sphi 0, %s20
      %s24 = sphi 0, %s21
      %s25 = sphi 0, %s22
      %s26 = sphi 0, %s23
      %s42 = sphi 0, %s44
      %s45 = sphi 0, %s42
      %s46 = sphi 0, %s45
      %s62 = sphi 0, %s46
      %s70 = sphi 0, %s72
      %s73 = sphi 0, %s70
      %s74 = sphi 0, %s73
      %s90 = sphi 0, %s74
      %s96 = sphi 0, %s98
      %s99 = sphi 0, %s96
      %s100 = sphi 0, %s99
      %s116 = sphi 0, %s100
      %s122 = sphi 0, %s124
      %s125 = sphi 0, %s122
      %s126 = sphi 0, %s125
      %s142 = sphi 0, %s126
      %s148 = sphi 0, %s150
      %s151 = sphi 0, %s148
      %s152 = sphi 0, %s151
      %s168 = sphi 0, %s152
      %s176 = sphi 0, %s178
      %s179 = sphi 0, %s176
      %s180 = sphi 0, %s179
      %s196 = sphi 0, %s180
    $region4: #{_lambda_.21} parent=1 // loop_header_branch
      %14 = sbr.rel (%p12) target = $region8
    $region5: #{_lambda_.21} parent=1 // loop_body
      %s16 = ssub.s32 %s11, 1
      %s17 = ssub.s32 %s11, 2
      %s27 = sadd.s32 1, %s20
      %p28 = scmp.ge.s32.totalorder %s27, 1
      %s29 = scalar_select %p28, 0, %s27
      %s30 = sadd.s32 1, %s19
      %s31 = scalar_select %p28, %s30, %s19
      %p32 = scmp.ge.s32.totalorder %s31, 4
      %s33 = scalar_select %p32, 0, %s31
      %s34 = sadd.s32 1, %s18
      %s35 = scalar_select %p32, %s34, %s18
      %p36 = scmp.ge.s32.totalorder %s35, 1
      %s37 = scalar_select %p36, 0, %s35
      %s38 = ssub.s32 %s18, %s37
      %s39 = ssub.s32 %s20, %s29
      %s40 = sor.u32 %s38, %s39
      %p41 = scmp.eq.s32.totalorder %s40, 0
      %s43 = sadd.s32 %s42, 1
      %s44 = scalar_select %p41, %s42, %s43
      %p47 = pneg %p41
      %p48 = scmp.eq.s32.totalorder %s11, 3
      %p49 = por %p47, %p48
      %p50 = scmp.ne.s32.totalorder %s42, %s45
      %p51 = scmp.eq.s32.totalorder %s11, 0
      %p52 = por %p50, %p51
      %p53 = scmp.ne.s32.totalorder %s42, %s45
      %p54 = scmp.eq.s32.totalorder %s16, 3
      %p55 = por %p53, %p54
      %p56 = scmp.ne.s32.totalorder %s45, %s46
      %p57 = scmp.eq.s32.totalorder %s16, 0
      %p58 = por %p56, %p57
      %p59 = scmp.ne.s32.totalorder %s45, %s46
      %p60 = scmp.eq.s32.totalorder %s17, 3
      %p61 = por %p59, %p60
      %p63 = scmp.ne.s32.totalorder %s46, %s62
      %p64 = scmp.eq.s32.totalorder %s17, 0
      %p65 = por %p63, %p64
      %s66 = ssub.s32 %s20, %s29
      %s67 = ssub.s32 %s19, %s33
      %s68 = sor.u32 %s66, %s67
      %p69 = scmp.eq.s32.totalorder %s68, 0
      %s71 = sadd.s32 %s70, 1
      %s72 = scalar_select %p69, %s70, %s71
      %p75 = pneg %p69
      %p76 = scmp.eq.s32.totalorder %s11, 3
      %p77 = por %p75, %p76
      %p78 = scmp.ne.s32.totalorder %s70, %s73
      %p79 = scmp.eq.s32.totalorder %s11, 0
      %p80 = por %p78, %p79
      %p81 = scmp.ne.s32.totalorder %s70, %s73
      %p82 = scmp.eq.s32.totalorder %s16, 3
      %p83 = por %p81, %p82
      %p84 = scmp.ne.s32.totalorder %s73, %s74
      %p85 = scmp.eq.s32.totalorder %s16, 0
      %p86 = por %p84, %p85
      %p87 = scmp.ne.s32.totalorder %s73, %s74
      %p88 = scmp.eq.s32.totalorder %s17, 3
      %p89 = por %p87, %p88
      %p91 = scmp.ne.s32.totalorder %s74, %s90
      %p92 = scmp.eq.s32.totalorder %s17, 0
      %p93 = por %p91, %p92
      %s94 = ssub.s32 %s19, %s33
      %p95 = scmp.eq.s32.totalorder %s94, 0
      %s97 = sadd.s32 %s96, 1
      %s98 = scalar_select %p95, %s96, %s97
      %p101 = pneg %p95
      %p102 = scmp.eq.s32.totalorder %s11, 3
      %p103 = por %p101, %p102
      %p104 = scmp.ne.s32.totalorder %s96, %s99
      %p105 = scmp.eq.s32.totalorder %s11, 0
      %p106 = por %p104, %p105
      %p107 = scmp.ne.s32.totalorder %s96, %s99
      %p108 = scmp.eq.s32.totalorder %s16, 3
      %p109 = por %p107, %p108
      %p110 = scmp.ne.s32.totalorder %s99, %s100
      %p111 = scmp.eq.s32.totalorder %s16, 0
      %p112 = por %p110, %p111
      %p113 = scmp.ne.s32.totalorder %s99, %s100
      %p114 = scmp.eq.s32.totalorder %s17, 3
      %p115 = por %p113, %p114
      %p117 = scmp.ne.s32.totalorder %s100, %s116
      %p118 = scmp.eq.s32.totalorder %s17, 0
      %p119 = por %p117, %p118
      %s120 = ssub.s32 %s20, %s29
      %p121 = scmp.eq.s32.totalorder %s120, 0
      %s123 = sadd.s32 %s122, 1
      %s124 = scalar_select %p121, %s122, %s123
      %p127 = pneg %p121
      %p128 = scmp.eq.s32.totalorder %s11, 3
      %p129 = por %p127, %p128
      %p130 = scmp.ne.s32.totalorder %s122, %s125
      %p131 = scmp.eq.s32.totalorder %s11, 0
      %p132 = por %p130, %p131
      %p133 = scmp.ne.s32.totalorder %s122, %s125
      %p134 = scmp.eq.s32.totalorder %s16, 3
      %p135 = por %p133, %p134
      %p136 = scmp.ne.s32.totalorder %s125, %s126
      %p137 = scmp.eq.s32.totalorder %s16, 0
      %p138 = por %p136, %p137
      %p139 = scmp.ne.s32.totalorder %s125, %s126
      %p140 = scmp.eq.s32.totalorder %s17, 3
      %p141 = por %p139, %p140
      %p143 = scmp.ne.s32.totalorder %s126, %s142
      %p144 = scmp.eq.s32.totalorder %s17, 0
      %p145 = por %p143, %p144
      %s146 = ssub.s32 %s20, %s29
      %p147 = scmp.eq.s32.totalorder %s146, 0
      %s149 = sadd.s32 %s148, 1
      %s150 = scalar_select %p147, %s148, %s149
      %p153 = pneg %p147
      %p154 = scmp.eq.s32.totalorder %s11, 3
      %p155 = por %p153, %p154
      %p156 = scmp.ne.s32.totalorder %s148, %s151
      %p157 = scmp.eq.s32.totalorder %s11, 0
      %p158 = por %p156, %p157
      %p159 = scmp.ne.s32.totalorder %s148, %s151
      %p160 = scmp.eq.s32.totalorder %s16, 3
      %p161 = por %p159, %p160
      %p162 = scmp.ne.s32.totalorder %s151, %s152
      %p163 = scmp.eq.s32.totalorder %s16, 0
      %p164 = por %p162, %p163
      %p165 = scmp.ne.s32.totalorder %s151, %s152
      %p166 = scmp.eq.s32.totalorder %s17, 3
      %p167 = por %p165, %p166
      %p169 = scmp.ne.s32.totalorder %s152, %s168
      %p170 = scmp.eq.s32.totalorder %s17, 0
      %p171 = por %p169, %p170
      %s172 = ssub.s32 %s18, %s37
      %s173 = ssub.s32 %s19, %s33
      %s174 = sor.u32 %s172, %s173
      %p175 = scmp.eq.s32.totalorder %s174, 0
      %s177 = sadd.s32 %s176, 1
      %s178 = scalar_select %p175, %s176, %s177
      %p181 = pneg %p175
      %p182 = scmp.eq.s32.totalorder %s11, 3
      %p183 = por %p181, %p182
      %p184 = scmp.ne.s32.totalorder %s176, %s179
      %p185 = scmp.eq.s32.totalorder %s11, 0
      %p186 = por %p184, %p185
      %p187 = scmp.ne.s32.totalorder %s176, %s179
      %p188 = scmp.eq.s32.totalorder %s16, 3
      %p189 = por %p187, %p188
      %p190 = scmp.ne.s32.totalorder %s179, %s180
      %p191 = scmp.eq.s32.totalorder %s16, 0
      %p192 = por %p190, %p191
      %p193 = scmp.ne.s32.totalorder %s179, %s180
      %p194 = scmp.eq.s32.totalorder %s17, 3
      %p195 = por %p193, %p194
      %p197 = scmp.ne.s32.totalorder %s180, %s196
      %p198 = scmp.eq.s32.totalorder %s17, 0
      %p199 = por %p197, %p198
      %p200 = scmp.le.s32.totalorder 1, %s11
      %p201 = scmp.lt.s32.totalorder %s11, 5
      %p202 = pnand %p200, %p201
      %p203 = pneg %p202
      // Predicated region
      $region9: #{_lambda_.21} parent=5 // pred_check
        _
      $region10: #{_lambda_.21} parent=5 // pred_check_branch
        %205 = sbr.rel (%p202) target = $region12
      $region11: #{_lambda_.21} parent=5 // pred_region
        %s206 = ssub.s32 %s11, 1
        // Predicated region
        $region13: #{_lambda_.21} parent=11 // pred_check
          %p207 = pneg %p58
        $region14: #{_lambda_.21} parent=11 // pred_check_branch
          %209 = sbr.rel (%p207) target = $region16
        $region15: #{_lambda_.21} parent=11 // pred_region
          %s210 = smul.u32 2, %s21
          %s211 = smul.u32 2, %s23
          %p212 = scmp.lt.s32.totalorder %s210, 1
          %s213 = scalar_select %p212, %s210, 1
          %p214 = scmp.lt.s32.totalorder %s211, 1
          %s215 = scalar_select %p214, %s211, 1
          %s216 = smul.addr %s213, 2
          %s217 = sadd.s32 %s215, %s216
          %s218 = smul.addr %s217, 8
          %s219 = scalar_lea.vmem %s0, %s218
          %s220 = smul.u32 2, %s21
          %s221 = smul.u32 2, %s23
        $region16: #{_lambda_.21} parent=11 // pred_fallthru
          _
        // Predicated region
        $region17: #{_lambda_.21} parent=11 // pred_check
          %p222 = pneg %p138
        $region18: #{_lambda_.21} parent=11 // pred_check_branch
          %224 = sbr.rel (%p222) target = $region20
        $region19: #{_lambda_.21} parent=11 // pred_region
          %s225 = smul.u32 2, %s23
          %p226 = scmp.lt.s32.totalorder %s225, 1
          %s227 = scalar_select %p226, %s225, 1
          %s228 = scalar_lea.vmem %s3, %s227
          %s229 = smul.u32 2, %s23
        $region20: #{_lambda_.21} parent=11 // pred_fallthru
          _
        // Predicated region
        $region21: #{_lambda_.21} parent=11 // pred_check
          %p230 = pneg %p164
        $region22: #{_lambda_.21} parent=11 // pred_check_branch
          %232 = sbr.rel (%p230) target = $region24
        $region23: #{_lambda_.21} parent=11 // pred_region
          %s233 = smul.u32 2, %s23
          %p234 = scmp.lt.s32.totalorder %s233, 1
          %s235 = scalar_select %p234, %s233, 1
          %s236 = scalar_lea.vmem %s4, %s235
          %s237 = smul.u32 2, %s23
        $region24: #{_lambda_.21} parent=11 // pred_fallthru
          _
      $region12: #{_lambda_.21} parent=5 // pred_fallthru
        _
      %p238 = scmp.lt.s32.totalorder %s11, 4
      // Predicated region
      $region25: #{_lambda_.21} parent=5 // pred_check
        %p239 = pneg %p238
      $region26: #{_lambda_.21} parent=5 // pred_check_branch
        %241 = sbr.rel (%p239) target = $region28
      $region27: #{_lambda_.21} parent=5 // pred_region
        // Predicated region
        $region29: #{_lambda_.21} parent=27 // pred_check
          %p242 = pneg %p80
        $region30: #{_lambda_.21} parent=27 // pred_check_branch
          %244 = sbr.rel (%p242) target = $region32
        $region31: #{_lambda_.21} parent=27 // pred_region
          %s245 = sand.u32 %s70, 1
          %s246 = sand.u32 %s70, 1
          %s247 = smul.addr %s246, 256
          %s248 = scalar_lea.vmem [#allocation3], %s247
          %s249 = smul.u32 32, %s20
          %s250 = smul.u32 2, %s19
          %s251 = smul.addr %s249, 8
          %s252 = sadd.s32 %s250, %s251
          %s253 = smul.addr %s252, 4
          %s254 = scalar_lea.vmem %s1, %s253
          // Predicated region
          $region33: #{_lambda_.21} parent=31 // pred_check
            _
          $region34: #{_lambda_.21} parent=31 // pred_check_branch
            %256 = sbr.rel (0) target = $region36
          $region35: #{_lambda_.21} parent=31 // pred_region
            // Predicated region
            $region37: #{_lambda_.21} parent=35 // pred_check
              _
            $region38: #{_lambda_.21} parent=35 // pred_check_branch
              %258 = sbr.rel (0) target = $region40
            $region39: #{_lambda_.21} parent=35 // pred_region
              // Predicated region
              $region52: #{_lambda_.21} parent=39 // pred_check
                _
              $region53: #{_lambda_.21} parent=39 // pred_check_branch
                %336 = sbr.rel (0) target = $region55
              $region54: #{_lambda_.21} parent=39 // pred_region
                loop: start=0, step=1, limit=1
                $region56: #{_lambda_.21} parent=54 // loop_pre_header
                  _
                $region57: #{_lambda_.21} parent=54 // loop_header
                  %s338 = sphi 0, %s342
                  %p339 = scmp.ge.s32.totalorder %s338, 1
                  %s343 = sphi %s254, %s254
                  %s344 = sphi %s248, %s248
                $region58: #{_lambda_.21} parent=54 // loop_header_branch
                  %341 = sbr.rel (%p339) target = $region62
                $region59: #{_lambda_.21} parent=54 // loop_body
                  %v345 = vld [vmem:[%s343] sm:$0xff]
                  %346 = vst [vmem:[%s344] sm:$0xff] %v345
                  %v347 = vld [vmem:[%s343 + $0x20] sm:$0xff]
                  %348 = vst [vmem:[%s344 + $0x8] sm:$0xff] %v347
                  %v349 = vld [vmem:[%s343 + $0x40] sm:$0xff]
                  %350 = vst [vmem:[%s344 + $0x10] sm:$0xff] %v349
                  %v351 = vld [vmem:[%s343 + $0x60] sm:$0xff]
                  %352 = vst [vmem:[%s344 + $0x18] sm:$0xff] %v351
                  %v353 = vld [vmem:[%s343 + $0x80] sm:$0xff]
                  %354 = vst [vmem:[%s344 + $0x20] sm:$0xff] %v353
                  %v355 = vld [vmem:[%s343 + $0xa0] sm:$0xff]
                  %356 = vst [vmem:[%s344 + $0x28] sm:$0xff] %v355
                  %v357 = vld [vmem:[%s343 + $0xc0] sm:$0xff]
                  %358 = vst [vmem:[%s344 + $0x30] sm:$0xff] %v357
                  %v359 = vld [vmem:[%s343 + $0xe0] sm:$0xff]
                  %360 = vst [vmem:[%s344 + $0x38] sm:$0xff] %v359
                  %v361 = vld [vmem:[%s343 + $0x100] sm:$0xff]
                  %362 = vst [vmem:[%s344 + $0x40] sm:$0xff] %v361
                  %v363 = vld [vmem:[%s343 + $0x120] sm:$0xff]
                  %364 = vst [vmem:[%s344 + $0x48] sm:$0xff] %v363
                  %v365 = vld [vmem:[%s343 + $0x140] sm:$0xff]
                  %366 = vst [vmem:[%s344 + $0x50] sm:$0xff] %v365
                  %v367 = vld [vmem:[%s343 + $0x160] sm:$0xff]
                  %368 = vst [vmem:[%s344 + $0x58] sm:$0xff] %v367
                  %v369 = vld [vmem:[%s343 + $0x180] sm:$0xff]
                  %370 = vst [vmem:[%s344 + $0x60] sm:$0xff] %v369
                  %v371 = vld [vmem:[%s343 + $0x1a0] sm:$0xff]
                  %372 = vst [vmem:[%s344 + $0x68] sm:$0xff] %v371
                  %v373 = vld [vmem:[%s343 + $0x1c0] sm:$0xff]
                  %374 = vst [vmem:[%s344 + $0x70] sm:$0xff] %v373
                  %v375 = vld [vmem:[%s343 + $0x1e0] sm:$0xff]
                  %376 = vst [vmem:[%s344 + $0x78] sm:$0xff] %v375
                  %v377 = vld [vmem:[%s343 + $0x200] sm:$0xff]
                  %378 = vst [vmem:[%s344 + $0x80] sm:$0xff] %v377
                  %v379 = vld [vmem:[%s343 + $0x220] sm:$0xff]
                  %380 = vst [vmem:[%s344 + $0x88] sm:$0xff] %v379
                  %v381 = vld [vmem:[%s343 + $0x240] sm:$0xff]
                  %382 = vst [vmem:[%s344 + $0x90] sm:$0xff] %v381
                  %v383 = vld [vmem:[%s343 + $0x260] sm:$0xff]
                  %384 = vst [vmem:[%s344 + $0x98] sm:$0xff] %v383
                  %v385 = vld [vmem:[%s343 + $0x280] sm:$0xff]
                  %386 = vst [vmem:[%s344 + $0xa0] sm:$0xff] %v385
                  %v387 = vld [vmem:[%s343 + $0x2a0] sm:$0xff]
                  %388 = vst [vmem:[%s344 + $0xa8] sm:$0xff] %v387
                  %v389 = vld [vmem:[%s343 + $0x2c0] sm:$0xff]
                  %390 = vst [vmem:[%s344 + $0xb0] sm:$0xff] %v389
                  %v391 = vld [vmem:[%s343 + $0x2e0] sm:$0xff]
                  %392 = vst [vmem:[%s344 + $0xb8] sm:$0xff] %v391
                  %v393 = vld [vmem:[%s343 + $0x300] sm:$0xff]
                  %394 = vst [vmem:[%s344 + $0xc0] sm:$0xff] %v393
                  %v395 = vld [vmem:[%s343 + $0x320] sm:$0xff]
                  %396 = vst [vmem:[%s344 + $0xc8] sm:$0xff] %v395
                  %v397 = vld [vmem:[%s343 + $0x340] sm:$0xff]
                  %398 = vst [vmem:[%s344 + $0xd0] sm:$0xff] %v397
                  %v399 = vld [vmem:[%s343 + $0x360] sm:$0xff]
                  %400 = vst [vmem:[%s344 + $0xd8] sm:$0xff] %v399
                  %v401 = vld [vmem:[%s343 + $0x380] sm:$0xff]
                  %402 = vst [vmem:[%s344 + $0xe0] sm:$0xff] %v401
                  %v403 = vld [vmem:[%s343 + $0x3a0] sm:$0xff]
                  %404 = vst [vmem:[%s344 + $0xe8] sm:$0xff] %v403
                  %v405 = vld [vmem:[%s343 + $0x3c0] sm:$0xff]
                  %406 = vst [vmem:[%s344 + $0xf0] sm:$0xff] %v405
                  %v407 = vld [vmem:[%s343 + $0x3e0] sm:$0xff]
                  %408 = vst [vmem:[%s344 + $0xf8] sm:$0xff] %v407
                $region60: #{_lambda_.21} parent=54 // loop_footer
                  %s342 = sadd.s32 1, %s338
                $region61: #{_lambda_.21} parent=54 // loop_footer_branch
                  %337 = sbr.rel target = $region57
                $region62: #{_lambda_.21} parent=54 // loop_exit
                  _
              $region55: #{_lambda_.21} parent=39 // pred_fallthru
                _
              // Predicated region
              $region63: #{_lambda_.21} parent=39 // pred_check
                _
              $region64: #{_lambda_.21} parent=39 // pred_check_branch
                %410 = sbr.rel target = $region66
              $region65: #{_lambda_.21} parent=39 // pred_region
                _
              $region66: #{_lambda_.21} parent=39 // pred_fallthru
                _
            $region40: #{_lambda_.21} parent=35 // pred_fallthru
              _
            // Predicated region
            $region41: #{_lambda_.21} parent=35 // pred_check
              _
            $region42: #{_lambda_.21} parent=35 // pred_check_branch
              %260 = sbr.rel target = $region44
            $region43: #{_lambda_.21} parent=35 // pred_region
              %s262 = ssub.s32 256, 1
              loop: start=0, step=1, limit=1
              $region45: #{_lambda_.21} parent=43 // loop_pre_header
                _
              $region46: #{_lambda_.21} parent=43 // loop_header
                %s264 = sphi 0, %s268
                %p265 = scmp.ge.s32.totalorder %s264, 1
                %s269 = sphi %s254, %s254
                %s270 = sphi %s248, %s248
              $region47: #{_lambda_.21} parent=43 // loop_header_branch
                %267 = sbr.rel (%p265) target = $region51
              $region48: #{_lambda_.21} parent=43 // loop_body
                %v271 = vld [vmem:[%s269] sm:%s262]
                %272 = vst [vmem:[%s270] sm:%s262] %v271
                %v273 = vld [vmem:[%s269 + $0x20] sm:%s262]
                %274 = vst [vmem:[%s270 + $0x8] sm:%s262] %v273
                %v275 = vld [vmem:[%s269 + $0x40] sm:%s262]
                %276 = vst [vmem:[%s270 + $0x10] sm:%s262] %v275
                %v277 = vld [vmem:[%s269 + $0x60] sm:%s262]
                %278 = vst [vmem:[%s270 + $0x18] sm:%s262] %v277
                %v279 = vld [vmem:[%s269 + $0x80] sm:%s262]
                %280 = vst [vmem:[%s270 + $0x20] sm:%s262] %v279
                %v281 = vld [vmem:[%s269 + $0xa0] sm:%s262]
                %282 = vst [vmem:[%s270 + $0x28] sm:%s262] %v281
                %v283 = vld [vmem:[%s269 + $0xc0] sm:%s262]
                %284 = vst [vmem:[%s270 + $0x30] sm:%s262] %v283
                %v285 = vld [vmem:[%s269 + $0xe0] sm:%s262]
                %286 = vst [vmem:[%s270 + $0x38] sm:%s262] %v285
                %v287 = vld [vmem:[%s269 + $0x100] sm:%s262]
                %288 = vst [vmem:[%s270 + $0x40] sm:%s262] %v287
                %v289 = vld [vmem:[%s269 + $0x120] sm:%s262]
                %290 = vst [vmem:[%s270 + $0x48] sm:%s262] %v289
                %v291 = vld [vmem:[%s269 + $0x140] sm:%s262]
                %292 = vst [vmem:[%s270 + $0x50] sm:%s262] %v291
                %v293 = vld [vmem:[%s269 + $0x160] sm:%s262]
                %294 = vst [vmem:[%s270 + $0x58] sm:%s262] %v293
                %v295 = vld [vmem:[%s269 + $0x180] sm:%s262]
                %296 = vst [vmem:[%s270 + $0x60] sm:%s262] %v295
                %v297 = vld [vmem:[%s269 + $0x1a0] sm:%s262]
                %298 = vst [vmem:[%s270 + $0x68] sm:%s262] %v297
                %v299 = vld [vmem:[%s269 + $0x1c0] sm:%s262]
                %300 = vst [vmem:[%s270 + $0x70] sm:%s262] %v299
                %v301 = vld [vmem:[%s269 + $0x1e0] sm:%s262]
                %302 = vst [vmem:[%s270 + $0x78] sm:%s262] %v301
                %v303 = vld [vmem:[%s269 + $0x200] sm:%s262]
                %304 = vst [vmem:[%s270 + $0x80] sm:%s262] %v303
                %v305 = vld [vmem:[%s269 + $0x220] sm:%s262]
                %306 = vst [vmem:[%s270 + $0x88] sm:%s262] %v305
                %v307 = vld [vmem:[%s269 + $0x240] sm:%s262]
                %308 = vst [vmem:[%s270 + $0x90] sm:%s262] %v307
                %v309 = vld [vmem:[%s269 + $0x260] sm:%s262]
                %310 = vst [vmem:[%s270 + $0x98] sm:%s262] %v309
                %v311 = vld [vmem:[%s269 + $0x280] sm:%s262]
                %312 = vst [vmem:[%s270 + $0xa0] sm:%s262] %v311
                %v313 = vld [vmem:[%s269 + $0x2a0] sm:%s262]
                %314 = vst [vmem:[%s270 + $0xa8] sm:%s262] %v313
                %v315 = vld [vmem:[%s269 + $0x2c0] sm:%s262]
                %316 = vst [vmem:[%s270 + $0xb0] sm:%s262] %v315
                %v317 = vld [vmem:[%s269 + $0x2e0] sm:%s262]
                %318 = vst [vmem:[%s270 + $0xb8] sm:%s262] %v317
                %v319 = vld [vmem:[%s269 + $0x300] sm:%s262]
                %320 = vst [vmem:[%s270 + $0xc0] sm:%s262] %v319
                %v321 = vld [vmem:[%s269 + $0x320] sm:%s262]
                %322 = vst [vmem:[%s270 + $0xc8] sm:%s262] %v321
                %v323 = vld [vmem:[%s269 + $0x340] sm:%s262]
                %324 = vst [vmem:[%s270 + $0xd0] sm:%s262] %v323
                %v325 = vld [vmem:[%s269 + $0x360] sm:%s262]
                %326 = vst [vmem:[%s270 + $0xd8] sm:%s262] %v325
                %v327 = vld [vmem:[%s269 + $0x380] sm:%s262]
                %328 = vst [vmem:[%s270 + $0xe0] sm:%s262] %v327
                %v329 = vld [vmem:[%s269 + $0x3a0] sm:%s262]
                %330 = vst [vmem:[%s270 + $0xe8] sm:%s262] %v329
                %v331 = vld [vmem:[%s269 + $0x3c0] sm:%s262]
                %332 = vst [vmem:[%s270 + $0xf0] sm:%s262] %v331
                %v333 = vld [vmem:[%s269 + $0x3e0] sm:%s262]
                %334 = vst [vmem:[%s270 + $0xf8] sm:%s262] %v333
              $region49: #{_lambda_.21} parent=43 // loop_footer
                %s268 = sadd.s32 1, %s264
              $region50: #{_lambda_.21} parent=43 // loop_footer_branch
                %263 = sbr.rel target = $region46
              $region51: #{_lambda_.21} parent=43 // loop_exit
                _
            $region44: #{_lambda_.21} parent=35 // pred_fallthru
              _
          $region36: #{_lambda_.21} parent=31 // pred_fallthru
            _
          %411 = vnop
        $region32: #{_lambda_.21} parent=27 // pred_fallthru
          _
        // Predicated region
        $region67: #{_lambda_.21} parent=27 // pred_check
          %p412 = pneg %p106
        $region68: #{_lambda_.21} parent=27 // pred_check_branch
          %414 = sbr.rel (%p412) target = $region70
        $region69: #{_lambda_.21} parent=27 // pred_region
          %s415 = smul.u32 2, %s19
          %p416 = scmp.lt.s32.totalorder %s415, 7
          %s417 = scalar_select %p416, %s415, 7
          %s418 = scalar_lea.vmem %s2, %s417
          %s419 = smul.u32 2, %s19
        $region70: #{_lambda_.21} parent=27 // pred_fallthru
          _
      $region28: #{_lambda_.21} parent=5 // pred_fallthru
        _
      %p420 = scmp.le.s32.totalorder 1, %s11
      %p421 = scmp.lt.s32.totalorder %s11, 5
      %p422 = pnand %p420, %p421
      %p423 = pneg %p422
      // Predicated region
      $region71: #{_lambda_.21} parent=5 // pred_check
        _
      $region72: #{_lambda_.21} parent=5 // pred_check_branch
        %425 = sbr.rel (%p422) target = $region74
      $region73: #{_lambda_.21} parent=5 // pred_region
        %s426 = ssub.s32 %s11, 1
        %s427 = sand.u32 %s73, 1
        %s428 = sand.u32 %s73, 1
        %s429 = smul.addr %s428, 256
        %s430 = scalar_lea.vmem [#allocation3], %s429
        // Predicated region
        $region75: #{_lambda_.21} parent=73 // pred_check
          %p431 = pneg %p86
        $region76: #{_lambda_.21} parent=73 // pred_check_branch
          %433 = sbr.rel (%p431) target = $region78
        $region77: #{_lambda_.21} parent=73 // pred_region
          _
        $region78: #{_lambda_.21} parent=73 // pred_fallthru
          _
        %s434 = smul.u32 2, %s21
        %s435 = smul.u32 2, %s23
        %p436 = scmp.lt.s32.totalorder %s434, 1
        %s437 = scalar_select %p436, %s434, 1
        %p438 = scmp.lt.s32.totalorder %s435, 1
        %s439 = scalar_select %p438, %s435, 1
        %s440 = smul.addr %s437, 2
        %s441 = sadd.s32 %s439, %s440
        %s442 = smul.addr %s441, 8
        %s443 = scalar_lea.vmem %s0, %s442
        %p444 = pneg %p58
        %p445 = pneg %p55
        %s446 = sand.u32 %s73, 1
        %s447 = sand.u32 %s73, 1
        %s448 = smul.addr %s447, 256
        %s449 = scalar_lea.vmem [#allocation3], %s448
        %p450 = pneg %p86
        %p451 = pneg %p83
        %s452 = smul.u32 2, %s22
        %p453 = scmp.lt.s32.totalorder %s452, 7
        %s454 = scalar_select %p453, %s452, 7
        %s455 = scalar_lea.vmem %s2, %s454
        %p456 = pneg %p112
        %p457 = pneg %p109
        %s458 = smul.u32 2, %s23
        %p459 = scmp.lt.s32.totalorder %s458, 1
        %s460 = scalar_select %p459, %s458, 1
        %s461 = scalar_lea.vmem %s3, %s460
        %p462 = pneg %p138
        %p463 = pneg %p135
        %s464 = smul.u32 2, %s23
        %p465 = scmp.lt.s32.totalorder %s464, 1
        %s466 = scalar_select %p465, %s464, 1
        %s467 = scalar_lea.vmem %s4, %s466
        %p468 = pneg %p164
        %p469 = pneg %p161
        %p470 = pneg %p192
        %p471 = pneg %p189
        %s472 = sand.u32 %s179, 1
        %s473 = sand.u32 %s179, 1
        %s474 = smul.addr %s473, 32
        %s475 = scalar_lea.vmem [#allocation4], %s474
        %s476 = smul.u32 2, %s21
        %s477 = smul.u32 2, %s23
        %p478 = scmp.lt.s32.totalorder %s476, 1
        %s479 = scalar_select %p478, %s476, 1
        %p480 = scmp.lt.s32.totalorder %s477, 1
        %s481 = scalar_select %p480, %s477, 1
        %s482 = smul.addr %s479, 2
        %s483 = sadd.s32 %s481, %s482
        %s484 = smul.addr %s483, 8
        %s485 = scalar_lea.vmem %s0, %s484
        %s486 = smul.u32 2, %s21
        %s487 = smul.u32 2, %s23
        %s488 = smul.u32 32, %s23
        %s489 = smul.u32 2, %s22
        %s490 = smul.u32 2, %s22
        %p491 = scmp.lt.s32.totalorder %s490, 7
        %s492 = scalar_select %p491, %s490, 7
        %s493 = scalar_lea.vmem %s2, %s492
        %s494 = smul.u32 2, %s22
        %s495 = smul.u32 2, %s23
        %p496 = scmp.lt.s32.totalorder %s495, 1
        %s497 = scalar_select %p496, %s495, 1
        %s498 = scalar_lea.vmem %s3, %s497
        %s499 = smul.u32 2, %s23
        %s500 = smul.u32 2, %s23
        %p501 = scmp.lt.s32.totalorder %s500, 1
        %s502 = scalar_select %p501, %s500, 1
        %s503 = scalar_lea.vmem %s4, %s502
        %s504 = smul.u32 2, %s23
        %s505 = smul.u32 2, %s21
        %s506 = smul.u32 2, %s22
        %p507 = scmp.eq.s32.totalorder %s23, 0
        // Predicated region
        $region79: #{_lambda_.21} parent=73 // pred_check
          %p508 = pneg %p507
        $region80: #{_lambda_.21} parent=73 // pred_check_branch
          %510 = sbr.rel (%p508) target = $region82
        $region81: #{_lambda_.21} parent=73 // pred_region
          %511 = vst [vmem:[#allocation2] sm:$0xff] 0.0
          %512 = vst [vmem:[#allocation2 + $0x8] sm:$0xff] 0.0
          %513 = vst [vmem:[#allocation2 + $0x10] sm:$0xff] 0.0
          %514 = vst [vmem:[#allocation2 + $0x18] sm:$0xff] 0.0
        $region82: #{_lambda_.21} parent=73 // pred_fallthru
          _
        %v515 = vld [vmem:[%s485] sm:$0xff]
        %v516 = vld [vmem:[%s485 + $0x8] sm:$0xff]
        %v517 = vld [vmem:[%s485 + $0x10] sm:$0xff]
        %v518 = vld [vmem:[%s485 + $0x18] sm:$0xff]
        %v519 = vadd.f32 %v515, %v516
        %520 = vadd.xlane.f32.xlu0 %v519
        %v521 = vpop.xlane.xlu0 %520
        %v522 = vadd.f32 %v517, %v518
        %523 = vadd.xlane.f32.xlu0 %v522
        %v524 = vpop.xlane.xlu0 %523
        %v525 = vrcp.pop 256.0
        %v526 = vmul.f32 256.0, %v525
        %v527 = vsub.f32 1.0, %v526
        %v528 = vmul.f32 %v525, %v527
        %v529 = vadd.f32 %v525, %v528
        %vm530 = vweird.f32 %v525
        %v531 = vsel %vm530, %v525, %v529
        %v532 = vmul.f32 %v521, %v531
        %v533 = vmul.f32 %v524, %v531
        %v534 = vsub.f32 %v515, %v532
        %v535 = vsub.f32 %v516, %v532
        %v536 = vsub.f32 %v517, %v533
        %v537 = vsub.f32 %v518, %v533
        %v538 = vmul.f32 %v534, %v534
        %v539 = vmul.f32 %v535, %v535
        %v540 = vmul.f32 %v536, %v536
        %v541 = vmul.f32 %v537, %v537
        %v542 = vadd.f32 %v538, %v539
        %543 = vadd.xlane.f32.xlu0 %v542
        %v544 = vpop.xlane.xlu0 %543
        %v545 = vadd.f32 %v540, %v541
        %546 = vadd.xlane.f32.xlu0 %v545
        %v547 = vpop.xlane.xlu0 %546
        %v548 = vmul.f32 %v544, %v531
        %v549 = vmul.f32 %v547, %v531
        %v550 = vadd.f32 %v548, 1e-06
        %v551 = vadd.f32 %v549, 1e-06
        %v552 = vrsqrt.pop %v550
        %v553 = vmul.f32 %v552, %v550
        %v554 = vmul.f32 %v553, %v552
        %v555 = vmul.f32 0.5, %v554
        %v556 = vsub.f32 1.5, %v555
        %v557 = vmul.f32 %v552, %v556
        %vm558 = vweird.f32 %v550
        %vm559 = vweird.f32 %v552
        %vm560 = vmor %vm558, %vm559
        %v561 = vsel %vm560, %v552, %v557
        %v562 = vrsqrt.pop %v551
        %v563 = vmul.f32 %v562, %v551
        %v564 = vmul.f32 %v563, %v562
        %v565 = vmul.f32 0.5, %v564
        %v566 = vsub.f32 1.5, %v565
        %v567 = vmul.f32 %v562, %v566
        %vm568 = vweird.f32 %v551
        %vm569 = vweird.f32 %v562
        %vm570 = vmor %vm568, %vm569
        %v571 = vsel %vm570, %v562, %v567
        %v572 = vmul.f32 %v534, %v561
        %v573 = vmul.f32 %v535, %v561
        %v574 = vmul.f32 %v536, %v571
        %v575 = vmul.f32 %v537, %v571
        %v576 = vld [vmem:[%s498] sm:$0x3]
        %v578 = vperm.slane %v576, 0
        %v579 = vperm.slane %v576, 1
        %v582 = vmul.f32 %v572, %v578
        %v583 = vmul.f32 %v573, %v579
        %v584 = vmul.f32 %v574, %v578
        %v585 = vmul.f32 %v575, %v579
        %v586 = vld [vmem:[%s503] sm:$0x3]
        %v588 = vperm.slane %v586, 0
        %v589 = vperm.slane %v586, 1
        %v592 = vadd.f32 %v582, %v588
        %v593 = vadd.f32 %v583, %v589
        %v594 = vadd.f32 %v584, %v588
        %v595 = vadd.f32 %v585, %v589
        %v596 = vpack.c.bf16 %v594, %v592
        %v597 = vpack.c.bf16 %v595, %v593
        %v598 = vld [vmem:[#allocation2] sm:$0xff]
        %v599 = vld [vmem:[#allocation2 + $0x8] sm:$0xff]
        %v600 = vld [vmem:[#allocation2 + $0x10] sm:$0xff]
        %v601 = vld [vmem:[#allocation2 + $0x18] sm:$0xff]
        %v602 = vld [vmem:[%s430] sm:$0xff]
        %v603 = vld [vmem:[%s430 + $0x8] sm:$0xff]
        %v604 = vld [vmem:[%s430 + $0x10] sm:$0xff]
        %v605 = vld [vmem:[%s430 + $0x18] sm:$0xff]
        %v606 = vld [vmem:[%s430 + $0x20] sm:$0xff]
        %v607 = vld [vmem:[%s430 + $0x28] sm:$0xff]
        %v608 = vld [vmem:[%s430 + $0x30] sm:$0xff]
        %v609 = vld [vmem:[%s430 + $0x38] sm:$0xff]
        %v610 = vld [vmem:[%s430 + $0x40] sm:$0xff]
        %v611 = vld [vmem:[%s430 + $0x48] sm:$0xff]
        %v612 = vld [vmem:[%s430 + $0x50] sm:$0xff]
        %v613 = vld [vmem:[%s430 + $0x58] sm:$0xff]
        %v614 = vld [vmem:[%s430 + $0x60] sm:$0xff]
        %v615 = vld [vmem:[%s430 + $0x68] sm:$0xff]
        %v616 = vld [vmem:[%s430 + $0x70] sm:$0xff]
        %v617 = vld [vmem:[%s430 + $0x78] sm:$0xff]
        %v618 = vld [vmem:[%s430 + $0x80] sm:$0xff]
        %v619 = vld [vmem:[%s430 + $0x88] sm:$0xff]
        %v620 = vld [vmem:[%s430 + $0x90] sm:$0xff]
        %v621 = vld [vmem:[%s430 + $0x98] sm:$0xff]
        %v622 = vld [vmem:[%s430 + $0xa0] sm:$0xff]
        %v623 = vld [vmem:[%s430 + $0xa8] sm:$0xff]
        %v624 = vld [vmem:[%s430 + $0xb0] sm:$0xff]
        %v625 = vld [vmem:[%s430 + $0xb8] sm:$0xff]
        %v626 = vld [vmem:[%s430 + $0xc0] sm:$0xff]
        %v627 = vld [vmem:[%s430 + $0xc8] sm:$0xff]
        %v628 = vld [vmem:[%s430 + $0xd0] sm:$0xff]
        %v629 = vld [vmem:[%s430 + $0xd8] sm:$0xff]
        %v630 = vld [vmem:[%s430 + $0xe0] sm:$0xff]
        %v631 = vld [vmem:[%s430 + $0xe8] sm:$0xff]
        %v632 = vld [vmem:[%s430 + $0xf0] sm:$0xff]
        %v633 = vld [vmem:[%s430 + $0xf8] sm:$0xff]
        %v666 = vunpack.c.l.b16 %v602
        %v667 = vunpack.c.h.b16 %v602
        %v668 = vunpack.c.l.b16 %v603
        %v669 = vunpack.c.h.b16 %v603
        %v670 = vunpack.c.l.b16 %v604
        %v671 = vunpack.c.h.b16 %v604
        %v672 = vunpack.c.l.b16 %v605
        %v673 = vunpack.c.h.b16 %v605
        %v674 = vunpack.c.l.b16 %v606
        %v675 = vunpack.c.h.b16 %v606
        %v676 = vunpack.c.l.b16 %v607
        %v677 = vunpack.c.h.b16 %v607
        %v678 = vunpack.c.l.b16 %v608
        %v679 = vunpack.c.h.b16 %v608
        %v680 = vunpack.c.l.b16 %v609
        %v681 = vunpack.c.h.b16 %v609
        %v682 = vunpack.c.l.b16 %v610
        %v683 = vunpack.c.h.b16 %v610
        %v684 = vunpack.c.l.b16 %v611
        %v685 = vunpack.c.h.b16 %v611
        %v686 = vunpack.c.l.b16 %v612
        %v687 = vunpack.c.h.b16 %v612
        %v688 = vunpack.c.l.b16 %v613
        %v689 = vunpack.c.h.b16 %v613
        %v690 = vunpack.c.l.b16 %v614
        %v691 = vunpack.c.h.b16 %v614
        %v692 = vunpack.c.l.b16 %v615
        %v693 = vunpack.c.h.b16 %v615
        %v694 = vunpack.c.l.b16 %v616
        %v695 = vunpack.c.h.b16 %v616
        %v696 = vunpack.c.l.b16 %v617
        %v697 = vunpack.c.h.b16 %v617
        %v698 = vunpack.c.l.b16 %v618
        %v699 = vunpack.c.h.b16 %v618
        %v700 = vunpack.c.l.b16 %v619
        %v701 = vunpack.c.h.b16 %v619
        %v702 = vunpack.c.l.b16 %v620
        %v703 = vunpack.c.h.b16 %v620
        %v704 = vunpack.c.l.b16 %v621
        %v705 = vunpack.c.h.b16 %v621
        %v706 = vunpack.c.l.b16 %v622
        %v707 = vunpack.c.h.b16 %v622
        %v708 = vunpack.c.l.b16 %v623
        %v709 = vunpack.c.h.b16 %v623
        %v710 = vunpack.c.l.b16 %v624
        %v711 = vunpack.c.h.b16 %v624
        %v712 = vunpack.c.l.b16 %v625
        %v713 = vunpack.c.h.b16 %v625
        %v714 = vunpack.c.l.b16 %v626
        %v715 = vunpack.c.h.b16 %v626
        %v716 = vunpack.c.l.b16 %v627
        %v717 = vunpack.c.h.b16 %v627
        %v718 = vunpack.c.l.b16 %v628
        %v719 = vunpack.c.h.b16 %v628
        %v720 = vunpack.c.l.b16 %v629
        %v721 = vunpack.c.h.b16 %v629
        %v722 = vunpack.c.l.b16 %v630
        %v723 = vunpack.c.h.b16 %v630
        %v724 = vunpack.c.l.b16 %v631
        %v725 = vunpack.c.h.b16 %v631
        %v726 = vunpack.c.l.b16 %v632
        %v727 = vunpack.c.h.b16 %v632
        %v728 = vunpack.c.l.b16 %v633
        %v729 = vunpack.c.h.b16 %v633
        %v730 = vpack.c.b16 %v668, %v666
        %v731 = vpack.c.b16 %v669, %v667
        %v732 = vpack.c.b16 %v672, %v670
        %v733 = vpack.c.b16 %v673, %v671
        %v734 = vpack.c.b16 %v676, %v674
        %v735 = vpack.c.b16 %v677, %v675
        %v736 = vpack.c.b16 %v680, %v678
        %v737 = vpack.c.b16 %v681, %v679
        %v738 = vpack.c.b16 %v684, %v682
        %v739 = vpack.c.b16 %v685, %v683
        %v740 = vpack.c.b16 %v688, %v686
        %v741 = vpack.c.b16 %v689, %v687
        %v742 = vpack.c.b16 %v692, %v690
        %v743 = vpack.c.b16 %v693, %v691
        %v744 = vpack.c.b16 %v696, %v694
        %v745 = vpack.c.b16 %v697, %v695
        %v746 = vpack.c.b16 %v700, %v698
        %v747 = vpack.c.b16 %v701, %v699
        %v748 = vpack.c.b16 %v704, %v702
        %v749 = vpack.c.b16 %v705, %v703
        %v750 = vpack.c.b16 %v708, %v706
        %v751 = vpack.c.b16 %v709, %v707
        %v752 = vpack.c.b16 %v712, %v710
        %v753 = vpack.c.b16 %v713, %v711
        %v754 = vpack.c.b16 %v716, %v714
        %v755 = vpack.c.b16 %v717, %v715
        %v756 = vpack.c.b16 %v720, %v718
        %v757 = vpack.c.b16 %v721, %v719
        %v758 = vpack.c.b16 %v724, %v722
        %v759 = vpack.c.b16 %v725, %v723
        %v760 = vpack.c.b16 %v728, %v726
        %v761 = vpack.c.b16 %v729, %v727
        %794 = vmatpush.bf16.msra.mxu0 %v744
        %795 = vmatpush.bf16.msra.mxu0 %v742
        %796 = vmatpush.bf16.msra.mxu0 %v740
        %797 = vmatpush.bf16.msra.mxu0 %v738
        %798 = vmatpush.bf16.msra.mxu0 %v736
        %799 = vmatpush.bf16.msra.mxu0 %v734
        %800 = vmatpush.bf16.msra.mxu0 %v732
        %801 = vmatpush.bf16.msra.mxu0 %v730
        %802 = vmatmul.bf16.gmra.mxu0 %v596
        %v803 = vpop.f32.mrf.mxu0
        %v804 = vadd.f32 0.0, %v803
        %v805 = vpop.f32.mrf.mxu0
        %v806 = vadd.f32 0.0, %v805
        %807 = vdwg.mxu0
        %808 = vmatpush.bf16.msra.mxu0 %v760
        %809 = vmatpush.bf16.msra.mxu0 %v758
        %810 = vmatpush.bf16.msra.mxu0 %v756
        %811 = vmatpush.bf16.msra.mxu0 %v754
        %812 = vmatpush.bf16.msra.mxu0 %v752
        %813 = vmatpush.bf16.msra.mxu0 %v750
        %814 = vmatpush.bf16.msra.mxu0 %v748
        %815 = vmatpush.bf16.msra.mxu0 %v746
        %816 = vmatmul.bf16.gmra.mxu0 %v597
        %v817 = vpop.f32.mrf.mxu0
        %v818 = vadd.f32 %v804, %v817
        %v819 = vpop.f32.mrf.mxu0
        %v820 = vadd.f32 %v806, %v819
        %821 = vdwg.mxu0
        %822 = vmatpush.bf16.msra.mxu0 %v745
        %823 = vmatpush.bf16.msra.mxu0 %v743
        %824 = vmatpush.bf16.msra.mxu0 %v741
        %825 = vmatpush.bf16.msra.mxu0 %v739
        %826 = vmatpush.bf16.msra.mxu0 %v737
        %827 = vmatpush.bf16.msra.mxu0 %v735
        %828 = vmatpush.bf16.msra.mxu0 %v733
        %829 = vmatpush.bf16.msra.mxu0 %v731
        %830 = vmatmul.bf16.gmra.mxu0 %v596
        %v831 = vpop.f32.mrf.mxu0
        %v832 = vadd.f32 0.0, %v831
        %v833 = vpop.f32.mrf.mxu0
        %v834 = vadd.f32 0.0, %v833
        %835 = vdwg.mxu0
        %836 = vmatpush.bf16.msra.mxu0 %v761
        %837 = vmatpush.bf16.msra.mxu0 %v759
        %838 = vmatpush.bf16.msra.mxu0 %v757
        %839 = vmatpush.bf16.msra.mxu0 %v755
        %840 = vmatpush.bf16.msra.mxu0 %v753
        %841 = vmatpush.bf16.msra.mxu0 %v751
        %842 = vmatpush.bf16.msra.mxu0 %v749
        %843 = vmatpush.bf16.msra.mxu0 %v747
        %844 = vmatmul.bf16.gmra.mxu0 %v597
        %v845 = vpop.f32.mrf.mxu0
        %v846 = vadd.f32 %v832, %v845
        %v847 = vpop.f32.mrf.mxu0
        %v848 = vadd.f32 %v834, %v847
        %849 = vdwg.mxu0
        %v850 = vadd.f32 %v598, %v818
        %v851 = vadd.f32 %v599, %v846
        %v852 = vadd.f32 %v600, %v820
        %v853 = vadd.f32 %v601, %v848
        %854 = vst [vmem:[#allocation2] sm:$0xff] %v850
        %855 = vst [vmem:[#allocation2 + $0x8] sm:$0xff] %v851
        %856 = vst [vmem:[#allocation2 + $0x10] sm:$0xff] %v852
        %857 = vst [vmem:[#allocation2 + $0x18] sm:$0xff] %v853
        // Predicated region
        $region83: #{_lambda_.21} parent=73 // pred_check
          %p858 = pneg %p507
        $region84: #{_lambda_.21} parent=73 // pred_check_branch
          %860 = sbr.rel (%p858) target = $region86
        $region85: #{_lambda_.21} parent=73 // pred_region
          %v861 = vld [vmem:[#allocation2] sm:$0xff]
          %v862 = vld [vmem:[#allocation2 + $0x8] sm:$0xff]
          %v863 = vld [vmem:[#allocation2 + $0x10] sm:$0xff]
          %v864 = vld [vmem:[#allocation2 + $0x18] sm:$0xff]
          %v865 = vld [vmem:[%s493] sm:$0x3]
          %v867 = vperm.slane %v865, 0
          %v868 = vperm.slane %v865, 1
          %v871 = vadd.f32 %v861, %v867
          %v872 = vadd.f32 %v862, %v868
          %v873 = vadd.f32 %v863, %v867
          %v874 = vadd.f32 %v864, %v868
          %v875 = vmul.f32 %v871, 0.5
          %v876 = vmul.f32 %v872, 0.5
          %v877 = vmul.f32 %v873, 0.5
          %v878 = vmul.f32 %v874, 0.5
          %v879 = vmul.f32 %v871, 0.044715
          %v880 = vmul.f32 %v872, 0.044715
          %v881 = vmul.f32 %v873, 0.044715
          %v882 = vmul.f32 %v874, 0.044715
          %v883 = vmul.f32 %v879, %v871
          %v884 = vmul.f32 %v880, %v872
          %v885 = vmul.f32 %v881, %v873
          %v886 = vmul.f32 %v882, %v874
          %v887 = vmul.f32 %v883, %v871
          %v888 = vmul.f32 %v884, %v872
          %v889 = vmul.f32 %v885, %v873
          %v890 = vmul.f32 %v886, %v874
          %v891 = vadd.f32 %v871, %v887
          %v892 = vadd.f32 %v872, %v888
          %v893 = vadd.f32 %v873, %v889
          %v894 = vadd.f32 %v874, %v890
          %v895 = vmul.f32 %v891, 0.7978846
          %v896 = vmul.f32 %v892, 0.7978846
          %v897 = vmul.f32 %v893, 0.7978846
          %v898 = vmul.f32 %v894, 0.7978846
          %v899 = vtanh.pop %v895
          %v900 = vtanh.pop %v896
          %v901 = vtanh.pop %v897
          %v902 = vtanh.pop %v898
          %v903 = vadd.f32 %v899, 1.0
          %v904 = vadd.f32 %v900, 1.0
          %v905 = vadd.f32 %v901, 1.0
          %v906 = vadd.f32 %v902, 1.0
          %v907 = vmul.f32 %v875, %v903
          %v908 = vmul.f32 %v876, %v904
          %v909 = vmul.f32 %v877, %v905
          %v910 = vmul.f32 %v878, %v906
          %911 = vst [vmem:[%s475] sm:$0xff] %v907
          %912 = vst [vmem:[%s475 + $0x8] sm:$0xff] %v908
          %913 = vst [vmem:[%s475 + $0x10] sm:$0xff] %v909
          %914 = vst [vmem:[%s475 + $0x18] sm:$0xff] %v910
        $region86: #{_lambda_.21} parent=73 // pred_fallthru
          _
        %s915 = sand.u32 %s179, 1
        %s916 = sand.u32 %s179, 1
        %s917 = smul.addr %s916, 32
        %s918 = scalar_lea.vmem [#allocation4], %s917
        // Predicated region
        $region87: #{_lambda_.21} parent=73 // pred_check
          %p919 = pneg %p189
        $region88: #{_lambda_.21} parent=73 // pred_check_branch
          %921 = sbr.rel (%p919) target = $region90
        $region89: #{_lambda_.21} parent=73 // pred_region
          %s922 = smul.u32 2, %s21
          %s923 = smul.u32 2, %s22
          %s924 = smul.addr %s922, 8
          %s925 = sadd.s32 %s923, %s924
          %s926 = smul.addr %s925, 8
          %s927 = scalar_lea.vmem %s5, %s926
          // Predicated region
          $region91: #{_lambda_.21} parent=89 // pred_check
            _
          $region92: #{_lambda_.21} parent=89 // pred_check_branch
            %929 = sbr.rel (0) target = $region94
          $region93: #{_lambda_.21} parent=89 // pred_region
            // Predicated region
            $region95: #{_lambda_.21} parent=93 // pred_check
              _
            $region96: #{_lambda_.21} parent=93 // pred_check_branch
              %931 = sbr.rel (0) target = $region98
            $region97: #{_lambda_.21} parent=93 // pred_region
              loop: start=0, step=1, limit=1
              $region99: #{_lambda_.21} parent=97 // loop_pre_header
                _
              $region100: #{_lambda_.21} parent=97 // loop_header
                %s933 = sphi 0, %s937
                %p934 = scmp.ge.s32.totalorder %s933, 1
                %s938 = sphi %s918, %s918
                %s939 = sphi %s927, %s927
              $region101: #{_lambda_.21} parent=97 // loop_header_branch
                %936 = sbr.rel (%p934) target = $region105
              $region102: #{_lambda_.21} parent=97 // loop_body
                %v940 = vld [vmem:[%s938] sm:$0xff]
                %941 = vst [vmem:[%s939] sm:$0xff] %v940
                %v942 = vld [vmem:[%s938 + $0x8] sm:$0xff]
                %943 = vst [vmem:[%s939 + $0x8] sm:$0xff] %v942
                %v944 = vld [vmem:[%s938 + $0x10] sm:$0xff]
                %945 = vst [vmem:[%s939 + $0x40] sm:$0xff] %v944
                %v946 = vld [vmem:[%s938 + $0x18] sm:$0xff]
                %947 = vst [vmem:[%s939 + $0x48] sm:$0xff] %v946
              $region103: #{_lambda_.21} parent=97 // loop_footer
                %s937 = sadd.s32 1, %s933
              $region104: #{_lambda_.21} parent=97 // loop_footer_branch
                %932 = sbr.rel target = $region100
              $region105: #{_lambda_.21} parent=97 // loop_exit
                _
            $region98: #{_lambda_.21} parent=93 // pred_fallthru
              _
            // Predicated region
            $region106: #{_lambda_.21} parent=93 // pred_check
              _
            $region107: #{_lambda_.21} parent=93 // pred_check_branch
              %949 = sbr.rel target = $region109
            $region108: #{_lambda_.21} parent=93 // pred_region
              _
            $region109: #{_lambda_.21} parent=93 // pred_fallthru
              _
          $region94: #{_lambda_.21} parent=89 // pred_fallthru
            _
          %950 = vnop
        $region90: #{_lambda_.21} parent=73 // pred_fallthru
          _
      $region74: #{_lambda_.21} parent=5 // pred_fallthru
        _
      %p951 = scmp.le.s32.totalorder 2, %s11
      // Predicated region
      $region110: #{_lambda_.21} parent=5 // pred_check
        %p952 = pneg %p951
      $region111: #{_lambda_.21} parent=5 // pred_check_branch
        %954 = sbr.rel (%p952) target = $region113
      $region112: #{_lambda_.21} parent=5 // pred_region
        %s955 = ssub.s32 %s11, 2
        // Predicated region
        $region114: #{_lambda_.21} parent=112 // pred_check
          %p956 = pneg %p195
        $region115: #{_lambda_.21} parent=112 // pred_check_branch
          %958 = sbr.rel (%p956) target = $region117
        $region116: #{_lambda_.21} parent=112 // pred_region
          %s959 = sand.u32 %s180, 1
          %s960 = sand.u32 %s180, 1
          %s961 = smul.addr %s960, 32
          %s962 = scalar_lea.vmem [#allocation4], %s961
        $region117: #{_lambda_.21} parent=112 // pred_fallthru
          _
      $region113: #{_lambda_.21} parent=5 // pred_fallthru
        _
    $region6: #{_lambda_.21} parent=1 // loop_footer
      %s15 = sadd.s32 1, %s11
    $region7: #{_lambda_.21} parent=1 // loop_footer_branch
      %10 = sbr.rel target = $region3
    $region8: #{_lambda_.21} parent=1 // loop_exit
      _

// kernel: _lambda_.23
$region0: #{_lambda_.23}
  #allocation0 [shape = 'u32[]', space=smem, size = 0x4, offset = 0x4, fixed_abs, tag = 'smem constant byte address 0x4 - core index']
  #allocation1 [shape = 'u32[72,128]{1,0:T(1,128)}', space=vmem, size = 0x9000, scoped, tag = 'internal scratch']
  #allocation2 [shape = 'f32[8,128]{1,0:T(8,128)}', space=vmem, size = 0x1000, scoped, tag = 'scratch operand']
  %s0 = inlined_call_operand.vmem [shape: f32[8,256], index: 0, kind: input, shape index: {}]
  %s1 = inlined_call_operand.vmem [shape: bf16[256,128], index: 1, kind: input, shape index: {}]
  %s2 = inlined_call_operand.vmem [shape: f32[1,128], index: 2, kind: input, shape index: {}]
  %s3 = inlined_call_operand.vmem [shape: f32[1,256], index: 3, kind: input, shape index: {}]
  %s4 = inlined_call_operand.vmem [shape: f32[1,256], index: 4, kind: input, shape index: {}]
  %s5 = inlined_call_operand.vmem [shape: f32[8,128], index: 5, kind: output, shape index: {}]
  %s6 = sld [smem:[#allocation0]]
  $region38: #{_lambda_.23} parent=0
    _
  %s8 = ssub.s32 1, %s6
  %s9 = scalar_select 0, %s8, %s6
  // Predicated region
  $region2: #{_lambda_.23} parent=0 // pred_check
    _
  $region3: #{_lambda_.23} parent=0 // pred_check_branch
    %11 = sbr.rel (0) target = $region5
  $region4: #{_lambda_.23} parent=0 // pred_region
    _
  $region5: #{_lambda_.23} parent=0 // pred_fallthru
    _
  // Predicated region
  $region6: #{_lambda_.23} parent=0 // pred_check
    _
  $region7: #{_lambda_.23} parent=0 // pred_check_branch
    %13 = sbr.rel (0) target = $region9
  $region8: #{_lambda_.23} parent=0 // pred_region
    _
  $region9: #{_lambda_.23} parent=0 // pred_fallthru
    _
  // Predicated region
  $region10: #{_lambda_.23} parent=0 // pred_check
    _
  $region11: #{_lambda_.23} parent=0 // pred_check_branch
    %15 = sbr.rel (0) target = $region13
  $region12: #{_lambda_.23} parent=0 // pred_region
    _
  $region13: #{_lambda_.23} parent=0 // pred_fallthru
    _
  // Predicated region
  $region14: #{_lambda_.23} parent=0 // pred_check
    _
  $region15: #{_lambda_.23} parent=0 // pred_check_branch
    %17 = sbr.rel (0) target = $region17
  $region16: #{_lambda_.23} parent=0 // pred_region
    _
  $region17: #{_lambda_.23} parent=0 // pred_fallthru
    _
  // Predicated region
  $region18: #{_lambda_.23} parent=0 // pred_check
    _
  $region19: #{_lambda_.23} parent=0 // pred_check_branch
    %19 = sbr.rel (0) target = $region21
  $region20: #{_lambda_.23} parent=0 // pred_region
    _
  $region21: #{_lambda_.23} parent=0 // pred_fallthru
    _
  %p20 = scmp.eq.s32.totalorder 0, 0
  // Predicated region
  $region22: #{_lambda_.23} parent=0 // pred_check
    %p21 = pneg %p20
  $region23: #{_lambda_.23} parent=0 // pred_check_branch
    %23 = sbr.rel (%p21) target = $region25
  $region24: #{_lambda_.23} parent=0 // pred_region
    %24 = vst [vmem:[#allocation2] sm:$0xff] 0.0
  $region25: #{_lambda_.23} parent=0 // pred_fallthru
    _
  %v25 = vld [vmem:[%s0] sm:$0xff]
  %v26 = vld [vmem:[%s0 + $0x8] sm:$0xff]
  %v27 = vadd.f32 %v25, %v26
  %28 = vadd.xlane.f32.xlu0 %v27
  %v29 = vpop.xlane.xlu0 %28
  %v30 = vrcp.pop 256.0
  %v31 = vmul.f32 256.0, %v30
  %v32 = vsub.f32 1.0, %v31
  %v33 = vmul.f32 %v30, %v32
  %v34 = vadd.f32 %v30, %v33
  %vm35 = vweird.f32 %v30
  %v36 = vsel %vm35, %v30, %v34
  %v37 = vmul.f32 %v29, %v36
  %v38 = vsub.f32 %v25, %v37
  %v39 = vsub.f32 %v26, %v37
  %v40 = vmul.f32 %v38, %v38
  %v41 = vmul.f32 %v39, %v39
  %v42 = vadd.f32 %v40, %v41
  %43 = vadd.xlane.f32.xlu0 %v42
  %v44 = vpop.xlane.xlu0 %43
  %v45 = vmul.f32 %v44, %v36
  %v46 = vadd.f32 %v45, 1e-06
  %v47 = vrsqrt.pop %v46
  %v48 = vmul.f32 %v47, %v46
  %v49 = vmul.f32 %v48, %v47
  %v50 = vmul.f32 0.5, %v49
  %v51 = vsub.f32 1.5, %v50
  %v52 = vmul.f32 %v47, %v51
  %vm53 = vweird.f32 %v46
  %vm54 = vweird.f32 %v47
  %vm55 = vmor %vm53, %vm54
  %v56 = vsel %vm55, %v47, %v52
  %v57 = vmul.f32 %v38, %v56
  %v58 = vmul.f32 %v39, %v56
  %v59 = vld [vmem:[%s3] sm:$0x3]
  %v61 = vperm.slane %v59, 0
  %v62 = vperm.slane %v59, 1
  %v65 = vmul.f32 %v57, %v61
  %v66 = vmul.f32 %v58, %v62
  %v67 = vld [vmem:[%s4] sm:$0x3]
  %v69 = vperm.slane %v67, 0
  %v70 = vperm.slane %v67, 1
  %v73 = vadd.f32 %v65, %v69
  %v74 = vadd.f32 %v66, %v70
  %v75 = vpack.c.bf16 %v73, %v73
  %v76 = vpack.c.bf16 %v74, %v74
  %v77 = vld [vmem:[#allocation2] sm:$0xff]
  %v78 = vld [vmem:[%s1] sm:$0xf]
  %v79 = vld [vmem:[%s1 + $0x4] sm:$0xf]
  %v80 = vld [vmem:[%s1 + $0x8] sm:$0xf]
  %v81 = vld [vmem:[%s1 + $0xc] sm:$0xf]
  %v82 = vld [vmem:[%s1 + $0x10] sm:$0xf]
  %v83 = vld [vmem:[%s1 + $0x14] sm:$0xf]
  %v84 = vld [vmem:[%s1 + $0x18] sm:$0xf]
  %v85 = vld [vmem:[%s1 + $0x1c] sm:$0xf]
  %v86 = vld [vmem:[%s1 + $0x20] sm:$0xf]
  %v87 = vld [vmem:[%s1 + $0x24] sm:$0xf]
  %v88 = vld [vmem:[%s1 + $0x28] sm:$0xf]
  %v89 = vld [vmem:[%s1 + $0x2c] sm:$0xf]
  %v90 = vld [vmem:[%s1 + $0x30] sm:$0xf]
  %v91 = vld [vmem:[%s1 + $0x34] sm:$0xf]
  %v92 = vld [vmem:[%s1 + $0x38] sm:$0xf]
  %v93 = vld [vmem:[%s1 + $0x3c] sm:$0xf]
  %v94 = vld [vmem:[%s1 + $0x40] sm:$0xf]
  %v95 = vld [vmem:[%s1 + $0x44] sm:$0xf]
  %v96 = vld [vmem:[%s1 + $0x48] sm:$0xf]
  %v97 = vld [vmem:[%s1 + $0x4c] sm:$0xf]
  %v98 = vld [vmem:[%s1 + $0x50] sm:$0xf]
  %v99 = vld [vmem:[%s1 + $0x54] sm:$0xf]
  %v100 = vld [vmem:[%s1 + $0x58] sm:$0xf]
  %v101 = vld [vmem:[%s1 + $0x5c] sm:$0xf]
  %v102 = vld [vmem:[%s1 + $0x60] sm:$0xf]
  %v103 = vld [vmem:[%s1 + $0x64] sm:$0xf]
  %v104 = vld [vmem:[%s1 + $0x68] sm:$0xf]
  %v105 = vld [vmem:[%s1 + $0x6c] sm:$0xf]
  %v106 = vld [vmem:[%s1 + $0x70] sm:$0xf]
  %v107 = vld [vmem:[%s1 + $0x74] sm:$0xf]
  %v108 = vld [vmem:[%s1 + $0x78] sm:$0xf]
  %v109 = vld [vmem:[%s1 + $0x7c] sm:$0xf]
  %v142 = vunpack.c.l.b16 %v78
  %v143 = vunpack.c.l.b16 %v79
  %v144 = vunpack.c.l.b16 %v80
  %v145 = vunpack.c.l.b16 %v81
  %v146 = vunpack.c.l.b16 %v82
  %v147 = vunpack.c.l.b16 %v83
  %v148 = vunpack.c.l.b16 %v84
  %v149 = vunpack.c.l.b16 %v85
  %v150 = vunpack.c.l.b16 %v86
  %v151 = vunpack.c.l.b16 %v87
  %v152 = vunpack.c.l.b16 %v88
  %v153 = vunpack.c.l.b16 %v89
  %v154 = vunpack.c.l.b16 %v90
  %v155 = vunpack.c.l.b16 %v91
  %v156 = vunpack.c.l.b16 %v92
  %v157 = vunpack.c.l.b16 %v93
  %v158 = vunpack.c.l.b16 %v94
  %v159 = vunpack.c.l.b16 %v95
  %v160 = vunpack.c.l.b16 %v96
  %v161 = vunpack.c.l.b16 %v97
  %v162 = vunpack.c.l.b16 %v98
  %v163 = vunpack.c.l.b16 %v99
  %v164 = vunpack.c.l.b16 %v100
  %v165 = vunpack.c.l.b16 %v101
  %v166 = vunpack.c.l.b16 %v102
  %v167 = vunpack.c.l.b16 %v103
  %v168 = vunpack.c.l.b16 %v104
  %v169 = vunpack.c.l.b16 %v105
  %v170 = vunpack.c.l.b16 %v106
  %v171 = vunpack.c.l.b16 %v107
  %v172 = vunpack.c.l.b16 %v108
  %v173 = vunpack.c.l.b16 %v109
  %v174 = vpack.c.b16 %v143, %v142
  %v175 = vpack.c.b16 %v145, %v144
  %v176 = vpack.c.b16 %v147, %v146
  %v177 = vpack.c.b16 %v149, %v148
  %v178 = vpack.c.b16 %v151, %v150
  %v179 = vpack.c.b16 %v153, %v152
  %v180 = vpack.c.b16 %v155, %v154
  %v181 = vpack.c.b16 %v157, %v156
  %v182 = vpack.c.b16 %v159, %v158
  %v183 = vpack.c.b16 %v161, %v160
  %v184 = vpack.c.b16 %v163, %v162
  %v185 = vpack.c.b16 %v165, %v164
  %v186 = vpack.c.b16 %v167, %v166
  %v187 = vpack.c.b16 %v169, %v168
  %v188 = vpack.c.b16 %v171, %v170
  %v189 = vpack.c.b16 %v173, %v172
  %206 = vmatpush.bf16.msra.mxu0 %v181
  %207 = vmatpush.bf16.msra.mxu0 %v180
  %208 = vmatpush.bf16.msra.mxu0 %v179
  %209 = vmatpush.bf16.msra.mxu0 %v178
  %210 = vmatpush.bf16.msra.mxu0 %v177
  %211 = vmatpush.bf16.msra.mxu0 %v176
  %212 = vmatpush.bf16.msra.mxu0 %v175
  %213 = vmatpush.bf16.msra.mxu0 %v174
  %214 = vmatmul.bf16.gmra.mxu0 %v75
  %v215 = vpop.f32.mrf.mxu0
  %v216 = vadd.f32 0.0, %v215
  %v217 = vpop.f32.mrf.mxu0
  %218 = vdwg.mxu0
  %219 = vmatpush.bf16.msra.mxu0 %v189
  %220 = vmatpush.bf16.msra.mxu0 %v188
  %221 = vmatpush.bf16.msra.mxu0 %v187
  %222 = vmatpush.bf16.msra.mxu0 %v186
  %223 = vmatpush.bf16.msra.mxu0 %v185
  %224 = vmatpush.bf16.msra.mxu0 %v184
  %225 = vmatpush.bf16.msra.mxu0 %v183
  %226 = vmatpush.bf16.msra.mxu0 %v182
  %227 = vmatmul.bf16.gmra.mxu0 %v76
  %v228 = vpop.f32.mrf.mxu0
  %v229 = vadd.f32 %v216, %v228
  %v230 = vpop.f32.mrf.mxu0
  %231 = vdwg.mxu0
  %v232 = vadd.f32 %v77, %v229
  %233 = vst [vmem:[#allocation2] sm:$0xff] %v232
  // Predicated region
  $region26: #{_lambda_.23} parent=0 // pred_check
    %p234 = pneg %p20
  $region27: #{_lambda_.23} parent=0 // pred_check_branch
    %236 = sbr.rel (%p234) target = $region29
  $region28: #{_lambda_.23} parent=0 // pred_region
    %v237 = vld [vmem:[#allocation2] sm:$0xff]
    %v238 = vld [vmem:[%s2] sm:$0x1]
    %v240 = vperm.slane %v238, 0
    %v242 = vadd.f32 %v237, %v240
    %v243 = vlaneseq
    %v244 = vand.u32 %v243, 127
    %vm245 = vcmp.lt.s32.totalorder %v244, 6
    %v246 = vsel %vm245, %v242, -1e+30
    %247 = vmax.xlane.f32.xlu0 %v246
    %v248 = vpop.xlane.xlu0 %247
    %v249 = vsub.f32 %v246, %v248
    %v250 = vmul.f32 %v249, 1.442695
    %v251 = vpow.pop %v250
    %252 = vadd.xlane.f32.xlu0 %v251
    %v253 = vpop.xlane.xlu0 %252
    %v254 = vrcp.pop %v253
    %v255 = vmul.f32 %v253, %v254
    %v256 = vsub.f32 1.0, %v255
    %v257 = vmul.f32 %v254, %v256
    %v258 = vadd.f32 %v254, %v257
    %vm259 = vweird.f32 %v253
    %vm260 = vweird.f32 %v254
    %vm261 = vmor %vm259, %vm260
    %v262 = vsel %vm261, %v254, %v258
    %v263 = vand.u32 2147483647, %v253
    %vm264 = vcmp.eq.f32.partialorder %v263, 8.507059e+37
    %v265 = vand.u32 %v253, 2147483648
    %v266 = vor.u32 1.1754944e-38, %v265
    %v267 = vsel %vm264, %v266, %v262
    %v268 = vmul.f32 %v251, %v267
    %269 = vst [vmem:[%s5] sm:$0xff] %v268
  $region29: #{_lambda_.23} parent=0 // pred_fallthru
    _
  // Predicated region
  $region30: #{_lambda_.23} parent=0 // pred_check
    _
  $region31: #{_lambda_.23} parent=0 // pred_check_branch
    %271 = sbr.rel (0) target = $region33
  $region32: #{_lambda_.23} parent=0 // pred_region
    _
  $region33: #{_lambda_.23} parent=0 // pred_fallthru
    _
  // Predicated region
  $region34: #{_lambda_.23} parent=0 // pred_check
    _
  $region35: #{_lambda_.23} parent=0 // pred_check_branch
    %273 = sbr.rel (0) target = $region37
  $region36: #{_lambda_.23} parent=0 // pred_region
    _
  $region37: #{_lambda_.23} parent=0 // pred_fallthru
    _

</llo_original>
